<compile_context>
chip_gen: v7x
topology: tpu7x:2x2x1
jax: 0.10.0
libtpu: 0.0.40
codegen_flags: <defaults>
</compile_context>

<pallas_src>
import jax
import jax.numpy as jnp
from jax import lax
from jax.experimental import pallas as pl
from jax.experimental.pallas import tpu as pltpu

# ---------------------------------------------------------------------------
# Geometry constants (MNIST 28x28 input is required by fc3 = 32*6*6).
# Flat index convention: conv1 output (y, x) lives at g = 28*y + x,
# conv2 output (y, x) lives at h = 13*y + x.
# ---------------------------------------------------------------------------
B_TILE = 8                               # images per grid step
IMG_H = 28
IMG_FLAT = IMG_H * IMG_H                 # 784
IMG_PAD = 896                            # 7*128: padded flat image (in VMEM)
F1 = 26 * IMG_H                          # 728: conv1 flat output width
TAPS1 = (0, 1, 2, 28, 29, 30, 56, 57, 58)        # 28*di + dj
MM1 = 698                                # pool1 window-max width (needs 697)
P1PAD = 192                              # padded pooled1 width (>=169, >=188)
TAPS2 = (0, 1, 2, 13, 14, 15, 26, 27, 28)        # 13*di + dj
F2 = 160                                 # conv2 flat output width (>= 155)
MM2 = 141                                # pool2 window-max width
NP2 = 36                                 # pooled2 spatial (6*6)
FC3_IN = 32 * NP2                        # 1152 = 9*128 (lane aligned)
OUT_PAD = 128                            # fc5 output padded to one vreg row


# ---------------------------------------------------------------------------
# The fused batched kernel.
# ---------------------------------------------------------------------------
def _mnist_fused_kernel(x_ref, w1_ref, b1_ref, s1_ref, w2_ref, b2_ref,
                        mask2_ref, s2_ref, w3_ref, b3_ref, w4_ref, b4_ref,
                        w5_ref, b5_ref, o_ref, img_sc, fc3_sc):
    f32, bf16 = jnp.float32, jnp.bfloat16
    B = B_TILE

    # Zero-pad the raw [B, 784] image block to 896 lanes inside VMEM.
    img_sc[:, IMG_FLAT:IMG_PAD] = jnp.zeros((B, IMG_PAD - IMG_FLAT), f32)
    img_sc[:, 0:IMG_FLAT] = x_ref[...]

    # conv1 + ReLU as ONE MXU matmul.  sh1 rows = (tap, image); w1_ref is the
    # [B*16, 9*B] block-diagonal weight, so output rows = (image, channel).
    sh1 = jnp.concatenate([img_sc[:, k:k + F1] for k in TAPS1], axis=0)
    o1 = jnp.dot(w1_ref[...], sh1.astype(bf16), preferred_element_type=f32)
    o1 = jnp.maximum(o1 + b1_ref[...], 0.0)                    # [B*16, 728]

    # maxpool1 2x2/2: windowed max + exact 0/1 selection matmul (M = B*16).
    mm1 = jnp.maximum(jnp.maximum(o1[:, 0:MM1], o1[:, 1:1 + MM1]),
                      jnp.maximum(o1[:, 28:28 + MM1], o1[:, 29:29 + MM1]))
    p1 = jnp.dot(mm1.astype(bf16), s1_ref[...],
                 preferred_element_type=f32)                   # [B*16, 192]

    # conv2 + ReLU as ONE MXU matmul: tap-stacked activations [9*B*16, 160]
    # against the [B*32, 9*B*16] block-diagonal weight; output rows (chan,img).
    sh2 = jnp.concatenate([p1[:, k:k + F2] for k in TAPS2], axis=0)
    acc2 = jnp.dot(w2_ref[...], sh2.astype(bf16), preferred_element_type=f32)
    # Ceil-mode pooling: mask lanes that are not real conv2 outputs to -1e30
    # (added after ReLU on the f32 accumulator, so valid lanes are untouched).
    o2 = jnp.maximum(acc2 + b2_ref[...], 0.0) + mask2_ref[...]  # [B*32, 160]

    # maxpool2 2x2/2 (ceil mode): windowed max + selection matmul.
    mm2 = jnp.maximum(jnp.maximum(o2[:, 0:MM2], o2[:, 1:1 + MM2]),
                      jnp.maximum(o2[:, 13:13 + MM2], o2[:, 14:14 + MM2]))
    p2 = jnp.dot(mm2.astype(bf16), s2_ref[...],
                 preferred_element_type=f32)                   # [B*32, 36]

    # Re-lay pool2 output (rows = chan*B + img) into a lane-dense [B, 1152]
    # scratch (torch flatten order, folded into w3's packing), then fc3 + ReLU
    # as ONE [B, 1152] x [1152, 120] matmul.
    for c in range(32):
        fc3_sc[:, c * NP2:(c + 1) * NP2] = p2[c * B:(c + 1) * B, :]
    h = jnp.dot(fc3_sc[...].astype(bf16), w3_ref[...],
                preferred_element_type=f32) + b3_ref[...]
    h = jnp.maximum(h, 0.0)                                    # [B, 120]

    # fc4 + ReLU
    h = jnp.maximum(
        jnp.dot(h.astype(bf16), w4_ref[...], preferred_element_type=f32)
        + b4_ref[...], 0.0)

    # fc5 (output padded to 128 lanes; sliced back to 10 in the wrapper).
    h = jnp.dot(h.astype(bf16), w5_ref[...],
                preferred_element_type=f32) + b5_ref[...]
    o_ref[...] = h                                             # [B, 128]


# ---------------------------------------------------------------------------
# Wrapper: one pallas_call, one batch tile (8 images) per grid step.
# ---------------------------------------------------------------------------
def simple_mnist_net(packed, x):
    """x: [N, 1, 28, 28] float32 -> logits [N, 10]."""
    n = x.shape[0]
    n_pad = -(-n // B_TILE) * B_TILE
    xf = x.astype(jnp.float32).reshape(n, IMG_FLAT)
    if n_pad != n:
        xf = jnp.pad(xf, ((0, n_pad - n), (0, 0)))

    const = lambda i: (0, 0)                       # noqa: E731
    resident = lambda shape: pl.BlockSpec(shape, const)   # noqa: E731

    out = pl.pallas_call(
        _mnist_fused_kernel,
        grid=(n_pad // B_TILE,),
        in_specs=[
            pl.BlockSpec((B_TILE, IMG_FLAT), lambda i: (i, 0)),   # images
            resident((B_TILE * 16, 9 * B_TILE)),                  # w1 blockdiag
            resident((B_TILE * 16, 1)),                           # b1 rows
            resident((MM1, P1PAD)),                               # pool1 select
            resident((B_TILE * 32, 9 * B_TILE * 16)),             # w2 blockdiag
            resident((B_TILE * 32, 1)),                           # b2 rows
            resident((1, F2)),                                    # conv2 mask
            resident((MM2, NP2)),                                 # pool2 select
            resident((FC3_IN, 120)),                              # w3
            resident((1, 120)),                                   # b3
            resident((120, 120)),                                 # w4
            resident((1, 120)),                                   # b4
            resident((120, OUT_PAD)),                             # w5 (padded)
            resident((1, OUT_PAD)),                               # b5 (padded)
        ],
        out_specs=pl.BlockSpec((B_TILE, OUT_PAD), lambda i: (i, 0)),
        out_shape=jax.ShapeDtypeStruct((n_pad, OUT_PAD), jnp.float32),
        scratch_shapes=[pltpu.VMEM((B_TILE, IMG_PAD), jnp.float32),
                        pltpu.VMEM((B_TILE, FC3_IN), jnp.float32)],
        compiler_params=pltpu.CompilerParams(
            dimension_semantics=("parallel",)),
    )(xf, packed["w1"], packed["b1"], packed["s1"], packed["w2"],
      packed["b2"], packed["mask2"], packed["s2"], packed["w3"],
      packed["b3"], packed["w4"], packed["b4"], packed["w5"], packed["b5"])
    return out[:n, :10]


# ---------------------------------------------------------------------------
# Parameters: PyTorch-style init + one-time packing / padding for the kernel.
# ---------------------------------------------------------------------------
def init_params(key):
    ks = jax.random.split(key, 10)

    def u(k, shape, fan_in):
        bound = 1.0 / jnp.sqrt(jnp.float32(fan_in))
        return jax.random.uniform(k, shape, jnp.float32, -bound, bound)

    return {
        "conv1_w": u(ks[0], (16, 1, 3, 3), 1 * 9),
        "conv1_b": u(ks[1], (16,), 1 * 9),
        "conv2_w": u(ks[2], (32, 16, 3, 3), 16 * 9),
        "conv2_b": u(ks[3], (32,), 16 * 9),
        "fc3_w":   u(ks[4], (120, 32 * 6 * 6), 32 * 6 * 6),
        "fc3_b":   u(ks[5], (120,), 32 * 6 * 6),
        "fc4_w":   u(ks[6], (120, 120), 120),
        "fc4_b":   u(ks[7], (120,), 120),
        "fc5_w":   u(ks[8], (10, 120), 120),
        "fc5_b":   u(ks[9], (10,), 120),
    }


def pack_params(p, b_tile=B_TILE):
    """One-time re-layout: block-diagonal conv weights (over the batch tile),
    [K, N] bf16 fc weights, fc5 output padding, and the constant pool-selection
    / ceil-mode mask tensors.  Biases stay f32."""
    f32, bf16 = jnp.float32, jnp.bfloat16
    Bt = b_tile

    # conv1 block-diagonal: rows m = img*16 + cout ; cols k = tap*Bt + img.
    w1 = p["conv1_w"].reshape(16, 9).astype(f32)
    b_g, c_g, t_g = jnp.meshgrid(jnp.arange(Bt), jnp.arange(16),
                                 jnp.arange(9), indexing="ij")
    w1bd = jnp.zeros((Bt * 16, 9 * Bt), f32)
    w1bd = w1bd.at[b_g * 16 + c_g, t_g * Bt + b_g].set(w1[c_g, t_g])
    b1 = jnp.tile(p["conv1_b"].astype(f32), Bt).reshape(Bt * 16, 1)

    # conv2 block-diagonal: rows m = cout*Bt + img ;
    #                       cols k = tap*(Bt*16) + img*16 + cin.
    w2 = p["conv2_w"].reshape(32, 16, 9).astype(f32)
    o_g, b2g, ci_g, t2g = jnp.meshgrid(jnp.arange(32), jnp.arange(Bt),
                                       jnp.arange(16), jnp.arange(9),
                                       indexing="ij")
    w2bd = jnp.zeros((Bt * 32, 9 * Bt * 16), f32)
    w2bd = w2bd.at[o_g * Bt + b2g,
                   t2g * (Bt * 16) + b2g * 16 + ci_g].set(w2[o_g, ci_g, t2g])
    b2 = jnp.repeat(p["conv2_b"].astype(f32), Bt).reshape(Bt * 32, 1)

    # fc weights stored [K, N]; fc5 padded to a full 128-lane output row.
    w3 = p["fc3_w"].T.astype(f32)                          # [1152, 120]
    b3 = p["fc3_b"].reshape(1, 120).astype(f32)
    w4 = p["fc4_w"].T.astype(f32)                          # [120, 120]
    b4 = p["fc4_b"].reshape(1, 120).astype(f32)
    w5 = jnp.zeros((120, OUT_PAD), f32).at[:, :10].set(p["fc5_w"].T)
    b5 = jnp.zeros((1, OUT_PAD), f32).at[0, :10].set(p["fc5_b"])

    # pool1 selection: output j = 13*py + px  <-  g = 56*py + 2*px.
    j = jnp.arange(169)
    g = 56 * (j // 13) + 2 * (j % 13)
    s1 = jnp.zeros((MM1, P1PAD), f32).at[g, j].set(1.0)
    # pool2 selection: output t = 6*py + px  <-  h = 26*py + 2*px.
    t = jnp.arange(NP2)
    hsel = 26 * (t // 6) + 2 * (t % 6)
    s2 = jnp.zeros((MM2, NP2), f32).at[hsel, t].set(1.0)
    # conv2 validity mask: flat h is a real 11x11 output iff h<143 and h%13<11.
    hidx = jnp.arange(F2)
    valid = (hidx < 143) & ((hidx % 13) < 11)
    mask2 = jnp.where(valid, 0.0, -1e30).reshape(1, F2).astype(f32)

    return dict(
        w1=w1bd.astype(bf16), b1=b1, s1=s1.astype(bf16),
        w2=w2bd.astype(bf16), b2=b2, mask2=mask2, s2=s2.astype(bf16),
        w3=w3.astype(bf16), b3=b3, w4=w4.astype(bf16), b4=b4,
        w5=w5.astype(bf16), b5=b5)


# ---------------------------------------------------------------------------
# Pure-JAX reference (PyTorch semantics) for a self-check.
# ---------------------------------------------------------------------------
def _ref_maxpool(y):
    n, c, h, w = y.shape
    y = jnp.pad(y, ((0, 0), (0, 0), (0, (-h) % 2), (0, (-w) % 2)),
                constant_values=-jnp.inf)
    return lax.reduce_window(y, -jnp.inf, lax.max, (1, 1, 2, 2), (1, 1, 2, 2),
                             "VALID")


def _reference_forward(params, x):
    dn = ("NCHW", "OIHW", "NCHW")
    y = lax.conv_general_dilated(x, params["conv1_w"], (1, 1), "VALID",
                                 dimension_numbers=dn)
    y = _ref_maxpool(jnp.maximum(y + params["conv1_b"][None, :, None, None], 0.0))
    y = lax.conv_general_dilated(y, params["conv2_w"], (1, 1), "VALID",
                                 dimension_numbers=dn)
    y = _ref_maxpool(jnp.maximum(y + params["conv2_b"][None, :, None, None], 0.0))
    y = y.reshape(y.shape[0], -1)
    y = jnp.maximum(y @ params["fc3_w"].T + params["fc3_b"], 0.0)
    y = jnp.maximum(y @ params["fc4_w"].T + params["fc4_b"], 0.0)
    return y @ params["fc5_w"].T + params["fc5_b"]


# ---------------------------------------------------------------------------
if __name__ == "__main__":
    key = jax.random.PRNGKey(0)
    pkey, xkey = jax.random.split(key)
    params = init_params(pkey)
    packed = pack_params(params)          # one-time weight re-layout
    # MNIST-shaped input (28x28 is required by fc3's 32*6*6 input dim).
    # N=10 gives 2 grid steps and exercises the batch-tile padding (10 -> 16).
    x = jax.random.normal(xkey, (10, 1, 28, 28), jnp.float32)

    logits = jax.block_until_ready(jax.jit(simple_mnist_net)(packed, x))
    assert logits.shape == (10, 10)
    assert bool(jnp.all(jnp.isfinite(logits)))

    # Self-check against a plain-JAX f32 reference (tolerance covers the
    # bf16 MXU operands with f32 accumulation).
    ref = jax.block_until_ready(jax.jit(_reference_forward)(params, x))
    err = float(jnp.max(jnp.abs(logits - ref)))
    tol = 1e-1 * (1.0 + float(jnp.max(jnp.abs(ref))))
    assert err <= tol, f"kernel vs reference mismatch: max_err={err} tol={tol}"

    print("KERNEL_OK")
</pallas_src>

<mosaic_0001>
module attributes {stable_mosaic.version = 11 : i64} {
  func.func @_mnist_fused_kernel(%arg0: i32, %arg1: memref<8x784xf32, #tpu.memory_space<vmem>>, %arg2: memref<128x72xbf16, #tpu.memory_space<vmem>>, %arg3: memref<128x1xf32, #tpu.memory_space<vmem>>, %arg4: memref<698x192xbf16, #tpu.memory_space<vmem>>, %arg5: memref<256x1152xbf16, #tpu.memory_space<vmem>>, %arg6: memref<256x1xf32, #tpu.memory_space<vmem>>, %arg7: memref<1x160xf32, #tpu.memory_space<vmem>>, %arg8: memref<141x36xbf16, #tpu.memory_space<vmem>>, %arg9: memref<1152x120xbf16, #tpu.memory_space<vmem>>, %arg10: memref<1x120xf32, #tpu.memory_space<vmem>>, %arg11: memref<120x120xbf16, #tpu.memory_space<vmem>>, %arg12: memref<1x120xf32, #tpu.memory_space<vmem>>, %arg13: memref<120x128xbf16, #tpu.memory_space<vmem>>, %arg14: memref<1x128xf32, #tpu.memory_space<vmem>>, %arg15: memref<8x128xf32, #tpu.memory_space<vmem>>, %arg16: memref<8x896xf32, #tpu.memory_space<vmem>>, %arg17: memref<8x1152xf32, #tpu.memory_space<vmem>>) attributes {dimension_semantics = [#tpu.dimension_semantics<parallel>], iteration_bounds = array<i64: 2>, scalar_prefetch = 0 : i64, scratch_operands = 2 : i64, tpu.core_type = #tpu.core_type<tc>, window_params = [{transform_indices = @transform_0, window_bounds = array<i64: 8, 784>}, {pipeline_mode = #tpu.pipeline_mode<synchronous>, transform_indices = @transform_1, window_bounds = array<i64: 128, 72>}, {pipeline_mode = #tpu.pipeline_mode<synchronous>, transform_indices = @transform_2, window_bounds = array<i64: 128, 1>}, {pipeline_mode = #tpu.pipeline_mode<synchronous>, transform_indices = @transform_3, window_bounds = array<i64: 698, 192>}, {pipeline_mode = #tpu.pipeline_mode<synchronous>, transform_indices = @transform_4, window_bounds = array<i64: 256, 1152>}, {pipeline_mode = #tpu.pipeline_mode<synchronous>, transform_indices = @transform_5, window_bounds = array<i64: 256, 1>}, {pipeline_mode = #tpu.pipeline_mode<synchronous>, transform_indices = @transform_6, window_bounds = array<i64: 1, 160>}, {pipeline_mode = #tpu.pipeline_mode<synchronous>, transform_indices = @transform_7, window_bounds = array<i64: 141, 36>}, {pipeline_mode = #tpu.pipeline_mode<synchronous>, transform_indices = @transform_8, window_bounds = array<i64: 1152, 120>}, {pipeline_mode = #tpu.pipeline_mode<synchronous>, transform_indices = @transform_9, window_bounds = array<i64: 1, 120>}, {pipeline_mode = #tpu.pipeline_mode<synchronous>, transform_indices = @transform_10, window_bounds = array<i64: 120, 120>}, {pipeline_mode = #tpu.pipeline_mode<synchronous>, transform_indices = @transform_11, window_bounds = array<i64: 1, 120>}, {pipeline_mode = #tpu.pipeline_mode<synchronous>, transform_indices = @transform_12, window_bounds = array<i64: 120, 128>}, {pipeline_mode = #tpu.pipeline_mode<synchronous>, transform_indices = @transform_13, window_bounds = array<i64: 1, 128>}, {transform_indices = @transform_14, window_bounds = array<i64: 8, 128>}]} {
    %cst = arith.constant 0.000000e+00 : f32
    %0 = vector.broadcast %cst : f32 to vector<8x112xf32>
    %c0 = arith.constant 0 : index
    %c784 = arith.constant 784 : index
    %1 = vector.load %arg16[%c0, %c784] : memref<8x896xf32, #tpu.memory_space<vmem>>, vector<8x112xf32>
    tpu.vector_store %arg16[%c0, %c784], %0 {strides = array<i32>} : memref<8x896xf32, #tpu.memory_space<vmem>>, vector<8x112xf32>,
    %c0_0 = arith.constant 0 : index
    %c0_1 = arith.constant 0 : index
    %2 = vector.load %arg1[%c0_0, %c0_1] : memref<8x784xf32, #tpu.memory_space<vmem>>, vector<8x784xf32>
    %c0_2 = arith.constant 0 : index
    %c0_3 = arith.constant 0 : index
    %3 = vector.load %arg16[%c0_2, %c0_3] : memref<8x896xf32, #tpu.memory_space<vmem>>, vector<8x784xf32>
    tpu.vector_store %arg16[%c0_2, %c0_3], %2 {strides = array<i32>} : memref<8x896xf32, #tpu.memory_space<vmem>>, vector<8x784xf32>,
    %c0_4 = arith.constant 0 : index
    %c0_5 = arith.constant 0 : index
    %4 = vector.load %arg16[%c0_4, %c0_5] : memref<8x896xf32, #tpu.memory_space<vmem>>, vector<8x728xf32>
    %c0_6 = arith.constant 0 : index
    %c1 = arith.constant 1 : index
    %5 = vector.load %arg16[%c0_6, %c1] : memref<8x896xf32, #tpu.memory_space<vmem>>, vector<8x728xf32>
    %c0_7 = arith.constant 0 : index
    %c2 = arith.constant 2 : index
    %6 = vector.load %arg16[%c0_7, %c2] : memref<8x896xf32, #tpu.memory_space<vmem>>, vector<8x728xf32>
    %c0_8 = arith.constant 0 : index
    %c28 = arith.constant 28 : index
    %7 = vector.load %arg16[%c0_8, %c28] : memref<8x896xf32, #tpu.memory_space<vmem>>, vector<8x728xf32>
    %c0_9 = arith.constant 0 : index
    %c29 = arith.constant 29 : index
    %8 = vector.load %arg16[%c0_9, %c29] : memref<8x896xf32, #tpu.memory_space<vmem>>, vector<8x728xf32>
    %c0_10 = arith.constant 0 : index
    %c30 = arith.constant 30 : index
    %9 = vector.load %arg16[%c0_10, %c30] : memref<8x896xf32, #tpu.memory_space<vmem>>, vector<8x728xf32>
    %c0_11 = arith.constant 0 : index
    %c56 = arith.constant 56 : index
    %10 = vector.load %arg16[%c0_11, %c56] : memref<8x896xf32, #tpu.memory_space<vmem>>, vector<8x728xf32>
    %c0_12 = arith.constant 0 : index
    %c57 = arith.constant 57 : index
    %11 = vector.load %arg16[%c0_12, %c57] : memref<8x896xf32, #tpu.memory_space<vmem>>, vector<8x728xf32>
    %c0_13 = arith.constant 0 : index
    %c58 = arith.constant 58 : index
    %12 = vector.load %arg16[%c0_13, %c58] : memref<8x896xf32, #tpu.memory_space<vmem>>, vector<8x728xf32>
    %13 = tpu.concatenate %4, %5, %6, %7, %8, %9, %10, %11, %12 in 0 : vector<8x728xf32>, vector<8x728xf32>, vector<8x728xf32>, vector<8x728xf32>, vector<8x728xf32>, vector<8x728xf32>, vector<8x728xf32>, vector<8x728xf32>, vector<8x728xf32> -> vector<72x728xf32>
    %c0_14 = arith.constant 0 : index
    %c0_15 = arith.constant 0 : index
    %14 = vector.load %arg2[%c0_14, %c0_15] : memref<128x72xbf16, #tpu.memory_space<vmem>>, vector<128x72xbf16>
    %15 = arith.truncf %13 : vector<72x728xf32> to vector<72x728xbf16>
    %cst_16 = arith.constant dense<0.000000e+00> : vector<128x728xf32>
    %16 = tpu.matmul %14, %15, %cst_16 {dimension_numbers = #tpu.dot_dimension_numbers<[1], [0], [0], [1], [0, 0, 1, 1], [], []>} : vector<128x72xbf16>, vector<72x728xbf16>, vector<128x728xf32> -> vector<128x728xf32>
    %c0_17 = arith.constant 0 : index
    %c0_18 = arith.constant 0 : index
    %17 = vector.load %arg3[%c0_17, %c0_18] : memref<128x1xf32, #tpu.memory_space<vmem>>, vector<128x1xf32>
    %18 = vector.broadcast %17 : vector<128x1xf32> to vector<128x728xf32>
    %19 = arith.addf %16, %18 : vector<128x728xf32>
    %cst_19 = arith.constant 0.000000e+00 : f32
    %20 = vector.broadcast %cst_19 : f32 to vector<128x728xf32>
    %21 = arith.maximumf %19, %20 : vector<128x728xf32>
    %22 = vector.extract_strided_slice %21 {offsets = [0, 0], sizes = [128, 698], strides = [1, 1]} : vector<128x728xf32> to vector<128x698xf32>
    %23 = vector.extract_strided_slice %21 {offsets = [0, 1], sizes = [128, 698], strides = [1, 1]} : vector<128x728xf32> to vector<128x698xf32>
    %24 = arith.maximumf %22, %23 : vector<128x698xf32>
    %25 = vector.extract_strided_slice %21 {offsets = [0, 28], sizes = [128, 698], strides = [1, 1]} : vector<128x728xf32> to vector<128x698xf32>
    %26 = vector.extract_strided_slice %21 {offsets = [0, 29], sizes = [128, 698], strides = [1, 1]} : vector<128x728xf32> to vector<128x698xf32>
    %27 = arith.maximumf %25, %26 : vector<128x698xf32>
    %28 = arith.maximumf %24, %27 : vector<128x698xf32>
    %29 = arith.truncf %28 : vector<128x698xf32> to vector<128x698xbf16>
    %c0_20 = arith.constant 0 : index
    %c0_21 = arith.constant 0 : index
    %30 = vector.load %arg4[%c0_20, %c0_21] : memref<698x192xbf16, #tpu.memory_space<vmem>>, vector<698x192xbf16>
    %cst_22 = arith.constant dense<0.000000e+00> : vector<128x192xf32>
    %31 = tpu.matmul %29, %30, %cst_22 {dimension_numbers = #tpu.dot_dimension_numbers<[1], [0], [0], [1], [0, 0, 1, 1], [], []>} : vector<128x698xbf16>, vector<698x192xbf16>, vector<128x192xf32> -> vector<128x192xf32>
    %32 = vector.extract_strided_slice %31 {offsets = [0, 0], sizes = [128, 160], strides = [1, 1]} : vector<128x192xf32> to vector<128x160xf32>
    %33 = vector.extract_strided_slice %31 {offsets = [0, 1], sizes = [128, 160], strides = [1, 1]} : vector<128x192xf32> to vector<128x160xf32>
    %34 = vector.extract_strided_slice %31 {offsets = [0, 2], sizes = [128, 160], strides = [1, 1]} : vector<128x192xf32> to vector<128x160xf32>
    %35 = vector.extract_strided_slice %31 {offsets = [0, 13], sizes = [128, 160], strides = [1, 1]} : vector<128x192xf32> to vector<128x160xf32>
    %36 = vector.extract_strided_slice %31 {offsets = [0, 14], sizes = [128, 160], strides = [1, 1]} : vector<128x192xf32> to vector<128x160xf32>
    %37 = vector.extract_strided_slice %31 {offsets = [0, 15], sizes = [128, 160], strides = [1, 1]} : vector<128x192xf32> to vector<128x160xf32>
    %38 = vector.extract_strided_slice %31 {offsets = [0, 26], sizes = [128, 160], strides = [1, 1]} : vector<128x192xf32> to vector<128x160xf32>
    %39 = vector.extract_strided_slice %31 {offsets = [0, 27], sizes = [128, 160], strides = [1, 1]} : vector<128x192xf32> to vector<128x160xf32>
    %40 = vector.extract_strided_slice %31 {offsets = [0, 28], sizes = [128, 160], strides = [1, 1]} : vector<128x192xf32> to vector<128x160xf32>
    %41 = tpu.concatenate %32, %33, %34, %35, %36, %37, %38, %39, %40 in 0 : vector<128x160xf32>, vector<128x160xf32>, vector<128x160xf32>, vector<128x160xf32>, vector<128x160xf32>, vector<128x160xf32>, vector<128x160xf32>, vector<128x160xf32>, vector<128x160xf32> -> vector<1152x160xf32>
    %c0_23 = arith.constant 0 : index
    %c0_24 = arith.constant 0 : index
    %42 = vector.load %arg5[%c0_23, %c0_24] : memref<256x1152xbf16, #tpu.memory_space<vmem>>, vector<256x1152xbf16>
    %43 = arith.truncf %41 : vector<1152x160xf32> to vector<1152x160xbf16>
    %cst_25 = arith.constant dense<0.000000e+00> : vector<256x160xf32>
    %44 = tpu.matmul %42, %43, %cst_25 {dimension_numbers = #tpu.dot_dimension_numbers<[1], [0], [0], [1], [0, 0, 1, 1], [], []>} : vector<256x1152xbf16>, vector<1152x160xbf16>, vector<256x160xf32> -> vector<256x160xf32>
    %c0_26 = arith.constant 0 : index
    %c0_27 = arith.constant 0 : index
    %45 = vector.load %arg6[%c0_26, %c0_27] : memref<256x1xf32, #tpu.memory_space<vmem>>, vector<256x1xf32>
    %46 = vector.broadcast %45 : vector<256x1xf32> to vector<256x160xf32>
    %47 = arith.addf %44, %46 : vector<256x160xf32>
    %cst_28 = arith.constant 0.000000e+00 : f32
    %48 = vector.broadcast %cst_28 : f32 to vector<256x160xf32>
    %49 = arith.maximumf %47, %48 : vector<256x160xf32>
    %c0_29 = arith.constant 0 : index
    %c0_30 = arith.constant 0 : index
    %50 = vector.load %arg7[%c0_29, %c0_30] : memref<1x160xf32, #tpu.memory_space<vmem>>, vector<1x160xf32>
    %51 = vector.broadcast %50 : vector<1x160xf32> to vector<256x160xf32>
    %52 = arith.addf %49, %51 : vector<256x160xf32>
    %53 = vector.extract_strided_slice %52 {offsets = [0, 0], sizes = [256, 141], strides = [1, 1]} : vector<256x160xf32> to vector<256x141xf32>
    %54 = vector.extract_strided_slice %52 {offsets = [0, 1], sizes = [256, 141], strides = [1, 1]} : vector<256x160xf32> to vector<256x141xf32>
    %55 = arith.maximumf %53, %54 : vector<256x141xf32>
    %56 = vector.extract_strided_slice %52 {offsets = [0, 13], sizes = [256, 141], strides = [1, 1]} : vector<256x160xf32> to vector<256x141xf32>
    %57 = vector.extract_strided_slice %52 {offsets = [0, 14], sizes = [256, 141], strides = [1, 1]} : vector<256x160xf32> to vector<256x141xf32>
    %58 = arith.maximumf %56, %57 : vector<256x141xf32>
    %59 = arith.maximumf %55, %58 : vector<256x141xf32>
    %60 = arith.truncf %59 : vector<256x141xf32> to vector<256x141xbf16>
    %c0_31 = arith.constant 0 : index
    %c0_32 = arith.constant 0 : index
    %61 = vector.load %arg8[%c0_31, %c0_32] : memref<141x36xbf16, #tpu.memory_space<vmem>>, vector<141x36xbf16>
    %cst_33 = arith.constant dense<0.000000e+00> : vector<256x36xf32>
    %62 = tpu.matmul %60, %61, %cst_33 {dimension_numbers = #tpu.dot_dimension_numbers<[1], [0], [0], [1], [0, 0, 1, 1], [], []>} : vector<256x141xbf16>, vector<141x36xbf16>, vector<256x36xf32> -> vector<256x36xf32>
    %63 = vector.extract_strided_slice %62 {offsets = [0, 0], sizes = [8, 36], strides = [1, 1]} : vector<256x36xf32> to vector<8x36xf32>
    %c0_34 = arith.constant 0 : index
    %c0_35 = arith.constant 0 : index
    %64 = vector.load %arg17[%c0_34, %c0_35] : memref<8x1152xf32, #tpu.memory_space<vmem>>, vector<8x36xf32>
    tpu.vector_store %arg17[%c0_34, %c0_35], %63 {strides = array<i32>} : memref<8x1152xf32, #tpu.memory_space<vmem>>, vector<8x36xf32>,
    %65 = vector.extract_strided_slice %62 {offsets = [8, 0], sizes = [8, 36], strides = [1, 1]} : vector<256x36xf32> to vector<8x36xf32>
    %c0_36 = arith.constant 0 : index
    %c36 = arith.constant 36 : index
    %66 = vector.load %arg17[%c0_36, %c36] : memref<8x1152xf32, #tpu.memory_space<vmem>>, vector<8x36xf32>
    tpu.vector_store %arg17[%c0_36, %c36], %65 {strides = array<i32>} : memref<8x1152xf32, #tpu.memory_space<vmem>>, vector<8x36xf32>,
    %67 = vector.extract_strided_slice %62 {offsets = [16, 0], sizes = [8, 36], strides = [1, 1]} : vector<256x36xf32> to vector<8x36xf32>
    %c0_37 = arith.constant 0 : index
    %c72 = arith.constant 72 : index
    %68 = vector.load %arg17[%c0_37, %c72] : memref<8x1152xf32, #tpu.memory_space<vmem>>, vector<8x36xf32>
    tpu.vector_store %arg17[%c0_37, %c72], %67 {strides = array<i32>} : memref<8x1152xf32, #tpu.memory_space<vmem>>, vector<8x36xf32>,
    %69 = vector.extract_strided_slice %62 {offsets = [24, 0], sizes = [8, 36], strides = [1, 1]} : vector<256x36xf32> to vector<8x36xf32>
    %c0_38 = arith.constant 0 : index
    %c108 = arith.constant 108 : index
    %70 = vector.load %arg17[%c0_38, %c108] : memref<8x1152xf32, #tpu.memory_space<vmem>>, vector<8x36xf32>
    tpu.vector_store %arg17[%c0_38, %c108], %69 {strides = array<i32>} : memref<8x1152xf32, #tpu.memory_space<vmem>>, vector<8x36xf32>,
    %71 = vector.extract_strided_slice %62 {offsets = [32, 0], sizes = [8, 36], strides = [1, 1]} : vector<256x36xf32> to vector<8x36xf32>
    %c0_39 = arith.constant 0 : index
    %c144 = arith.constant 144 : index
    %72 = vector.load %arg17[%c0_39, %c144] : memref<8x1152xf32, #tpu.memory_space<vmem>>, vector<8x36xf32>
    tpu.vector_store %arg17[%c0_39, %c144], %71 {strides = array<i32>} : memref<8x1152xf32, #tpu.memory_space<vmem>>, vector<8x36xf32>,
    %73 = vector.extract_strided_slice %62 {offsets = [40, 0], sizes = [8, 36], strides = [1, 1]} : vector<256x36xf32> to vector<8x36xf32>
    %c0_40 = arith.constant 0 : index
    %c180 = arith.constant 180 : index
    %74 = vector.load %arg17[%c0_40, %c180] : memref<8x1152xf32, #tpu.memory_space<vmem>>, vector<8x36xf32>
    tpu.vector_store %arg17[%c0_40, %c180], %73 {strides = array<i32>} : memref<8x1152xf32, #tpu.memory_space<vmem>>, vector<8x36xf32>,
    %75 = vector.extract_strided_slice %62 {offsets = [48, 0], sizes = [8, 36], strides = [1, 1]} : vector<256x36xf32> to vector<8x36xf32>
    %c0_41 = arith.constant 0 : index
    %c216 = arith.constant 216 : index
    %76 = vector.load %arg17[%c0_41, %c216] : memref<8x1152xf32, #tpu.memory_space<vmem>>, vector<8x36xf32>
    tpu.vector_store %arg17[%c0_41, %c216], %75 {strides = array<i32>} : memref<8x1152xf32, #tpu.memory_space<vmem>>, vector<8x36xf32>,
    %77 = vector.extract_strided_slice %62 {offsets = [56, 0], sizes = [8, 36], strides = [1, 1]} : vector<256x36xf32> to vector<8x36xf32>
    %c0_42 = arith.constant 0 : index
    %c252 = arith.constant 252 : index
    %78 = vector.load %arg17[%c0_42, %c252] : memref<8x1152xf32, #tpu.memory_space<vmem>>, vector<8x36xf32>
    tpu.vector_store %arg17[%c0_42, %c252], %77 {strides = array<i32>} : memref<8x1152xf32, #tpu.memory_space<vmem>>, vector<8x36xf32>,
    %79 = vector.extract_strided_slice %62 {offsets = [64, 0], sizes = [8, 36], strides = [1, 1]} : vector<256x36xf32> to vector<8x36xf32>
    %c0_43 = arith.constant 0 : index
    %c288 = arith.constant 288 : index
    %80 = vector.load %arg17[%c0_43, %c288] : memref<8x1152xf32, #tpu.memory_space<vmem>>, vector<8x36xf32>
    tpu.vector_store %arg17[%c0_43, %c288], %79 {strides = array<i32>} : memref<8x1152xf32, #tpu.memory_space<vmem>>, vector<8x36xf32>,
    %81 = vector.extract_strided_slice %62 {offsets = [72, 0], sizes = [8, 36], strides = [1, 1]} : vector<256x36xf32> to vector<8x36xf32>
    %c0_44 = arith.constant 0 : index
    %c324 = arith.constant 324 : index
    %82 = vector.load %arg17[%c0_44, %c324] : memref<8x1152xf32, #tpu.memory_space<vmem>>, vector<8x36xf32>
    tpu.vector_store %arg17[%c0_44, %c324], %81 {strides = array<i32>} : memref<8x1152xf32, #tpu.memory_space<vmem>>, vector<8x36xf32>,
    %83 = vector.extract_strided_slice %62 {offsets = [80, 0], sizes = [8, 36], strides = [1, 1]} : vector<256x36xf32> to vector<8x36xf32>
    %c0_45 = arith.constant 0 : index
    %c360 = arith.constant 360 : index
    %84 = vector.load %arg17[%c0_45, %c360] : memref<8x1152xf32, #tpu.memory_space<vmem>>, vector<8x36xf32>
    tpu.vector_store %arg17[%c0_45, %c360], %83 {strides = array<i32>} : memref<8x1152xf32, #tpu.memory_space<vmem>>, vector<8x36xf32>,
    %85 = vector.extract_strided_slice %62 {offsets = [88, 0], sizes = [8, 36], strides = [1, 1]} : vector<256x36xf32> to vector<8x36xf32>
    %c0_46 = arith.constant 0 : index
    %c396 = arith.constant 396 : index
    %86 = vector.load %arg17[%c0_46, %c396] : memref<8x1152xf32, #tpu.memory_space<vmem>>, vector<8x36xf32>
    tpu.vector_store %arg17[%c0_46, %c396], %85 {strides = array<i32>} : memref<8x1152xf32, #tpu.memory_space<vmem>>, vector<8x36xf32>,
    %87 = vector.extract_strided_slice %62 {offsets = [96, 0], sizes = [8, 36], strides = [1, 1]} : vector<256x36xf32> to vector<8x36xf32>
    %c0_47 = arith.constant 0 : index
    %c432 = arith.constant 432 : index
    %88 = vector.load %arg17[%c0_47, %c432] : memref<8x1152xf32, #tpu.memory_space<vmem>>, vector<8x36xf32>
    tpu.vector_store %arg17[%c0_47, %c432], %87 {strides = array<i32>} : memref<8x1152xf32, #tpu.memory_space<vmem>>, vector<8x36xf32>,
    %89 = vector.extract_strided_slice %62 {offsets = [104, 0], sizes = [8, 36], strides = [1, 1]} : vector<256x36xf32> to vector<8x36xf32>
    %c0_48 = arith.constant 0 : index
    %c468 = arith.constant 468 : index
    %90 = vector.load %arg17[%c0_48, %c468] : memref<8x1152xf32, #tpu.memory_space<vmem>>, vector<8x36xf32>
    tpu.vector_store %arg17[%c0_48, %c468], %89 {strides = array<i32>} : memref<8x1152xf32, #tpu.memory_space<vmem>>, vector<8x36xf32>,
    %91 = vector.extract_strided_slice %62 {offsets = [112, 0], sizes = [8, 36], strides = [1, 1]} : vector<256x36xf32> to vector<8x36xf32>
    %c0_49 = arith.constant 0 : index
    %c504 = arith.constant 504 : index
    %92 = vector.load %arg17[%c0_49, %c504] : memref<8x1152xf32, #tpu.memory_space<vmem>>, vector<8x36xf32>
    tpu.vector_store %arg17[%c0_49, %c504], %91 {strides = array<i32>} : memref<8x1152xf32, #tpu.memory_space<vmem>>, vector<8x36xf32>,
    %93 = vector.extract_strided_slice %62 {offsets = [120, 0], sizes = [8, 36], strides = [1, 1]} : vector<256x36xf32> to vector<8x36xf32>
    %c0_50 = arith.constant 0 : index
    %c540 = arith.constant 540 : index
    %94 = vector.load %arg17[%c0_50, %c540] : memref<8x1152xf32, #tpu.memory_space<vmem>>, vector<8x36xf32>
    tpu.vector_store %arg17[%c0_50, %c540], %93 {strides = array<i32>} : memref<8x1152xf32, #tpu.memory_space<vmem>>, vector<8x36xf32>,
    %95 = vector.extract_strided_slice %62 {offsets = [128, 0], sizes = [8, 36], strides = [1, 1]} : vector<256x36xf32> to vector<8x36xf32>
    %c0_51 = arith.constant 0 : index
    %c576 = arith.constant 576 : index
    %96 = vector.load %arg17[%c0_51, %c576] : memref<8x1152xf32, #tpu.memory_space<vmem>>, vector<8x36xf32>
    tpu.vector_store %arg17[%c0_51, %c576], %95 {strides = array<i32>} : memref<8x1152xf32, #tpu.memory_space<vmem>>, vector<8x36xf32>,
    %97 = vector.extract_strided_slice %62 {offsets = [136, 0], sizes = [8, 36], strides = [1, 1]} : vector<256x36xf32> to vector<8x36xf32>
    %c0_52 = arith.constant 0 : index
    %c612 = arith.constant 612 : index
    %98 = vector.load %arg17[%c0_52, %c612] : memref<8x1152xf32, #tpu.memory_space<vmem>>, vector<8x36xf32>
    tpu.vector_store %arg17[%c0_52, %c612], %97 {strides = array<i32>} : memref<8x1152xf32, #tpu.memory_space<vmem>>, vector<8x36xf32>,
    %99 = vector.extract_strided_slice %62 {offsets = [144, 0], sizes = [8, 36], strides = [1, 1]} : vector<256x36xf32> to vector<8x36xf32>
    %c0_53 = arith.constant 0 : index
    %c648 = arith.constant 648 : index
    %100 = vector.load %arg17[%c0_53, %c648] : memref<8x1152xf32, #tpu.memory_space<vmem>>, vector<8x36xf32>
    tpu.vector_store %arg17[%c0_53, %c648], %99 {strides = array<i32>} : memref<8x1152xf32, #tpu.memory_space<vmem>>, vector<8x36xf32>,
    %101 = vector.extract_strided_slice %62 {offsets = [152, 0], sizes = [8, 36], strides = [1, 1]} : vector<256x36xf32> to vector<8x36xf32>
    %c0_54 = arith.constant 0 : index
    %c684 = arith.constant 684 : index
    %102 = vector.load %arg17[%c0_54, %c684] : memref<8x1152xf32, #tpu.memory_space<vmem>>, vector<8x36xf32>
    tpu.vector_store %arg17[%c0_54, %c684], %101 {strides = array<i32>} : memref<8x1152xf32, #tpu.memory_space<vmem>>, vector<8x36xf32>,
    %103 = vector.extract_strided_slice %62 {offsets = [160, 0], sizes = [8, 36], strides = [1, 1]} : vector<256x36xf32> to vector<8x36xf32>
    %c0_55 = arith.constant 0 : index
    %c720 = arith.constant 720 : index
    %104 = vector.load %arg17[%c0_55, %c720] : memref<8x1152xf32, #tpu.memory_space<vmem>>, vector<8x36xf32>
    tpu.vector_store %arg17[%c0_55, %c720], %103 {strides = array<i32>} : memref<8x1152xf32, #tpu.memory_space<vmem>>, vector<8x36xf32>,
    %105 = vector.extract_strided_slice %62 {offsets = [168, 0], sizes = [8, 36], strides = [1, 1]} : vector<256x36xf32> to vector<8x36xf32>
    %c0_56 = arith.constant 0 : index
    %c756 = arith.constant 756 : index
    %106 = vector.load %arg17[%c0_56, %c756] : memref<8x1152xf32, #tpu.memory_space<vmem>>, vector<8x36xf32>
    tpu.vector_store %arg17[%c0_56, %c756], %105 {strides = array<i32>} : memref<8x1152xf32, #tpu.memory_space<vmem>>, vector<8x36xf32>,
    %107 = vector.extract_strided_slice %62 {offsets = [176, 0], sizes = [8, 36], strides = [1, 1]} : vector<256x36xf32> to vector<8x36xf32>
    %c0_57 = arith.constant 0 : index
    %c792 = arith.constant 792 : index
    %108 = vector.load %arg17[%c0_57, %c792] : memref<8x1152xf32, #tpu.memory_space<vmem>>, vector<8x36xf32>
    tpu.vector_store %arg17[%c0_57, %c792], %107 {strides = array<i32>} : memref<8x1152xf32, #tpu.memory_space<vmem>>, vector<8x36xf32>,
    %109 = vector.extract_strided_slice %62 {offsets = [184, 0], sizes = [8, 36], strides = [1, 1]} : vector<256x36xf32> to vector<8x36xf32>
    %c0_58 = arith.constant 0 : index
    %c828 = arith.constant 828 : index
    %110 = vector.load %arg17[%c0_58, %c828] : memref<8x1152xf32, #tpu.memory_space<vmem>>, vector<8x36xf32>
    tpu.vector_store %arg17[%c0_58, %c828], %109 {strides = array<i32>} : memref<8x1152xf32, #tpu.memory_space<vmem>>, vector<8x36xf32>,
    %111 = vector.extract_strided_slice %62 {offsets = [192, 0], sizes = [8, 36], strides = [1, 1]} : vector<256x36xf32> to vector<8x36xf32>
    %c0_59 = arith.constant 0 : index
    %c864 = arith.constant 864 : index
    %112 = vector.load %arg17[%c0_59, %c864] : memref<8x1152xf32, #tpu.memory_space<vmem>>, vector<8x36xf32>
    tpu.vector_store %arg17[%c0_59, %c864], %111 {strides = array<i32>} : memref<8x1152xf32, #tpu.memory_space<vmem>>, vector<8x36xf32>,
    %113 = vector.extract_strided_slice %62 {offsets = [200, 0], sizes = [8, 36], strides = [1, 1]} : vector<256x36xf32> to vector<8x36xf32>
    %c0_60 = arith.constant 0 : index
    %c900 = arith.constant 900 : index
    %114 = vector.load %arg17[%c0_60, %c900] : memref<8x1152xf32, #tpu.memory_space<vmem>>, vector<8x36xf32>
    tpu.vector_store %arg17[%c0_60, %c900], %113 {strides = array<i32>} : memref<8x1152xf32, #tpu.memory_space<vmem>>, vector<8x36xf32>,
    %115 = vector.extract_strided_slice %62 {offsets = [208, 0], sizes = [8, 36], strides = [1, 1]} : vector<256x36xf32> to vector<8x36xf32>
    %c0_61 = arith.constant 0 : index
    %c936 = arith.constant 936 : index
    %116 = vector.load %arg17[%c0_61, %c936] : memref<8x1152xf32, #tpu.memory_space<vmem>>, vector<8x36xf32>
    tpu.vector_store %arg17[%c0_61, %c936], %115 {strides = array<i32>} : memref<8x1152xf32, #tpu.memory_space<vmem>>, vector<8x36xf32>,
    %117 = vector.extract_strided_slice %62 {offsets = [216, 0], sizes = [8, 36], strides = [1, 1]} : vector<256x36xf32> to vector<8x36xf32>
    %c0_62 = arith.constant 0 : index
    %c972 = arith.constant 972 : index
    %118 = vector.load %arg17[%c0_62, %c972] : memref<8x1152xf32, #tpu.memory_space<vmem>>, vector<8x36xf32>
    tpu.vector_store %arg17[%c0_62, %c972], %117 {strides = array<i32>} : memref<8x1152xf32, #tpu.memory_space<vmem>>, vector<8x36xf32>,
    %119 = vector.extract_strided_slice %62 {offsets = [224, 0], sizes = [8, 36], strides = [1, 1]} : vector<256x36xf32> to vector<8x36xf32>
    %c0_63 = arith.constant 0 : index
    %c1008 = arith.constant 1008 : index
    %120 = vector.load %arg17[%c0_63, %c1008] : memref<8x1152xf32, #tpu.memory_space<vmem>>, vector<8x36xf32>
    tpu.vector_store %arg17[%c0_63, %c1008], %119 {strides = array<i32>} : memref<8x1152xf32, #tpu.memory_space<vmem>>, vector<8x36xf32>,
    %121 = vector.extract_strided_slice %62 {offsets = [232, 0], sizes = [8, 36], strides = [1, 1]} : vector<256x36xf32> to vector<8x36xf32>
    %c0_64 = arith.constant 0 : index
    %c1044 = arith.constant 1044 : index
    %122 = vector.load %arg17[%c0_64, %c1044] : memref<8x1152xf32, #tpu.memory_space<vmem>>, vector<8x36xf32>
    tpu.vector_store %arg17[%c0_64, %c1044], %121 {strides = array<i32>} : memref<8x1152xf32, #tpu.memory_space<vmem>>, vector<8x36xf32>,
    %123 = vector.extract_strided_slice %62 {offsets = [240, 0], sizes = [8, 36], strides = [1, 1]} : vector<256x36xf32> to vector<8x36xf32>
    %c0_65 = arith.constant 0 : index
    %c1080 = arith.constant 1080 : index
    %124 = vector.load %arg17[%c0_65, %c1080] : memref<8x1152xf32, #tpu.memory_space<vmem>>, vector<8x36xf32>
    tpu.vector_store %arg17[%c0_65, %c1080], %123 {strides = array<i32>} : memref<8x1152xf32, #tpu.memory_space<vmem>>, vector<8x36xf32>,
    %125 = vector.extract_strided_slice %62 {offsets = [248, 0], sizes = [8, 36], strides = [1, 1]} : vector<256x36xf32> to vector<8x36xf32>
    %c0_66 = arith.constant 0 : index
    %c1116 = arith.constant 1116 : index
    %126 = vector.load %arg17[%c0_66, %c1116] : memref<8x1152xf32, #tpu.memory_space<vmem>>, vector<8x36xf32>
    tpu.vector_store %arg17[%c0_66, %c1116], %125 {strides = array<i32>} : memref<8x1152xf32, #tpu.memory_space<vmem>>, vector<8x36xf32>,
    %c0_67 = arith.constant 0 : index
    %c0_68 = arith.constant 0 : index
    %127 = vector.load %arg17[%c0_67, %c0_68] : memref<8x1152xf32, #tpu.memory_space<vmem>>, vector<8x1152xf32>
    %128 = arith.truncf %127 : vector<8x1152xf32> to vector<8x1152xbf16>
    %c0_69 = arith.constant 0 : index
    %c0_70 = arith.constant 0 : index
    %129 = vector.load %arg9[%c0_69, %c0_70] : memref<1152x120xbf16, #tpu.memory_space<vmem>>, vector<1152x120xbf16>
    %cst_71 = arith.constant dense<0.000000e+00> : vector<8x120xf32>
    %130 = tpu.matmul %128, %129, %cst_71 {dimension_numbers = #tpu.dot_dimension_numbers<[1], [0], [0], [1], [0, 0, 1, 1], [], []>} : vector<8x1152xbf16>, vector<1152x120xbf16>, vector<8x120xf32> -> vector<8x120xf32>
    %c0_72 = arith.constant 0 : index
    %c0_73 = arith.constant 0 : index
    %131 = vector.load %arg10[%c0_72, %c0_73] : memref<1x120xf32, #tpu.memory_space<vmem>>, vector<1x120xf32>
    %132 = vector.broadcast %131 : vector<1x120xf32> to vector<8x120xf32>
    %133 = arith.addf %130, %132 : vector<8x120xf32>
    %cst_74 = arith.constant 0.000000e+00 : f32
    %134 = vector.broadcast %cst_74 : f32 to vector<8x120xf32>
    %135 = arith.maximumf %133, %134 : vector<8x120xf32>
    %136 = arith.truncf %135 : vector<8x120xf32> to vector<8x120xbf16>
    %c0_75 = arith.constant 0 : index
    %c0_76 = arith.constant 0 : index
    %137 = vector.load %arg11[%c0_75, %c0_76] : memref<120x120xbf16, #tpu.memory_space<vmem>>, vector<120x120xbf16>
    %cst_77 = arith.constant dense<0.000000e+00> : vector<8x120xf32>
    %138 = tpu.matmul %136, %137, %cst_77 {dimension_numbers = #tpu.dot_dimension_numbers<[1], [0], [0], [1], [0, 0, 1, 1], [], []>} : vector<8x120xbf16>, vector<120x120xbf16>, vector<8x120xf32> -> vector<8x120xf32>
    %c0_78 = arith.constant 0 : index
    %c0_79 = arith.constant 0 : index
    %139 = vector.load %arg12[%c0_78, %c0_79] : memref<1x120xf32, #tpu.memory_space<vmem>>, vector<1x120xf32>
    %140 = vector.broadcast %139 : vector<1x120xf32> to vector<8x120xf32>
    %141 = arith.addf %138, %140 : vector<8x120xf32>
    %cst_80 = arith.constant 0.000000e+00 : f32
    %142 = vector.broadcast %cst_80 : f32 to vector<8x120xf32>
    %143 = arith.maximumf %141, %142 : vector<8x120xf32>
    %144 = arith.truncf %143 : vector<8x120xf32> to vector<8x120xbf16>
    %c0_81 = arith.constant 0 : index
    %c0_82 = arith.constant 0 : index
    %145 = vector.load %arg13[%c0_81, %c0_82] : memref<120x128xbf16, #tpu.memory_space<vmem>>, vector<120x128xbf16>
    %cst_83 = arith.constant dense<0.000000e+00> : vector<8x128xf32>
    %146 = tpu.matmul %144, %145, %cst_83 {dimension_numbers = #tpu.dot_dimension_numbers<[1], [0], [0], [1], [0, 0, 1, 1], [], []>} : vector<8x120xbf16>, vector<120x128xbf16>, vector<8x128xf32> -> vector<8x128xf32>
    %c0_84 = arith.constant 0 : index
    %c0_85 = arith.constant 0 : index
    %147 = vector.load %arg14[%c0_84, %c0_85] : memref<1x128xf32, #tpu.memory_space<vmem>>, vector<1x128xf32>
    %148 = vector.broadcast %147 : vector<1x128xf32> to vector<8x128xf32>
    %149 = arith.addf %146, %148 : vector<8x128xf32>
    %c0_86 = arith.constant 0 : index
    %c0_87 = arith.constant 0 : index
    %150 = vector.load %arg15[%c0_86, %c0_87] : memref<8x128xf32, #tpu.memory_space<vmem>>, vector<8x128xf32>
    tpu.vector_store %arg15[%c0_86, %c0_87], %149 {strides = array<i32>} : memref<8x128xf32, #tpu.memory_space<vmem>>, vector<8x128xf32>,
    return
  }
  func.func @transform_0(%arg0: i32) -> (i32, i32) {
    %c0_i32 = arith.constant 0 : i32
    %c0_i32_0 = arith.constant 0 : i32
    return %arg0, %c0_i32 : i32, i32
  }
  func.func @transform_1(%arg0: i32) -> (i32, i32) {
    %c0_i32 = arith.constant 0 : i32
    %c0_i32_0 = arith.constant 0 : i32
    %c0_i32_1 = arith.constant 0 : i32
    return %c0_i32, %c0_i32_0 : i32, i32
  }
  func.func @transform_2(%arg0: i32) -> (i32, i32) {
    %c0_i32 = arith.constant 0 : i32
    %c0_i32_0 = arith.constant 0 : i32
    %c0_i32_1 = arith.constant 0 : i32
    return %c0_i32, %c0_i32_0 : i32, i32
  }
  func.func @transform_3(%arg0: i32) -> (i32, i32) {
    %c0_i32 = arith.constant 0 : i32
    %c0_i32_0 = arith.constant 0 : i32
    %c0_i32_1 = arith.constant 0 : i32
    return %c0_i32, %c0_i32_0 : i32, i32
  }
  func.func @transform_4(%arg0: i32) -> (i32, i32) {
    %c0_i32 = arith.constant 0 : i32
    %c0_i32_0 = arith.constant 0 : i32
    %c0_i32_1 = arith.constant 0 : i32
    return %c0_i32, %c0_i32_0 : i32, i32
  }
  func.func @transform_5(%arg0: i32) -> (i32, i32) {
    %c0_i32 = arith.constant 0 : i32
    %c0_i32_0 = arith.constant 0 : i32
    %c0_i32_1 = arith.constant 0 : i32
    return %c0_i32, %c0_i32_0 : i32, i32
  }
  func.func @transform_6(%arg0: i32) -> (i32, i32) {
    %c0_i32 = arith.constant 0 : i32
    %c0_i32_0 = arith.constant 0 : i32
    %c0_i32_1 = arith.constant 0 : i32
    return %c0_i32, %c0_i32_0 : i32, i32
  }
  func.func @transform_7(%arg0: i32) -> (i32, i32) {
    %c0_i32 = arith.constant 0 : i32
    %c0_i32_0 = arith.constant 0 : i32
    %c0_i32_1 = arith.constant 0 : i32
    return %c0_i32, %c0_i32_0 : i32, i32
  }
  func.func @transform_8(%arg0: i32) -> (i32, i32) {
    %c0_i32 = arith.constant 0 : i32
    %c0_i32_0 = arith.constant 0 : i32
    %c0_i32_1 = arith.constant 0 : i32
    return %c0_i32, %c0_i32_0 : i32, i32
  }
  func.func @transform_9(%arg0: i32) -> (i32, i32) {
    %c0_i32 = arith.constant 0 : i32
    %c0_i32_0 = arith.constant 0 : i32
    %c0_i32_1 = arith.constant 0 : i32
    return %c0_i32, %c0_i32_0 : i32, i32
  }
  func.func @transform_10(%arg0: i32) -> (i32, i32) {
    %c0_i32 = arith.constant 0 : i32
    %c0_i32_0 = arith.constant 0 : i32
    %c0_i32_1 = arith.constant 0 : i32
    return %c0_i32, %c0_i32_0 : i32, i32
  }
  func.func @transform_11(%arg0: i32) -> (i32, i32) {
    %c0_i32 = arith.constant 0 : i32
    %c0_i32_0 = arith.constant 0 : i32
    %c0_i32_1 = arith.constant 0 : i32
    return %c0_i32, %c0_i32_0 : i32, i32
  }
  func.func @transform_12(%arg0: i32) -> (i32, i32) {
    %c0_i32 = arith.constant 0 : i32
    %c0_i32_0 = arith.constant 0 : i32
    %c0_i32_1 = arith.constant 0 : i32
    return %c0_i32, %c0_i32_0 : i32, i32
  }
  func.func @transform_13(%arg0: i32) -> (i32, i32) {
    %c0_i32 = arith.constant 0 : i32
    %c0_i32_0 = arith.constant 0 : i32
    %c0_i32_1 = arith.constant 0 : i32
    return %c0_i32, %c0_i32_0 : i32, i32
  }
  func.func @transform_14(%arg0: i32) -> (i32, i32) {
    %c0_i32 = arith.constant 0 : i32
    %c0_i32_0 = arith.constant 0 : i32
    return %arg0, %c0_i32 : i32, i32
  }
}

</mosaic_0001>

<llo_original>
// kernel: simple_mnist_net.1
$region0: #{simple_mnist_net.1}
  #allocation0 [shape = 'u32[]', space=smem, size = 0x4, offset = 0x4, fixed_abs, tag = 'smem constant byte address 0x4 - core index']
  #allocation1 [shape = 'u32[144,128]{1,0:T(1,128)}', space=vmem, size = 0x12000, scoped, tag = 'internal scratch']
  #allocation2 [shape = 'f32[8,896]{1,0:T(8,128)}', space=vmem, size = 0x7000, scoped, tag = 'scratch operand']
  #allocation3 [shape = 'f32[8,1152]{1,0:T(8,128)}', space=vmem, size = 0x9000, scoped, tag = 'scratch operand']
  %s0 = inlined_call_operand.vmem [shape: f32[16,784], index: 0, kind: input, shape index: {}]
  %s1 = inlined_call_operand.vmem [shape: bf16[128,72], index: 1, kind: input, shape index: {}]
  %s2 = inlined_call_operand.vmem [shape: f32[128,1], index: 2, kind: input, shape index: {}]
  %s3 = inlined_call_operand.vmem [shape: bf16[698,192], index: 3, kind: input, shape index: {}]
  %s4 = inlined_call_operand.vmem [shape: bf16[256,1152], index: 4, kind: input, shape index: {}]
  %s5 = inlined_call_operand.vmem [shape: f32[256,1], index: 5, kind: input, shape index: {}]
  %s6 = inlined_call_operand.vmem [shape: f32[1,160], index: 6, kind: input, shape index: {}]
  %s7 = inlined_call_operand.vmem [shape: bf16[141,36], index: 7, kind: input, shape index: {}]
  %s8 = inlined_call_operand.vmem [shape: bf16[1152,120], index: 8, kind: input, shape index: {}]
  %s9 = inlined_call_operand.vmem [shape: f32[1,120], index: 9, kind: input, shape index: {}]
  %s10 = inlined_call_operand.vmem [shape: bf16[120,120], index: 10, kind: input, shape index: {}]
  %s11 = inlined_call_operand.vmem [shape: f32[1,120], index: 11, kind: input, shape index: {}]
  %s12 = inlined_call_operand.vmem [shape: bf16[120,128], index: 12, kind: input, shape index: {}]
  %s13 = inlined_call_operand.vmem [shape: f32[1,128], index: 13, kind: input, shape index: {}]
  %s14 = inlined_call_operand.hbm [shape: f32[16,128], index: 14, kind: output, shape index: {}]
  %s15 = sld [smem:[#allocation0]]
  $region89: #{simple_mnist_net.1} parent=0
    _
  %s17 = ssub.s32 1, %s15
  %s18 = scalar_select 0, %s17, %s15
  $region1: #{simple_mnist_net.1} parent=0
    #allocation4 [shape = 'u8[8192]{0}', space=vmem, size = 0x2000, scoped, tag = 'output window, operand 0']
    #allocation5 [shape = 's32[2]{0}', space=sflag, size = 0x8, scoped, tag = 'scoped memory for simple_mnist_net.1']
    %19 = vsyncpa [#allocation5], 0
    %s20 = scalar_lea.sflag [#allocation5], 1
    %21 = vsyncpa %s20, 0
    loop: start=0, step=1, limit=4
    $region2: #{simple_mnist_net.1} parent=1 // loop_pre_header
      _
    $region3: #{simple_mnist_net.1} parent=1 // loop_header
      %s23 = sphi 0, %s27
      %p24 = scmp.ge.s32.totalorder %s23, 4
      %s33 = sphi 0, %s35
      %s36 = sphi 0, %s33
      %s37 = sphi 0, %s36
      %s53 = sphi 0, %s37
      %s57 = sphi 0, %s57
      %s59 = sphi 0, %s57
      %s60 = sphi 0, %s59
      %s74 = sphi 0, %s60
      %s78 = sphi 0, %s78
      %s80 = sphi 0, %s78
      %s81 = sphi 0, %s80
      %s95 = sphi 0, %s81
      %s99 = sphi 0, %s99
      %s101 = sphi 0, %s99
      %s102 = sphi 0, %s101
      %s116 = sphi 0, %s102
      %s120 = sphi 0, %s120
      %s122 = sphi 0, %s120
      %s123 = sphi 0, %s122
      %s137 = sphi 0, %s123
      %s141 = sphi 0, %s141
      %s143 = sphi 0, %s141
      %s144 = sphi 0, %s143
      %s158 = sphi 0, %s144
      %s162 = sphi 0, %s162
      %s164 = sphi 0, %s162
      %s165 = sphi 0, %s164
      %s179 = sphi 0, %s165
      %s183 = sphi 0, %s183
      %s185 = sphi 0, %s183
      %s186 = sphi 0, %s185
      %s200 = sphi 0, %s186
      %s204 = sphi 0, %s204
      %s206 = sphi 0, %s204
      %s207 = sphi 0, %s206
      %s221 = sphi 0, %s207
      %s225 = sphi 0, %s225
      %s227 = sphi 0, %s225
      %s228 = sphi 0, %s227
      %s242 = sphi 0, %s228
      %s246 = sphi 0, %s246
      %s248 = sphi 0, %s246
      %s249 = sphi 0, %s248
      %s263 = sphi 0, %s249
      %s267 = sphi 0, %s267
      %s269 = sphi 0, %s267
      %s270 = sphi 0, %s269
      %s284 = sphi 0, %s270
      %s288 = sphi 0, %s288
      %s290 = sphi 0, %s288
      %s291 = sphi 0, %s290
      %s305 = sphi 0, %s291
      %s309 = sphi 0, %s309
      %s311 = sphi 0, %s309
      %s312 = sphi 0, %s311
      %s326 = sphi 0, %s312
      %s332 = sphi 0, %s334
      %s335 = sphi 0, %s332
      %s336 = sphi 0, %s335
      %s352 = sphi 0, %s336
    $region4: #{simple_mnist_net.1} parent=1 // loop_header_branch
      %26 = sbr.rel (%p24) target = $region8
    $region5: #{simple_mnist_net.1} parent=1 // loop_body
      %s28 = ssub.s32 %s23, 1
      %s29 = ssub.s32 %s23, 2
      %s30 = sadd.s32 %s23, 1
      %s31 = ssub.s32 %s23, %s30
      %p32 = scmp.eq.s32.totalorder %s31, 0
      %s34 = sadd.s32 %s33, 1
      %s35 = scalar_select %p32, %s33, %s34
      %p38 = pneg %p32
      %p39 = scmp.eq.s32.totalorder %s23, 1
      %p40 = por %p38, %p39
      %p41 = scmp.ne.s32.totalorder %s33, %s36
      %p42 = scmp.eq.s32.totalorder %s23, 0
      %p43 = por %p41, %p42
      %p44 = scmp.ne.s32.totalorder %s33, %s36
      %p45 = scmp.eq.s32.totalorder %s28, 1
      %p46 = por %p44, %p45
      %p47 = scmp.ne.s32.totalorder %s36, %s37
      %p48 = scmp.eq.s32.totalorder %s28, 0
      %p49 = por %p47, %p48
      %p50 = scmp.ne.s32.totalorder %s36, %s37
      %p51 = scmp.eq.s32.totalorder %s29, 1
      %p52 = por %p50, %p51
      %p54 = scmp.ne.s32.totalorder %s37, %s53
      %p55 = scmp.eq.s32.totalorder %s29, 0
      %p56 = por %p54, %p55
      %s58 = sadd.s32 %s57, 1
      %p61 = scmp.eq.s32.totalorder %s23, 1
      %p62 = scmp.ne.s32.totalorder %s57, %s59
      %p63 = scmp.eq.s32.totalorder %s23, 0
      %p64 = por %p62, %p63
      %p65 = scmp.ne.s32.totalorder %s57, %s59
      %p66 = scmp.eq.s32.totalorder %s28, 1
      %p67 = por %p65, %p66
      %p68 = scmp.ne.s32.totalorder %s59, %s60
      %p69 = scmp.eq.s32.totalorder %s28, 0
      %p70 = por %p68, %p69
      %p71 = scmp.ne.s32.totalorder %s59, %s60
      %p72 = scmp.eq.s32.totalorder %s29, 1
      %p73 = por %p71, %p72
      %p75 = scmp.ne.s32.totalorder %s60, %s74
      %p76 = scmp.eq.s32.totalorder %s29, 0
      %p77 = por %p75, %p76
      %s79 = sadd.s32 %s78, 1
      %p82 = scmp.eq.s32.totalorder %s23, 1
      %p83 = scmp.ne.s32.totalorder %s78, %s80
      %p84 = scmp.eq.s32.totalorder %s23, 0
      %p85 = por %p83, %p84
      %p86 = scmp.ne.s32.totalorder %s78, %s80
      %p87 = scmp.eq.s32.totalorder %s28, 1
      %p88 = por %p86, %p87
      %p89 = scmp.ne.s32.totalorder %s80, %s81
      %p90 = scmp.eq.s32.totalorder %s28, 0
      %p91 = por %p89, %p90
      %p92 = scmp.ne.s32.totalorder %s80, %s81
      %p93 = scmp.eq.s32.totalorder %s29, 1
      %p94 = por %p92, %p93
      %p96 = scmp.ne.s32.totalorder %s81, %s95
      %p97 = scmp.eq.s32.totalorder %s29, 0
      %p98 = por %p96, %p97
      %s100 = sadd.s32 %s99, 1
      %p103 = scmp.eq.s32.totalorder %s23, 1
      %p104 = scmp.ne.s32.totalorder %s99, %s101
      %p105 = scmp.eq.s32.totalorder %s23, 0
      %p106 = por %p104, %p105
      %p107 = scmp.ne.s32.totalorder %s99, %s101
      %p108 = scmp.eq.s32.totalorder %s28, 1
      %p109 = por %p107, %p108
      %p110 = scmp.ne.s32.totalorder %s101, %s102
      %p111 = scmp.eq.s32.totalorder %s28, 0
      %p112 = por %p110, %p111
      %p113 = scmp.ne.s32.totalorder %s101, %s102
      %p114 = scmp.eq.s32.totalorder %s29, 1
      %p115 = por %p113, %p114
      %p117 = scmp.ne.s32.totalorder %s102, %s116
      %p118 = scmp.eq.s32.totalorder %s29, 0
      %p119 = por %p117, %p118
      %s121 = sadd.s32 %s120, 1
      %p124 = scmp.eq.s32.totalorder %s23, 1
      %p125 = scmp.ne.s32.totalorder %s120, %s122
      %p126 = scmp.eq.s32.totalorder %s23, 0
      %p127 = por %p125, %p126
      %p128 = scmp.ne.s32.totalorder %s120, %s122
      %p129 = scmp.eq.s32.totalorder %s28, 1
      %p130 = por %p128, %p129
      %p131 = scmp.ne.s32.totalorder %s122, %s123
      %p132 = scmp.eq.s32.totalorder %s28, 0
      %p133 = por %p131, %p132
      %p134 = scmp.ne.s32.totalorder %s122, %s123
      %p135 = scmp.eq.s32.totalorder %s29, 1
      %p136 = por %p134, %p135
      %p138 = scmp.ne.s32.totalorder %s123, %s137
      %p139 = scmp.eq.s32.totalorder %s29, 0
      %p140 = por %p138, %p139
      %s142 = sadd.s32 %s141, 1
      %p145 = scmp.eq.s32.totalorder %s23, 1
      %p146 = scmp.ne.s32.totalorder %s141, %s143
      %p147 = scmp.eq.s32.totalorder %s23, 0
      %p148 = por %p146, %p147
      %p149 = scmp.ne.s32.totalorder %s141, %s143
      %p150 = scmp.eq.s32.totalorder %s28, 1
      %p151 = por %p149, %p150
      %p152 = scmp.ne.s32.totalorder %s143, %s144
      %p153 = scmp.eq.s32.totalorder %s28, 0
      %p154 = por %p152, %p153
      %p155 = scmp.ne.s32.totalorder %s143, %s144
      %p156 = scmp.eq.s32.totalorder %s29, 1
      %p157 = por %p155, %p156
      %p159 = scmp.ne.s32.totalorder %s144, %s158
      %p160 = scmp.eq.s32.totalorder %s29, 0
      %p161 = por %p159, %p160
      %s163 = sadd.s32 %s162, 1
      %p166 = scmp.eq.s32.totalorder %s23, 1
      %p167 = scmp.ne.s32.totalorder %s162, %s164
      %p168 = scmp.eq.s32.totalorder %s23, 0
      %p169 = por %p167, %p168
      %p170 = scmp.ne.s32.totalorder %s162, %s164
      %p171 = scmp.eq.s32.totalorder %s28, 1
      %p172 = por %p170, %p171
      %p173 = scmp.ne.s32.totalorder %s164, %s165
      %p174 = scmp.eq.s32.totalorder %s28, 0
      %p175 = por %p173, %p174
      %p176 = scmp.ne.s32.totalorder %s164, %s165
      %p177 = scmp.eq.s32.totalorder %s29, 1
      %p178 = por %p176, %p177
      %p180 = scmp.ne.s32.totalorder %s165, %s179
      %p181 = scmp.eq.s32.totalorder %s29, 0
      %p182 = por %p180, %p181
      %s184 = sadd.s32 %s183, 1
      %p187 = scmp.eq.s32.totalorder %s23, 1
      %p188 = scmp.ne.s32.totalorder %s183, %s185
      %p189 = scmp.eq.s32.totalorder %s23, 0
      %p190 = por %p188, %p189
      %p191 = scmp.ne.s32.totalorder %s183, %s185
      %p192 = scmp.eq.s32.totalorder %s28, 1
      %p193 = por %p191, %p192
      %p194 = scmp.ne.s32.totalorder %s185, %s186
      %p195 = scmp.eq.s32.totalorder %s28, 0
      %p196 = por %p194, %p195
      %p197 = scmp.ne.s32.totalorder %s185, %s186
      %p198 = scmp.eq.s32.totalorder %s29, 1
      %p199 = por %p197, %p198
      %p201 = scmp.ne.s32.totalorder %s186, %s200
      %p202 = scmp.eq.s32.totalorder %s29, 0
      %p203 = por %p201, %p202
      %s205 = sadd.s32 %s204, 1
      %p208 = scmp.eq.s32.totalorder %s23, 1
      %p209 = scmp.ne.s32.totalorder %s204, %s206
      %p210 = scmp.eq.s32.totalorder %s23, 0
      %p211 = por %p209, %p210
      %p212 = scmp.ne.s32.totalorder %s204, %s206
      %p213 = scmp.eq.s32.totalorder %s28, 1
      %p214 = por %p212, %p213
      %p215 = scmp.ne.s32.totalorder %s206, %s207
      %p216 = scmp.eq.s32.totalorder %s28, 0
      %p217 = por %p215, %p216
      %p218 = scmp.ne.s32.totalorder %s206, %s207
      %p219 = scmp.eq.s32.totalorder %s29, 1
      %p220 = por %p218, %p219
      %p222 = scmp.ne.s32.totalorder %s207, %s221
      %p223 = scmp.eq.s32.totalorder %s29, 0
      %p224 = por %p222, %p223
      %s226 = sadd.s32 %s225, 1
      %p229 = scmp.eq.s32.totalorder %s23, 1
      %p230 = scmp.ne.s32.totalorder %s225, %s227
      %p231 = scmp.eq.s32.totalorder %s23, 0
      %p232 = por %p230, %p231
      %p233 = scmp.ne.s32.totalorder %s225, %s227
      %p234 = scmp.eq.s32.totalorder %s28, 1
      %p235 = por %p233, %p234
      %p236 = scmp.ne.s32.totalorder %s227, %s228
      %p237 = scmp.eq.s32.totalorder %s28, 0
      %p238 = por %p236, %p237
      %p239 = scmp.ne.s32.totalorder %s227, %s228
      %p240 = scmp.eq.s32.totalorder %s29, 1
      %p241 = por %p239, %p240
      %p243 = scmp.ne.s32.totalorder %s228, %s242
      %p244 = scmp.eq.s32.totalorder %s29, 0
      %p245 = por %p243, %p244
      %s247 = sadd.s32 %s246, 1
      %p250 = scmp.eq.s32.totalorder %s23, 1
      %p251 = scmp.ne.s32.totalorder %s246, %s248
      %p252 = scmp.eq.s32.totalorder %s23, 0
      %p253 = por %p251, %p252
      %p254 = scmp.ne.s32.totalorder %s246, %s248
      %p255 = scmp.eq.s32.totalorder %s28, 1
      %p256 = por %p254, %p255
      %p257 = scmp.ne.s32.totalorder %s248, %s249
      %p258 = scmp.eq.s32.totalorder %s28, 0
      %p259 = por %p257, %p258
      %p260 = scmp.ne.s32.totalorder %s248, %s249
      %p261 = scmp.eq.s32.totalorder %s29, 1
      %p262 = por %p260, %p261
      %p264 = scmp.ne.s32.totalorder %s249, %s263
      %p265 = scmp.eq.s32.totalorder %s29, 0
      %p266 = por %p264, %p265
      %s268 = sadd.s32 %s267, 1
      %p271 = scmp.eq.s32.totalorder %s23, 1
      %p272 = scmp.ne.s32.totalorder %s267, %s269
      %p273 = scmp.eq.s32.totalorder %s23, 0
      %p274 = por %p272, %p273
      %p275 = scmp.ne.s32.totalorder %s267, %s269
      %p276 = scmp.eq.s32.totalorder %s28, 1
      %p277 = por %p275, %p276
      %p278 = scmp.ne.s32.totalorder %s269, %s270
      %p279 = scmp.eq.s32.totalorder %s28, 0
      %p280 = por %p278, %p279
      %p281 = scmp.ne.s32.totalorder %s269, %s270
      %p282 = scmp.eq.s32.totalorder %s29, 1
      %p283 = por %p281, %p282
      %p285 = scmp.ne.s32.totalorder %s270, %s284
      %p286 = scmp.eq.s32.totalorder %s29, 0
      %p287 = por %p285, %p286
      %s289 = sadd.s32 %s288, 1
      %p292 = scmp.eq.s32.totalorder %s23, 1
      %p293 = scmp.ne.s32.totalorder %s288, %s290
      %p294 = scmp.eq.s32.totalorder %s23, 0
      %p295 = por %p293, %p294
      %p296 = scmp.ne.s32.totalorder %s288, %s290
      %p297 = scmp.eq.s32.totalorder %s28, 1
      %p298 = por %p296, %p297
      %p299 = scmp.ne.s32.totalorder %s290, %s291
      %p300 = scmp.eq.s32.totalorder %s28, 0
      %p301 = por %p299, %p300
      %p302 = scmp.ne.s32.totalorder %s290, %s291
      %p303 = scmp.eq.s32.totalorder %s29, 1
      %p304 = por %p302, %p303
      %p306 = scmp.ne.s32.totalorder %s291, %s305
      %p307 = scmp.eq.s32.totalorder %s29, 0
      %p308 = por %p306, %p307
      %s310 = sadd.s32 %s309, 1
      %p313 = scmp.eq.s32.totalorder %s23, 1
      %p314 = scmp.ne.s32.totalorder %s309, %s311
      %p315 = scmp.eq.s32.totalorder %s23, 0
      %p316 = por %p314, %p315
      %p317 = scmp.ne.s32.totalorder %s309, %s311
      %p318 = scmp.eq.s32.totalorder %s28, 1
      %p319 = por %p317, %p318
      %p320 = scmp.ne.s32.totalorder %s311, %s312
      %p321 = scmp.eq.s32.totalorder %s28, 0
      %p322 = por %p320, %p321
      %p323 = scmp.ne.s32.totalorder %s311, %s312
      %p324 = scmp.eq.s32.totalorder %s29, 1
      %p325 = por %p323, %p324
      %p327 = scmp.ne.s32.totalorder %s312, %s326
      %p328 = scmp.eq.s32.totalorder %s29, 0
      %p329 = por %p327, %p328
      %s330 = ssub.s32 %s23, %s30
      %p331 = scmp.eq.s32.totalorder %s330, 0
      %s333 = sadd.s32 %s332, 1
      %s334 = scalar_select %p331, %s332, %s333
      %p337 = pneg %p331
      %p338 = scmp.eq.s32.totalorder %s23, 1
      %p339 = por %p337, %p338
      %p340 = scmp.ne.s32.totalorder %s332, %s335
      %p341 = scmp.eq.s32.totalorder %s23, 0
      %p342 = por %p340, %p341
      %p343 = scmp.ne.s32.totalorder %s332, %s335
      %p344 = scmp.eq.s32.totalorder %s28, 1
      %p345 = por %p343, %p344
      %p346 = scmp.ne.s32.totalorder %s335, %s336
      %p347 = scmp.eq.s32.totalorder %s28, 0
      %p348 = por %p346, %p347
      %p349 = scmp.ne.s32.totalorder %s335, %s336
      %p350 = scmp.eq.s32.totalorder %s29, 1
      %p351 = por %p349, %p350
      %p353 = scmp.ne.s32.totalorder %s336, %s352
      %p354 = scmp.eq.s32.totalorder %s29, 0
      %p355 = por %p353, %p354
      %p356 = scmp.le.s32.totalorder 1, %s23
      %p357 = scmp.lt.s32.totalorder %s23, 3
      %p358 = pnand %p356, %p357
      %p359 = pneg %p358
      // Predicated region
      $region9: #{simple_mnist_net.1} parent=5 // pred_check
        _
      $region10: #{simple_mnist_net.1} parent=5 // pred_check_branch
        %361 = sbr.rel (%p358) target = $region12
      $region11: #{simple_mnist_net.1} parent=5 // pred_region
        %s362 = ssub.s32 %s23, 1
        // Predicated region
        $region13: #{simple_mnist_net.1} parent=11 // pred_check
          %p363 = pneg %p70
        $region14: #{simple_mnist_net.1} parent=11 // pred_check_branch
          %365 = sbr.rel (%p363) target = $region16
        $region15: #{simple_mnist_net.1} parent=11 // pred_region
          _
        $region16: #{simple_mnist_net.1} parent=11 // pred_fallthru
          _
        // Predicated region
        $region17: #{simple_mnist_net.1} parent=11 // pred_check
          %p366 = pneg %p91
        $region18: #{simple_mnist_net.1} parent=11 // pred_check_branch
          %368 = sbr.rel (%p366) target = $region20
        $region19: #{simple_mnist_net.1} parent=11 // pred_region
          _
        $region20: #{simple_mnist_net.1} parent=11 // pred_fallthru
          _
        // Predicated region
        $region21: #{simple_mnist_net.1} parent=11 // pred_check
          %p369 = pneg %p112
        $region22: #{simple_mnist_net.1} parent=11 // pred_check_branch
          %371 = sbr.rel (%p369) target = $region24
        $region23: #{simple_mnist_net.1} parent=11 // pred_region
          _
        $region24: #{simple_mnist_net.1} parent=11 // pred_fallthru
          _
        // Predicated region
        $region25: #{simple_mnist_net.1} parent=11 // pred_check
          %p372 = pneg %p133
        $region26: #{simple_mnist_net.1} parent=11 // pred_check_branch
          %374 = sbr.rel (%p372) target = $region28
        $region27: #{simple_mnist_net.1} parent=11 // pred_region
          _
        $region28: #{simple_mnist_net.1} parent=11 // pred_fallthru
          _
        // Predicated region
        $region29: #{simple_mnist_net.1} parent=11 // pred_check
          %p375 = pneg %p154
        $region30: #{simple_mnist_net.1} parent=11 // pred_check_branch
          %377 = sbr.rel (%p375) target = $region32
        $region31: #{simple_mnist_net.1} parent=11 // pred_region
          _
        $region32: #{simple_mnist_net.1} parent=11 // pred_fallthru
          _
        // Predicated region
        $region33: #{simple_mnist_net.1} parent=11 // pred_check
          %p378 = pneg %p175
        $region34: #{simple_mnist_net.1} parent=11 // pred_check_branch
          %380 = sbr.rel (%p378) target = $region36
        $region35: #{simple_mnist_net.1} parent=11 // pred_region
          _
        $region36: #{simple_mnist_net.1} parent=11 // pred_fallthru
          _
        // Predicated region
        $region37: #{simple_mnist_net.1} parent=11 // pred_check
          %p381 = pneg %p196
        $region38: #{simple_mnist_net.1} parent=11 // pred_check_branch
          %383 = sbr.rel (%p381) target = $region40
        $region39: #{simple_mnist_net.1} parent=11 // pred_region
          _
        $region40: #{simple_mnist_net.1} parent=11 // pred_fallthru
          _
        // Predicated region
        $region41: #{simple_mnist_net.1} parent=11 // pred_check
          %p384 = pneg %p217
        $region42: #{simple_mnist_net.1} parent=11 // pred_check_branch
          %386 = sbr.rel (%p384) target = $region44
        $region43: #{simple_mnist_net.1} parent=11 // pred_region
          _
        $region44: #{simple_mnist_net.1} parent=11 // pred_fallthru
          _
        // Predicated region
        $region45: #{simple_mnist_net.1} parent=11 // pred_check
          %p387 = pneg %p238
        $region46: #{simple_mnist_net.1} parent=11 // pred_check_branch
          %389 = sbr.rel (%p387) target = $region48
        $region47: #{simple_mnist_net.1} parent=11 // pred_region
          _
        $region48: #{simple_mnist_net.1} parent=11 // pred_fallthru
          _
        // Predicated region
        $region49: #{simple_mnist_net.1} parent=11 // pred_check
          %p390 = pneg %p259
        $region50: #{simple_mnist_net.1} parent=11 // pred_check_branch
          %392 = sbr.rel (%p390) target = $region52
        $region51: #{simple_mnist_net.1} parent=11 // pred_region
          _
        $region52: #{simple_mnist_net.1} parent=11 // pred_fallthru
          _
        // Predicated region
        $region53: #{simple_mnist_net.1} parent=11 // pred_check
          %p393 = pneg %p280
        $region54: #{simple_mnist_net.1} parent=11 // pred_check_branch
          %395 = sbr.rel (%p393) target = $region56
        $region55: #{simple_mnist_net.1} parent=11 // pred_region
          _
        $region56: #{simple_mnist_net.1} parent=11 // pred_fallthru
          _
        // Predicated region
        $region57: #{simple_mnist_net.1} parent=11 // pred_check
          %p396 = pneg %p301
        $region58: #{simple_mnist_net.1} parent=11 // pred_check_branch
          %398 = sbr.rel (%p396) target = $region60
        $region59: #{simple_mnist_net.1} parent=11 // pred_region
          _
        $region60: #{simple_mnist_net.1} parent=11 // pred_fallthru
          _
        // Predicated region
        $region61: #{simple_mnist_net.1} parent=11 // pred_check
          %p399 = pneg %p322
        $region62: #{simple_mnist_net.1} parent=11 // pred_check_branch
          %401 = sbr.rel (%p399) target = $region64
        $region63: #{simple_mnist_net.1} parent=11 // pred_region
          _
        $region64: #{simple_mnist_net.1} parent=11 // pred_fallthru
          _
      $region12: #{simple_mnist_net.1} parent=5 // pred_fallthru
        _
      %p402 = scmp.lt.s32.totalorder %s23, 2
      // Predicated region
      $region65: #{simple_mnist_net.1} parent=5 // pred_check
        %p403 = pneg %p402
      $region66: #{simple_mnist_net.1} parent=5 // pred_check_branch
        %405 = sbr.rel (%p403) target = $region68
      $region67: #{simple_mnist_net.1} parent=5 // pred_region
        // Predicated region
        $region69: #{simple_mnist_net.1} parent=67 // pred_check
          %p406 = pneg %p43
        $region70: #{simple_mnist_net.1} parent=67 // pred_check_branch
          %408 = sbr.rel (%p406) target = $region72
        $region71: #{simple_mnist_net.1} parent=67 // pred_region
          %p409 = scmp.lt.s32.totalorder %s23, 1
          %s410 = scalar_select %p409, %s23, 1
          %s411 = smul.addr %s410, 7
          %s412 = smul.addr %s411, 8
          %s413 = scalar_lea.vmem %s0, %s412
        $region72: #{simple_mnist_net.1} parent=67 // pred_fallthru
          _
      $region68: #{simple_mnist_net.1} parent=5 // pred_fallthru
        _
      %p414 = scmp.le.s32.totalorder 1, %s23
      %p415 = scmp.lt.s32.totalorder %s23, 3
      %p416 = pnand %p414, %p415
      %p417 = pneg %p416
      // Predicated region
      $region73: #{simple_mnist_net.1} parent=5 // pred_check
        _
      $region74: #{simple_mnist_net.1} parent=5 // pred_check_branch
        %419 = sbr.rel (%p416) target = $region76
      $region75: #{simple_mnist_net.1} parent=5 // pred_region
        %s420 = ssub.s32 %s23, 1
        %p421 = scmp.lt.s32.totalorder %s28, 1
        %s422 = scalar_select %p421, %s28, 1
        %s423 = smul.addr %s422, 7
        %s424 = smul.addr %s423, 8
        %s425 = scalar_lea.vmem %s0, %s424
        %p426 = pneg %p49
        %p427 = pneg %p46
        %p428 = pneg %p70
        %p429 = pneg %p67
        %p430 = pneg %p91
        %p431 = pneg %p88
        %p432 = pneg %p112
        %p433 = pneg %p109
        %p434 = pneg %p133
        %p435 = pneg %p130
        %p436 = pneg %p154
        %p437 = pneg %p151
        %p438 = pneg %p175
        %p439 = pneg %p172
        %p440 = pneg %p196
        %p441 = pneg %p193
        %p442 = pneg %p217
        %p443 = pneg %p214
        %p444 = pneg %p238
        %p445 = pneg %p235
        %p446 = pneg %p259
        %p447 = pneg %p256
        %p448 = pneg %p280
        %p449 = pneg %p277
        %p450 = pneg %p301
        %p451 = pneg %p298
        %p452 = pneg %p322
        %p453 = pneg %p319
        %p454 = pneg %p348
        %p455 = pneg %p345
        %s456 = sand.u32 %s335, 1
        %s457 = scalar_lea.sflag [#allocation5], %s456
        %s458 = sand.u32 %s335, 1
        %s459 = smul.addr %s458, 8
        %s460 = scalar_lea.vmem [#allocation4], %s459
        %p461 = scmp.lt.s32.totalorder %s28, 1
        %s462 = scalar_select %p461, %s28, 1
        %s463 = smul.addr %s462, 7
        %s464 = smul.addr %s463, 8
        %s465 = scalar_lea.vmem %s0, %s464
        %vm467 = vcmask 1047680
        %468 = vst.msk [vmem:[#allocation2 + $0x30] sm:$0xff] %vm467, 0.0
        %v469 = vld [vmem:[%s465] sm:$0xff]
        %v470 = vld [vmem:[%s465 + $0x8] sm:$0xff]
        %v471 = vld [vmem:[%s465 + $0x10] sm:$0xff]
        %v472 = vld [vmem:[%s465 + $0x18] sm:$0xff]
        %v473 = vld [vmem:[%s465 + $0x20] sm:$0xff]
        %v474 = vld [vmem:[%s465 + $0x28] sm:$0xff]
        %v475 = vld [vmem:[%s465 + $0x30] sm:$0xff]
        %476 = vst [vmem:[#allocation2] sm:$0xff] %v469
        %477 = vst [vmem:[#allocation2 + $0x8] sm:$0xff] %v470
        %478 = vst [vmem:[#allocation2 + $0x10] sm:$0xff] %v471
        %479 = vst [vmem:[#allocation2 + $0x18] sm:$0xff] %v472
        %480 = vst [vmem:[#allocation2 + $0x20] sm:$0xff] %v473
        %481 = vst [vmem:[#allocation2 + $0x28] sm:$0xff] %v474
        %vm482 = vcmask 130048
        %483 = vst.msk [vmem:[#allocation2 + $0x30] sm:$0xff] %vm482, %v475
        %v484 = vld [vmem:[#allocation2] sm:$0xff]
        %v485 = vld [vmem:[#allocation2 + $0x8] sm:$0xff]
        %v486 = vld [vmem:[#allocation2 + $0x10] sm:$0xff]
        %v487 = vld [vmem:[#allocation2 + $0x18] sm:$0xff]
        %v488 = vld [vmem:[#allocation2 + $0x20] sm:$0xff]
        %v489 = vld [vmem:[#allocation2 + $0x28] sm:$0xff]
        %v490 = vld [vmem:[#allocation2] sm:$0xff]
        %v491 = vld [vmem:[#allocation2 + $0x8] sm:$0xff]
        %v492 = vld [vmem:[#allocation2 + $0x10] sm:$0xff]
        %v493 = vld [vmem:[#allocation2 + $0x18] sm:$0xff]
        %v494 = vld [vmem:[#allocation2 + $0x20] sm:$0xff]
        %v495 = vld [vmem:[#allocation2 + $0x28] sm:$0xff]
        %v496 = vld [vmem:[#allocation2 + $0x30] sm:$0xff]
        %503 = vrot.lane.b32.xlu0 %v484, 127
        %v504 = vpop.permute.xlu0 %503
        %505 = vrot.lane.b32.xlu0 %v485, 127
        %v506 = vpop.permute.xlu0 %505
        %507 = vrot.lane.b32.xlu0 %v486, 127
        %v508 = vpop.permute.xlu0 %507
        %509 = vrot.lane.b32.xlu0 %v487, 127
        %v510 = vpop.permute.xlu0 %509
        %511 = vrot.lane.b32.xlu0 %v488, 127
        %v512 = vpop.permute.xlu0 %511
        %513 = vrot.lane.b32.xlu0 %v489, 127
        %v514 = vpop.permute.xlu0 %513
        %vm515 = vcmask 1039360
        %v516 = vsel %vm515, %v504, %v506
        %v517 = vsel %vm515, %v506, %v508
        %v518 = vsel %vm515, %v508, %v510
        %v519 = vsel %vm515, %v510, %v512
        %v520 = vsel %vm515, %v512, %v514
        %527 = vrot.lane.b32.xlu0 %v484, 126
        %v528 = vpop.permute.xlu0 %527
        %529 = vrot.lane.b32.xlu0 %v485, 126
        %v530 = vpop.permute.xlu0 %529
        %531 = vrot.lane.b32.xlu0 %v486, 126
        %v532 = vpop.permute.xlu0 %531
        %533 = vrot.lane.b32.xlu0 %v487, 126
        %v534 = vpop.permute.xlu0 %533
        %535 = vrot.lane.b32.xlu0 %v488, 126
        %v536 = vpop.permute.xlu0 %535
        %537 = vrot.lane.b32.xlu0 %v489, 126
        %v538 = vpop.permute.xlu0 %537
        %vm539 = vcmask 1031168
        %v540 = vsel %vm539, %v528, %v530
        %v541 = vsel %vm539, %v530, %v532
        %v542 = vsel %vm539, %v532, %v534
        %v543 = vsel %vm539, %v534, %v536
        %v544 = vsel %vm539, %v536, %v538
        %551 = vrot.lane.b32.xlu0 %v484, 100
        %v552 = vpop.permute.xlu0 %551
        %553 = vrot.lane.b32.xlu0 %v485, 100
        %v554 = vpop.permute.xlu0 %553
        %555 = vrot.lane.b32.xlu0 %v486, 100
        %v556 = vpop.permute.xlu0 %555
        %557 = vrot.lane.b32.xlu0 %v487, 100
        %v558 = vpop.permute.xlu0 %557
        %559 = vrot.lane.b32.xlu0 %v488, 100
        %v560 = vpop.permute.xlu0 %559
        %561 = vrot.lane.b32.xlu0 %v489, 100
        %v562 = vpop.permute.xlu0 %561
        %vm563 = vcmask 818176
        %v564 = vsel %vm563, %v552, %v554
        %v565 = vsel %vm563, %v554, %v556
        %v566 = vsel %vm563, %v556, %v558
        %v567 = vsel %vm563, %v558, %v560
        %v568 = vsel %vm563, %v560, %v562
        %575 = vrot.lane.b32.xlu0 %v484, 99
        %v576 = vpop.permute.xlu0 %575
        %577 = vrot.lane.b32.xlu0 %v485, 99
        %v578 = vpop.permute.xlu0 %577
        %579 = vrot.lane.b32.xlu0 %v486, 99
        %v580 = vpop.permute.xlu0 %579
        %581 = vrot.lane.b32.xlu0 %v487, 99
        %v582 = vpop.permute.xlu0 %581
        %583 = vrot.lane.b32.xlu0 %v488, 99
        %v584 = vpop.permute.xlu0 %583
        %585 = vrot.lane.b32.xlu0 %v489, 99
        %v586 = vpop.permute.xlu0 %585
        %vm587 = vcmask 809984
        %v588 = vsel %vm587, %v576, %v578
        %v589 = vsel %vm587, %v578, %v580
        %v590 = vsel %vm587, %v580, %v582
        %v591 = vsel %vm587, %v582, %v584
        %v592 = vsel %vm587, %v584, %v586
        %599 = vrot.lane.b32.xlu0 %v484, 98
        %v600 = vpop.permute.xlu0 %599
        %601 = vrot.lane.b32.xlu0 %v485, 98
        %v602 = vpop.permute.xlu0 %601
        %603 = vrot.lane.b32.xlu0 %v486, 98
        %v604 = vpop.permute.xlu0 %603
        %605 = vrot.lane.b32.xlu0 %v487, 98
        %v606 = vpop.permute.xlu0 %605
        %607 = vrot.lane.b32.xlu0 %v488, 98
        %v608 = vpop.permute.xlu0 %607
        %609 = vrot.lane.b32.xlu0 %v489, 98
        %v610 = vpop.permute.xlu0 %609
        %vm611 = vcmask 801792
        %v612 = vsel %vm611, %v600, %v602
        %v613 = vsel %vm611, %v602, %v604
        %v614 = vsel %vm611, %v604, %v606
        %v615 = vsel %vm611, %v606, %v608
        %v616 = vsel %vm611, %v608, %v610
        %630 = vrot.lane.b32.xlu0 %v490, 72
        %v631 = vpop.permute.xlu0 %630
        %632 = vrot.lane.b32.xlu0 %v491, 72
        %v633 = vpop.permute.xlu0 %632
        %634 = vrot.lane.b32.xlu0 %v492, 72
        %v635 = vpop.permute.xlu0 %634
        %636 = vrot.lane.b32.xlu0 %v493, 72
        %v637 = vpop.permute.xlu0 %636
        %638 = vrot.lane.b32.xlu0 %v494, 72
        %v639 = vpop.permute.xlu0 %638
        %640 = vrot.lane.b32.xlu0 %v495, 72
        %v641 = vpop.permute.xlu0 %640
        %642 = vrot.lane.b32.xlu0 %v496, 72
        %v643 = vpop.permute.xlu0 %642
        %vm644 = vcmask 588800
        %v645 = vsel %vm644, %v631, %v633
        %v646 = vsel %vm644, %v633, %v635
        %v647 = vsel %vm644, %v635, %v637
        %v648 = vsel %vm644, %v637, %v639
        %v649 = vsel %vm644, %v639, %v641
        %v650 = vsel %vm644, %v641, %v643
        %657 = vrot.lane.b32.xlu0 %v490, 71
        %v658 = vpop.permute.xlu0 %657
        %659 = vrot.lane.b32.xlu0 %v491, 71
        %v660 = vpop.permute.xlu0 %659
        %661 = vrot.lane.b32.xlu0 %v492, 71
        %v662 = vpop.permute.xlu0 %661
        %663 = vrot.lane.b32.xlu0 %v493, 71
        %v664 = vpop.permute.xlu0 %663
        %665 = vrot.lane.b32.xlu0 %v494, 71
        %v666 = vpop.permute.xlu0 %665
        %667 = vrot.lane.b32.xlu0 %v495, 71
        %v668 = vpop.permute.xlu0 %667
        %669 = vrot.lane.b32.xlu0 %v496, 71
        %v670 = vpop.permute.xlu0 %669
        %vm671 = vcmask 580608
        %v672 = vsel %vm671, %v658, %v660
        %v673 = vsel %vm671, %v660, %v662
        %v674 = vsel %vm671, %v662, %v664
        %v675 = vsel %vm671, %v664, %v666
        %v676 = vsel %vm671, %v666, %v668
        %v677 = vsel %vm671, %v668, %v670
        %684 = vrot.lane.b32.xlu0 %v490, 70
        %v685 = vpop.permute.xlu0 %684
        %686 = vrot.lane.b32.xlu0 %v491, 70
        %v687 = vpop.permute.xlu0 %686
        %688 = vrot.lane.b32.xlu0 %v492, 70
        %v689 = vpop.permute.xlu0 %688
        %690 = vrot.lane.b32.xlu0 %v493, 70
        %v691 = vpop.permute.xlu0 %690
        %692 = vrot.lane.b32.xlu0 %v494, 70
        %v693 = vpop.permute.xlu0 %692
        %694 = vrot.lane.b32.xlu0 %v495, 70
        %v695 = vpop.permute.xlu0 %694
        %696 = vrot.lane.b32.xlu0 %v496, 70
        %v697 = vpop.permute.xlu0 %696
        %vm698 = vcmask 572416
        %v699 = vsel %vm698, %v685, %v687
        %v700 = vsel %vm698, %v687, %v689
        %v701 = vsel %vm698, %v689, %v691
        %v702 = vsel %vm698, %v691, %v693
        %v703 = vsel %vm698, %v693, %v695
        %v704 = vsel %vm698, %v695, %v697
        %v711 = vld [vmem:[%s1] sm:$0xf]
        %v712 = vld [vmem:[%s1 + $0x4] sm:$0xf]
        %v713 = vld [vmem:[%s1 + $0x8] sm:$0xf]
        %v714 = vld [vmem:[%s1 + $0xc] sm:$0xf]
        %v715 = vld [vmem:[%s1 + $0x10] sm:$0xf]
        %v716 = vld [vmem:[%s1 + $0x14] sm:$0xf]
        %v717 = vld [vmem:[%s1 + $0x18] sm:$0xf]
        %v718 = vld [vmem:[%s1 + $0x1c] sm:$0xf]
        %v719 = vld [vmem:[%s1 + $0x20] sm:$0xf]
        %v720 = vld [vmem:[%s1 + $0x24] sm:$0xf]
        %v721 = vld [vmem:[%s1 + $0x28] sm:$0xf]
        %v722 = vld [vmem:[%s1 + $0x2c] sm:$0xf]
        %v723 = vld [vmem:[%s1 + $0x30] sm:$0xf]
        %v724 = vld [vmem:[%s1 + $0x34] sm:$0xf]
        %v725 = vld [vmem:[%s1 + $0x38] sm:$0xf]
        %v726 = vld [vmem:[%s1 + $0x3c] sm:$0xf]
        %v727 = vpack.c.bf16 %v516, %v484
        %v728 = vpack.c.bf16 %v517, %v485
        %v729 = vpack.c.bf16 %v518, %v486
        %v730 = vpack.c.bf16 %v519, %v487
        %v731 = vpack.c.bf16 %v520, %v488
        %v732 = vpack.c.bf16 %v514, %v489
        %v733 = vpack.c.bf16 %v564, %v540
        %v734 = vpack.c.bf16 %v565, %v541
        %v735 = vpack.c.bf16 %v566, %v542
        %v736 = vpack.c.bf16 %v567, %v543
        %v737 = vpack.c.bf16 %v568, %v544
        %v738 = vpack.c.bf16 %v562, %v538
        %v739 = vpack.c.bf16 %v612, %v588
        %v740 = vpack.c.bf16 %v613, %v589
        %v741 = vpack.c.bf16 %v614, %v590
        %v742 = vpack.c.bf16 %v615, %v591
        %v743 = vpack.c.bf16 %v616, %v592
        %v744 = vpack.c.bf16 %v610, %v586
        %v745 = vpack.c.bf16 %v672, %v645
        %v746 = vpack.c.bf16 %v673, %v646
        %v747 = vpack.c.bf16 %v674, %v647
        %v748 = vpack.c.bf16 %v675, %v648
        %v749 = vpack.c.bf16 %v676, %v649
        %v750 = vpack.c.bf16 %v677, %v650
        %v751 = vpack.c.bf16 %v699, %v699
        %v752 = vpack.c.bf16 %v700, %v700
        %v753 = vpack.c.bf16 %v701, %v701
        %v754 = vpack.c.bf16 %v702, %v702
        %v755 = vpack.c.bf16 %v703, %v703
        %v756 = vpack.c.bf16 %v704, %v704
        %v757 = vld [vmem:[%s2] sm:$0xff]
        %v758 = vld [vmem:[%s2 + $0x8] sm:$0xff]
        %v759 = vld [vmem:[%s2 + $0x10] sm:$0xff]
        %v760 = vld [vmem:[%s2 + $0x18] sm:$0xff]
        %v761 = vld [vmem:[%s2 + $0x20] sm:$0xff]
        %v762 = vld [vmem:[%s2 + $0x28] sm:$0xff]
        %v763 = vld [vmem:[%s2 + $0x30] sm:$0xff]
        %v764 = vld [vmem:[%s2 + $0x38] sm:$0xff]
        %v765 = vld [vmem:[%s2 + $0x40] sm:$0xff]
        %v766 = vld [vmem:[%s2 + $0x48] sm:$0xff]
        %v767 = vld [vmem:[%s2 + $0x50] sm:$0xff]
        %v768 = vld [vmem:[%s2 + $0x58] sm:$0xff]
        %v769 = vld [vmem:[%s2 + $0x60] sm:$0xff]
        %v770 = vld [vmem:[%s2 + $0x68] sm:$0xff]
        %v771 = vld [vmem:[%s2 + $0x70] sm:$0xff]
        %v772 = vld [vmem:[%s2 + $0x78] sm:$0xff]
        %774 = vset.pattern.permute.xlu0 0
        %775 = vperm.xlu0 %774, %v757
        %v776 = vpop.permute.xlu0 %775
        %779 = vset.pattern.permute.xlu0 0
        %780 = vperm.xlu0 %779, %v758
        %v781 = vpop.permute.xlu0 %780
        %784 = vset.pattern.permute.xlu0 0
        %785 = vperm.xlu0 %784, %v759
        %v786 = vpop.permute.xlu0 %785
        %789 = vset.pattern.permute.xlu0 0
        %790 = vperm.xlu0 %789, %v760
        %v791 = vpop.permute.xlu0 %790
        %794 = vset.pattern.permute.xlu0 0
        %795 = vperm.xlu0 %794, %v761
        %v796 = vpop.permute.xlu0 %795
        %799 = vset.pattern.permute.xlu0 0
        %800 = vperm.xlu0 %799, %v762
        %v801 = vpop.permute.xlu0 %800
        %804 = vset.pattern.permute.xlu0 0
        %805 = vperm.xlu0 %804, %v763
        %v806 = vpop.permute.xlu0 %805
        %809 = vset.pattern.permute.xlu0 0
        %810 = vperm.xlu0 %809, %v764
        %v811 = vpop.permute.xlu0 %810
        %814 = vset.pattern.permute.xlu0 0
        %815 = vperm.xlu0 %814, %v765
        %v816 = vpop.permute.xlu0 %815
        %819 = vset.pattern.permute.xlu0 0
        %820 = vperm.xlu0 %819, %v766
        %v821 = vpop.permute.xlu0 %820
        %824 = vset.pattern.permute.xlu0 0
        %825 = vperm.xlu0 %824, %v767
        %v826 = vpop.permute.xlu0 %825
        %829 = vset.pattern.permute.xlu0 0
        %830 = vperm.xlu0 %829, %v768
        %v831 = vpop.permute.xlu0 %830
        %834 = vset.pattern.permute.xlu0 0
        %835 = vperm.xlu0 %834, %v769
        %v836 = vpop.permute.xlu0 %835
        %839 = vset.pattern.permute.xlu0 0
        %840 = vperm.xlu0 %839, %v770
        %v841 = vpop.permute.xlu0 %840
        %844 = vset.pattern.permute.xlu0 0
        %845 = vperm.xlu0 %844, %v771
        %v846 = vpop.permute.xlu0 %845
        %849 = vset.pattern.permute.xlu0 0
        %850 = vperm.xlu0 %849, %v772
        %v851 = vpop.permute.xlu0 %850
        %v869 = vunpack.c.l.b16 %v711
        %v870 = vunpack.c.l.b16 %v712
        %v871 = vunpack.c.l.b16 %v713
        %v872 = vunpack.c.l.b16 %v714
        %v873 = vunpack.c.l.b16 %v715
        %v874 = vunpack.c.l.b16 %v716
        %v875 = vunpack.c.l.b16 %v717
        %v876 = vunpack.c.l.b16 %v718
        %v877 = vunpack.c.l.b16 %v719
        %v878 = vunpack.c.l.b16 %v720
        %v879 = vunpack.c.l.b16 %v721
        %v880 = vunpack.c.l.b16 %v722
        %v881 = vunpack.c.l.b16 %v723
        %v882 = vunpack.c.l.b16 %v724
        %v883 = vunpack.c.l.b16 %v725
        %v884 = vunpack.c.l.b16 %v726
        %v885 = vpack.c.b16 %v870, %v869
        %v886 = vpack.c.b16 %v872, %v871
        %v887 = vpack.c.b16 %v874, %v873
        %v888 = vpack.c.b16 %v876, %v875
        %v889 = vpack.c.b16 %v878, %v877
        %v890 = vpack.c.b16 %v880, %v879
        %v891 = vpack.c.b16 %v882, %v881
        %v892 = vpack.c.b16 %v884, %v883
        %v894 = vsel %vm644, %v885, 0
        %v897 = vsel %vm644, %v886, 0
        %v900 = vsel %vm644, %v887, 0
        %v903 = vsel %vm644, %v888, 0
        %v906 = vsel %vm644, %v889, 0
        %v909 = vsel %vm644, %v890, 0
        %v912 = vsel %vm644, %v891, 0
        %v915 = vsel %vm644, %v892, 0
        %vm917 = vcmask 1043456
        %v919 = vsel %vm917, %v751, 0
        %v922 = vsel %vm917, %v752, 0
        %v925 = vsel %vm917, %v753, 0
        %v928 = vsel %vm917, %v754, 0
        %v931 = vsel %vm917, %v755, 0
        %v934 = vsel %vm917, %v756, 0
        %936 = vmatprep.subr.bf16.mxu0 %v728
        %937 = vmatpush1.bf16.msra.mxu0 %v727
        %938 = vmatprep.subr.bf16.mxu0 %v734
        %939 = vmatpush1.bf16.msra.mxu0 %v733
        %940 = vmatprep.subr.bf16.mxu0 %v740
        %941 = vmatpush1.bf16.msra.mxu0 %v739
        %942 = vmatprep.subr.bf16.mxu0 %v746
        %943 = vmatpush1.bf16.msra.mxu0 %v745
        %944 = vmatprep.subr.bf16.mxu0 %v922
        %945 = vmatpush1.bf16.msra.mxu0 %v919
        %946 = vmatprep.subr.bf16.mxu0 0
        %947 = vmatpush1.bf16.msra.mxu0 0
        %948 = vmatprep.subr.bf16.mxu0 0
        %949 = vmatpush1.bf16.msra.mxu0 0
        %950 = vmatprep.subr.bf16.mxu0 0
        %951 = vmatpush1.bf16.msra.mxu0 0
        %952 = vmatprep.subr.bf16.mxu0 0
        %953 = vmatpush1.bf16.msra.mxu0 0
        %954 = vmatprep.subr.bf16.mxu0 0
        %955 = vmatpush1.bf16.msra.mxu0 0
        %956 = vmatprep.subr.bf16.mxu0 0
        %957 = vmatpush1.bf16.msra.mxu0 0
        %958 = vmatprep.subr.bf16.mxu0 0
        %959 = vmatpush1.bf16.msra.mxu0 0
        %960 = vmatprep.subr.bf16.mxu0 0
        %961 = vmatpush1.bf16.msra.mxu0 0
        %962 = vmatprep.subr.bf16.mxu0 0
        %963 = vmatpush1.bf16.msra.mxu0 0
        %964 = vmatprep.subr.bf16.mxu0 0
        %965 = vmatpush1.bf16.msra.mxu0 0
        %966 = vmatprep.subr.bf16.mxu0 0
        %967 = vmatpush1.bf16.msra.mxu0 0
        %968 = vmatprep.mubr.bf16.mxu0 0
        %969 = vmatmul.mubr.bf16.gmra.mrb[0].mxu0 %v894
        %v970 = vpop.f32.mrb[0].mxu0
        %v971 = vadd.f32 %v776, %v970
        %v972 = vpop.f32.mrb[0].mxu0
        %v973 = vadd.f32 %v776, %v972
        %v974 = vpop.f32.mrb[0].mxu0
        %v975 = vadd.f32 %v781, %v974
        %v976 = vpop.f32.mrb[0].mxu0
        %v977 = vadd.f32 %v781, %v976
        %978 = vmatprep.mubr.bf16.mxu0 0
        %979 = vmatmul.mubr.bf16.gmra.mrb[0].mxu0 %v897
        %v980 = vpop.f32.mrb[0].mxu0
        %v981 = vadd.f32 %v786, %v980
        %v982 = vpop.f32.mrb[0].mxu0
        %v983 = vadd.f32 %v786, %v982
        %v984 = vpop.f32.mrb[0].mxu0
        %v985 = vadd.f32 %v791, %v984
        %v986 = vpop.f32.mrb[0].mxu0
        %v987 = vadd.f32 %v791, %v986
        %988 = vmatprep.mubr.bf16.mxu0 0
        %989 = vmatmul.mubr.bf16.gmra.mrb[0].mxu0 %v900
        %v990 = vpop.f32.mrb[0].mxu0
        %v991 = vadd.f32 %v796, %v990
        %v992 = vpop.f32.mrb[0].mxu0
        %v993 = vadd.f32 %v796, %v992
        %v994 = vpop.f32.mrb[0].mxu0
        %v995 = vadd.f32 %v801, %v994
        %v996 = vpop.f32.mrb[0].mxu0
        %v997 = vadd.f32 %v801, %v996
        %998 = vmatprep.mubr.bf16.mxu0 0
        %999 = vmatmul.mubr.bf16.gmra.mrb[0].mxu0 %v903
        %v1000 = vpop.f32.mrb[0].mxu0
        %v1001 = vadd.f32 %v806, %v1000
        %v1002 = vpop.f32.mrb[0].mxu0
        %v1003 = vadd.f32 %v806, %v1002
        %v1004 = vpop.f32.mrb[0].mxu0
        %v1005 = vadd.f32 %v811, %v1004
        %v1006 = vpop.f32.mrb[0].mxu0
        %v1007 = vadd.f32 %v811, %v1006
        %1008 = vmatprep.mubr.bf16.mxu0 0
        %1009 = vmatmul.mubr.bf16.gmra.mrb[0].mxu0 %v906
        %v1010 = vpop.f32.mrb[0].mxu0
        %v1011 = vadd.f32 %v816, %v1010
        %v1012 = vpop.f32.mrb[0].mxu0
        %v1013 = vadd.f32 %v816, %v1012
        %v1014 = vpop.f32.mrb[0].mxu0
        %v1015 = vadd.f32 %v821, %v1014
        %v1016 = vpop.f32.mrb[0].mxu0
        %v1017 = vadd.f32 %v821, %v1016
        %1018 = vmatprep.mubr.bf16.mxu0 0
        %1019 = vmatmul.mubr.bf16.gmra.mrb[0].mxu0 %v909
        %v1020 = vpop.f32.mrb[0].mxu0
        %v1021 = vadd.f32 %v826, %v1020
        %v1022 = vpop.f32.mrb[0].mxu0
        %v1023 = vadd.f32 %v826, %v1022
        %v1024 = vpop.f32.mrb[0].mxu0
        %v1025 = vadd.f32 %v831, %v1024
        %v1026 = vpop.f32.mrb[0].mxu0
        %v1027 = vadd.f32 %v831, %v1026
        %1028 = vmatprep.mubr.bf16.mxu0 0
        %1029 = vmatmul.mubr.bf16.gmra.mrb[0].mxu0 %v912
        %v1030 = vpop.f32.mrb[0].mxu0
        %v1031 = vadd.f32 %v836, %v1030
        %v1032 = vpop.f32.mrb[0].mxu0
        %v1033 = vadd.f32 %v836, %v1032
        %v1034 = vpop.f32.mrb[0].mxu0
        %v1035 = vadd.f32 %v841, %v1034
        %v1036 = vpop.f32.mrb[0].mxu0
        %v1037 = vadd.f32 %v841, %v1036
        %1038 = vmatprep.mubr.bf16.mxu0 0
        %1039 = vmatmul.mubr.bf16.gmra.mrb[0].mxu0 %v915
        %v1040 = vpop.f32.mrb[0].mxu0
        %v1041 = vadd.f32 %v846, %v1040
        %v1042 = vpop.f32.mrb[0].mxu0
        %v1043 = vadd.f32 %v846, %v1042
        %v1044 = vpop.f32.mrb[0].mxu0
        %v1045 = vadd.f32 %v851, %v1044
        %v1046 = vpop.f32.mrb[0].mxu0
        %v1047 = vadd.f32 %v851, %v1046
        %1048 = vdwg.mxu0
        %1049 = vmatprep.subr.bf16.mxu0 %v730
        %1050 = vmatpush1.bf16.msra.mxu0 %v729
        %1051 = vmatprep.subr.bf16.mxu0 %v736
        %1052 = vmatpush1.bf16.msra.mxu0 %v735
        %1053 = vmatprep.subr.bf16.mxu0 %v742
        %1054 = vmatpush1.bf16.msra.mxu0 %v741
        %1055 = vmatprep.subr.bf16.mxu0 %v748
        %1056 = vmatpush1.bf16.msra.mxu0 %v747
        %1057 = vmatprep.subr.bf16.mxu0 %v928
        %1058 = vmatpush1.bf16.msra.mxu0 %v925
        %1059 = vmatprep.subr.bf16.mxu0 0
        %1060 = vmatpush1.bf16.msra.mxu0 0
        %1061 = vmatprep.subr.bf16.mxu0 0
        %1062 = vmatpush1.bf16.msra.mxu0 0
        %1063 = vmatprep.subr.bf16.mxu0 0
        %1064 = vmatpush1.bf16.msra.mxu0 0
        %1065 = vmatprep.subr.bf16.mxu0 0
        %1066 = vmatpush1.bf16.msra.mxu0 0
        %1067 = vmatprep.subr.bf16.mxu0 0
        %1068 = vmatpush1.bf16.msra.mxu0 0
        %1069 = vmatprep.subr.bf16.mxu0 0
        %1070 = vmatpush1.bf16.msra.mxu0 0
        %1071 = vmatprep.subr.bf16.mxu0 0
        %1072 = vmatpush1.bf16.msra.mxu0 0
        %1073 = vmatprep.subr.bf16.mxu0 0
        %1074 = vmatpush1.bf16.msra.mxu0 0
        %1075 = vmatprep.subr.bf16.mxu0 0
        %1076 = vmatpush1.bf16.msra.mxu0 0
        %1077 = vmatprep.subr.bf16.mxu0 0
        %1078 = vmatpush1.bf16.msra.mxu0 0
        %1079 = vmatprep.subr.bf16.mxu0 0
        %1080 = vmatpush1.bf16.msra.mxu0 0
        %1081 = vmatprep.mubr.bf16.mxu0 0
        %1082 = vmatmul.mubr.bf16.gmra.mrb[0].mxu0 %v894
        %v1083 = vpop.f32.mrb[0].mxu0
        %v1084 = vadd.f32 %v776, %v1083
        %v1085 = vpop.f32.mrb[0].mxu0
        %v1086 = vadd.f32 %v776, %v1085
        %v1087 = vpop.f32.mrb[0].mxu0
        %v1088 = vadd.f32 %v781, %v1087
        %v1089 = vpop.f32.mrb[0].mxu0
        %v1090 = vadd.f32 %v781, %v1089
        %1091 = vmatprep.mubr.bf16.mxu0 0
        %1092 = vmatmul.mubr.bf16.gmra.mrb[0].mxu0 %v897
        %v1093 = vpop.f32.mrb[0].mxu0
        %v1094 = vadd.f32 %v786, %v1093
        %v1095 = vpop.f32.mrb[0].mxu0
        %v1096 = vadd.f32 %v786, %v1095
        %v1097 = vpop.f32.mrb[0].mxu0
        %v1098 = vadd.f32 %v791, %v1097
        %v1099 = vpop.f32.mrb[0].mxu0
        %v1100 = vadd.f32 %v791, %v1099
        %1101 = vmatprep.mubr.bf16.mxu0 0
        %1102 = vmatmul.mubr.bf16.gmra.mrb[0].mxu0 %v900
        %v1103 = vpop.f32.mrb[0].mxu0
        %v1104 = vadd.f32 %v796, %v1103
        %v1105 = vpop.f32.mrb[0].mxu0
        %v1106 = vadd.f32 %v796, %v1105
        %v1107 = vpop.f32.mrb[0].mxu0
        %v1108 = vadd.f32 %v801, %v1107
        %v1109 = vpop.f32.mrb[0].mxu0
        %v1110 = vadd.f32 %v801, %v1109
        %1111 = vmatprep.mubr.bf16.mxu0 0
        %1112 = vmatmul.mubr.bf16.gmra.mrb[0].mxu0 %v903
        %v1113 = vpop.f32.mrb[0].mxu0
        %v1114 = vadd.f32 %v806, %v1113
        %v1115 = vpop.f32.mrb[0].mxu0
        %v1116 = vadd.f32 %v806, %v1115
        %v1117 = vpop.f32.mrb[0].mxu0
        %v1118 = vadd.f32 %v811, %v1117
        %v1119 = vpop.f32.mrb[0].mxu0
        %v1120 = vadd.f32 %v811, %v1119
        %1121 = vmatprep.mubr.bf16.mxu0 0
        %1122 = vmatmul.mubr.bf16.gmra.mrb[0].mxu0 %v906
        %v1123 = vpop.f32.mrb[0].mxu0
        %v1124 = vadd.f32 %v816, %v1123
        %v1125 = vpop.f32.mrb[0].mxu0
        %v1126 = vadd.f32 %v816, %v1125
        %v1127 = vpop.f32.mrb[0].mxu0
        %v1128 = vadd.f32 %v821, %v1127
        %v1129 = vpop.f32.mrb[0].mxu0
        %v1130 = vadd.f32 %v821, %v1129
        %1131 = vmatprep.mubr.bf16.mxu0 0
        %1132 = vmatmul.mubr.bf16.gmra.mrb[0].mxu0 %v909
        %v1133 = vpop.f32.mrb[0].mxu0
        %v1134 = vadd.f32 %v826, %v1133
        %v1135 = vpop.f32.mrb[0].mxu0
        %v1136 = vadd.f32 %v826, %v1135
        %v1137 = vpop.f32.mrb[0].mxu0
        %v1138 = vadd.f32 %v831, %v1137
        %v1139 = vpop.f32.mrb[0].mxu0
        %v1140 = vadd.f32 %v831, %v1139
        %1141 = vmatprep.mubr.bf16.mxu0 0
        %1142 = vmatmul.mubr.bf16.gmra.mrb[0].mxu0 %v912
        %v1143 = vpop.f32.mrb[0].mxu0
        %v1144 = vadd.f32 %v836, %v1143
        %v1145 = vpop.f32.mrb[0].mxu0
        %v1146 = vadd.f32 %v836, %v1145
        %v1147 = vpop.f32.mrb[0].mxu0
        %v1148 = vadd.f32 %v841, %v1147
        %v1149 = vpop.f32.mrb[0].mxu0
        %v1150 = vadd.f32 %v841, %v1149
        %1151 = vmatprep.mubr.bf16.mxu0 0
        %1152 = vmatmul.mubr.bf16.gmra.mrb[0].mxu0 %v915
        %v1153 = vpop.f32.mrb[0].mxu0
        %v1154 = vadd.f32 %v846, %v1153
        %v1155 = vpop.f32.mrb[0].mxu0
        %v1156 = vadd.f32 %v846, %v1155
        %v1157 = vpop.f32.mrb[0].mxu0
        %v1158 = vadd.f32 %v851, %v1157
        %v1159 = vpop.f32.mrb[0].mxu0
        %v1160 = vadd.f32 %v851, %v1159
        %1161 = vdwg.mxu0
        %1162 = vmatprep.subr.bf16.mxu0 %v732
        %1163 = vmatpush1.bf16.msra.mxu0 %v731
        %1164 = vmatprep.subr.bf16.mxu0 %v738
        %1165 = vmatpush1.bf16.msra.mxu0 %v737
        %1166 = vmatprep.subr.bf16.mxu0 %v744
        %1167 = vmatpush1.bf16.msra.mxu0 %v743
        %1168 = vmatprep.subr.bf16.mxu0 %v750
        %1169 = vmatpush1.bf16.msra.mxu0 %v749
        %1170 = vmatprep.subr.bf16.mxu0 %v934
        %1171 = vmatpush1.bf16.msra.mxu0 %v931
        %1172 = vmatprep.subr.bf16.mxu0 0
        %1173 = vmatpush1.bf16.msra.mxu0 0
        %1174 = vmatprep.subr.bf16.mxu0 0
        %1175 = vmatpush1.bf16.msra.mxu0 0
        %1176 = vmatprep.subr.bf16.mxu0 0
        %1177 = vmatpush1.bf16.msra.mxu0 0
        %1178 = vmatprep.subr.bf16.mxu0 0
        %1179 = vmatpush1.bf16.msra.mxu0 0
        %1180 = vmatprep.subr.bf16.mxu0 0
        %1181 = vmatpush1.bf16.msra.mxu0 0
        %1182 = vmatprep.subr.bf16.mxu0 0
        %1183 = vmatpush1.bf16.msra.mxu0 0
        %1184 = vmatprep.subr.bf16.mxu0 0
        %1185 = vmatpush1.bf16.msra.mxu0 0
        %1186 = vmatprep.subr.bf16.mxu0 0
        %1187 = vmatpush1.bf16.msra.mxu0 0
        %1188 = vmatprep.subr.bf16.mxu0 0
        %1189 = vmatpush1.bf16.msra.mxu0 0
        %1190 = vmatprep.subr.bf16.mxu0 0
        %1191 = vmatpush1.bf16.msra.mxu0 0
        %1192 = vmatprep.subr.bf16.mxu0 0
        %1193 = vmatpush1.bf16.msra.mxu0 0
        %1194 = vmatprep.mubr.bf16.mxu0 0
        %1195 = vmatmul.mubr.bf16.gmra.mrb[0].mxu0 %v894
        %v1196 = vpop.f32.mrb[0].mxu0
        %v1197 = vadd.f32 %v776, %v1196
        %v1198 = vpop.f32.mrb[0].mxu0
        %v1199 = vadd.f32 %v776, %v1198
        %v1200 = vpop.f32.mrb[0].mxu0
        %v1201 = vadd.f32 %v781, %v1200
        %v1202 = vpop.f32.mrb[0].mxu0
        %v1203 = vadd.f32 %v781, %v1202
        %1204 = vmatprep.mubr.bf16.mxu0 0
        %1205 = vmatmul.mubr.bf16.gmra.mrb[0].mxu0 %v897
        %v1206 = vpop.f32.mrb[0].mxu0
        %v1207 = vadd.f32 %v786, %v1206
        %v1208 = vpop.f32.mrb[0].mxu0
        %v1209 = vadd.f32 %v786, %v1208
        %v1210 = vpop.f32.mrb[0].mxu0
        %v1211 = vadd.f32 %v791, %v1210
        %v1212 = vpop.f32.mrb[0].mxu0
        %v1213 = vadd.f32 %v791, %v1212
        %1214 = vmatprep.mubr.bf16.mxu0 0
        %1215 = vmatmul.mubr.bf16.gmra.mrb[0].mxu0 %v900
        %v1216 = vpop.f32.mrb[0].mxu0
        %v1217 = vadd.f32 %v796, %v1216
        %v1218 = vpop.f32.mrb[0].mxu0
        %v1219 = vadd.f32 %v796, %v1218
        %v1220 = vpop.f32.mrb[0].mxu0
        %v1221 = vadd.f32 %v801, %v1220
        %v1222 = vpop.f32.mrb[0].mxu0
        %v1223 = vadd.f32 %v801, %v1222
        %1224 = vmatprep.mubr.bf16.mxu0 0
        %1225 = vmatmul.mubr.bf16.gmra.mrb[0].mxu0 %v903
        %v1226 = vpop.f32.mrb[0].mxu0
        %v1227 = vadd.f32 %v806, %v1226
        %v1228 = vpop.f32.mrb[0].mxu0
        %v1229 = vadd.f32 %v806, %v1228
        %v1230 = vpop.f32.mrb[0].mxu0
        %v1231 = vadd.f32 %v811, %v1230
        %v1232 = vpop.f32.mrb[0].mxu0
        %v1233 = vadd.f32 %v811, %v1232
        %1234 = vmatprep.mubr.bf16.mxu0 0
        %1235 = vmatmul.mubr.bf16.gmra.mrb[0].mxu0 %v906
        %v1236 = vpop.f32.mrb[0].mxu0
        %v1237 = vadd.f32 %v816, %v1236
        %v1238 = vpop.f32.mrb[0].mxu0
        %v1239 = vadd.f32 %v816, %v1238
        %v1240 = vpop.f32.mrb[0].mxu0
        %v1241 = vadd.f32 %v821, %v1240
        %v1242 = vpop.f32.mrb[0].mxu0
        %v1243 = vadd.f32 %v821, %v1242
        %1244 = vmatprep.mubr.bf16.mxu0 0
        %1245 = vmatmul.mubr.bf16.gmra.mrb[0].mxu0 %v909
        %v1246 = vpop.f32.mrb[0].mxu0
        %v1247 = vadd.f32 %v826, %v1246
        %v1248 = vpop.f32.mrb[0].mxu0
        %v1249 = vadd.f32 %v826, %v1248
        %v1250 = vpop.f32.mrb[0].mxu0
        %v1251 = vadd.f32 %v831, %v1250
        %v1252 = vpop.f32.mrb[0].mxu0
        %v1253 = vadd.f32 %v831, %v1252
        %1254 = vmatprep.mubr.bf16.mxu0 0
        %1255 = vmatmul.mubr.bf16.gmra.mrb[0].mxu0 %v912
        %v1256 = vpop.f32.mrb[0].mxu0
        %v1257 = vadd.f32 %v836, %v1256
        %v1258 = vpop.f32.mrb[0].mxu0
        %v1259 = vadd.f32 %v836, %v1258
        %v1260 = vpop.f32.mrb[0].mxu0
        %v1261 = vadd.f32 %v841, %v1260
        %v1262 = vpop.f32.mrb[0].mxu0
        %v1263 = vadd.f32 %v841, %v1262
        %1264 = vmatprep.mubr.bf16.mxu0 0
        %1265 = vmatmul.mubr.bf16.gmra.mrb[0].mxu0 %v915
        %v1266 = vpop.f32.mrb[0].mxu0
        %v1267 = vadd.f32 %v846, %v1266
        %v1268 = vpop.f32.mrb[0].mxu0
        %v1269 = vadd.f32 %v846, %v1268
        %v1270 = vpop.f32.mrb[0].mxu0
        %v1271 = vadd.f32 %v851, %v1270
        %v1272 = vpop.f32.mrb[0].mxu0
        %v1273 = vadd.f32 %v851, %v1272
        %1274 = vdwg.mxu0
        %v1275 = vmax.f32 %v971, 0.0
        %v1276 = vmax.f32 %v973, 0.0
        %v1277 = vmax.f32 %v1084, 0.0
        %v1278 = vmax.f32 %v1086, 0.0
        %v1279 = vmax.f32 %v1197, 0.0
        %v1280 = vmax.f32 %v1199, 0.0
        %v1281 = vmax.f32 %v975, 0.0
        %v1282 = vmax.f32 %v977, 0.0
        %v1283 = vmax.f32 %v1088, 0.0
        %v1284 = vmax.f32 %v1090, 0.0
        %v1285 = vmax.f32 %v1201, 0.0
        %v1286 = vmax.f32 %v1203, 0.0
        %v1287 = vmax.f32 %v981, 0.0
        %v1288 = vmax.f32 %v983, 0.0
        %v1289 = vmax.f32 %v1094, 0.0
        %v1290 = vmax.f32 %v1096, 0.0
        %v1291 = vmax.f32 %v1207, 0.0
        %v1292 = vmax.f32 %v1209, 0.0
        %v1293 = vmax.f32 %v985, 0.0
        %v1294 = vmax.f32 %v987, 0.0
        %v1295 = vmax.f32 %v1098, 0.0
        %v1296 = vmax.f32 %v1100, 0.0
        %v1297 = vmax.f32 %v1211, 0.0
        %v1298 = vmax.f32 %v1213, 0.0
        %v1299 = vmax.f32 %v991, 0.0
        %v1300 = vmax.f32 %v993, 0.0
        %v1301 = vmax.f32 %v1104, 0.0
        %v1302 = vmax.f32 %v1106, 0.0
        %v1303 = vmax.f32 %v1217, 0.0
        %v1304 = vmax.f32 %v1219, 0.0
        %v1305 = vmax.f32 %v995, 0.0
        %v1306 = vmax.f32 %v997, 0.0
        %v1307 = vmax.f32 %v1108, 0.0
        %v1308 = vmax.f32 %v1110, 0.0
        %v1309 = vmax.f32 %v1221, 0.0
        %v1310 = vmax.f32 %v1223, 0.0
        %v1311 = vmax.f32 %v1001, 0.0
        %v1312 = vmax.f32 %v1003, 0.0
        %v1313 = vmax.f32 %v1114, 0.0
        %v1314 = vmax.f32 %v1116, 0.0
        %v1315 = vmax.f32 %v1227, 0.0
        %v1316 = vmax.f32 %v1229, 0.0
        %v1317 = vmax.f32 %v1005, 0.0
        %v1318 = vmax.f32 %v1007, 0.0
        %v1319 = vmax.f32 %v1118, 0.0
        %v1320 = vmax.f32 %v1120, 0.0
        %v1321 = vmax.f32 %v1231, 0.0
        %v1322 = vmax.f32 %v1233, 0.0
        %v1323 = vmax.f32 %v1011, 0.0
        %v1324 = vmax.f32 %v1013, 0.0
        %v1325 = vmax.f32 %v1124, 0.0
        %v1326 = vmax.f32 %v1126, 0.0
        %v1327 = vmax.f32 %v1237, 0.0
        %v1328 = vmax.f32 %v1239, 0.0
        %v1329 = vmax.f32 %v1015, 0.0
        %v1330 = vmax.f32 %v1017, 0.0
        %v1331 = vmax.f32 %v1128, 0.0
        %v1332 = vmax.f32 %v1130, 0.0
        %v1333 = vmax.f32 %v1241, 0.0
        %v1334 = vmax.f32 %v1243, 0.0
        %v1335 = vmax.f32 %v1021, 0.0
        %v1336 = vmax.f32 %v1023, 0.0
        %v1337 = vmax.f32 %v1134, 0.0
        %v1338 = vmax.f32 %v1136, 0.0
        %v1339 = vmax.f32 %v1247, 0.0
        %v1340 = vmax.f32 %v1249, 0.0
        %v1341 = vmax.f32 %v1025, 0.0
        %v1342 = vmax.f32 %v1027, 0.0
        %v1343 = vmax.f32 %v1138, 0.0
        %v1344 = vmax.f32 %v1140, 0.0
        %v1345 = vmax.f32 %v1251, 0.0
        %v1346 = vmax.f32 %v1253, 0.0
        %v1347 = vmax.f32 %v1031, 0.0
        %v1348 = vmax.f32 %v1033, 0.0
        %v1349 = vmax.f32 %v1144, 0.0
        %v1350 = vmax.f32 %v1146, 0.0
        %v1351 = vmax.f32 %v1257, 0.0
        %v1352 = vmax.f32 %v1259, 0.0
        %v1353 = vmax.f32 %v1035, 0.0
        %v1354 = vmax.f32 %v1037, 0.0
        %v1355 = vmax.f32 %v1148, 0.0
        %v1356 = vmax.f32 %v1150, 0.0
        %v1357 = vmax.f32 %v1261, 0.0
        %v1358 = vmax.f32 %v1263, 0.0
        %v1359 = vmax.f32 %v1041, 0.0
        %v1360 = vmax.f32 %v1043, 0.0
        %v1361 = vmax.f32 %v1154, 0.0
        %v1362 = vmax.f32 %v1156, 0.0
        %v1363 = vmax.f32 %v1267, 0.0
        %v1364 = vmax.f32 %v1269, 0.0
        %v1365 = vmax.f32 %v1045, 0.0
        %v1366 = vmax.f32 %v1047, 0.0
        %v1367 = vmax.f32 %v1158, 0.0
        %v1368 = vmax.f32 %v1160, 0.0
        %v1369 = vmax.f32 %v1271, 0.0
        %v1370 = vmax.f32 %v1273, 0.0
        %1467 = vrot.lane.b32.xlu0 %v1275, 127
        %v1468 = vpop.permute.xlu0 %1467
        %1469 = vrot.lane.b32.xlu0 %v1276, 127
        %v1470 = vpop.permute.xlu0 %1469
        %1471 = vrot.lane.b32.xlu0 %v1277, 127
        %v1472 = vpop.permute.xlu0 %1471
        %1473 = vrot.lane.b32.xlu0 %v1278, 127
        %v1474 = vpop.permute.xlu0 %1473
        %1475 = vrot.lane.b32.xlu0 %v1279, 127
        %v1476 = vpop.permute.xlu0 %1475
        %1477 = vrot.lane.b32.xlu0 %v1280, 127
        %v1478 = vpop.permute.xlu0 %1477
        %1479 = vrot.lane.b32.xlu0 %v1281, 127
        %v1480 = vpop.permute.xlu0 %1479
        %1481 = vrot.lane.b32.xlu0 %v1282, 127
        %v1482 = vpop.permute.xlu0 %1481
        %1483 = vrot.lane.b32.xlu0 %v1283, 127
        %v1484 = vpop.permute.xlu0 %1483
        %1485 = vrot.lane.b32.xlu0 %v1284, 127
        %v1486 = vpop.permute.xlu0 %1485
        %1487 = vrot.lane.b32.xlu0 %v1285, 127
        %v1488 = vpop.permute.xlu0 %1487
        %1489 = vrot.lane.b32.xlu0 %v1286, 127
        %v1490 = vpop.permute.xlu0 %1489
        %1491 = vrot.lane.b32.xlu0 %v1287, 127
        %v1492 = vpop.permute.xlu0 %1491
        %1493 = vrot.lane.b32.xlu0 %v1288, 127
        %v1494 = vpop.permute.xlu0 %1493
        %1495 = vrot.lane.b32.xlu0 %v1289, 127
        %v1496 = vpop.permute.xlu0 %1495
        %1497 = vrot.lane.b32.xlu0 %v1290, 127
        %v1498 = vpop.permute.xlu0 %1497
        %1499 = vrot.lane.b32.xlu0 %v1291, 127
        %v1500 = vpop.permute.xlu0 %1499
        %1501 = vrot.lane.b32.xlu0 %v1292, 127
        %v1502 = vpop.permute.xlu0 %1501
        %1503 = vrot.lane.b32.xlu0 %v1293, 127
        %v1504 = vpop.permute.xlu0 %1503
        %1505 = vrot.lane.b32.xlu0 %v1294, 127
        %v1506 = vpop.permute.xlu0 %1505
        %1507 = vrot.lane.b32.xlu0 %v1295, 127
        %v1508 = vpop.permute.xlu0 %1507
        %1509 = vrot.lane.b32.xlu0 %v1296, 127
        %v1510 = vpop.permute.xlu0 %1509
        %1511 = vrot.lane.b32.xlu0 %v1297, 127
        %v1512 = vpop.permute.xlu0 %1511
        %1513 = vrot.lane.b32.xlu0 %v1298, 127
        %v1514 = vpop.permute.xlu0 %1513
        %1515 = vrot.lane.b32.xlu0 %v1299, 127
        %v1516 = vpop.permute.xlu0 %1515
        %1517 = vrot.lane.b32.xlu0 %v1300, 127
        %v1518 = vpop.permute.xlu0 %1517
        %1519 = vrot.lane.b32.xlu0 %v1301, 127
        %v1520 = vpop.permute.xlu0 %1519
        %1521 = vrot.lane.b32.xlu0 %v1302, 127
        %v1522 = vpop.permute.xlu0 %1521
        %1523 = vrot.lane.b32.xlu0 %v1303, 127
        %v1524 = vpop.permute.xlu0 %1523
        %1525 = vrot.lane.b32.xlu0 %v1304, 127
        %v1526 = vpop.permute.xlu0 %1525
        %1527 = vrot.lane.b32.xlu0 %v1305, 127
        %v1528 = vpop.permute.xlu0 %1527
        %1529 = vrot.lane.b32.xlu0 %v1306, 127
        %v1530 = vpop.permute.xlu0 %1529
        %1531 = vrot.lane.b32.xlu0 %v1307, 127
        %v1532 = vpop.permute.xlu0 %1531
        %1533 = vrot.lane.b32.xlu0 %v1308, 127
        %v1534 = vpop.permute.xlu0 %1533
        %1535 = vrot.lane.b32.xlu0 %v1309, 127
        %v1536 = vpop.permute.xlu0 %1535
        %1537 = vrot.lane.b32.xlu0 %v1310, 127
        %v1538 = vpop.permute.xlu0 %1537
        %1539 = vrot.lane.b32.xlu0 %v1311, 127
        %v1540 = vpop.permute.xlu0 %1539
        %1541 = vrot.lane.b32.xlu0 %v1312, 127
        %v1542 = vpop.permute.xlu0 %1541
        %1543 = vrot.lane.b32.xlu0 %v1313, 127
        %v1544 = vpop.permute.xlu0 %1543
        %1545 = vrot.lane.b32.xlu0 %v1314, 127
        %v1546 = vpop.permute.xlu0 %1545
        %1547 = vrot.lane.b32.xlu0 %v1315, 127
        %v1548 = vpop.permute.xlu0 %1547
        %1549 = vrot.lane.b32.xlu0 %v1316, 127
        %v1550 = vpop.permute.xlu0 %1549
        %1551 = vrot.lane.b32.xlu0 %v1317, 127
        %v1552 = vpop.permute.xlu0 %1551
        %1553 = vrot.lane.b32.xlu0 %v1318, 127
        %v1554 = vpop.permute.xlu0 %1553
        %1555 = vrot.lane.b32.xlu0 %v1319, 127
        %v1556 = vpop.permute.xlu0 %1555
        %1557 = vrot.lane.b32.xlu0 %v1320, 127
        %v1558 = vpop.permute.xlu0 %1557
        %1559 = vrot.lane.b32.xlu0 %v1321, 127
        %v1560 = vpop.permute.xlu0 %1559
        %1561 = vrot.lane.b32.xlu0 %v1322, 127
        %v1562 = vpop.permute.xlu0 %1561
        %1563 = vrot.lane.b32.xlu0 %v1323, 127
        %v1564 = vpop.permute.xlu0 %1563
        %1565 = vrot.lane.b32.xlu0 %v1324, 127
        %v1566 = vpop.permute.xlu0 %1565
        %1567 = vrot.lane.b32.xlu0 %v1325, 127
        %v1568 = vpop.permute.xlu0 %1567
        %1569 = vrot.lane.b32.xlu0 %v1326, 127
        %v1570 = vpop.permute.xlu0 %1569
        %1571 = vrot.lane.b32.xlu0 %v1327, 127
        %v1572 = vpop.permute.xlu0 %1571
        %1573 = vrot.lane.b32.xlu0 %v1328, 127
        %v1574 = vpop.permute.xlu0 %1573
        %1575 = vrot.lane.b32.xlu0 %v1329, 127
        %v1576 = vpop.permute.xlu0 %1575
        %1577 = vrot.lane.b32.xlu0 %v1330, 127
        %v1578 = vpop.permute.xlu0 %1577
        %1579 = vrot.lane.b32.xlu0 %v1331, 127
        %v1580 = vpop.permute.xlu0 %1579
        %1581 = vrot.lane.b32.xlu0 %v1332, 127
        %v1582 = vpop.permute.xlu0 %1581
        %1583 = vrot.lane.b32.xlu0 %v1333, 127
        %v1584 = vpop.permute.xlu0 %1583
        %1585 = vrot.lane.b32.xlu0 %v1334, 127
        %v1586 = vpop.permute.xlu0 %1585
        %1587 = vrot.lane.b32.xlu0 %v1335, 127
        %v1588 = vpop.permute.xlu0 %1587
        %1589 = vrot.lane.b32.xlu0 %v1336, 127
        %v1590 = vpop.permute.xlu0 %1589
        %1591 = vrot.lane.b32.xlu0 %v1337, 127
        %v1592 = vpop.permute.xlu0 %1591
        %1593 = vrot.lane.b32.xlu0 %v1338, 127
        %v1594 = vpop.permute.xlu0 %1593
        %1595 = vrot.lane.b32.xlu0 %v1339, 127
        %v1596 = vpop.permute.xlu0 %1595
        %1597 = vrot.lane.b32.xlu0 %v1340, 127
        %v1598 = vpop.permute.xlu0 %1597
        %1599 = vrot.lane.b32.xlu0 %v1341, 127
        %v1600 = vpop.permute.xlu0 %1599
        %1601 = vrot.lane.b32.xlu0 %v1342, 127
        %v1602 = vpop.permute.xlu0 %1601
        %1603 = vrot.lane.b32.xlu0 %v1343, 127
        %v1604 = vpop.permute.xlu0 %1603
        %1605 = vrot.lane.b32.xlu0 %v1344, 127
        %v1606 = vpop.permute.xlu0 %1605
        %1607 = vrot.lane.b32.xlu0 %v1345, 127
        %v1608 = vpop.permute.xlu0 %1607
        %1609 = vrot.lane.b32.xlu0 %v1346, 127
        %v1610 = vpop.permute.xlu0 %1609
        %1611 = vrot.lane.b32.xlu0 %v1347, 127
        %v1612 = vpop.permute.xlu0 %1611
        %1613 = vrot.lane.b32.xlu0 %v1348, 127
        %v1614 = vpop.permute.xlu0 %1613
        %1615 = vrot.lane.b32.xlu0 %v1349, 127
        %v1616 = vpop.permute.xlu0 %1615
        %1617 = vrot.lane.b32.xlu0 %v1350, 127
        %v1618 = vpop.permute.xlu0 %1617
        %1619 = vrot.lane.b32.xlu0 %v1351, 127
        %v1620 = vpop.permute.xlu0 %1619
        %1621 = vrot.lane.b32.xlu0 %v1352, 127
        %v1622 = vpop.permute.xlu0 %1621
        %1623 = vrot.lane.b32.xlu0 %v1353, 127
        %v1624 = vpop.permute.xlu0 %1623
        %1625 = vrot.lane.b32.xlu0 %v1354, 127
        %v1626 = vpop.permute.xlu0 %1625
        %1627 = vrot.lane.b32.xlu0 %v1355, 127
        %v1628 = vpop.permute.xlu0 %1627
        %1629 = vrot.lane.b32.xlu0 %v1356, 127
        %v1630 = vpop.permute.xlu0 %1629
        %1631 = vrot.lane.b32.xlu0 %v1357, 127
        %v1632 = vpop.permute.xlu0 %1631
        %1633 = vrot.lane.b32.xlu0 %v1358, 127
        %v1634 = vpop.permute.xlu0 %1633
        %1635 = vrot.lane.b32.xlu0 %v1359, 127
        %v1636 = vpop.permute.xlu0 %1635
        %1637 = vrot.lane.b32.xlu0 %v1360, 127
        %v1638 = vpop.permute.xlu0 %1637
        %1639 = vrot.lane.b32.xlu0 %v1361, 127
        %v1640 = vpop.permute.xlu0 %1639
        %1641 = vrot.lane.b32.xlu0 %v1362, 127
        %v1642 = vpop.permute.xlu0 %1641
        %1643 = vrot.lane.b32.xlu0 %v1363, 127
        %v1644 = vpop.permute.xlu0 %1643
        %1645 = vrot.lane.b32.xlu0 %v1364, 127
        %v1646 = vpop.permute.xlu0 %1645
        %1647 = vrot.lane.b32.xlu0 %v1365, 127
        %v1648 = vpop.permute.xlu0 %1647
        %1649 = vrot.lane.b32.xlu0 %v1366, 127
        %v1650 = vpop.permute.xlu0 %1649
        %1651 = vrot.lane.b32.xlu0 %v1367, 127
        %v1652 = vpop.permute.xlu0 %1651
        %1653 = vrot.lane.b32.xlu0 %v1368, 127
        %v1654 = vpop.permute.xlu0 %1653
        %1655 = vrot.lane.b32.xlu0 %v1369, 127
        %v1656 = vpop.permute.xlu0 %1655
        %1657 = vrot.lane.b32.xlu0 %v1370, 127
        %v1658 = vpop.permute.xlu0 %1657
        %v1659 = vsel %vm515, %v1468, %v1470
        %v1660 = vsel %vm515, %v1470, %v1472
        %v1661 = vsel %vm515, %v1472, %v1474
        %v1662 = vsel %vm515, %v1474, %v1476
        %v1663 = vsel %vm515, %v1476, %v1478
        %v1664 = vsel %vm515, %v1480, %v1482
        %v1665 = vsel %vm515, %v1482, %v1484
        %v1666 = vsel %vm515, %v1484, %v1486
        %v1667 = vsel %vm515, %v1486, %v1488
        %v1668 = vsel %vm515, %v1488, %v1490
        %v1669 = vsel %vm515, %v1492, %v1494
        %v1670 = vsel %vm515, %v1494, %v1496
        %v1671 = vsel %vm515, %v1496, %v1498
        %v1672 = vsel %vm515, %v1498, %v1500
        %v1673 = vsel %vm515, %v1500, %v1502
        %v1674 = vsel %vm515, %v1504, %v1506
        %v1675 = vsel %vm515, %v1506, %v1508
        %v1676 = vsel %vm515, %v1508, %v1510
        %v1677 = vsel %vm515, %v1510, %v1512
        %v1678 = vsel %vm515, %v1512, %v1514
        %v1679 = vsel %vm515, %v1516, %v1518
        %v1680 = vsel %vm515, %v1518, %v1520
        %v1681 = vsel %vm515, %v1520, %v1522
        %v1682 = vsel %vm515, %v1522, %v1524
        %v1683 = vsel %vm515, %v1524, %v1526
        %v1684 = vsel %vm515, %v1528, %v1530
        %v1685 = vsel %vm515, %v1530, %v1532
        %v1686 = vsel %vm515, %v1532, %v1534
        %v1687 = vsel %vm515, %v1534, %v1536
        %v1688 = vsel %vm515, %v1536, %v1538
        %v1689 = vsel %vm515, %v1540, %v1542
        %v1690 = vsel %vm515, %v1542, %v1544
        %v1691 = vsel %vm515, %v1544, %v1546
        %v1692 = vsel %vm515, %v1546, %v1548
        %v1693 = vsel %vm515, %v1548, %v1550
        %v1694 = vsel %vm515, %v1552, %v1554
        %v1695 = vsel %vm515, %v1554, %v1556
        %v1696 = vsel %vm515, %v1556, %v1558
        %v1697 = vsel %vm515, %v1558, %v1560
        %v1698 = vsel %vm515, %v1560, %v1562
        %v1699 = vsel %vm515, %v1564, %v1566
        %v1700 = vsel %vm515, %v1566, %v1568
        %v1701 = vsel %vm515, %v1568, %v1570
        %v1702 = vsel %vm515, %v1570, %v1572
        %v1703 = vsel %vm515, %v1572, %v1574
        %v1704 = vsel %vm515, %v1576, %v1578
        %v1705 = vsel %vm515, %v1578, %v1580
        %v1706 = vsel %vm515, %v1580, %v1582
        %v1707 = vsel %vm515, %v1582, %v1584
        %v1708 = vsel %vm515, %v1584, %v1586
        %v1709 = vsel %vm515, %v1588, %v1590
        %v1710 = vsel %vm515, %v1590, %v1592
        %v1711 = vsel %vm515, %v1592, %v1594
        %v1712 = vsel %vm515, %v1594, %v1596
        %v1713 = vsel %vm515, %v1596, %v1598
        %v1714 = vsel %vm515, %v1600, %v1602
        %v1715 = vsel %vm515, %v1602, %v1604
        %v1716 = vsel %vm515, %v1604, %v1606
        %v1717 = vsel %vm515, %v1606, %v1608
        %v1718 = vsel %vm515, %v1608, %v1610
        %v1719 = vsel %vm515, %v1612, %v1614
        %v1720 = vsel %vm515, %v1614, %v1616
        %v1721 = vsel %vm515, %v1616, %v1618
        %v1722 = vsel %vm515, %v1618, %v1620
        %v1723 = vsel %vm515, %v1620, %v1622
        %v1724 = vsel %vm515, %v1624, %v1626
        %v1725 = vsel %vm515, %v1626, %v1628
        %v1726 = vsel %vm515, %v1628, %v1630
        %v1727 = vsel %vm515, %v1630, %v1632
        %v1728 = vsel %vm515, %v1632, %v1634
        %v1729 = vsel %vm515, %v1636, %v1638
        %v1730 = vsel %vm515, %v1638, %v1640
        %v1731 = vsel %vm515, %v1640, %v1642
        %v1732 = vsel %vm515, %v1642, %v1644
        %v1733 = vsel %vm515, %v1644, %v1646
        %v1734 = vsel %vm515, %v1648, %v1650
        %v1735 = vsel %vm515, %v1650, %v1652
        %v1736 = vsel %vm515, %v1652, %v1654
        %v1737 = vsel %vm515, %v1654, %v1656
        %v1738 = vsel %vm515, %v1656, %v1658
        %v1835 = vmax.f32 %v1275, %v1659
        %v1836 = vmax.f32 %v1276, %v1660
        %v1837 = vmax.f32 %v1277, %v1661
        %v1838 = vmax.f32 %v1278, %v1662
        %v1839 = vmax.f32 %v1279, %v1663
        %v1840 = vmax.f32 %v1280, %v1478
        %v1841 = vmax.f32 %v1281, %v1664
        %v1842 = vmax.f32 %v1282, %v1665
        %v1843 = vmax.f32 %v1283, %v1666
        %v1844 = vmax.f32 %v1284, %v1667
        %v1845 = vmax.f32 %v1285, %v1668
        %v1846 = vmax.f32 %v1286, %v1490
        %v1847 = vmax.f32 %v1287, %v1669
        %v1848 = vmax.f32 %v1288, %v1670
        %v1849 = vmax.f32 %v1289, %v1671
        %v1850 = vmax.f32 %v1290, %v1672
        %v1851 = vmax.f32 %v1291, %v1673
        %v1852 = vmax.f32 %v1292, %v1502
        %v1853 = vmax.f32 %v1293, %v1674
        %v1854 = vmax.f32 %v1294, %v1675
        %v1855 = vmax.f32 %v1295, %v1676
        %v1856 = vmax.f32 %v1296, %v1677
        %v1857 = vmax.f32 %v1297, %v1678
        %v1858 = vmax.f32 %v1298, %v1514
        %v1859 = vmax.f32 %v1299, %v1679
        %v1860 = vmax.f32 %v1300, %v1680
        %v1861 = vmax.f32 %v1301, %v1681
        %v1862 = vmax.f32 %v1302, %v1682
        %v1863 = vmax.f32 %v1303, %v1683
        %v1864 = vmax.f32 %v1304, %v1526
        %v1865 = vmax.f32 %v1305, %v1684
        %v1866 = vmax.f32 %v1306, %v1685
        %v1867 = vmax.f32 %v1307, %v1686
        %v1868 = vmax.f32 %v1308, %v1687
        %v1869 = vmax.f32 %v1309, %v1688
        %v1870 = vmax.f32 %v1310, %v1538
        %v1871 = vmax.f32 %v1311, %v1689
        %v1872 = vmax.f32 %v1312, %v1690
        %v1873 = vmax.f32 %v1313, %v1691
        %v1874 = vmax.f32 %v1314, %v1692
        %v1875 = vmax.f32 %v1315, %v1693
        %v1876 = vmax.f32 %v1316, %v1550
        %v1877 = vmax.f32 %v1317, %v1694
        %v1878 = vmax.f32 %v1318, %v1695
        %v1879 = vmax.f32 %v1319, %v1696
        %v1880 = vmax.f32 %v1320, %v1697
        %v1881 = vmax.f32 %v1321, %v1698
        %v1882 = vmax.f32 %v1322, %v1562
        %v1883 = vmax.f32 %v1323, %v1699
        %v1884 = vmax.f32 %v1324, %v1700
        %v1885 = vmax.f32 %v1325, %v1701
        %v1886 = vmax.f32 %v1326, %v1702
        %v1887 = vmax.f32 %v1327, %v1703
        %v1888 = vmax.f32 %v1328, %v1574
        %v1889 = vmax.f32 %v1329, %v1704
        %v1890 = vmax.f32 %v1330, %v1705
        %v1891 = vmax.f32 %v1331, %v1706
        %v1892 = vmax.f32 %v1332, %v1707
        %v1893 = vmax.f32 %v1333, %v1708
        %v1894 = vmax.f32 %v1334, %v1586
        %v1895 = vmax.f32 %v1335, %v1709
        %v1896 = vmax.f32 %v1336, %v1710
        %v1897 = vmax.f32 %v1337, %v1711
        %v1898 = vmax.f32 %v1338, %v1712
        %v1899 = vmax.f32 %v1339, %v1713
        %v1900 = vmax.f32 %v1340, %v1598
        %v1901 = vmax.f32 %v1341, %v1714
        %v1902 = vmax.f32 %v1342, %v1715
        %v1903 = vmax.f32 %v1343, %v1716
        %v1904 = vmax.f32 %v1344, %v1717
        %v1905 = vmax.f32 %v1345, %v1718
        %v1906 = vmax.f32 %v1346, %v1610
        %v1907 = vmax.f32 %v1347, %v1719
        %v1908 = vmax.f32 %v1348, %v1720
        %v1909 = vmax.f32 %v1349, %v1721
        %v1910 = vmax.f32 %v1350, %v1722
        %v1911 = vmax.f32 %v1351, %v1723
        %v1912 = vmax.f32 %v1352, %v1622
        %v1913 = vmax.f32 %v1353, %v1724
        %v1914 = vmax.f32 %v1354, %v1725
        %v1915 = vmax.f32 %v1355, %v1726
        %v1916 = vmax.f32 %v1356, %v1727
        %v1917 = vmax.f32 %v1357, %v1728
        %v1918 = vmax.f32 %v1358, %v1634
        %v1919 = vmax.f32 %v1359, %v1729
        %v1920 = vmax.f32 %v1360, %v1730
        %v1921 = vmax.f32 %v1361, %v1731
        %v1922 = vmax.f32 %v1362, %v1732
        %v1923 = vmax.f32 %v1363, %v1733
        %v1924 = vmax.f32 %v1364, %v1646
        %v1925 = vmax.f32 %v1365, %v1734
        %v1926 = vmax.f32 %v1366, %v1735
        %v1927 = vmax.f32 %v1367, %v1736
        %v1928 = vmax.f32 %v1368, %v1737
        %v1929 = vmax.f32 %v1369, %v1738
        %v1930 = vmax.f32 %v1370, %v1658
        %2027 = vrot.lane.b32.xlu0 %v1835, 100
        %v2028 = vpop.permute.xlu0 %2027
        %2029 = vrot.lane.b32.xlu0 %v1836, 100
        %v2030 = vpop.permute.xlu0 %2029
        %2031 = vrot.lane.b32.xlu0 %v1837, 100
        %v2032 = vpop.permute.xlu0 %2031
        %2033 = vrot.lane.b32.xlu0 %v1838, 100
        %v2034 = vpop.permute.xlu0 %2033
        %2035 = vrot.lane.b32.xlu0 %v1839, 100
        %v2036 = vpop.permute.xlu0 %2035
        %2037 = vrot.lane.b32.xlu0 %v1840, 100
        %v2038 = vpop.permute.xlu0 %2037
        %2039 = vrot.lane.b32.xlu0 %v1841, 100
        %v2040 = vpop.permute.xlu0 %2039
        %2041 = vrot.lane.b32.xlu0 %v1842, 100
        %v2042 = vpop.permute.xlu0 %2041
        %2043 = vrot.lane.b32.xlu0 %v1843, 100
        %v2044 = vpop.permute.xlu0 %2043
        %2045 = vrot.lane.b32.xlu0 %v1844, 100
        %v2046 = vpop.permute.xlu0 %2045
        %2047 = vrot.lane.b32.xlu0 %v1845, 100
        %v2048 = vpop.permute.xlu0 %2047
        %2049 = vrot.lane.b32.xlu0 %v1846, 100
        %v2050 = vpop.permute.xlu0 %2049
        %2051 = vrot.lane.b32.xlu0 %v1847, 100
        %v2052 = vpop.permute.xlu0 %2051
        %2053 = vrot.lane.b32.xlu0 %v1848, 100
        %v2054 = vpop.permute.xlu0 %2053
        %2055 = vrot.lane.b32.xlu0 %v1849, 100
        %v2056 = vpop.permute.xlu0 %2055
        %2057 = vrot.lane.b32.xlu0 %v1850, 100
        %v2058 = vpop.permute.xlu0 %2057
        %2059 = vrot.lane.b32.xlu0 %v1851, 100
        %v2060 = vpop.permute.xlu0 %2059
        %2061 = vrot.lane.b32.xlu0 %v1852, 100
        %v2062 = vpop.permute.xlu0 %2061
        %2063 = vrot.lane.b32.xlu0 %v1853, 100
        %v2064 = vpop.permute.xlu0 %2063
        %2065 = vrot.lane.b32.xlu0 %v1854, 100
        %v2066 = vpop.permute.xlu0 %2065
        %2067 = vrot.lane.b32.xlu0 %v1855, 100
        %v2068 = vpop.permute.xlu0 %2067
        %2069 = vrot.lane.b32.xlu0 %v1856, 100
        %v2070 = vpop.permute.xlu0 %2069
        %2071 = vrot.lane.b32.xlu0 %v1857, 100
        %v2072 = vpop.permute.xlu0 %2071
        %2073 = vrot.lane.b32.xlu0 %v1858, 100
        %v2074 = vpop.permute.xlu0 %2073
        %2075 = vrot.lane.b32.xlu0 %v1859, 100
        %v2076 = vpop.permute.xlu0 %2075
        %2077 = vrot.lane.b32.xlu0 %v1860, 100
        %v2078 = vpop.permute.xlu0 %2077
        %2079 = vrot.lane.b32.xlu0 %v1861, 100
        %v2080 = vpop.permute.xlu0 %2079
        %2081 = vrot.lane.b32.xlu0 %v1862, 100
        %v2082 = vpop.permute.xlu0 %2081
        %2083 = vrot.lane.b32.xlu0 %v1863, 100
        %v2084 = vpop.permute.xlu0 %2083
        %2085 = vrot.lane.b32.xlu0 %v1864, 100
        %v2086 = vpop.permute.xlu0 %2085
        %2087 = vrot.lane.b32.xlu0 %v1865, 100
        %v2088 = vpop.permute.xlu0 %2087
        %2089 = vrot.lane.b32.xlu0 %v1866, 100
        %v2090 = vpop.permute.xlu0 %2089
        %2091 = vrot.lane.b32.xlu0 %v1867, 100
        %v2092 = vpop.permute.xlu0 %2091
        %2093 = vrot.lane.b32.xlu0 %v1868, 100
        %v2094 = vpop.permute.xlu0 %2093
        %2095 = vrot.lane.b32.xlu0 %v1869, 100
        %v2096 = vpop.permute.xlu0 %2095
        %2097 = vrot.lane.b32.xlu0 %v1870, 100
        %v2098 = vpop.permute.xlu0 %2097
        %2099 = vrot.lane.b32.xlu0 %v1871, 100
        %v2100 = vpop.permute.xlu0 %2099
        %2101 = vrot.lane.b32.xlu0 %v1872, 100
        %v2102 = vpop.permute.xlu0 %2101
        %2103 = vrot.lane.b32.xlu0 %v1873, 100
        %v2104 = vpop.permute.xlu0 %2103
        %2105 = vrot.lane.b32.xlu0 %v1874, 100
        %v2106 = vpop.permute.xlu0 %2105
        %2107 = vrot.lane.b32.xlu0 %v1875, 100
        %v2108 = vpop.permute.xlu0 %2107
        %2109 = vrot.lane.b32.xlu0 %v1876, 100
        %v2110 = vpop.permute.xlu0 %2109
        %2111 = vrot.lane.b32.xlu0 %v1877, 100
        %v2112 = vpop.permute.xlu0 %2111
        %2113 = vrot.lane.b32.xlu0 %v1878, 100
        %v2114 = vpop.permute.xlu0 %2113
        %2115 = vrot.lane.b32.xlu0 %v1879, 100
        %v2116 = vpop.permute.xlu0 %2115
        %2117 = vrot.lane.b32.xlu0 %v1880, 100
        %v2118 = vpop.permute.xlu0 %2117
        %2119 = vrot.lane.b32.xlu0 %v1881, 100
        %v2120 = vpop.permute.xlu0 %2119
        %2121 = vrot.lane.b32.xlu0 %v1882, 100
        %v2122 = vpop.permute.xlu0 %2121
        %2123 = vrot.lane.b32.xlu0 %v1883, 100
        %v2124 = vpop.permute.xlu0 %2123
        %2125 = vrot.lane.b32.xlu0 %v1884, 100
        %v2126 = vpop.permute.xlu0 %2125
        %2127 = vrot.lane.b32.xlu0 %v1885, 100
        %v2128 = vpop.permute.xlu0 %2127
        %2129 = vrot.lane.b32.xlu0 %v1886, 100
        %v2130 = vpop.permute.xlu0 %2129
        %2131 = vrot.lane.b32.xlu0 %v1887, 100
        %v2132 = vpop.permute.xlu0 %2131
        %2133 = vrot.lane.b32.xlu0 %v1888, 100
        %v2134 = vpop.permute.xlu0 %2133
        %2135 = vrot.lane.b32.xlu0 %v1889, 100
        %v2136 = vpop.permute.xlu0 %2135
        %2137 = vrot.lane.b32.xlu0 %v1890, 100
        %v2138 = vpop.permute.xlu0 %2137
        %2139 = vrot.lane.b32.xlu0 %v1891, 100
        %v2140 = vpop.permute.xlu0 %2139
        %2141 = vrot.lane.b32.xlu0 %v1892, 100
        %v2142 = vpop.permute.xlu0 %2141
        %2143 = vrot.lane.b32.xlu0 %v1893, 100
        %v2144 = vpop.permute.xlu0 %2143
        %2145 = vrot.lane.b32.xlu0 %v1894, 100
        %v2146 = vpop.permute.xlu0 %2145
        %2147 = vrot.lane.b32.xlu0 %v1895, 100
        %v2148 = vpop.permute.xlu0 %2147
        %2149 = vrot.lane.b32.xlu0 %v1896, 100
        %v2150 = vpop.permute.xlu0 %2149
        %2151 = vrot.lane.b32.xlu0 %v1897, 100
        %v2152 = vpop.permute.xlu0 %2151
        %2153 = vrot.lane.b32.xlu0 %v1898, 100
        %v2154 = vpop.permute.xlu0 %2153
        %2155 = vrot.lane.b32.xlu0 %v1899, 100
        %v2156 = vpop.permute.xlu0 %2155
        %2157 = vrot.lane.b32.xlu0 %v1900, 100
        %v2158 = vpop.permute.xlu0 %2157
        %2159 = vrot.lane.b32.xlu0 %v1901, 100
        %v2160 = vpop.permute.xlu0 %2159
        %2161 = vrot.lane.b32.xlu0 %v1902, 100
        %v2162 = vpop.permute.xlu0 %2161
        %2163 = vrot.lane.b32.xlu0 %v1903, 100
        %v2164 = vpop.permute.xlu0 %2163
        %2165 = vrot.lane.b32.xlu0 %v1904, 100
        %v2166 = vpop.permute.xlu0 %2165
        %2167 = vrot.lane.b32.xlu0 %v1905, 100
        %v2168 = vpop.permute.xlu0 %2167
        %2169 = vrot.lane.b32.xlu0 %v1906, 100
        %v2170 = vpop.permute.xlu0 %2169
        %2171 = vrot.lane.b32.xlu0 %v1907, 100
        %v2172 = vpop.permute.xlu0 %2171
        %2173 = vrot.lane.b32.xlu0 %v1908, 100
        %v2174 = vpop.permute.xlu0 %2173
        %2175 = vrot.lane.b32.xlu0 %v1909, 100
        %v2176 = vpop.permute.xlu0 %2175
        %2177 = vrot.lane.b32.xlu0 %v1910, 100
        %v2178 = vpop.permute.xlu0 %2177
        %2179 = vrot.lane.b32.xlu0 %v1911, 100
        %v2180 = vpop.permute.xlu0 %2179
        %2181 = vrot.lane.b32.xlu0 %v1912, 100
        %v2182 = vpop.permute.xlu0 %2181
        %2183 = vrot.lane.b32.xlu0 %v1913, 100
        %v2184 = vpop.permute.xlu0 %2183
        %2185 = vrot.lane.b32.xlu0 %v1914, 100
        %v2186 = vpop.permute.xlu0 %2185
        %2187 = vrot.lane.b32.xlu0 %v1915, 100
        %v2188 = vpop.permute.xlu0 %2187
        %2189 = vrot.lane.b32.xlu0 %v1916, 100
        %v2190 = vpop.permute.xlu0 %2189
        %2191 = vrot.lane.b32.xlu0 %v1917, 100
        %v2192 = vpop.permute.xlu0 %2191
        %2193 = vrot.lane.b32.xlu0 %v1918, 100
        %v2194 = vpop.permute.xlu0 %2193
        %2195 = vrot.lane.b32.xlu0 %v1919, 100
        %v2196 = vpop.permute.xlu0 %2195
        %2197 = vrot.lane.b32.xlu0 %v1920, 100
        %v2198 = vpop.permute.xlu0 %2197
        %2199 = vrot.lane.b32.xlu0 %v1921, 100
        %v2200 = vpop.permute.xlu0 %2199
        %2201 = vrot.lane.b32.xlu0 %v1922, 100
        %v2202 = vpop.permute.xlu0 %2201
        %2203 = vrot.lane.b32.xlu0 %v1923, 100
        %v2204 = vpop.permute.xlu0 %2203
        %2205 = vrot.lane.b32.xlu0 %v1924, 100
        %v2206 = vpop.permute.xlu0 %2205
        %2207 = vrot.lane.b32.xlu0 %v1925, 100
        %v2208 = vpop.permute.xlu0 %2207
        %2209 = vrot.lane.b32.xlu0 %v1926, 100
        %v2210 = vpop.permute.xlu0 %2209
        %2211 = vrot.lane.b32.xlu0 %v1927, 100
        %v2212 = vpop.permute.xlu0 %2211
        %2213 = vrot.lane.b32.xlu0 %v1928, 100
        %v2214 = vpop.permute.xlu0 %2213
        %2215 = vrot.lane.b32.xlu0 %v1929, 100
        %v2216 = vpop.permute.xlu0 %2215
        %2217 = vrot.lane.b32.xlu0 %v1930, 100
        %v2218 = vpop.permute.xlu0 %2217
        %v2219 = vsel %vm563, %v2028, %v2030
        %v2220 = vsel %vm563, %v2030, %v2032
        %v2221 = vsel %vm563, %v2032, %v2034
        %v2222 = vsel %vm563, %v2034, %v2036
        %v2223 = vsel %vm563, %v2036, %v2038
        %v2224 = vsel %vm563, %v2040, %v2042
        %v2225 = vsel %vm563, %v2042, %v2044
        %v2226 = vsel %vm563, %v2044, %v2046
        %v2227 = vsel %vm563, %v2046, %v2048
        %v2228 = vsel %vm563, %v2048, %v2050
        %v2229 = vsel %vm563, %v2052, %v2054
        %v2230 = vsel %vm563, %v2054, %v2056
        %v2231 = vsel %vm563, %v2056, %v2058
        %v2232 = vsel %vm563, %v2058, %v2060
        %v2233 = vsel %vm563, %v2060, %v2062
        %v2234 = vsel %vm563, %v2064, %v2066
        %v2235 = vsel %vm563, %v2066, %v2068
        %v2236 = vsel %vm563, %v2068, %v2070
        %v2237 = vsel %vm563, %v2070, %v2072
        %v2238 = vsel %vm563, %v2072, %v2074
        %v2239 = vsel %vm563, %v2076, %v2078
        %v2240 = vsel %vm563, %v2078, %v2080
        %v2241 = vsel %vm563, %v2080, %v2082
        %v2242 = vsel %vm563, %v2082, %v2084
        %v2243 = vsel %vm563, %v2084, %v2086
        %v2244 = vsel %vm563, %v2088, %v2090
        %v2245 = vsel %vm563, %v2090, %v2092
        %v2246 = vsel %vm563, %v2092, %v2094
        %v2247 = vsel %vm563, %v2094, %v2096
        %v2248 = vsel %vm563, %v2096, %v2098
        %v2249 = vsel %vm563, %v2100, %v2102
        %v2250 = vsel %vm563, %v2102, %v2104
        %v2251 = vsel %vm563, %v2104, %v2106
        %v2252 = vsel %vm563, %v2106, %v2108
        %v2253 = vsel %vm563, %v2108, %v2110
        %v2254 = vsel %vm563, %v2112, %v2114
        %v2255 = vsel %vm563, %v2114, %v2116
        %v2256 = vsel %vm563, %v2116, %v2118
        %v2257 = vsel %vm563, %v2118, %v2120
        %v2258 = vsel %vm563, %v2120, %v2122
        %v2259 = vsel %vm563, %v2124, %v2126
        %v2260 = vsel %vm563, %v2126, %v2128
        %v2261 = vsel %vm563, %v2128, %v2130
        %v2262 = vsel %vm563, %v2130, %v2132
        %v2263 = vsel %vm563, %v2132, %v2134
        %v2264 = vsel %vm563, %v2136, %v2138
        %v2265 = vsel %vm563, %v2138, %v2140
        %v2266 = vsel %vm563, %v2140, %v2142
        %v2267 = vsel %vm563, %v2142, %v2144
        %v2268 = vsel %vm563, %v2144, %v2146
        %v2269 = vsel %vm563, %v2148, %v2150
        %v2270 = vsel %vm563, %v2150, %v2152
        %v2271 = vsel %vm563, %v2152, %v2154
        %v2272 = vsel %vm563, %v2154, %v2156
        %v2273 = vsel %vm563, %v2156, %v2158
        %v2274 = vsel %vm563, %v2160, %v2162
        %v2275 = vsel %vm563, %v2162, %v2164
        %v2276 = vsel %vm563, %v2164, %v2166
        %v2277 = vsel %vm563, %v2166, %v2168
        %v2278 = vsel %vm563, %v2168, %v2170
        %v2279 = vsel %vm563, %v2172, %v2174
        %v2280 = vsel %vm563, %v2174, %v2176
        %v2281 = vsel %vm563, %v2176, %v2178
        %v2282 = vsel %vm563, %v2178, %v2180
        %v2283 = vsel %vm563, %v2180, %v2182
        %v2284 = vsel %vm563, %v2184, %v2186
        %v2285 = vsel %vm563, %v2186, %v2188
        %v2286 = vsel %vm563, %v2188, %v2190
        %v2287 = vsel %vm563, %v2190, %v2192
        %v2288 = vsel %vm563, %v2192, %v2194
        %v2289 = vsel %vm563, %v2196, %v2198
        %v2290 = vsel %vm563, %v2198, %v2200
        %v2291 = vsel %vm563, %v2200, %v2202
        %v2292 = vsel %vm563, %v2202, %v2204
        %v2293 = vsel %vm563, %v2204, %v2206
        %v2294 = vsel %vm563, %v2208, %v2210
        %v2295 = vsel %vm563, %v2210, %v2212
        %v2296 = vsel %vm563, %v2212, %v2214
        %v2297 = vsel %vm563, %v2214, %v2216
        %v2298 = vsel %vm563, %v2216, %v2218
        %v2395 = vmax.f32 %v1835, %v2219
        %v2396 = vmax.f32 %v1836, %v2220
        %v2397 = vmax.f32 %v1837, %v2221
        %v2398 = vmax.f32 %v1838, %v2222
        %v2399 = vmax.f32 %v1839, %v2223
        %v2400 = vmax.f32 %v1840, %v2038
        %v2401 = vmax.f32 %v1841, %v2224
        %v2402 = vmax.f32 %v1842, %v2225
        %v2403 = vmax.f32 %v1843, %v2226
        %v2404 = vmax.f32 %v1844, %v2227
        %v2405 = vmax.f32 %v1845, %v2228
        %v2406 = vmax.f32 %v1846, %v2050
        %v2407 = vmax.f32 %v1847, %v2229
        %v2408 = vmax.f32 %v1848, %v2230
        %v2409 = vmax.f32 %v1849, %v2231
        %v2410 = vmax.f32 %v1850, %v2232
        %v2411 = vmax.f32 %v1851, %v2233
        %v2412 = vmax.f32 %v1852, %v2062
        %v2413 = vmax.f32 %v1853, %v2234
        %v2414 = vmax.f32 %v1854, %v2235
        %v2415 = vmax.f32 %v1855, %v2236
        %v2416 = vmax.f32 %v1856, %v2237
        %v2417 = vmax.f32 %v1857, %v2238
        %v2418 = vmax.f32 %v1858, %v2074
        %v2419 = vmax.f32 %v1859, %v2239
        %v2420 = vmax.f32 %v1860, %v2240
        %v2421 = vmax.f32 %v1861, %v2241
        %v2422 = vmax.f32 %v1862, %v2242
        %v2423 = vmax.f32 %v1863, %v2243
        %v2424 = vmax.f32 %v1864, %v2086
        %v2425 = vmax.f32 %v1865, %v2244
        %v2426 = vmax.f32 %v1866, %v2245
        %v2427 = vmax.f32 %v1867, %v2246
        %v2428 = vmax.f32 %v1868, %v2247
        %v2429 = vmax.f32 %v1869, %v2248
        %v2430 = vmax.f32 %v1870, %v2098
        %v2431 = vmax.f32 %v1871, %v2249
        %v2432 = vmax.f32 %v1872, %v2250
        %v2433 = vmax.f32 %v1873, %v2251
        %v2434 = vmax.f32 %v1874, %v2252
        %v2435 = vmax.f32 %v1875, %v2253
        %v2436 = vmax.f32 %v1876, %v2110
        %v2437 = vmax.f32 %v1877, %v2254
        %v2438 = vmax.f32 %v1878, %v2255
        %v2439 = vmax.f32 %v1879, %v2256
        %v2440 = vmax.f32 %v1880, %v2257
        %v2441 = vmax.f32 %v1881, %v2258
        %v2442 = vmax.f32 %v1882, %v2122
        %v2443 = vmax.f32 %v1883, %v2259
        %v2444 = vmax.f32 %v1884, %v2260
        %v2445 = vmax.f32 %v1885, %v2261
        %v2446 = vmax.f32 %v1886, %v2262
        %v2447 = vmax.f32 %v1887, %v2263
        %v2448 = vmax.f32 %v1888, %v2134
        %v2449 = vmax.f32 %v1889, %v2264
        %v2450 = vmax.f32 %v1890, %v2265
        %v2451 = vmax.f32 %v1891, %v2266
        %v2452 = vmax.f32 %v1892, %v2267
        %v2453 = vmax.f32 %v1893, %v2268
        %v2454 = vmax.f32 %v1894, %v2146
        %v2455 = vmax.f32 %v1895, %v2269
        %v2456 = vmax.f32 %v1896, %v2270
        %v2457 = vmax.f32 %v1897, %v2271
        %v2458 = vmax.f32 %v1898, %v2272
        %v2459 = vmax.f32 %v1899, %v2273
        %v2460 = vmax.f32 %v1900, %v2158
        %v2461 = vmax.f32 %v1901, %v2274
        %v2462 = vmax.f32 %v1902, %v2275
        %v2463 = vmax.f32 %v1903, %v2276
        %v2464 = vmax.f32 %v1904, %v2277
        %v2465 = vmax.f32 %v1905, %v2278
        %v2466 = vmax.f32 %v1906, %v2170
        %v2467 = vmax.f32 %v1907, %v2279
        %v2468 = vmax.f32 %v1908, %v2280
        %v2469 = vmax.f32 %v1909, %v2281
        %v2470 = vmax.f32 %v1910, %v2282
        %v2471 = vmax.f32 %v1911, %v2283
        %v2472 = vmax.f32 %v1912, %v2182
        %v2473 = vmax.f32 %v1913, %v2284
        %v2474 = vmax.f32 %v1914, %v2285
        %v2475 = vmax.f32 %v1915, %v2286
        %v2476 = vmax.f32 %v1916, %v2287
        %v2477 = vmax.f32 %v1917, %v2288
        %v2478 = vmax.f32 %v1918, %v2194
        %v2479 = vmax.f32 %v1919, %v2289
        %v2480 = vmax.f32 %v1920, %v2290
        %v2481 = vmax.f32 %v1921, %v2291
        %v2482 = vmax.f32 %v1922, %v2292
        %v2483 = vmax.f32 %v1923, %v2293
        %v2484 = vmax.f32 %v1924, %v2206
        %v2485 = vmax.f32 %v1925, %v2294
        %v2486 = vmax.f32 %v1926, %v2295
        %v2487 = vmax.f32 %v1927, %v2296
        %v2488 = vmax.f32 %v1928, %v2297
        %v2489 = vmax.f32 %v1929, %v2298
        %v2490 = vmax.f32 %v1930, %v2218
        %v2491 = vpack.c.bf16 %v2401, %v2395
        %v2492 = vpack.c.bf16 %v2402, %v2396
        %v2493 = vpack.c.bf16 %v2403, %v2397
        %v2494 = vpack.c.bf16 %v2404, %v2398
        %v2495 = vpack.c.bf16 %v2405, %v2399
        %v2496 = vpack.c.bf16 %v2406, %v2400
        %v2497 = vpack.c.bf16 %v2413, %v2407
        %v2498 = vpack.c.bf16 %v2414, %v2408
        %v2499 = vpack.c.bf16 %v2415, %v2409
        %v2500 = vpack.c.bf16 %v2416, %v2410
        %v2501 = vpack.c.bf16 %v2417, %v2411
        %v2502 = vpack.c.bf16 %v2418, %v2412
        %v2503 = vpack.c.bf16 %v2425, %v2419
        %v2504 = vpack.c.bf16 %v2426, %v2420
        %v2505 = vpack.c.bf16 %v2427, %v2421
        %v2506 = vpack.c.bf16 %v2428, %v2422
        %v2507 = vpack.c.bf16 %v2429, %v2423
        %v2508 = vpack.c.bf16 %v2430, %v2424
        %v2509 = vpack.c.bf16 %v2437, %v2431
        %v2510 = vpack.c.bf16 %v2438, %v2432
        %v2511 = vpack.c.bf16 %v2439, %v2433
        %v2512 = vpack.c.bf16 %v2440, %v2434
        %v2513 = vpack.c.bf16 %v2441, %v2435
        %v2514 = vpack.c.bf16 %v2442, %v2436
        %v2515 = vpack.c.bf16 %v2449, %v2443
        %v2516 = vpack.c.bf16 %v2450, %v2444
        %v2517 = vpack.c.bf16 %v2451, %v2445
        %v2518 = vpack.c.bf16 %v2452, %v2446
        %v2519 = vpack.c.bf16 %v2453, %v2447
        %v2520 = vpack.c.bf16 %v2454, %v2448
        %v2521 = vpack.c.bf16 %v2461, %v2455
        %v2522 = vpack.c.bf16 %v2462, %v2456
        %v2523 = vpack.c.bf16 %v2463, %v2457
        %v2524 = vpack.c.bf16 %v2464, %v2458
        %v2525 = vpack.c.bf16 %v2465, %v2459
        %v2526 = vpack.c.bf16 %v2466, %v2460
        %v2527 = vpack.c.bf16 %v2473, %v2467
        %v2528 = vpack.c.bf16 %v2474, %v2468
        %v2529 = vpack.c.bf16 %v2475, %v2469
        %v2530 = vpack.c.bf16 %v2476, %v2470
        %v2531 = vpack.c.bf16 %v2477, %v2471
        %v2532 = vpack.c.bf16 %v2478, %v2472
        %v2533 = vpack.c.bf16 %v2485, %v2479
        %v2534 = vpack.c.bf16 %v2486, %v2480
        %v2535 = vpack.c.bf16 %v2487, %v2481
        %v2536 = vpack.c.bf16 %v2488, %v2482
        %v2537 = vpack.c.bf16 %v2489, %v2483
        %v2538 = vpack.c.bf16 %v2490, %v2484
        %v2539 = vld [vmem:[%s3] sm:$0xff]
        %v2540 = vld [vmem:[%s3 + $0x8] sm:$0xff]
        %v2541 = vld [vmem:[%s3 + $0x10] sm:$0xff]
        %v2542 = vld [vmem:[%s3 + $0x18] sm:$0xff]
        %v2543 = vld [vmem:[%s3 + $0x20] sm:$0xff]
        %v2544 = vld [vmem:[%s3 + $0x28] sm:$0xff]
        %v2545 = vld [vmem:[%s3 + $0x30] sm:$0xff]
        %v2546 = vld [vmem:[%s3 + $0x38] sm:$0xff]
        %v2547 = vld [vmem:[%s3 + $0x40] sm:$0xff]
        %v2548 = vld [vmem:[%s3 + $0x48] sm:$0xff]
        %v2549 = vld [vmem:[%s3 + $0x50] sm:$0xff]
        %v2550 = vld [vmem:[%s3 + $0x58] sm:$0xff]
        %v2551 = vld [vmem:[%s3 + $0x60] sm:$0xff]
        %v2552 = vld [vmem:[%s3 + $0x68] sm:$0xff]
        %v2553 = vld [vmem:[%s3 + $0x70] sm:$0xff]
        %v2554 = vld [vmem:[%s3 + $0x78] sm:$0xff]
        %v2555 = vld [vmem:[%s3 + $0x80] sm:$0xff]
        %v2556 = vld [vmem:[%s3 + $0x88] sm:$0xff]
        %v2557 = vld [vmem:[%s3 + $0x90] sm:$0xff]
        %v2558 = vld [vmem:[%s3 + $0x98] sm:$0xff]
        %v2559 = vld [vmem:[%s3 + $0xa0] sm:$0xff]
        %v2560 = vld [vmem:[%s3 + $0xa8] sm:$0xff]
        %v2561 = vld [vmem:[%s3 + $0xb0] sm:$0xff]
        %v2562 = vld [vmem:[%s3 + $0xb8] sm:$0xff]
        %v2563 = vld [vmem:[%s3 + $0xc0] sm:$0xff]
        %v2564 = vld [vmem:[%s3 + $0xc8] sm:$0xff]
        %v2565 = vld [vmem:[%s3 + $0xd0] sm:$0xff]
        %v2566 = vld [vmem:[%s3 + $0xd8] sm:$0xff]
        %v2567 = vld [vmem:[%s3 + $0xe0] sm:$0xff]
        %v2568 = vld [vmem:[%s3 + $0xe8] sm:$0xff]
        %v2569 = vld [vmem:[%s3 + $0xf0] sm:$0xff]
        %v2570 = vld [vmem:[%s3 + $0xf8] sm:$0xff]
        %v2571 = vld [vmem:[%s3 + $0x100] sm:$0xff]
        %v2572 = vld [vmem:[%s3 + $0x108] sm:$0xff]
        %v2573 = vld [vmem:[%s3 + $0x110] sm:$0xff]
        %v2574 = vld [vmem:[%s3 + $0x118] sm:$0xff]
        %v2575 = vld [vmem:[%s3 + $0x120] sm:$0xff]
        %v2576 = vld [vmem:[%s3 + $0x128] sm:$0xff]
        %v2577 = vld [vmem:[%s3 + $0x130] sm:$0xff]
        %v2578 = vld [vmem:[%s3 + $0x138] sm:$0xff]
        %v2579 = vld [vmem:[%s3 + $0x140] sm:$0xff]
        %v2580 = vld [vmem:[%s3 + $0x148] sm:$0xff]
        %v2581 = vld [vmem:[%s3 + $0x150] sm:$0xff]
        %v2582 = vld [vmem:[%s3 + $0x158] sm:$0xff]
        %v2583 = vld [vmem:[%s3 + $0x160] sm:$0xff]
        %v2584 = vld [vmem:[%s3 + $0x168] sm:$0xff]
        %v2585 = vld [vmem:[%s3 + $0x170] sm:$0xff]
        %v2586 = vld [vmem:[%s3 + $0x178] sm:$0xff]
        %v2587 = vld [vmem:[%s3 + $0x180] sm:$0xff]
        %v2588 = vld [vmem:[%s3 + $0x188] sm:$0xff]
        %v2589 = vld [vmem:[%s3 + $0x190] sm:$0xff]
        %v2590 = vld [vmem:[%s3 + $0x198] sm:$0xff]
        %v2591 = vld [vmem:[%s3 + $0x1a0] sm:$0xff]
        %v2592 = vld [vmem:[%s3 + $0x1a8] sm:$0xff]
        %v2593 = vld [vmem:[%s3 + $0x1b0] sm:$0xff]
        %v2594 = vld [vmem:[%s3 + $0x1b8] sm:$0xff]
        %v2595 = vld [vmem:[%s3 + $0x1c0] sm:$0xff]
        %v2596 = vld [vmem:[%s3 + $0x1c8] sm:$0xff]
        %v2597 = vld [vmem:[%s3 + $0x1d0] sm:$0xff]
        %v2598 = vld [vmem:[%s3 + $0x1d8] sm:$0xff]
        %v2599 = vld [vmem:[%s3 + $0x1e0] sm:$0xff]
        %v2600 = vld [vmem:[%s3 + $0x1e8] sm:$0xff]
        %v2601 = vld [vmem:[%s3 + $0x1f0] sm:$0xff]
        %v2602 = vld [vmem:[%s3 + $0x1f8] sm:$0xff]
        %v2603 = vld [vmem:[%s3 + $0x200] sm:$0xff]
        %v2604 = vld [vmem:[%s3 + $0x208] sm:$0xff]
        %v2605 = vld [vmem:[%s3 + $0x210] sm:$0xff]
        %v2606 = vld [vmem:[%s3 + $0x218] sm:$0xff]
        %v2607 = vld [vmem:[%s3 + $0x220] sm:$0xff]
        %v2608 = vld [vmem:[%s3 + $0x228] sm:$0xff]
        %v2609 = vld [vmem:[%s3 + $0x230] sm:$0xff]
        %v2610 = vld [vmem:[%s3 + $0x238] sm:$0xff]
        %v2611 = vld [vmem:[%s3 + $0x240] sm:$0xff]
        %v2612 = vld [vmem:[%s3 + $0x248] sm:$0xff]
        %v2613 = vld [vmem:[%s3 + $0x250] sm:$0xff]
        %v2614 = vld [vmem:[%s3 + $0x258] sm:$0xff]
        %v2615 = vld [vmem:[%s3 + $0x260] sm:$0xff]
        %v2616 = vld [vmem:[%s3 + $0x268] sm:$0xff]
        %v2617 = vld [vmem:[%s3 + $0x270] sm:$0xff]
        %v2618 = vld [vmem:[%s3 + $0x278] sm:$0xff]
        %v2619 = vld [vmem:[%s3 + $0x280] sm:$0xff]
        %v2620 = vld [vmem:[%s3 + $0x288] sm:$0xff]
        %v2621 = vld [vmem:[%s3 + $0x290] sm:$0xff]
        %v2622 = vld [vmem:[%s3 + $0x298] sm:$0xff]
        %v2623 = vld [vmem:[%s3 + $0x2a0] sm:$0xff]
        %v2624 = vld [vmem:[%s3 + $0x2a8] sm:$0xff]
        %v2625 = vld [vmem:[%s3 + $0x2b0] sm:$0xff]
        %v2626 = vld [vmem:[%s3 + $0x2b8] sm:$0x11]
        %v2715 = vunpack.c.l.b16 %v2539
        %v2716 = vunpack.c.h.b16 %v2539
        %v2717 = vunpack.c.l.b16 %v2540
        %v2718 = vunpack.c.h.b16 %v2540
        %v2719 = vunpack.c.l.b16 %v2541
        %v2720 = vunpack.c.h.b16 %v2541
        %v2721 = vunpack.c.l.b16 %v2542
        %v2722 = vunpack.c.h.b16 %v2542
        %v2723 = vunpack.c.l.b16 %v2543
        %v2724 = vunpack.c.h.b16 %v2543
        %v2725 = vunpack.c.l.b16 %v2544
        %v2726 = vunpack.c.h.b16 %v2544
        %v2727 = vunpack.c.l.b16 %v2545
        %v2728 = vunpack.c.h.b16 %v2545
        %v2729 = vunpack.c.l.b16 %v2546
        %v2730 = vunpack.c.h.b16 %v2546
        %v2731 = vunpack.c.l.b16 %v2547
        %v2732 = vunpack.c.h.b16 %v2547
        %v2733 = vunpack.c.l.b16 %v2548
        %v2734 = vunpack.c.h.b16 %v2548
        %v2735 = vunpack.c.l.b16 %v2549
        %v2736 = vunpack.c.h.b16 %v2549
        %v2737 = vunpack.c.l.b16 %v2550
        %v2738 = vunpack.c.h.b16 %v2550
        %v2739 = vunpack.c.l.b16 %v2551
        %v2740 = vunpack.c.h.b16 %v2551
        %v2741 = vunpack.c.l.b16 %v2552
        %v2742 = vunpack.c.h.b16 %v2552
        %v2743 = vunpack.c.l.b16 %v2553
        %v2744 = vunpack.c.h.b16 %v2553
        %v2745 = vunpack.c.l.b16 %v2554
        %v2746 = vunpack.c.h.b16 %v2554
        %v2747 = vunpack.c.l.b16 %v2555
        %v2748 = vunpack.c.h.b16 %v2555
        %v2749 = vunpack.c.l.b16 %v2556
        %v2750 = vunpack.c.h.b16 %v2556
        %v2751 = vunpack.c.l.b16 %v2557
        %v2752 = vunpack.c.h.b16 %v2557
        %v2753 = vunpack.c.l.b16 %v2558
        %v2754 = vunpack.c.h.b16 %v2558
        %v2755 = vunpack.c.l.b16 %v2559
        %v2756 = vunpack.c.h.b16 %v2559
        %v2757 = vunpack.c.l.b16 %v2560
        %v2758 = vunpack.c.h.b16 %v2560
        %v2759 = vunpack.c.l.b16 %v2561
        %v2760 = vunpack.c.h.b16 %v2561
        %v2761 = vunpack.c.l.b16 %v2562
        %v2762 = vunpack.c.h.b16 %v2562
        %v2763 = vunpack.c.l.b16 %v2563
        %v2764 = vunpack.c.h.b16 %v2563
        %v2765 = vunpack.c.l.b16 %v2564
        %v2766 = vunpack.c.h.b16 %v2564
        %v2767 = vunpack.c.l.b16 %v2565
        %v2768 = vunpack.c.h.b16 %v2565
        %v2769 = vunpack.c.l.b16 %v2566
        %v2770 = vunpack.c.h.b16 %v2566
        %v2771 = vunpack.c.l.b16 %v2567
        %v2772 = vunpack.c.h.b16 %v2567
        %v2773 = vunpack.c.l.b16 %v2568
        %v2774 = vunpack.c.h.b16 %v2568
        %v2775 = vunpack.c.l.b16 %v2569
        %v2776 = vunpack.c.h.b16 %v2569
        %v2777 = vunpack.c.l.b16 %v2570
        %v2778 = vunpack.c.h.b16 %v2570
        %v2779 = vunpack.c.l.b16 %v2571
        %v2780 = vunpack.c.h.b16 %v2571
        %v2781 = vunpack.c.l.b16 %v2572
        %v2782 = vunpack.c.h.b16 %v2572
        %v2783 = vunpack.c.l.b16 %v2573
        %v2784 = vunpack.c.h.b16 %v2573
        %v2785 = vunpack.c.l.b16 %v2574
        %v2786 = vunpack.c.h.b16 %v2574
        %v2787 = vunpack.c.l.b16 %v2575
        %v2788 = vunpack.c.h.b16 %v2575
        %v2789 = vunpack.c.l.b16 %v2576
        %v2790 = vunpack.c.h.b16 %v2576
        %v2791 = vunpack.c.l.b16 %v2577
        %v2792 = vunpack.c.h.b16 %v2577
        %v2793 = vunpack.c.l.b16 %v2578
        %v2794 = vunpack.c.h.b16 %v2578
        %v2795 = vunpack.c.l.b16 %v2579
        %v2796 = vunpack.c.h.b16 %v2579
        %v2797 = vunpack.c.l.b16 %v2580
        %v2798 = vunpack.c.h.b16 %v2580
        %v2799 = vunpack.c.l.b16 %v2581
        %v2800 = vunpack.c.h.b16 %v2581
        %v2801 = vunpack.c.l.b16 %v2582
        %v2802 = vunpack.c.h.b16 %v2582
        %v2803 = vunpack.c.l.b16 %v2583
        %v2804 = vunpack.c.h.b16 %v2583
        %v2805 = vunpack.c.l.b16 %v2584
        %v2806 = vunpack.c.h.b16 %v2584
        %v2807 = vunpack.c.l.b16 %v2585
        %v2808 = vunpack.c.h.b16 %v2585
        %v2809 = vunpack.c.l.b16 %v2586
        %v2810 = vunpack.c.h.b16 %v2586
        %v2811 = vunpack.c.l.b16 %v2587
        %v2812 = vunpack.c.h.b16 %v2587
        %v2813 = vunpack.c.l.b16 %v2588
        %v2814 = vunpack.c.h.b16 %v2588
        %v2815 = vunpack.c.l.b16 %v2589
        %v2816 = vunpack.c.h.b16 %v2589
        %v2817 = vunpack.c.l.b16 %v2590
        %v2818 = vunpack.c.h.b16 %v2590
        %v2819 = vunpack.c.l.b16 %v2591
        %v2820 = vunpack.c.h.b16 %v2591
        %v2821 = vunpack.c.l.b16 %v2592
        %v2822 = vunpack.c.h.b16 %v2592
        %v2823 = vunpack.c.l.b16 %v2593
        %v2824 = vunpack.c.h.b16 %v2593
        %v2825 = vunpack.c.l.b16 %v2594
        %v2826 = vunpack.c.h.b16 %v2594
        %v2827 = vunpack.c.l.b16 %v2595
        %v2828 = vunpack.c.h.b16 %v2595
        %v2829 = vunpack.c.l.b16 %v2596
        %v2830 = vunpack.c.h.b16 %v2596
        %v2831 = vunpack.c.l.b16 %v2597
        %v2832 = vunpack.c.h.b16 %v2597
        %v2833 = vunpack.c.l.b16 %v2598
        %v2834 = vunpack.c.h.b16 %v2598
        %v2835 = vunpack.c.l.b16 %v2599
        %v2836 = vunpack.c.h.b16 %v2599
        %v2837 = vunpack.c.l.b16 %v2600
        %v2838 = vunpack.c.h.b16 %v2600
        %v2839 = vunpack.c.l.b16 %v2601
        %v2840 = vunpack.c.h.b16 %v2601
        %v2841 = vunpack.c.l.b16 %v2602
        %v2842 = vunpack.c.h.b16 %v2602
        %v2843 = vunpack.c.l.b16 %v2603
        %v2844 = vunpack.c.h.b16 %v2603
        %v2845 = vunpack.c.l.b16 %v2604
        %v2846 = vunpack.c.h.b16 %v2604
        %v2847 = vunpack.c.l.b16 %v2605
        %v2848 = vunpack.c.h.b16 %v2605
        %v2849 = vunpack.c.l.b16 %v2606
        %v2850 = vunpack.c.h.b16 %v2606
        %v2851 = vunpack.c.l.b16 %v2607
        %v2852 = vunpack.c.h.b16 %v2607
        %v2853 = vunpack.c.l.b16 %v2608
        %v2854 = vunpack.c.h.b16 %v2608
        %v2855 = vunpack.c.l.b16 %v2609
        %v2856 = vunpack.c.h.b16 %v2609
        %v2857 = vunpack.c.l.b16 %v2610
        %v2858 = vunpack.c.h.b16 %v2610
        %v2859 = vunpack.c.l.b16 %v2611
        %v2860 = vunpack.c.h.b16 %v2611
        %v2861 = vunpack.c.l.b16 %v2612
        %v2862 = vunpack.c.h.b16 %v2612
        %v2863 = vunpack.c.l.b16 %v2613
        %v2864 = vunpack.c.h.b16 %v2613
        %v2865 = vunpack.c.l.b16 %v2614
        %v2866 = vunpack.c.h.b16 %v2614
        %v2867 = vunpack.c.l.b16 %v2615
        %v2868 = vunpack.c.h.b16 %v2615
        %v2869 = vunpack.c.l.b16 %v2616
        %v2870 = vunpack.c.h.b16 %v2616
        %v2871 = vunpack.c.l.b16 %v2617
        %v2872 = vunpack.c.h.b16 %v2617
        %v2873 = vunpack.c.l.b16 %v2618
        %v2874 = vunpack.c.h.b16 %v2618
        %v2875 = vunpack.c.l.b16 %v2619
        %v2876 = vunpack.c.h.b16 %v2619
        %v2877 = vunpack.c.l.b16 %v2620
        %v2878 = vunpack.c.h.b16 %v2620
        %v2879 = vunpack.c.l.b16 %v2621
        %v2880 = vunpack.c.h.b16 %v2621
        %v2881 = vunpack.c.l.b16 %v2622
        %v2882 = vunpack.c.h.b16 %v2622
        %v2883 = vunpack.c.l.b16 %v2623
        %v2884 = vunpack.c.h.b16 %v2623
        %v2885 = vunpack.c.l.b16 %v2624
        %v2886 = vunpack.c.h.b16 %v2624
        %v2887 = vunpack.c.l.b16 %v2625
        %v2888 = vunpack.c.h.b16 %v2625
        %v2889 = vunpack.c.l.b16 %v2626
        %v2890 = vunpack.c.h.b16 %v2626
        %v2891 = vpack.c.b16 %v2717, %v2715
        %v2892 = vpack.c.b16 %v2718, %v2716
        %v2893 = vpack.c.b16 %v2721, %v2719
        %v2894 = vpack.c.b16 %v2722, %v2720
        %v2895 = vpack.c.b16 %v2725, %v2723
        %v2896 = vpack.c.b16 %v2726, %v2724
        %v2897 = vpack.c.b16 %v2729, %v2727
        %v2898 = vpack.c.b16 %v2730, %v2728
        %v2899 = vpack.c.b16 %v2733, %v2731
        %v2900 = vpack.c.b16 %v2734, %v2732
        %v2901 = vpack.c.b16 %v2737, %v2735
        %v2902 = vpack.c.b16 %v2738, %v2736
        %v2903 = vpack.c.b16 %v2741, %v2739
        %v2904 = vpack.c.b16 %v2742, %v2740
        %v2905 = vpack.c.b16 %v2745, %v2743
        %v2906 = vpack.c.b16 %v2746, %v2744
        %v2907 = vpack.c.b16 %v2749, %v2747
        %v2908 = vpack.c.b16 %v2750, %v2748
        %v2909 = vpack.c.b16 %v2753, %v2751
        %v2910 = vpack.c.b16 %v2754, %v2752
        %v2911 = vpack.c.b16 %v2757, %v2755
        %v2912 = vpack.c.b16 %v2758, %v2756
        %v2913 = vpack.c.b16 %v2761, %v2759
        %v2914 = vpack.c.b16 %v2762, %v2760
        %v2915 = vpack.c.b16 %v2765, %v2763
        %v2916 = vpack.c.b16 %v2766, %v2764
        %v2917 = vpack.c.b16 %v2769, %v2767
        %v2918 = vpack.c.b16 %v2770, %v2768
        %v2919 = vpack.c.b16 %v2773, %v2771
        %v2920 = vpack.c.b16 %v2774, %v2772
        %v2921 = vpack.c.b16 %v2777, %v2775
        %v2922 = vpack.c.b16 %v2778, %v2776
        %v2923 = vpack.c.b16 %v2781, %v2779
        %v2924 = vpack.c.b16 %v2782, %v2780
        %v2925 = vpack.c.b16 %v2785, %v2783
        %v2926 = vpack.c.b16 %v2786, %v2784
        %v2927 = vpack.c.b16 %v2789, %v2787
        %v2928 = vpack.c.b16 %v2790, %v2788
        %v2929 = vpack.c.b16 %v2793, %v2791
        %v2930 = vpack.c.b16 %v2794, %v2792
        %v2931 = vpack.c.b16 %v2797, %v2795
        %v2932 = vpack.c.b16 %v2798, %v2796
        %v2933 = vpack.c.b16 %v2801, %v2799
        %v2934 = vpack.c.b16 %v2802, %v2800
        %v2935 = vpack.c.b16 %v2805, %v2803
        %v2936 = vpack.c.b16 %v2806, %v2804
        %v2937 = vpack.c.b16 %v2809, %v2807
        %v2938 = vpack.c.b16 %v2810, %v2808
        %v2939 = vpack.c.b16 %v2813, %v2811
        %v2940 = vpack.c.b16 %v2814, %v2812
        %v2941 = vpack.c.b16 %v2817, %v2815
        %v2942 = vpack.c.b16 %v2818, %v2816
        %v2943 = vpack.c.b16 %v2821, %v2819
        %v2944 = vpack.c.b16 %v2822, %v2820
        %v2945 = vpack.c.b16 %v2825, %v2823
        %v2946 = vpack.c.b16 %v2826, %v2824
        %v2947 = vpack.c.b16 %v2829, %v2827
        %v2948 = vpack.c.b16 %v2830, %v2828
        %v2949 = vpack.c.b16 %v2833, %v2831
        %v2950 = vpack.c.b16 %v2834, %v2832
        %v2951 = vpack.c.b16 %v2837, %v2835
        %v2952 = vpack.c.b16 %v2838, %v2836
        %v2953 = vpack.c.b16 %v2841, %v2839
        %v2954 = vpack.c.b16 %v2842, %v2840
        %v2955 = vpack.c.b16 %v2845, %v2843
        %v2956 = vpack.c.b16 %v2846, %v2844
        %v2957 = vpack.c.b16 %v2849, %v2847
        %v2958 = vpack.c.b16 %v2850, %v2848
        %v2959 = vpack.c.b16 %v2853, %v2851
        %v2960 = vpack.c.b16 %v2854, %v2852
        %v2961 = vpack.c.b16 %v2857, %v2855
        %v2962 = vpack.c.b16 %v2858, %v2856
        %v2963 = vpack.c.b16 %v2861, %v2859
        %v2964 = vpack.c.b16 %v2862, %v2860
        %v2965 = vpack.c.b16 %v2865, %v2863
        %v2966 = vpack.c.b16 %v2866, %v2864
        %v2967 = vpack.c.b16 %v2869, %v2867
        %v2968 = vpack.c.b16 %v2870, %v2868
        %v2969 = vpack.c.b16 %v2873, %v2871
        %v2970 = vpack.c.b16 %v2874, %v2872
        %v2971 = vpack.c.b16 %v2877, %v2875
        %v2972 = vpack.c.b16 %v2878, %v2876
        %v2973 = vpack.c.b16 %v2881, %v2879
        %v2974 = vpack.c.b16 %v2882, %v2880
        %v2975 = vpack.c.b16 %v2885, %v2883
        %v2976 = vpack.c.b16 %v2886, %v2884
        %v2977 = vpack.c.b16 %v2889, %v2887
        %v2978 = vpack.c.b16 %v2890, %v2888
        %vm3065 = vcmask 474112
        %v3067 = vsel %vm3065, %v2496, 0
        %v3070 = vsel %vm3065, %v2502, 0
        %v3073 = vsel %vm3065, %v2508, 0
        %v3076 = vsel %vm3065, %v2514, 0
        %v3079 = vsel %vm3065, %v2520, 0
        %v3082 = vsel %vm3065, %v2526, 0
        %v3085 = vsel %vm3065, %v2532, 0
        %v3088 = vsel %vm3065, %v2538, 0
        %vm3090 = vcmask 1044480
        %v3092 = vsel %vm3090, %v2977, 0
        %v3095 = vsel %vm3090, %v2978, 0
        %3097 = vmatprep.subr.bf16.mxu0 %v2892
        %3098 = vmatpush1.bf16.msra.mxu0 %v2891
        %3099 = vmatprep.subr.bf16.mxu0 %v2894
        %3100 = vmatpush1.bf16.msra.mxu0 %v2893
        %3101 = vmatprep.subr.bf16.mxu0 %v2896
        %3102 = vmatpush1.bf16.msra.mxu0 %v2895
        %3103 = vmatprep.subr.bf16.mxu0 %v2898
        %3104 = vmatpush1.bf16.msra.mxu0 %v2897
        %3105 = vmatprep.subr.bf16.mxu0 %v2900
        %3106 = vmatpush1.bf16.msra.mxu0 %v2899
        %3107 = vmatprep.subr.bf16.mxu0 %v2902
        %3108 = vmatpush1.bf16.msra.mxu0 %v2901
        %3109 = vmatprep.subr.bf16.mxu0 %v2904
        %3110 = vmatpush1.bf16.msra.mxu0 %v2903
        %3111 = vmatprep.subr.bf16.mxu0 %v2906
        %3112 = vmatpush1.bf16.msra.mxu0 %v2905
        %3113 = vmatprep.subr.bf16.mxu0 %v2908
        %3114 = vmatpush1.bf16.msra.mxu0 %v2907
        %3115 = vmatprep.subr.bf16.mxu0 %v2910
        %3116 = vmatpush1.bf16.msra.mxu0 %v2909
        %3117 = vmatprep.subr.bf16.mxu0 %v2912
        %3118 = vmatpush1.bf16.msra.mxu0 %v2911
        %3119 = vmatprep.subr.bf16.mxu0 %v2914
        %3120 = vmatpush1.bf16.msra.mxu0 %v2913
        %3121 = vmatprep.subr.bf16.mxu0 %v2916
        %3122 = vmatpush1.bf16.msra.mxu0 %v2915
        %3123 = vmatprep.subr.bf16.mxu0 %v2918
        %3124 = vmatpush1.bf16.msra.mxu0 %v2917
        %3125 = vmatprep.subr.bf16.mxu0 %v2920
        %3126 = vmatpush1.bf16.msra.mxu0 %v2919
        %3127 = vmatprep.subr.bf16.mxu0 %v2922
        %3128 = vmatpush1.bf16.msra.mxu0 %v2921
        %3129 = vmatprep.mubr.bf16.mxu0 %v2492
        %3130 = vmatmul.mubr.bf16.gmra.mrb[0].mxu0 %v2491
        %v3131 = vpop.f32.mrb[0].mxu0
        %v3132 = vadd.f32 0.0, %v3131
        %v3133 = vpop.f32.mrb[0].mxu0
        %v3134 = vadd.f32 0.0, %v3133
        %v3135 = vpop.f32.mrb[0].mxu0
        %v3136 = vadd.f32 0.0, %v3135
        %v3137 = vpop.f32.mrb[0].mxu0
        %v3138 = vadd.f32 0.0, %v3137
        %3139 = vmatprep.mubr.bf16.mxu0 %v2498
        %3140 = vmatmul.mubr.bf16.gmra.mrb[0].mxu0 %v2497
        %v3141 = vpop.f32.mrb[0].mxu0
        %v3142 = vadd.f32 0.0, %v3141
        %v3143 = vpop.f32.mrb[0].mxu0
        %v3144 = vadd.f32 0.0, %v3143
        %v3145 = vpop.f32.mrb[0].mxu0
        %v3146 = vadd.f32 0.0, %v3145
        %v3147 = vpop.f32.mrb[0].mxu0
        %v3148 = vadd.f32 0.0, %v3147
        %3149 = vmatprep.mubr.bf16.mxu0 %v2504
        %3150 = vmatmul.mubr.bf16.gmra.mrb[0].mxu0 %v2503
        %v3151 = vpop.f32.mrb[0].mxu0
        %v3152 = vadd.f32 0.0, %v3151
        %v3153 = vpop.f32.mrb[0].mxu0
        %v3154 = vadd.f32 0.0, %v3153
        %v3155 = vpop.f32.mrb[0].mxu0
        %v3156 = vadd.f32 0.0, %v3155
        %v3157 = vpop.f32.mrb[0].mxu0
        %v3158 = vadd.f32 0.0, %v3157
        %3159 = vmatprep.mubr.bf16.mxu0 %v2510
        %3160 = vmatmul.mubr.bf16.gmra.mrb[0].mxu0 %v2509
        %v3161 = vpop.f32.mrb[0].mxu0
        %v3162 = vadd.f32 0.0, %v3161
        %v3163 = vpop.f32.mrb[0].mxu0
        %v3164 = vadd.f32 0.0, %v3163
        %v3165 = vpop.f32.mrb[0].mxu0
        %v3166 = vadd.f32 0.0, %v3165
        %v3167 = vpop.f32.mrb[0].mxu0
        %v3168 = vadd.f32 0.0, %v3167
        %3169 = vmatprep.mubr.bf16.mxu0 %v2516
        %3170 = vmatmul.mubr.bf16.gmra.mrb[0].mxu0 %v2515
        %v3171 = vpop.f32.mrb[0].mxu0
        %v3172 = vadd.f32 0.0, %v3171
        %v3173 = vpop.f32.mrb[0].mxu0
        %v3174 = vadd.f32 0.0, %v3173
        %v3175 = vpop.f32.mrb[0].mxu0
        %v3176 = vadd.f32 0.0, %v3175
        %v3177 = vpop.f32.mrb[0].mxu0
        %v3178 = vadd.f32 0.0, %v3177
        %3179 = vmatprep.mubr.bf16.mxu0 %v2522
        %3180 = vmatmul.mubr.bf16.gmra.mrb[0].mxu0 %v2521
        %v3181 = vpop.f32.mrb[0].mxu0
        %v3182 = vadd.f32 0.0, %v3181
        %v3183 = vpop.f32.mrb[0].mxu0
        %v3184 = vadd.f32 0.0, %v3183
        %v3185 = vpop.f32.mrb[0].mxu0
        %v3186 = vadd.f32 0.0, %v3185
        %v3187 = vpop.f32.mrb[0].mxu0
        %v3188 = vadd.f32 0.0, %v3187
        %3189 = vmatprep.mubr.bf16.mxu0 %v2528
        %3190 = vmatmul.mubr.bf16.gmra.mrb[0].mxu0 %v2527
        %v3191 = vpop.f32.mrb[0].mxu0
        %v3192 = vadd.f32 0.0, %v3191
        %v3193 = vpop.f32.mrb[0].mxu0
        %v3194 = vadd.f32 0.0, %v3193
        %v3195 = vpop.f32.mrb[0].mxu0
        %v3196 = vadd.f32 0.0, %v3195
        %v3197 = vpop.f32.mrb[0].mxu0
        %v3198 = vadd.f32 0.0, %v3197
        %3199 = vmatprep.mubr.bf16.mxu0 %v2534
        %3200 = vmatmul.mubr.bf16.gmra.mrb[0].mxu0 %v2533
        %v3201 = vpop.f32.mrb[0].mxu0
        %v3202 = vadd.f32 0.0, %v3201
        %v3203 = vpop.f32.mrb[0].mxu0
        %v3204 = vadd.f32 0.0, %v3203
        %v3205 = vpop.f32.mrb[0].mxu0
        %v3206 = vadd.f32 0.0, %v3205
        %v3207 = vpop.f32.mrb[0].mxu0
        %v3208 = vadd.f32 0.0, %v3207
        %3209 = vdwg.mxu0
        %3210 = vmatprep.subr.bf16.mxu0 %v2924
        %3211 = vmatpush1.bf16.msra.mxu0 %v2923
        %3212 = vmatprep.subr.bf16.mxu0 %v2926
        %3213 = vmatpush1.bf16.msra.mxu0 %v2925
        %3214 = vmatprep.subr.bf16.mxu0 %v2928
        %3215 = vmatpush1.bf16.msra.mxu0 %v2927
        %3216 = vmatprep.subr.bf16.mxu0 %v2930
        %3217 = vmatpush1.bf16.msra.mxu0 %v2929
        %3218 = vmatprep.subr.bf16.mxu0 %v2932
        %3219 = vmatpush1.bf16.msra.mxu0 %v2931
        %3220 = vmatprep.subr.bf16.mxu0 %v2934
        %3221 = vmatpush1.bf16.msra.mxu0 %v2933
        %3222 = vmatprep.subr.bf16.mxu0 %v2936
        %3223 = vmatpush1.bf16.msra.mxu0 %v2935
        %3224 = vmatprep.subr.bf16.mxu0 %v2938
        %3225 = vmatpush1.bf16.msra.mxu0 %v2937
        %3226 = vmatprep.subr.bf16.mxu0 %v2940
        %3227 = vmatpush1.bf16.msra.mxu0 %v2939
        %3228 = vmatprep.subr.bf16.mxu0 %v2942
        %3229 = vmatpush1.bf16.msra.mxu0 %v2941
        %3230 = vmatprep.subr.bf16.mxu0 %v2944
        %3231 = vmatpush1.bf16.msra.mxu0 %v2943
        %3232 = vmatprep.subr.bf16.mxu0 %v2946
        %3233 = vmatpush1.bf16.msra.mxu0 %v2945
        %3234 = vmatprep.subr.bf16.mxu0 %v2948
        %3235 = vmatpush1.bf16.msra.mxu0 %v2947
        %3236 = vmatprep.subr.bf16.mxu0 %v2950
        %3237 = vmatpush1.bf16.msra.mxu0 %v2949
        %3238 = vmatprep.subr.bf16.mxu0 %v2952
        %3239 = vmatpush1.bf16.msra.mxu0 %v2951
        %3240 = vmatprep.subr.bf16.mxu0 %v2954
        %3241 = vmatpush1.bf16.msra.mxu0 %v2953
        %3242 = vmatprep.mubr.bf16.mxu0 %v2494
        %3243 = vmatmul.mubr.bf16.gmra.mrb[0].mxu0 %v2493
        %v3244 = vpop.f32.mrb[0].mxu0
        %v3245 = vadd.f32 %v3132, %v3244
        %v3246 = vpop.f32.mrb[0].mxu0
        %v3247 = vadd.f32 %v3134, %v3246
        %v3248 = vpop.f32.mrb[0].mxu0
        %v3249 = vadd.f32 %v3136, %v3248
        %v3250 = vpop.f32.mrb[0].mxu0
        %v3251 = vadd.f32 %v3138, %v3250
        %3252 = vmatprep.mubr.bf16.mxu0 %v2500
        %3253 = vmatmul.mubr.bf16.gmra.mrb[0].mxu0 %v2499
        %v3254 = vpop.f32.mrb[0].mxu0
        %v3255 = vadd.f32 %v3142, %v3254
        %v3256 = vpop.f32.mrb[0].mxu0
        %v3257 = vadd.f32 %v3144, %v3256
        %v3258 = vpop.f32.mrb[0].mxu0
        %v3259 = vadd.f32 %v3146, %v3258
        %v3260 = vpop.f32.mrb[0].mxu0
        %v3261 = vadd.f32 %v3148, %v3260
        %3262 = vmatprep.mubr.bf16.mxu0 %v2506
        %3263 = vmatmul.mubr.bf16.gmra.mrb[0].mxu0 %v2505
        %v3264 = vpop.f32.mrb[0].mxu0
        %v3265 = vadd.f32 %v3152, %v3264
        %v3266 = vpop.f32.mrb[0].mxu0
        %v3267 = vadd.f32 %v3154, %v3266
        %v3268 = vpop.f32.mrb[0].mxu0
        %v3269 = vadd.f32 %v3156, %v3268
        %v3270 = vpop.f32.mrb[0].mxu0
        %v3271 = vadd.f32 %v3158, %v3270
        %3272 = vmatprep.mubr.bf16.mxu0 %v2512
        %3273 = vmatmul.mubr.bf16.gmra.mrb[0].mxu0 %v2511
        %v3274 = vpop.f32.mrb[0].mxu0
        %v3275 = vadd.f32 %v3162, %v3274
        %v3276 = vpop.f32.mrb[0].mxu0
        %v3277 = vadd.f32 %v3164, %v3276
        %v3278 = vpop.f32.mrb[0].mxu0
        %v3279 = vadd.f32 %v3166, %v3278
        %v3280 = vpop.f32.mrb[0].mxu0
        %v3281 = vadd.f32 %v3168, %v3280
        %3282 = vmatprep.mubr.bf16.mxu0 %v2518
        %3283 = vmatmul.mubr.bf16.gmra.mrb[0].mxu0 %v2517
        %v3284 = vpop.f32.mrb[0].mxu0
        %v3285 = vadd.f32 %v3172, %v3284
        %v3286 = vpop.f32.mrb[0].mxu0
        %v3287 = vadd.f32 %v3174, %v3286
        %v3288 = vpop.f32.mrb[0].mxu0
        %v3289 = vadd.f32 %v3176, %v3288
        %v3290 = vpop.f32.mrb[0].mxu0
        %v3291 = vadd.f32 %v3178, %v3290
        %3292 = vmatprep.mubr.bf16.mxu0 %v2524
        %3293 = vmatmul.mubr.bf16.gmra.mrb[0].mxu0 %v2523
        %v3294 = vpop.f32.mrb[0].mxu0
        %v3295 = vadd.f32 %v3182, %v3294
        %v3296 = vpop.f32.mrb[0].mxu0
        %v3297 = vadd.f32 %v3184, %v3296
        %v3298 = vpop.f32.mrb[0].mxu0
        %v3299 = vadd.f32 %v3186, %v3298
        %v3300 = vpop.f32.mrb[0].mxu0
        %v3301 = vadd.f32 %v3188, %v3300
        %3302 = vmatprep.mubr.bf16.mxu0 %v2530
        %3303 = vmatmul.mubr.bf16.gmra.mrb[0].mxu0 %v2529
        %v3304 = vpop.f32.mrb[0].mxu0
        %v3305 = vadd.f32 %v3192, %v3304
        %v3306 = vpop.f32.mrb[0].mxu0
        %v3307 = vadd.f32 %v3194, %v3306
        %v3308 = vpop.f32.mrb[0].mxu0
        %v3309 = vadd.f32 %v3196, %v3308
        %v3310 = vpop.f32.mrb[0].mxu0
        %v3311 = vadd.f32 %v3198, %v3310
        %3312 = vmatprep.mubr.bf16.mxu0 %v2536
        %3313 = vmatmul.mubr.bf16.gmra.mrb[0].mxu0 %v2535
        %v3314 = vpop.f32.mrb[0].mxu0
        %v3315 = vadd.f32 %v3202, %v3314
        %v3316 = vpop.f32.mrb[0].mxu0
        %v3317 = vadd.f32 %v3204, %v3316
        %v3318 = vpop.f32.mrb[0].mxu0
        %v3319 = vadd.f32 %v3206, %v3318
        %v3320 = vpop.f32.mrb[0].mxu0
        %v3321 = vadd.f32 %v3208, %v3320
        %3322 = vdwg.mxu0
        %3323 = vmatprep.subr.bf16.mxu0 %v2956
        %3324 = vmatpush1.bf16.msra.mxu0 %v2955
        %3325 = vmatprep.subr.bf16.mxu0 %v2958
        %3326 = vmatpush1.bf16.msra.mxu0 %v2957
        %3327 = vmatprep.subr.bf16.mxu0 %v2960
        %3328 = vmatpush1.bf16.msra.mxu0 %v2959
        %3329 = vmatprep.subr.bf16.mxu0 %v2962
        %3330 = vmatpush1.bf16.msra.mxu0 %v2961
        %3331 = vmatprep.subr.bf16.mxu0 %v2964
        %3332 = vmatpush1.bf16.msra.mxu0 %v2963
        %3333 = vmatprep.subr.bf16.mxu0 %v2966
        %3334 = vmatpush1.bf16.msra.mxu0 %v2965
        %3335 = vmatprep.subr.bf16.mxu0 %v2968
        %3336 = vmatpush1.bf16.msra.mxu0 %v2967
        %3337 = vmatprep.subr.bf16.mxu0 %v2970
        %3338 = vmatpush1.bf16.msra.mxu0 %v2969
        %3339 = vmatprep.subr.bf16.mxu0 %v2972
        %3340 = vmatpush1.bf16.msra.mxu0 %v2971
        %3341 = vmatprep.subr.bf16.mxu0 %v2974
        %3342 = vmatpush1.bf16.msra.mxu0 %v2973
        %3343 = vmatprep.subr.bf16.mxu0 %v2976
        %3344 = vmatpush1.bf16.msra.mxu0 %v2975
        %3345 = vmatprep.subr.bf16.mxu0 %v3095
        %3346 = vmatpush1.bf16.msra.mxu0 %v3092
        %3347 = vmatprep.subr.bf16.mxu0 0
        %3348 = vmatpush1.bf16.msra.mxu0 0
        %3349 = vmatprep.subr.bf16.mxu0 0
        %3350 = vmatpush1.bf16.msra.mxu0 0
        %3351 = vmatprep.subr.bf16.mxu0 0
        %3352 = vmatpush1.bf16.msra.mxu0 0
        %3353 = vmatprep.subr.bf16.mxu0 0
        %3354 = vmatpush1.bf16.msra.mxu0 0
        %3355 = vmatprep.mubr.bf16.mxu0 %v3067
        %3356 = vmatmul.mubr.bf16.gmra.mrb[0].mxu0 %v2495
        %v3357 = vpop.f32.mrb[0].mxu0
        %v3358 = vadd.f32 %v3245, %v3357
        %v3359 = vpop.f32.mrb[0].mxu0
        %v3360 = vadd.f32 %v3247, %v3359
        %v3361 = vpop.f32.mrb[0].mxu0
        %v3362 = vadd.f32 %v3249, %v3361
        %v3363 = vpop.f32.mrb[0].mxu0
        %v3364 = vadd.f32 %v3251, %v3363
        %3365 = vmatprep.mubr.bf16.mxu0 %v3070
        %3366 = vmatmul.mubr.bf16.gmra.mrb[0].mxu0 %v2501
        %v3367 = vpop.f32.mrb[0].mxu0
        %v3368 = vadd.f32 %v3255, %v3367
        %v3369 = vpop.f32.mrb[0].mxu0
        %v3370 = vadd.f32 %v3257, %v3369
        %v3371 = vpop.f32.mrb[0].mxu0
        %v3372 = vadd.f32 %v3259, %v3371
        %v3373 = vpop.f32.mrb[0].mxu0
        %v3374 = vadd.f32 %v3261, %v3373
        %3375 = vmatprep.mubr.bf16.mxu0 %v3073
        %3376 = vmatmul.mubr.bf16.gmra.mrb[0].mxu0 %v2507
        %v3377 = vpop.f32.mrb[0].mxu0
        %v3378 = vadd.f32 %v3265, %v3377
        %v3379 = vpop.f32.mrb[0].mxu0
        %v3380 = vadd.f32 %v3267, %v3379
        %v3381 = vpop.f32.mrb[0].mxu0
        %v3382 = vadd.f32 %v3269, %v3381
        %v3383 = vpop.f32.mrb[0].mxu0
        %v3384 = vadd.f32 %v3271, %v3383
        %3385 = vmatprep.mubr.bf16.mxu0 %v3076
        %3386 = vmatmul.mubr.bf16.gmra.mrb[0].mxu0 %v2513
        %v3387 = vpop.f32.mrb[0].mxu0
        %v3388 = vadd.f32 %v3275, %v3387
        %v3389 = vpop.f32.mrb[0].mxu0
        %v3390 = vadd.f32 %v3277, %v3389
        %v3391 = vpop.f32.mrb[0].mxu0
        %v3392 = vadd.f32 %v3279, %v3391
        %v3393 = vpop.f32.mrb[0].mxu0
        %v3394 = vadd.f32 %v3281, %v3393
        %3395 = vmatprep.mubr.bf16.mxu0 %v3079
        %3396 = vmatmul.mubr.bf16.gmra.mrb[0].mxu0 %v2519
        %v3397 = vpop.f32.mrb[0].mxu0
        %v3398 = vadd.f32 %v3285, %v3397
        %v3399 = vpop.f32.mrb[0].mxu0
        %v3400 = vadd.f32 %v3287, %v3399
        %v3401 = vpop.f32.mrb[0].mxu0
        %v3402 = vadd.f32 %v3289, %v3401
        %v3403 = vpop.f32.mrb[0].mxu0
        %v3404 = vadd.f32 %v3291, %v3403
        %3405 = vmatprep.mubr.bf16.mxu0 %v3082
        %3406 = vmatmul.mubr.bf16.gmra.mrb[0].mxu0 %v2525
        %v3407 = vpop.f32.mrb[0].mxu0
        %v3408 = vadd.f32 %v3295, %v3407
        %v3409 = vpop.f32.mrb[0].mxu0
        %v3410 = vadd.f32 %v3297, %v3409
        %v3411 = vpop.f32.mrb[0].mxu0
        %v3412 = vadd.f32 %v3299, %v3411
        %v3413 = vpop.f32.mrb[0].mxu0
        %v3414 = vadd.f32 %v3301, %v3413
        %3415 = vmatprep.mubr.bf16.mxu0 %v3085
        %3416 = vmatmul.mubr.bf16.gmra.mrb[0].mxu0 %v2531
        %v3417 = vpop.f32.mrb[0].mxu0
        %v3418 = vadd.f32 %v3305, %v3417
        %v3419 = vpop.f32.mrb[0].mxu0
        %v3420 = vadd.f32 %v3307, %v3419
        %v3421 = vpop.f32.mrb[0].mxu0
        %v3422 = vadd.f32 %v3309, %v3421
        %v3423 = vpop.f32.mrb[0].mxu0
        %v3424 = vadd.f32 %v3311, %v3423
        %3425 = vmatprep.mubr.bf16.mxu0 %v3088
        %3426 = vmatmul.mubr.bf16.gmra.mrb[0].mxu0 %v2537
        %v3427 = vpop.f32.mrb[0].mxu0
        %v3428 = vadd.f32 %v3315, %v3427
        %v3429 = vpop.f32.mrb[0].mxu0
        %v3430 = vadd.f32 %v3317, %v3429
        %v3431 = vpop.f32.mrb[0].mxu0
        %v3432 = vadd.f32 %v3319, %v3431
        %v3433 = vpop.f32.mrb[0].mxu0
        %v3434 = vadd.f32 %v3321, %v3433
        %3435 = vdwg.mxu0
        %3468 = vrot.lane.b32.xlu0 %v3358, 127
        %v3469 = vpop.permute.xlu0 %3468
        %3470 = vrot.lane.b32.xlu0 %v3360, 127
        %v3471 = vpop.permute.xlu0 %3470
        %3472 = vrot.lane.b32.xlu0 %v3362, 127
        %v3473 = vpop.permute.xlu0 %3472
        %3474 = vrot.lane.b32.xlu0 %v3364, 127
        %v3475 = vpop.permute.xlu0 %3474
        %3476 = vrot.lane.b32.xlu0 %v3368, 127
        %v3477 = vpop.permute.xlu0 %3476
        %3478 = vrot.lane.b32.xlu0 %v3370, 127
        %v3479 = vpop.permute.xlu0 %3478
        %3480 = vrot.lane.b32.xlu0 %v3372, 127
        %v3481 = vpop.permute.xlu0 %3480
        %3482 = vrot.lane.b32.xlu0 %v3374, 127
        %v3483 = vpop.permute.xlu0 %3482
        %3484 = vrot.lane.b32.xlu0 %v3378, 127
        %v3485 = vpop.permute.xlu0 %3484
        %3486 = vrot.lane.b32.xlu0 %v3380, 127
        %v3487 = vpop.permute.xlu0 %3486
        %3488 = vrot.lane.b32.xlu0 %v3382, 127
        %v3489 = vpop.permute.xlu0 %3488
        %3490 = vrot.lane.b32.xlu0 %v3384, 127
        %v3491 = vpop.permute.xlu0 %3490
        %3492 = vrot.lane.b32.xlu0 %v3388, 127
        %v3493 = vpop.permute.xlu0 %3492
        %3494 = vrot.lane.b32.xlu0 %v3390, 127
        %v3495 = vpop.permute.xlu0 %3494
        %3496 = vrot.lane.b32.xlu0 %v3392, 127
        %v3497 = vpop.permute.xlu0 %3496
        %3498 = vrot.lane.b32.xlu0 %v3394, 127
        %v3499 = vpop.permute.xlu0 %3498
        %3500 = vrot.lane.b32.xlu0 %v3398, 127
        %v3501 = vpop.permute.xlu0 %3500
        %3502 = vrot.lane.b32.xlu0 %v3400, 127
        %v3503 = vpop.permute.xlu0 %3502
        %3504 = vrot.lane.b32.xlu0 %v3402, 127
        %v3505 = vpop.permute.xlu0 %3504
        %3506 = vrot.lane.b32.xlu0 %v3404, 127
        %v3507 = vpop.permute.xlu0 %3506
        %3508 = vrot.lane.b32.xlu0 %v3408, 127
        %v3509 = vpop.permute.xlu0 %3508
        %3510 = vrot.lane.b32.xlu0 %v3410, 127
        %v3511 = vpop.permute.xlu0 %3510
        %3512 = vrot.lane.b32.xlu0 %v3412, 127
        %v3513 = vpop.permute.xlu0 %3512
        %3514 = vrot.lane.b32.xlu0 %v3414, 127
        %v3515 = vpop.permute.xlu0 %3514
        %3516 = vrot.lane.b32.xlu0 %v3418, 127
        %v3517 = vpop.permute.xlu0 %3516
        %3518 = vrot.lane.b32.xlu0 %v3420, 127
        %v3519 = vpop.permute.xlu0 %3518
        %3520 = vrot.lane.b32.xlu0 %v3422, 127
        %v3521 = vpop.permute.xlu0 %3520
        %3522 = vrot.lane.b32.xlu0 %v3424, 127
        %v3523 = vpop.permute.xlu0 %3522
        %3524 = vrot.lane.b32.xlu0 %v3428, 127
        %v3525 = vpop.permute.xlu0 %3524
        %3526 = vrot.lane.b32.xlu0 %v3430, 127
        %v3527 = vpop.permute.xlu0 %3526
        %3528 = vrot.lane.b32.xlu0 %v3432, 127
        %v3529 = vpop.permute.xlu0 %3528
        %3530 = vrot.lane.b32.xlu0 %v3434, 127
        %v3531 = vpop.permute.xlu0 %3530
        %v3532 = vsel %vm515, %v3469, %v3471
        %v3533 = vsel %vm515, %v3473, %v3475
        %v3534 = vsel %vm515, %v3477, %v3479
        %v3535 = vsel %vm515, %v3481, %v3483
        %v3536 = vsel %vm515, %v3485, %v3487
        %v3537 = vsel %vm515, %v3489, %v3491
        %v3538 = vsel %vm515, %v3493, %v3495
        %v3539 = vsel %vm515, %v3497, %v3499
        %v3540 = vsel %vm515, %v3501, %v3503
        %v3541 = vsel %vm515, %v3505, %v3507
        %v3542 = vsel %vm515, %v3509, %v3511
        %v3543 = vsel %vm515, %v3513, %v3515
        %v3544 = vsel %vm515, %v3517, %v3519
        %v3545 = vsel %vm515, %v3521, %v3523
        %v3546 = vsel %vm515, %v3525, %v3527
        %v3547 = vsel %vm515, %v3529, %v3531
        %3580 = vrot.lane.b32.xlu0 %v3358, 126
        %v3581 = vpop.permute.xlu0 %3580
        %3582 = vrot.lane.b32.xlu0 %v3360, 126
        %v3583 = vpop.permute.xlu0 %3582
        %3584 = vrot.lane.b32.xlu0 %v3362, 126
        %v3585 = vpop.permute.xlu0 %3584
        %3586 = vrot.lane.b32.xlu0 %v3364, 126
        %v3587 = vpop.permute.xlu0 %3586
        %3588 = vrot.lane.b32.xlu0 %v3368, 126
        %v3589 = vpop.permute.xlu0 %3588
        %3590 = vrot.lane.b32.xlu0 %v3370, 126
        %v3591 = vpop.permute.xlu0 %3590
        %3592 = vrot.lane.b32.xlu0 %v3372, 126
        %v3593 = vpop.permute.xlu0 %3592
        %3594 = vrot.lane.b32.xlu0 %v3374, 126
        %v3595 = vpop.permute.xlu0 %3594
        %3596 = vrot.lane.b32.xlu0 %v3378, 126
        %v3597 = vpop.permute.xlu0 %3596
        %3598 = vrot.lane.b32.xlu0 %v3380, 126
        %v3599 = vpop.permute.xlu0 %3598
        %3600 = vrot.lane.b32.xlu0 %v3382, 126
        %v3601 = vpop.permute.xlu0 %3600
        %3602 = vrot.lane.b32.xlu0 %v3384, 126
        %v3603 = vpop.permute.xlu0 %3602
        %3604 = vrot.lane.b32.xlu0 %v3388, 126
        %v3605 = vpop.permute.xlu0 %3604
        %3606 = vrot.lane.b32.xlu0 %v3390, 126
        %v3607 = vpop.permute.xlu0 %3606
        %3608 = vrot.lane.b32.xlu0 %v3392, 126
        %v3609 = vpop.permute.xlu0 %3608
        %3610 = vrot.lane.b32.xlu0 %v3394, 126
        %v3611 = vpop.permute.xlu0 %3610
        %3612 = vrot.lane.b32.xlu0 %v3398, 126
        %v3613 = vpop.permute.xlu0 %3612
        %3614 = vrot.lane.b32.xlu0 %v3400, 126
        %v3615 = vpop.permute.xlu0 %3614
        %3616 = vrot.lane.b32.xlu0 %v3402, 126
        %v3617 = vpop.permute.xlu0 %3616
        %3618 = vrot.lane.b32.xlu0 %v3404, 126
        %v3619 = vpop.permute.xlu0 %3618
        %3620 = vrot.lane.b32.xlu0 %v3408, 126
        %v3621 = vpop.permute.xlu0 %3620
        %3622 = vrot.lane.b32.xlu0 %v3410, 126
        %v3623 = vpop.permute.xlu0 %3622
        %3624 = vrot.lane.b32.xlu0 %v3412, 126
        %v3625 = vpop.permute.xlu0 %3624
        %3626 = vrot.lane.b32.xlu0 %v3414, 126
        %v3627 = vpop.permute.xlu0 %3626
        %3628 = vrot.lane.b32.xlu0 %v3418, 126
        %v3629 = vpop.permute.xlu0 %3628
        %3630 = vrot.lane.b32.xlu0 %v3420, 126
        %v3631 = vpop.permute.xlu0 %3630
        %3632 = vrot.lane.b32.xlu0 %v3422, 126
        %v3633 = vpop.permute.xlu0 %3632
        %3634 = vrot.lane.b32.xlu0 %v3424, 126
        %v3635 = vpop.permute.xlu0 %3634
        %3636 = vrot.lane.b32.xlu0 %v3428, 126
        %v3637 = vpop.permute.xlu0 %3636
        %3638 = vrot.lane.b32.xlu0 %v3430, 126
        %v3639 = vpop.permute.xlu0 %3638
        %3640 = vrot.lane.b32.xlu0 %v3432, 126
        %v3641 = vpop.permute.xlu0 %3640
        %3642 = vrot.lane.b32.xlu0 %v3434, 126
        %v3643 = vpop.permute.xlu0 %3642
        %v3644 = vsel %vm539, %v3581, %v3583
        %v3645 = vsel %vm539, %v3585, %v3587
        %v3646 = vsel %vm539, %v3589, %v3591
        %v3647 = vsel %vm539, %v3593, %v3595
        %v3648 = vsel %vm539, %v3597, %v3599
        %v3649 = vsel %vm539, %v3601, %v3603
        %v3650 = vsel %vm539, %v3605, %v3607
        %v3651 = vsel %vm539, %v3609, %v3611
        %v3652 = vsel %vm539, %v3613, %v3615
        %v3653 = vsel %vm539, %v3617, %v3619
        %v3654 = vsel %vm539, %v3621, %v3623
        %v3655 = vsel %vm539, %v3625, %v3627
        %v3656 = vsel %vm539, %v3629, %v3631
        %v3657 = vsel %vm539, %v3633, %v3635
        %v3658 = vsel %vm539, %v3637, %v3639
        %v3659 = vsel %vm539, %v3641, %v3643
        %3692 = vrot.lane.b32.xlu0 %v3358, 115
        %v3693 = vpop.permute.xlu0 %3692
        %3694 = vrot.lane.b32.xlu0 %v3360, 115
        %v3695 = vpop.permute.xlu0 %3694
        %3696 = vrot.lane.b32.xlu0 %v3362, 115
        %v3697 = vpop.permute.xlu0 %3696
        %3698 = vrot.lane.b32.xlu0 %v3364, 115
        %v3699 = vpop.permute.xlu0 %3698
        %3700 = vrot.lane.b32.xlu0 %v3368, 115
        %v3701 = vpop.permute.xlu0 %3700
        %3702 = vrot.lane.b32.xlu0 %v3370, 115
        %v3703 = vpop.permute.xlu0 %3702
        %3704 = vrot.lane.b32.xlu0 %v3372, 115
        %v3705 = vpop.permute.xlu0 %3704
        %3706 = vrot.lane.b32.xlu0 %v3374, 115
        %v3707 = vpop.permute.xlu0 %3706
        %3708 = vrot.lane.b32.xlu0 %v3378, 115
        %v3709 = vpop.permute.xlu0 %3708
        %3710 = vrot.lane.b32.xlu0 %v3380, 115
        %v3711 = vpop.permute.xlu0 %3710
        %3712 = vrot.lane.b32.xlu0 %v3382, 115
        %v3713 = vpop.permute.xlu0 %3712
        %3714 = vrot.lane.b32.xlu0 %v3384, 115
        %v3715 = vpop.permute.xlu0 %3714
        %3716 = vrot.lane.b32.xlu0 %v3388, 115
        %v3717 = vpop.permute.xlu0 %3716
        %3718 = vrot.lane.b32.xlu0 %v3390, 115
        %v3719 = vpop.permute.xlu0 %3718
        %3720 = vrot.lane.b32.xlu0 %v3392, 115
        %v3721 = vpop.permute.xlu0 %3720
        %3722 = vrot.lane.b32.xlu0 %v3394, 115
        %v3723 = vpop.permute.xlu0 %3722
        %3724 = vrot.lane.b32.xlu0 %v3398, 115
        %v3725 = vpop.permute.xlu0 %3724
        %3726 = vrot.lane.b32.xlu0 %v3400, 115
        %v3727 = vpop.permute.xlu0 %3726
        %3728 = vrot.lane.b32.xlu0 %v3402, 115
        %v3729 = vpop.permute.xlu0 %3728
        %3730 = vrot.lane.b32.xlu0 %v3404, 115
        %v3731 = vpop.permute.xlu0 %3730
        %3732 = vrot.lane.b32.xlu0 %v3408, 115
        %v3733 = vpop.permute.xlu0 %3732
        %3734 = vrot.lane.b32.xlu0 %v3410, 115
        %v3735 = vpop.permute.xlu0 %3734
        %3736 = vrot.lane.b32.xlu0 %v3412, 115
        %v3737 = vpop.permute.xlu0 %3736
        %3738 = vrot.lane.b32.xlu0 %v3414, 115
        %v3739 = vpop.permute.xlu0 %3738
        %3740 = vrot.lane.b32.xlu0 %v3418, 115
        %v3741 = vpop.permute.xlu0 %3740
        %3742 = vrot.lane.b32.xlu0 %v3420, 115
        %v3743 = vpop.permute.xlu0 %3742
        %3744 = vrot.lane.b32.xlu0 %v3422, 115
        %v3745 = vpop.permute.xlu0 %3744
        %3746 = vrot.lane.b32.xlu0 %v3424, 115
        %v3747 = vpop.permute.xlu0 %3746
        %3748 = vrot.lane.b32.xlu0 %v3428, 115
        %v3749 = vpop.permute.xlu0 %3748
        %3750 = vrot.lane.b32.xlu0 %v3430, 115
        %v3751 = vpop.permute.xlu0 %3750
        %3752 = vrot.lane.b32.xlu0 %v3432, 115
        %v3753 = vpop.permute.xlu0 %3752
        %3754 = vrot.lane.b32.xlu0 %v3434, 115
        %v3755 = vpop.permute.xlu0 %3754
        %vm3756 = vcmask 941056
        %v3757 = vsel %vm3756, %v3693, %v3695
        %v3758 = vsel %vm3756, %v3697, %v3699
        %v3759 = vsel %vm3756, %v3701, %v3703
        %v3760 = vsel %vm3756, %v3705, %v3707
        %v3761 = vsel %vm3756, %v3709, %v3711
        %v3762 = vsel %vm3756, %v3713, %v3715
        %v3763 = vsel %vm3756, %v3717, %v3719
        %v3764 = vsel %vm3756, %v3721, %v3723
        %v3765 = vsel %vm3756, %v3725, %v3727
        %v3766 = vsel %vm3756, %v3729, %v3731
        %v3767 = vsel %vm3756, %v3733, %v3735
        %v3768 = vsel %vm3756, %v3737, %v3739
        %v3769 = vsel %vm3756, %v3741, %v3743
        %v3770 = vsel %vm3756, %v3745, %v3747
        %v3771 = vsel %vm3756, %v3749, %v3751
        %v3772 = vsel %vm3756, %v3753, %v3755
        %3805 = vrot.lane.b32.xlu0 %v3358, 114
        %v3806 = vpop.permute.xlu0 %3805
        %3807 = vrot.lane.b32.xlu0 %v3360, 114
        %v3808 = vpop.permute.xlu0 %3807
        %3809 = vrot.lane.b32.xlu0 %v3362, 114
        %v3810 = vpop.permute.xlu0 %3809
        %3811 = vrot.lane.b32.xlu0 %v3364, 114
        %v3812 = vpop.permute.xlu0 %3811
        %3813 = vrot.lane.b32.xlu0 %v3368, 114
        %v3814 = vpop.permute.xlu0 %3813
        %3815 = vrot.lane.b32.xlu0 %v3370, 114
        %v3816 = vpop.permute.xlu0 %3815
        %3817 = vrot.lane.b32.xlu0 %v3372, 114
        %v3818 = vpop.permute.xlu0 %3817
        %3819 = vrot.lane.b32.xlu0 %v3374, 114
        %v3820 = vpop.permute.xlu0 %3819
        %3821 = vrot.lane.b32.xlu0 %v3378, 114
        %v3822 = vpop.permute.xlu0 %3821
        %3823 = vrot.lane.b32.xlu0 %v3380, 114
        %v3824 = vpop.permute.xlu0 %3823
        %3825 = vrot.lane.b32.xlu0 %v3382, 114
        %v3826 = vpop.permute.xlu0 %3825
        %3827 = vrot.lane.b32.xlu0 %v3384, 114
        %v3828 = vpop.permute.xlu0 %3827
        %3829 = vrot.lane.b32.xlu0 %v3388, 114
        %v3830 = vpop.permute.xlu0 %3829
        %3831 = vrot.lane.b32.xlu0 %v3390, 114
        %v3832 = vpop.permute.xlu0 %3831
        %3833 = vrot.lane.b32.xlu0 %v3392, 114
        %v3834 = vpop.permute.xlu0 %3833
        %3835 = vrot.lane.b32.xlu0 %v3394, 114
        %v3836 = vpop.permute.xlu0 %3835
        %3837 = vrot.lane.b32.xlu0 %v3398, 114
        %v3838 = vpop.permute.xlu0 %3837
        %3839 = vrot.lane.b32.xlu0 %v3400, 114
        %v3840 = vpop.permute.xlu0 %3839
        %3841 = vrot.lane.b32.xlu0 %v3402, 114
        %v3842 = vpop.permute.xlu0 %3841
        %3843 = vrot.lane.b32.xlu0 %v3404, 114
        %v3844 = vpop.permute.xlu0 %3843
        %3845 = vrot.lane.b32.xlu0 %v3408, 114
        %v3846 = vpop.permute.xlu0 %3845
        %3847 = vrot.lane.b32.xlu0 %v3410, 114
        %v3848 = vpop.permute.xlu0 %3847
        %3849 = vrot.lane.b32.xlu0 %v3412, 114
        %v3850 = vpop.permute.xlu0 %3849
        %3851 = vrot.lane.b32.xlu0 %v3414, 114
        %v3852 = vpop.permute.xlu0 %3851
        %3853 = vrot.lane.b32.xlu0 %v3418, 114
        %v3854 = vpop.permute.xlu0 %3853
        %3855 = vrot.lane.b32.xlu0 %v3420, 114
        %v3856 = vpop.permute.xlu0 %3855
        %3857 = vrot.lane.b32.xlu0 %v3422, 114
        %v3858 = vpop.permute.xlu0 %3857
        %3859 = vrot.lane.b32.xlu0 %v3424, 114
        %v3860 = vpop.permute.xlu0 %3859
        %3861 = vrot.lane.b32.xlu0 %v3428, 114
        %v3862 = vpop.permute.xlu0 %3861
        %3863 = vrot.lane.b32.xlu0 %v3430, 114
        %v3864 = vpop.permute.xlu0 %3863
        %3865 = vrot.lane.b32.xlu0 %v3432, 114
        %v3866 = vpop.permute.xlu0 %3865
        %3867 = vrot.lane.b32.xlu0 %v3434, 114
        %v3868 = vpop.permute.xlu0 %3867
        %vm3869 = vcmask 932864
        %v3870 = vsel %vm3869, %v3806, %v3808
        %v3871 = vsel %vm3869, %v3810, %v3812
        %v3872 = vsel %vm3869, %v3814, %v3816
        %v3873 = vsel %vm3869, %v3818, %v3820
        %v3874 = vsel %vm3869, %v3822, %v3824
        %v3875 = vsel %vm3869, %v3826, %v3828
        %v3876 = vsel %vm3869, %v3830, %v3832
        %v3877 = vsel %vm3869, %v3834, %v3836
        %v3878 = vsel %vm3869, %v3838, %v3840
        %v3879 = vsel %vm3869, %v3842, %v3844
        %v3880 = vsel %vm3869, %v3846, %v3848
        %v3881 = vsel %vm3869, %v3850, %v3852
        %v3882 = vsel %vm3869, %v3854, %v3856
        %v3883 = vsel %vm3869, %v3858, %v3860
        %v3884 = vsel %vm3869, %v3862, %v3864
        %v3885 = vsel %vm3869, %v3866, %v3868
        %3918 = vrot.lane.b32.xlu0 %v3358, 113
        %v3919 = vpop.permute.xlu0 %3918
        %3920 = vrot.lane.b32.xlu0 %v3360, 113
        %v3921 = vpop.permute.xlu0 %3920
        %3922 = vrot.lane.b32.xlu0 %v3362, 113
        %v3923 = vpop.permute.xlu0 %3922
        %3924 = vrot.lane.b32.xlu0 %v3364, 113
        %v3925 = vpop.permute.xlu0 %3924
        %3926 = vrot.lane.b32.xlu0 %v3368, 113
        %v3927 = vpop.permute.xlu0 %3926
        %3928 = vrot.lane.b32.xlu0 %v3370, 113
        %v3929 = vpop.permute.xlu0 %3928
        %3930 = vrot.lane.b32.xlu0 %v3372, 113
        %v3931 = vpop.permute.xlu0 %3930
        %3932 = vrot.lane.b32.xlu0 %v3374, 113
        %v3933 = vpop.permute.xlu0 %3932
        %3934 = vrot.lane.b32.xlu0 %v3378, 113
        %v3935 = vpop.permute.xlu0 %3934
        %3936 = vrot.lane.b32.xlu0 %v3380, 113
        %v3937 = vpop.permute.xlu0 %3936
        %3938 = vrot.lane.b32.xlu0 %v3382, 113
        %v3939 = vpop.permute.xlu0 %3938
        %3940 = vrot.lane.b32.xlu0 %v3384, 113
        %v3941 = vpop.permute.xlu0 %3940
        %3942 = vrot.lane.b32.xlu0 %v3388, 113
        %v3943 = vpop.permute.xlu0 %3942
        %3944 = vrot.lane.b32.xlu0 %v3390, 113
        %v3945 = vpop.permute.xlu0 %3944
        %3946 = vrot.lane.b32.xlu0 %v3392, 113
        %v3947 = vpop.permute.xlu0 %3946
        %3948 = vrot.lane.b32.xlu0 %v3394, 113
        %v3949 = vpop.permute.xlu0 %3948
        %3950 = vrot.lane.b32.xlu0 %v3398, 113
        %v3951 = vpop.permute.xlu0 %3950
        %3952 = vrot.lane.b32.xlu0 %v3400, 113
        %v3953 = vpop.permute.xlu0 %3952
        %3954 = vrot.lane.b32.xlu0 %v3402, 113
        %v3955 = vpop.permute.xlu0 %3954
        %3956 = vrot.lane.b32.xlu0 %v3404, 113
        %v3957 = vpop.permute.xlu0 %3956
        %3958 = vrot.lane.b32.xlu0 %v3408, 113
        %v3959 = vpop.permute.xlu0 %3958
        %3960 = vrot.lane.b32.xlu0 %v3410, 113
        %v3961 = vpop.permute.xlu0 %3960
        %3962 = vrot.lane.b32.xlu0 %v3412, 113
        %v3963 = vpop.permute.xlu0 %3962
        %3964 = vrot.lane.b32.xlu0 %v3414, 113
        %v3965 = vpop.permute.xlu0 %3964
        %3966 = vrot.lane.b32.xlu0 %v3418, 113
        %v3967 = vpop.permute.xlu0 %3966
        %3968 = vrot.lane.b32.xlu0 %v3420, 113
        %v3969 = vpop.permute.xlu0 %3968
        %3970 = vrot.lane.b32.xlu0 %v3422, 113
        %v3971 = vpop.permute.xlu0 %3970
        %3972 = vrot.lane.b32.xlu0 %v3424, 113
        %v3973 = vpop.permute.xlu0 %3972
        %3974 = vrot.lane.b32.xlu0 %v3428, 113
        %v3975 = vpop.permute.xlu0 %3974
        %3976 = vrot.lane.b32.xlu0 %v3430, 113
        %v3977 = vpop.permute.xlu0 %3976
        %3978 = vrot.lane.b32.xlu0 %v3432, 113
        %v3979 = vpop.permute.xlu0 %3978
        %3980 = vrot.lane.b32.xlu0 %v3434, 113
        %v3981 = vpop.permute.xlu0 %3980
        %vm3982 = vcmask 924672
        %v3983 = vsel %vm3982, %v3919, %v3921
        %v3984 = vsel %vm3982, %v3923, %v3925
        %v3985 = vsel %vm3982, %v3927, %v3929
        %v3986 = vsel %vm3982, %v3931, %v3933
        %v3987 = vsel %vm3982, %v3935, %v3937
        %v3988 = vsel %vm3982, %v3939, %v3941
        %v3989 = vsel %vm3982, %v3943, %v3945
        %v3990 = vsel %vm3982, %v3947, %v3949
        %v3991 = vsel %vm3982, %v3951, %v3953
        %v3992 = vsel %vm3982, %v3955, %v3957
        %v3993 = vsel %vm3982, %v3959, %v3961
        %v3994 = vsel %vm3982, %v3963, %v3965
        %v3995 = vsel %vm3982, %v3967, %v3969
        %v3996 = vsel %vm3982, %v3971, %v3973
        %v3997 = vsel %vm3982, %v3975, %v3977
        %v3998 = vsel %vm3982, %v3979, %v3981
        %4031 = vrot.lane.b32.xlu0 %v3358, 102
        %v4032 = vpop.permute.xlu0 %4031
        %4033 = vrot.lane.b32.xlu0 %v3360, 102
        %v4034 = vpop.permute.xlu0 %4033
        %4035 = vrot.lane.b32.xlu0 %v3362, 102
        %v4036 = vpop.permute.xlu0 %4035
        %4037 = vrot.lane.b32.xlu0 %v3364, 102
        %v4038 = vpop.permute.xlu0 %4037
        %4039 = vrot.lane.b32.xlu0 %v3368, 102
        %v4040 = vpop.permute.xlu0 %4039
        %4041 = vrot.lane.b32.xlu0 %v3370, 102
        %v4042 = vpop.permute.xlu0 %4041
        %4043 = vrot.lane.b32.xlu0 %v3372, 102
        %v4044 = vpop.permute.xlu0 %4043
        %4045 = vrot.lane.b32.xlu0 %v3374, 102
        %v4046 = vpop.permute.xlu0 %4045
        %4047 = vrot.lane.b32.xlu0 %v3378, 102
        %v4048 = vpop.permute.xlu0 %4047
        %4049 = vrot.lane.b32.xlu0 %v3380, 102
        %v4050 = vpop.permute.xlu0 %4049
        %4051 = vrot.lane.b32.xlu0 %v3382, 102
        %v4052 = vpop.permute.xlu0 %4051
        %4053 = vrot.lane.b32.xlu0 %v3384, 102
        %v4054 = vpop.permute.xlu0 %4053
        %4055 = vrot.lane.b32.xlu0 %v3388, 102
        %v4056 = vpop.permute.xlu0 %4055
        %4057 = vrot.lane.b32.xlu0 %v3390, 102
        %v4058 = vpop.permute.xlu0 %4057
        %4059 = vrot.lane.b32.xlu0 %v3392, 102
        %v4060 = vpop.permute.xlu0 %4059
        %4061 = vrot.lane.b32.xlu0 %v3394, 102
        %v4062 = vpop.permute.xlu0 %4061
        %4063 = vrot.lane.b32.xlu0 %v3398, 102
        %v4064 = vpop.permute.xlu0 %4063
        %4065 = vrot.lane.b32.xlu0 %v3400, 102
        %v4066 = vpop.permute.xlu0 %4065
        %4067 = vrot.lane.b32.xlu0 %v3402, 102
        %v4068 = vpop.permute.xlu0 %4067
        %4069 = vrot.lane.b32.xlu0 %v3404, 102
        %v4070 = vpop.permute.xlu0 %4069
        %4071 = vrot.lane.b32.xlu0 %v3408, 102
        %v4072 = vpop.permute.xlu0 %4071
        %4073 = vrot.lane.b32.xlu0 %v3410, 102
        %v4074 = vpop.permute.xlu0 %4073
        %4075 = vrot.lane.b32.xlu0 %v3412, 102
        %v4076 = vpop.permute.xlu0 %4075
        %4077 = vrot.lane.b32.xlu0 %v3414, 102
        %v4078 = vpop.permute.xlu0 %4077
        %4079 = vrot.lane.b32.xlu0 %v3418, 102
        %v4080 = vpop.permute.xlu0 %4079
        %4081 = vrot.lane.b32.xlu0 %v3420, 102
        %v4082 = vpop.permute.xlu0 %4081
        %4083 = vrot.lane.b32.xlu0 %v3422, 102
        %v4084 = vpop.permute.xlu0 %4083
        %4085 = vrot.lane.b32.xlu0 %v3424, 102
        %v4086 = vpop.permute.xlu0 %4085
        %4087 = vrot.lane.b32.xlu0 %v3428, 102
        %v4088 = vpop.permute.xlu0 %4087
        %4089 = vrot.lane.b32.xlu0 %v3430, 102
        %v4090 = vpop.permute.xlu0 %4089
        %4091 = vrot.lane.b32.xlu0 %v3432, 102
        %v4092 = vpop.permute.xlu0 %4091
        %4093 = vrot.lane.b32.xlu0 %v3434, 102
        %v4094 = vpop.permute.xlu0 %4093
        %vm4095 = vcmask 834560
        %v4096 = vsel %vm4095, %v4032, %v4034
        %v4097 = vsel %vm4095, %v4036, %v4038
        %v4098 = vsel %vm4095, %v4040, %v4042
        %v4099 = vsel %vm4095, %v4044, %v4046
        %v4100 = vsel %vm4095, %v4048, %v4050
        %v4101 = vsel %vm4095, %v4052, %v4054
        %v4102 = vsel %vm4095, %v4056, %v4058
        %v4103 = vsel %vm4095, %v4060, %v4062
        %v4104 = vsel %vm4095, %v4064, %v4066
        %v4105 = vsel %vm4095, %v4068, %v4070
        %v4106 = vsel %vm4095, %v4072, %v4074
        %v4107 = vsel %vm4095, %v4076, %v4078
        %v4108 = vsel %vm4095, %v4080, %v4082
        %v4109 = vsel %vm4095, %v4084, %v4086
        %v4110 = vsel %vm4095, %v4088, %v4090
        %v4111 = vsel %vm4095, %v4092, %v4094
        %4144 = vrot.lane.b32.xlu0 %v3358, 101
        %v4145 = vpop.permute.xlu0 %4144
        %4146 = vrot.lane.b32.xlu0 %v3360, 101
        %v4147 = vpop.permute.xlu0 %4146
        %4148 = vrot.lane.b32.xlu0 %v3362, 101
        %v4149 = vpop.permute.xlu0 %4148
        %4150 = vrot.lane.b32.xlu0 %v3364, 101
        %v4151 = vpop.permute.xlu0 %4150
        %4152 = vrot.lane.b32.xlu0 %v3368, 101
        %v4153 = vpop.permute.xlu0 %4152
        %4154 = vrot.lane.b32.xlu0 %v3370, 101
        %v4155 = vpop.permute.xlu0 %4154
        %4156 = vrot.lane.b32.xlu0 %v3372, 101
        %v4157 = vpop.permute.xlu0 %4156
        %4158 = vrot.lane.b32.xlu0 %v3374, 101
        %v4159 = vpop.permute.xlu0 %4158
        %4160 = vrot.lane.b32.xlu0 %v3378, 101
        %v4161 = vpop.permute.xlu0 %4160
        %4162 = vrot.lane.b32.xlu0 %v3380, 101
        %v4163 = vpop.permute.xlu0 %4162
        %4164 = vrot.lane.b32.xlu0 %v3382, 101
        %v4165 = vpop.permute.xlu0 %4164
        %4166 = vrot.lane.b32.xlu0 %v3384, 101
        %v4167 = vpop.permute.xlu0 %4166
        %4168 = vrot.lane.b32.xlu0 %v3388, 101
        %v4169 = vpop.permute.xlu0 %4168
        %4170 = vrot.lane.b32.xlu0 %v3390, 101
        %v4171 = vpop.permute.xlu0 %4170
        %4172 = vrot.lane.b32.xlu0 %v3392, 101
        %v4173 = vpop.permute.xlu0 %4172
        %4174 = vrot.lane.b32.xlu0 %v3394, 101
        %v4175 = vpop.permute.xlu0 %4174
        %4176 = vrot.lane.b32.xlu0 %v3398, 101
        %v4177 = vpop.permute.xlu0 %4176
        %4178 = vrot.lane.b32.xlu0 %v3400, 101
        %v4179 = vpop.permute.xlu0 %4178
        %4180 = vrot.lane.b32.xlu0 %v3402, 101
        %v4181 = vpop.permute.xlu0 %4180
        %4182 = vrot.lane.b32.xlu0 %v3404, 101
        %v4183 = vpop.permute.xlu0 %4182
        %4184 = vrot.lane.b32.xlu0 %v3408, 101
        %v4185 = vpop.permute.xlu0 %4184
        %4186 = vrot.lane.b32.xlu0 %v3410, 101
        %v4187 = vpop.permute.xlu0 %4186
        %4188 = vrot.lane.b32.xlu0 %v3412, 101
        %v4189 = vpop.permute.xlu0 %4188
        %4190 = vrot.lane.b32.xlu0 %v3414, 101
        %v4191 = vpop.permute.xlu0 %4190
        %4192 = vrot.lane.b32.xlu0 %v3418, 101
        %v4193 = vpop.permute.xlu0 %4192
        %4194 = vrot.lane.b32.xlu0 %v3420, 101
        %v4195 = vpop.permute.xlu0 %4194
        %4196 = vrot.lane.b32.xlu0 %v3422, 101
        %v4197 = vpop.permute.xlu0 %4196
        %4198 = vrot.lane.b32.xlu0 %v3424, 101
        %v4199 = vpop.permute.xlu0 %4198
        %4200 = vrot.lane.b32.xlu0 %v3428, 101
        %v4201 = vpop.permute.xlu0 %4200
        %4202 = vrot.lane.b32.xlu0 %v3430, 101
        %v4203 = vpop.permute.xlu0 %4202
        %4204 = vrot.lane.b32.xlu0 %v3432, 101
        %v4205 = vpop.permute.xlu0 %4204
        %4206 = vrot.lane.b32.xlu0 %v3434, 101
        %v4207 = vpop.permute.xlu0 %4206
        %vm4208 = vcmask 826368
        %v4209 = vsel %vm4208, %v4145, %v4147
        %v4210 = vsel %vm4208, %v4149, %v4151
        %v4211 = vsel %vm4208, %v4153, %v4155
        %v4212 = vsel %vm4208, %v4157, %v4159
        %v4213 = vsel %vm4208, %v4161, %v4163
        %v4214 = vsel %vm4208, %v4165, %v4167
        %v4215 = vsel %vm4208, %v4169, %v4171
        %v4216 = vsel %vm4208, %v4173, %v4175
        %v4217 = vsel %vm4208, %v4177, %v4179
        %v4218 = vsel %vm4208, %v4181, %v4183
        %v4219 = vsel %vm4208, %v4185, %v4187
        %v4220 = vsel %vm4208, %v4189, %v4191
        %v4221 = vsel %vm4208, %v4193, %v4195
        %v4222 = vsel %vm4208, %v4197, %v4199
        %v4223 = vsel %vm4208, %v4201, %v4203
        %v4224 = vsel %vm4208, %v4205, %v4207
        %4257 = vrot.lane.b32.xlu0 %v3358, 100
        %v4258 = vpop.permute.xlu0 %4257
        %4259 = vrot.lane.b32.xlu0 %v3360, 100
        %v4260 = vpop.permute.xlu0 %4259
        %4261 = vrot.lane.b32.xlu0 %v3362, 100
        %v4262 = vpop.permute.xlu0 %4261
        %4263 = vrot.lane.b32.xlu0 %v3364, 100
        %v4264 = vpop.permute.xlu0 %4263
        %4265 = vrot.lane.b32.xlu0 %v3368, 100
        %v4266 = vpop.permute.xlu0 %4265
        %4267 = vrot.lane.b32.xlu0 %v3370, 100
        %v4268 = vpop.permute.xlu0 %4267
        %4269 = vrot.lane.b32.xlu0 %v3372, 100
        %v4270 = vpop.permute.xlu0 %4269
        %4271 = vrot.lane.b32.xlu0 %v3374, 100
        %v4272 = vpop.permute.xlu0 %4271
        %4273 = vrot.lane.b32.xlu0 %v3378, 100
        %v4274 = vpop.permute.xlu0 %4273
        %4275 = vrot.lane.b32.xlu0 %v3380, 100
        %v4276 = vpop.permute.xlu0 %4275
        %4277 = vrot.lane.b32.xlu0 %v3382, 100
        %v4278 = vpop.permute.xlu0 %4277
        %4279 = vrot.lane.b32.xlu0 %v3384, 100
        %v4280 = vpop.permute.xlu0 %4279
        %4281 = vrot.lane.b32.xlu0 %v3388, 100
        %v4282 = vpop.permute.xlu0 %4281
        %4283 = vrot.lane.b32.xlu0 %v3390, 100
        %v4284 = vpop.permute.xlu0 %4283
        %4285 = vrot.lane.b32.xlu0 %v3392, 100
        %v4286 = vpop.permute.xlu0 %4285
        %4287 = vrot.lane.b32.xlu0 %v3394, 100
        %v4288 = vpop.permute.xlu0 %4287
        %4289 = vrot.lane.b32.xlu0 %v3398, 100
        %v4290 = vpop.permute.xlu0 %4289
        %4291 = vrot.lane.b32.xlu0 %v3400, 100
        %v4292 = vpop.permute.xlu0 %4291
        %4293 = vrot.lane.b32.xlu0 %v3402, 100
        %v4294 = vpop.permute.xlu0 %4293
        %4295 = vrot.lane.b32.xlu0 %v3404, 100
        %v4296 = vpop.permute.xlu0 %4295
        %4297 = vrot.lane.b32.xlu0 %v3408, 100
        %v4298 = vpop.permute.xlu0 %4297
        %4299 = vrot.lane.b32.xlu0 %v3410, 100
        %v4300 = vpop.permute.xlu0 %4299
        %4301 = vrot.lane.b32.xlu0 %v3412, 100
        %v4302 = vpop.permute.xlu0 %4301
        %4303 = vrot.lane.b32.xlu0 %v3414, 100
        %v4304 = vpop.permute.xlu0 %4303
        %4305 = vrot.lane.b32.xlu0 %v3418, 100
        %v4306 = vpop.permute.xlu0 %4305
        %4307 = vrot.lane.b32.xlu0 %v3420, 100
        %v4308 = vpop.permute.xlu0 %4307
        %4309 = vrot.lane.b32.xlu0 %v3422, 100
        %v4310 = vpop.permute.xlu0 %4309
        %4311 = vrot.lane.b32.xlu0 %v3424, 100
        %v4312 = vpop.permute.xlu0 %4311
        %4313 = vrot.lane.b32.xlu0 %v3428, 100
        %v4314 = vpop.permute.xlu0 %4313
        %4315 = vrot.lane.b32.xlu0 %v3430, 100
        %v4316 = vpop.permute.xlu0 %4315
        %4317 = vrot.lane.b32.xlu0 %v3432, 100
        %v4318 = vpop.permute.xlu0 %4317
        %4319 = vrot.lane.b32.xlu0 %v3434, 100
        %v4320 = vpop.permute.xlu0 %4319
        %v4321 = vsel %vm563, %v4258, %v4260
        %v4322 = vsel %vm563, %v4262, %v4264
        %v4323 = vsel %vm563, %v4266, %v4268
        %v4324 = vsel %vm563, %v4270, %v4272
        %v4325 = vsel %vm563, %v4274, %v4276
        %v4326 = vsel %vm563, %v4278, %v4280
        %v4327 = vsel %vm563, %v4282, %v4284
        %v4328 = vsel %vm563, %v4286, %v4288
        %v4329 = vsel %vm563, %v4290, %v4292
        %v4330 = vsel %vm563, %v4294, %v4296
        %v4331 = vsel %vm563, %v4298, %v4300
        %v4332 = vsel %vm563, %v4302, %v4304
        %v4333 = vsel %vm563, %v4306, %v4308
        %v4334 = vsel %vm563, %v4310, %v4312
        %v4335 = vsel %vm563, %v4314, %v4316
        %v4336 = vsel %vm563, %v4318, %v4320
        %v4369 = vld [vmem:[%s4] sm:$0xff]
        %v4370 = vld [vmem:[%s4 + $0x8] sm:$0xff]
        %v4371 = vld [vmem:[%s4 + $0x10] sm:$0xff]
        %v4372 = vld [vmem:[%s4 + $0x18] sm:$0xff]
        %v4373 = vld [vmem:[%s4 + $0x20] sm:$0xf]
        %v4374 = vld [vmem:[%s4 + $0x24] sm:$0xff]
        %v4375 = vld [vmem:[%s4 + $0x2c] sm:$0xff]
        %v4376 = vld [vmem:[%s4 + $0x34] sm:$0xff]
        %v4377 = vld [vmem:[%s4 + $0x3c] sm:$0xff]
        %v4378 = vld [vmem:[%s4 + $0x44] sm:$0xf]
        %v4379 = vld [vmem:[%s4 + $0x48] sm:$0xff]
        %v4380 = vld [vmem:[%s4 + $0x50] sm:$0xff]
        %v4381 = vld [vmem:[%s4 + $0x58] sm:$0xff]
        %v4382 = vld [vmem:[%s4 + $0x60] sm:$0xff]
        %v4383 = vld [vmem:[%s4 + $0x68] sm:$0xf]
        %v4384 = vld [vmem:[%s4 + $0x6c] sm:$0xff]
        %v4385 = vld [vmem:[%s4 + $0x74] sm:$0xff]
        %v4386 = vld [vmem:[%s4 + $0x7c] sm:$0xff]
        %v4387 = vld [vmem:[%s4 + $0x84] sm:$0xff]
        %v4388 = vld [vmem:[%s4 + $0x8c] sm:$0xf]
        %v4389 = vld [vmem:[%s4 + $0x90] sm:$0xff]
        %v4390 = vld [vmem:[%s4 + $0x98] sm:$0xff]
        %v4391 = vld [vmem:[%s4 + $0xa0] sm:$0xff]
        %v4392 = vld [vmem:[%s4 + $0xa8] sm:$0xff]
        %v4393 = vld [vmem:[%s4 + $0xb0] sm:$0xf]
        %v4394 = vld [vmem:[%s4 + $0xb4] sm:$0xff]
        %v4395 = vld [vmem:[%s4 + $0xbc] sm:$0xff]
        %v4396 = vld [vmem:[%s4 + $0xc4] sm:$0xff]
        %v4397 = vld [vmem:[%s4 + $0xcc] sm:$0xff]
        %v4398 = vld [vmem:[%s4 + $0xd4] sm:$0xf]
        %v4399 = vld [vmem:[%s4 + $0xd8] sm:$0xff]
        %v4400 = vld [vmem:[%s4 + $0xe0] sm:$0xff]
        %v4401 = vld [vmem:[%s4 + $0xe8] sm:$0xff]
        %v4402 = vld [vmem:[%s4 + $0xf0] sm:$0xff]
        %v4403 = vld [vmem:[%s4 + $0xf8] sm:$0xf]
        %v4404 = vld [vmem:[%s4 + $0xfc] sm:$0xff]
        %v4405 = vld [vmem:[%s4 + $0x104] sm:$0xff]
        %v4406 = vld [vmem:[%s4 + $0x10c] sm:$0xff]
        %v4407 = vld [vmem:[%s4 + $0x114] sm:$0xff]
        %v4408 = vld [vmem:[%s4 + $0x11c] sm:$0xf]
        %v4409 = vld [vmem:[%s4 + $0x120] sm:$0xff]
        %v4410 = vld [vmem:[%s4 + $0x128] sm:$0xff]
        %v4411 = vld [vmem:[%s4 + $0x130] sm:$0xff]
        %v4412 = vld [vmem:[%s4 + $0x138] sm:$0xff]
        %v4413 = vld [vmem:[%s4 + $0x140] sm:$0xf]
        %v4414 = vld [vmem:[%s4 + $0x144] sm:$0xff]
        %v4415 = vld [vmem:[%s4 + $0x14c] sm:$0xff]
        %v4416 = vld [vmem:[%s4 + $0x154] sm:$0xff]
        %v4417 = vld [vmem:[%s4 + $0x15c] sm:$0xff]
        %v4418 = vld [vmem:[%s4 + $0x164] sm:$0xf]
        %v4419 = vld [vmem:[%s4 + $0x168] sm:$0xff]
        %v4420 = vld [vmem:[%s4 + $0x170] sm:$0xff]
        %v4421 = vld [vmem:[%s4 + $0x178] sm:$0xff]
        %v4422 = vld [vmem:[%s4 + $0x180] sm:$0xff]
        %v4423 = vld [vmem:[%s4 + $0x188] sm:$0xf]
        %v4424 = vld [vmem:[%s4 + $0x18c] sm:$0xff]
        %v4425 = vld [vmem:[%s4 + $0x194] sm:$0xff]
        %v4426 = vld [vmem:[%s4 + $0x19c] sm:$0xff]
        %v4427 = vld [vmem:[%s4 + $0x1a4] sm:$0xff]
        %v4428 = vld [vmem:[%s4 + $0x1ac] sm:$0xf]
        %v4429 = vld [vmem:[%s4 + $0x1b0] sm:$0xff]
        %v4430 = vld [vmem:[%s4 + $0x1b8] sm:$0xff]
        %v4431 = vld [vmem:[%s4 + $0x1c0] sm:$0xff]
        %v4432 = vld [vmem:[%s4 + $0x1c8] sm:$0xff]
        %v4433 = vld [vmem:[%s4 + $0x1d0] sm:$0xf]
        %v4434 = vld [vmem:[%s4 + $0x1d4] sm:$0xff]
        %v4435 = vld [vmem:[%s4 + $0x1dc] sm:$0xff]
        %v4436 = vld [vmem:[%s4 + $0x1e4] sm:$0xff]
        %v4437 = vld [vmem:[%s4 + $0x1ec] sm:$0xff]
        %v4438 = vld [vmem:[%s4 + $0x1f4] sm:$0xf]
        %v4439 = vld [vmem:[%s4 + $0x1f8] sm:$0xff]
        %v4440 = vld [vmem:[%s4 + $0x200] sm:$0xff]
        %v4441 = vld [vmem:[%s4 + $0x208] sm:$0xff]
        %v4442 = vld [vmem:[%s4 + $0x210] sm:$0xff]
        %v4443 = vld [vmem:[%s4 + $0x218] sm:$0xf]
        %v4444 = vld [vmem:[%s4 + $0x21c] sm:$0xff]
        %v4445 = vld [vmem:[%s4 + $0x224] sm:$0xff]
        %v4446 = vld [vmem:[%s4 + $0x22c] sm:$0xff]
        %v4447 = vld [vmem:[%s4 + $0x234] sm:$0xff]
        %v4448 = vld [vmem:[%s4 + $0x23c] sm:$0xf]
        %v4449 = vld [vmem:[%s4 + $0x240] sm:$0xff]
        %v4450 = vld [vmem:[%s4 + $0x248] sm:$0xff]
        %v4451 = vld [vmem:[%s4 + $0x250] sm:$0xff]
        %v4452 = vld [vmem:[%s4 + $0x258] sm:$0xff]
        %v4453 = vld [vmem:[%s4 + $0x260] sm:$0xf]
        %v4454 = vld [vmem:[%s4 + $0x264] sm:$0xff]
        %v4455 = vld [vmem:[%s4 + $0x26c] sm:$0xff]
        %v4456 = vld [vmem:[%s4 + $0x274] sm:$0xff]
        %v4457 = vld [vmem:[%s4 + $0x27c] sm:$0xff]
        %v4458 = vld [vmem:[%s4 + $0x284] sm:$0xf]
        %v4459 = vld [vmem:[%s4 + $0x288] sm:$0xff]
        %v4460 = vld [vmem:[%s4 + $0x290] sm:$0xff]
        %v4461 = vld [vmem:[%s4 + $0x298] sm:$0xff]
        %v4462 = vld [vmem:[%s4 + $0x2a0] sm:$0xff]
        %v4463 = vld [vmem:[%s4 + $0x2a8] sm:$0xf]
        %v4464 = vld [vmem:[%s4 + $0x2ac] sm:$0xff]
        %v4465 = vld [vmem:[%s4 + $0x2b4] sm:$0xff]
        %v4466 = vld [vmem:[%s4 + $0x2bc] sm:$0xff]
        %v4467 = vld [vmem:[%s4 + $0x2c4] sm:$0xff]
        %v4468 = vld [vmem:[%s4 + $0x2cc] sm:$0xf]
        %v4469 = vld [vmem:[%s4 + $0x2d0] sm:$0xff]
        %v4470 = vld [vmem:[%s4 + $0x2d8] sm:$0xff]
        %v4471 = vld [vmem:[%s4 + $0x2e0] sm:$0xff]
        %v4472 = vld [vmem:[%s4 + $0x2e8] sm:$0xff]
        %v4473 = vld [vmem:[%s4 + $0x2f0] sm:$0xf]
        %v4474 = vld [vmem:[%s4 + $0x2f4] sm:$0xff]
        %v4475 = vld [vmem:[%s4 + $0x2fc] sm:$0xff]
        %v4476 = vld [vmem:[%s4 + $0x304] sm:$0xff]
        %v4477 = vld [vmem:[%s4 + $0x30c] sm:$0xff]
        %v4478 = vld [vmem:[%s4 + $0x314] sm:$0xf]
        %v4479 = vld [vmem:[%s4 + $0x318] sm:$0xff]
        %v4480 = vld [vmem:[%s4 + $0x320] sm:$0xff]
        %v4481 = vld [vmem:[%s4 + $0x328] sm:$0xff]
        %v4482 = vld [vmem:[%s4 + $0x330] sm:$0xff]
        %v4483 = vld [vmem:[%s4 + $0x338] sm:$0xf]
        %v4484 = vld [vmem:[%s4 + $0x33c] sm:$0xff]
        %v4485 = vld [vmem:[%s4 + $0x344] sm:$0xff]
        %v4486 = vld [vmem:[%s4 + $0x34c] sm:$0xff]
        %v4487 = vld [vmem:[%s4 + $0x354] sm:$0xff]
        %v4488 = vld [vmem:[%s4 + $0x35c] sm:$0xf]
        %v4489 = vld [vmem:[%s4 + $0x360] sm:$0xff]
        %v4490 = vld [vmem:[%s4 + $0x368] sm:$0xff]
        %v4491 = vld [vmem:[%s4 + $0x370] sm:$0xff]
        %v4492 = vld [vmem:[%s4 + $0x378] sm:$0xff]
        %v4493 = vld [vmem:[%s4 + $0x380] sm:$0xf]
        %v4494 = vld [vmem:[%s4 + $0x384] sm:$0xff]
        %v4495 = vld [vmem:[%s4 + $0x38c] sm:$0xff]
        %v4496 = vld [vmem:[%s4 + $0x394] sm:$0xff]
        %v4497 = vld [vmem:[%s4 + $0x39c] sm:$0xff]
        %v4498 = vld [vmem:[%s4 + $0x3a4] sm:$0xf]
        %v4499 = vld [vmem:[%s4 + $0x3a8] sm:$0xff]
        %v4500 = vld [vmem:[%s4 + $0x3b0] sm:$0xff]
        %v4501 = vld [vmem:[%s4 + $0x3b8] sm:$0xff]
        %v4502 = vld [vmem:[%s4 + $0x3c0] sm:$0xff]
        %v4503 = vld [vmem:[%s4 + $0x3c8] sm:$0xf]
        %v4504 = vld [vmem:[%s4 + $0x3cc] sm:$0xff]
        %v4505 = vld [vmem:[%s4 + $0x3d4] sm:$0xff]
        %v4506 = vld [vmem:[%s4 + $0x3dc] sm:$0xff]
        %v4507 = vld [vmem:[%s4 + $0x3e4] sm:$0xff]
        %v4508 = vld [vmem:[%s4 + $0x3ec] sm:$0xf]
        %v4509 = vld [vmem:[%s4 + $0x3f0] sm:$0xff]
        %v4510 = vld [vmem:[%s4 + $0x3f8] sm:$0xff]
        %v4511 = vld [vmem:[%s4 + $0x400] sm:$0xff]
        %v4512 = vld [vmem:[%s4 + $0x408] sm:$0xff]
        %v4513 = vld [vmem:[%s4 + $0x410] sm:$0xf]
        %v4514 = vld [vmem:[%s4 + $0x414] sm:$0xff]
        %v4515 = vld [vmem:[%s4 + $0x41c] sm:$0xff]
        %v4516 = vld [vmem:[%s4 + $0x424] sm:$0xff]
        %v4517 = vld [vmem:[%s4 + $0x42c] sm:$0xff]
        %v4518 = vld [vmem:[%s4 + $0x434] sm:$0xf]
        %v4519 = vld [vmem:[%s4 + $0x438] sm:$0xff]
        %v4520 = vld [vmem:[%s4 + $0x440] sm:$0xff]
        %v4521 = vld [vmem:[%s4 + $0x448] sm:$0xff]
        %v4522 = vld [vmem:[%s4 + $0x450] sm:$0xff]
        %v4523 = vld [vmem:[%s4 + $0x458] sm:$0xf]
        %v4524 = vld [vmem:[%s4 + $0x45c] sm:$0xff]
        %v4525 = vld [vmem:[%s4 + $0x464] sm:$0xff]
        %v4526 = vld [vmem:[%s4 + $0x46c] sm:$0xff]
        %v4527 = vld [vmem:[%s4 + $0x474] sm:$0xff]
        %v4528 = vld [vmem:[%s4 + $0x47c] sm:$0xf]
        %v4529 = vpack.c.bf16 %v3362, %v3358
        %v4530 = vpack.c.bf16 %v3364, %v3360
        %v4531 = vpack.c.bf16 %v3372, %v3368
        %v4532 = vpack.c.bf16 %v3374, %v3370
        %v4533 = vpack.c.bf16 %v3382, %v3378
        %v4534 = vpack.c.bf16 %v3384, %v3380
        %v4535 = vpack.c.bf16 %v3392, %v3388
        %v4536 = vpack.c.bf16 %v3394, %v3390
        %v4537 = vpack.c.bf16 %v3402, %v3398
        %v4538 = vpack.c.bf16 %v3404, %v3400
        %v4539 = vpack.c.bf16 %v3412, %v3408
        %v4540 = vpack.c.bf16 %v3414, %v3410
        %v4541 = vpack.c.bf16 %v3422, %v3418
        %v4542 = vpack.c.bf16 %v3424, %v3420
        %v4543 = vpack.c.bf16 %v3432, %v3428
        %v4544 = vpack.c.bf16 %v3434, %v3430
        %v4545 = vpack.c.bf16 %v3533, %v3532
        %v4546 = vpack.c.bf16 %v3475, %v3471
        %v4547 = vpack.c.bf16 %v3535, %v3534
        %v4548 = vpack.c.bf16 %v3483, %v3479
        %v4549 = vpack.c.bf16 %v3537, %v3536
        %v4550 = vpack.c.bf16 %v3491, %v3487
        %v4551 = vpack.c.bf16 %v3539, %v3538
        %v4552 = vpack.c.bf16 %v3499, %v3495
        %v4553 = vpack.c.bf16 %v3541, %v3540
        %v4554 = vpack.c.bf16 %v3507, %v3503
        %v4555 = vpack.c.bf16 %v3543, %v3542
        %v4556 = vpack.c.bf16 %v3515, %v3511
        %v4557 = vpack.c.bf16 %v3545, %v3544
        %v4558 = vpack.c.bf16 %v3523, %v3519
        %v4559 = vpack.c.bf16 %v3547, %v3546
        %v4560 = vpack.c.bf16 %v3531, %v3527
        %v4561 = vpack.c.bf16 %v3645, %v3644
        %v4562 = vpack.c.bf16 %v3587, %v3583
        %v4563 = vpack.c.bf16 %v3647, %v3646
        %v4564 = vpack.c.bf16 %v3595, %v3591
        %v4565 = vpack.c.bf16 %v3649, %v3648
        %v4566 = vpack.c.bf16 %v3603, %v3599
        %v4567 = vpack.c.bf16 %v3651, %v3650
        %v4568 = vpack.c.bf16 %v3611, %v3607
        %v4569 = vpack.c.bf16 %v3653, %v3652
        %v4570 = vpack.c.bf16 %v3619, %v3615
        %v4571 = vpack.c.bf16 %v3655, %v3654
        %v4572 = vpack.c.bf16 %v3627, %v3623
        %v4573 = vpack.c.bf16 %v3657, %v3656
        %v4574 = vpack.c.bf16 %v3635, %v3631
        %v4575 = vpack.c.bf16 %v3659, %v3658
        %v4576 = vpack.c.bf16 %v3643, %v3639
        %v4577 = vpack.c.bf16 %v3758, %v3757
        %v4578 = vpack.c.bf16 %v3699, %v3695
        %v4579 = vpack.c.bf16 %v3760, %v3759
        %v4580 = vpack.c.bf16 %v3707, %v3703
        %v4581 = vpack.c.bf16 %v3762, %v3761
        %v4582 = vpack.c.bf16 %v3715, %v3711
        %v4583 = vpack.c.bf16 %v3764, %v3763
        %v4584 = vpack.c.bf16 %v3723, %v3719
        %v4585 = vpack.c.bf16 %v3766, %v3765
        %v4586 = vpack.c.bf16 %v3731, %v3727
        %v4587 = vpack.c.bf16 %v3768, %v3767
        %v4588 = vpack.c.bf16 %v3739, %v3735
        %v4589 = vpack.c.bf16 %v3770, %v3769
        %v4590 = vpack.c.bf16 %v3747, %v3743
        %v4591 = vpack.c.bf16 %v3772, %v3771
        %v4592 = vpack.c.bf16 %v3755, %v3751
        %v4593 = vpack.c.bf16 %v3871, %v3870
        %v4594 = vpack.c.bf16 %v3812, %v3808
        %v4595 = vpack.c.bf16 %v3873, %v3872
        %v4596 = vpack.c.bf16 %v3820, %v3816
        %v4597 = vpack.c.bf16 %v3875, %v3874
        %v4598 = vpack.c.bf16 %v3828, %v3824
        %v4599 = vpack.c.bf16 %v3877, %v3876
        %v4600 = vpack.c.bf16 %v3836, %v3832
        %v4601 = vpack.c.bf16 %v3879, %v3878
        %v4602 = vpack.c.bf16 %v3844, %v3840
        %v4603 = vpack.c.bf16 %v3881, %v3880
        %v4604 = vpack.c.bf16 %v3852, %v3848
        %v4605 = vpack.c.bf16 %v3883, %v3882
        %v4606 = vpack.c.bf16 %v3860, %v3856
        %v4607 = vpack.c.bf16 %v3885, %v3884
        %v4608 = vpack.c.bf16 %v3868, %v3864
        %v4609 = vpack.c.bf16 %v3984, %v3983
        %v4610 = vpack.c.bf16 %v3925, %v3921
        %v4611 = vpack.c.bf16 %v3986, %v3985
        %v4612 = vpack.c.bf16 %v3933, %v3929
        %v4613 = vpack.c.bf16 %v3988, %v3987
        %v4614 = vpack.c.bf16 %v3941, %v3937
        %v4615 = vpack.c.bf16 %v3990, %v3989
        %v4616 = vpack.c.bf16 %v3949, %v3945
        %v4617 = vpack.c.bf16 %v3992, %v3991
        %v4618 = vpack.c.bf16 %v3957, %v3953
        %v4619 = vpack.c.bf16 %v3994, %v3993
        %v4620 = vpack.c.bf16 %v3965, %v3961
        %v4621 = vpack.c.bf16 %v3996, %v3995
        %v4622 = vpack.c.bf16 %v3973, %v3969
        %v4623 = vpack.c.bf16 %v3998, %v3997
        %v4624 = vpack.c.bf16 %v3981, %v3977
        %v4625 = vpack.c.bf16 %v4097, %v4096
        %v4626 = vpack.c.bf16 %v4038, %v4034
        %v4627 = vpack.c.bf16 %v4099, %v4098
        %v4628 = vpack.c.bf16 %v4046, %v4042
        %v4629 = vpack.c.bf16 %v4101, %v4100
        %v4630 = vpack.c.bf16 %v4054, %v4050
        %v4631 = vpack.c.bf16 %v4103, %v4102
        %v4632 = vpack.c.bf16 %v4062, %v4058
        %v4633 = vpack.c.bf16 %v4105, %v4104
        %v4634 = vpack.c.bf16 %v4070, %v4066
        %v4635 = vpack.c.bf16 %v4107, %v4106
        %v4636 = vpack.c.bf16 %v4078, %v4074
        %v4637 = vpack.c.bf16 %v4109, %v4108
        %v4638 = vpack.c.bf16 %v4086, %v4082
        %v4639 = vpack.c.bf16 %v4111, %v4110
        %v4640 = vpack.c.bf16 %v4094, %v4090
        %v4641 = vpack.c.bf16 %v4210, %v4209
        %v4642 = vpack.c.bf16 %v4151, %v4147
        %v4643 = vpack.c.bf16 %v4212, %v4211
        %v4644 = vpack.c.bf16 %v4159, %v4155
        %v4645 = vpack.c.bf16 %v4214, %v4213
        %v4646 = vpack.c.bf16 %v4167, %v4163
        %v4647 = vpack.c.bf16 %v4216, %v4215
        %v4648 = vpack.c.bf16 %v4175, %v4171
        %v4649 = vpack.c.bf16 %v4218, %v4217
        %v4650 = vpack.c.bf16 %v4183, %v4179
        %v4651 = vpack.c.bf16 %v4220, %v4219
        %v4652 = vpack.c.bf16 %v4191, %v4187
        %v4653 = vpack.c.bf16 %v4222, %v4221
        %v4654 = vpack.c.bf16 %v4199, %v4195
        %v4655 = vpack.c.bf16 %v4224, %v4223
        %v4656 = vpack.c.bf16 %v4207, %v4203
        %v4657 = vpack.c.bf16 %v4322, %v4321
        %v4658 = vpack.c.bf16 %v4264, %v4260
        %v4659 = vpack.c.bf16 %v4324, %v4323
        %v4660 = vpack.c.bf16 %v4272, %v4268
        %v4661 = vpack.c.bf16 %v4326, %v4325
        %v4662 = vpack.c.bf16 %v4280, %v4276
        %v4663 = vpack.c.bf16 %v4328, %v4327
        %v4664 = vpack.c.bf16 %v4288, %v4284
        %v4665 = vpack.c.bf16 %v4330, %v4329
        %v4666 = vpack.c.bf16 %v4296, %v4292
        %v4667 = vpack.c.bf16 %v4332, %v4331
        %v4668 = vpack.c.bf16 %v4304, %v4300
        %v4669 = vpack.c.bf16 %v4334, %v4333
        %v4670 = vpack.c.bf16 %v4312, %v4308
        %v4671 = vpack.c.bf16 %v4336, %v4335
        %v4672 = vpack.c.bf16 %v4320, %v4316
        %v4673 = vld [vmem:[%s5] sm:$0xff]
        %v4674 = vld [vmem:[%s5 + $0x8] sm:$0xff]
        %v4675 = vld [vmem:[%s5 + $0x10] sm:$0xff]
        %v4676 = vld [vmem:[%s5 + $0x18] sm:$0xff]
        %v4677 = vld [vmem:[%s5 + $0x20] sm:$0xff]
        %v4678 = vld [vmem:[%s5 + $0x28] sm:$0xff]
        %v4679 = vld [vmem:[%s5 + $0x30] sm:$0xff]
        %v4680 = vld [vmem:[%s5 + $0x38] sm:$0xff]
        %v4681 = vld [vmem:[%s5 + $0x40] sm:$0xff]
        %v4682 = vld [vmem:[%s5 + $0x48] sm:$0xff]
        %v4683 = vld [vmem:[%s5 + $0x50] sm:$0xff]
        %v4684 = vld [vmem:[%s5 + $0x58] sm:$0xff]
        %v4685 = vld [vmem:[%s5 + $0x60] sm:$0xff]
        %v4686 = vld [vmem:[%s5 + $0x68] sm:$0xff]
        %v4687 = vld [vmem:[%s5 + $0x70] sm:$0xff]
        %v4688 = vld [vmem:[%s5 + $0x78] sm:$0xff]
        %v4689 = vld [vmem:[%s5 + $0x80] sm:$0xff]
        %v4690 = vld [vmem:[%s5 + $0x88] sm:$0xff]
        %v4691 = vld [vmem:[%s5 + $0x90] sm:$0xff]
        %v4692 = vld [vmem:[%s5 + $0x98] sm:$0xff]
        %v4693 = vld [vmem:[%s5 + $0xa0] sm:$0xff]
        %v4694 = vld [vmem:[%s5 + $0xa8] sm:$0xff]
        %v4695 = vld [vmem:[%s5 + $0xb0] sm:$0xff]
        %v4696 = vld [vmem:[%s5 + $0xb8] sm:$0xff]
        %v4697 = vld [vmem:[%s5 + $0xc0] sm:$0xff]
        %v4698 = vld [vmem:[%s5 + $0xc8] sm:$0xff]
        %v4699 = vld [vmem:[%s5 + $0xd0] sm:$0xff]
        %v4700 = vld [vmem:[%s5 + $0xd8] sm:$0xff]
        %v4701 = vld [vmem:[%s5 + $0xe0] sm:$0xff]
        %v4702 = vld [vmem:[%s5 + $0xe8] sm:$0xff]
        %v4703 = vld [vmem:[%s5 + $0xf0] sm:$0xff]
        %v4704 = vld [vmem:[%s5 + $0xf8] sm:$0xff]
        %4706 = vset.pattern.permute.xlu0 0
        %4707 = vperm.xlu0 %4706, %v4673
        %v4708 = vpop.permute.xlu0 %4707
        %4711 = vset.pattern.permute.xlu0 0
        %4712 = vperm.xlu0 %4711, %v4674
        %v4713 = vpop.permute.xlu0 %4712
        %4716 = vset.pattern.permute.xlu0 0
        %4717 = vperm.xlu0 %4716, %v4675
        %v4718 = vpop.permute.xlu0 %4717
        %4721 = vset.pattern.permute.xlu0 0
        %4722 = vperm.xlu0 %4721, %v4676
        %v4723 = vpop.permute.xlu0 %4722
        %4726 = vset.pattern.permute.xlu0 0
        %4727 = vperm.xlu0 %4726, %v4677
        %v4728 = vpop.permute.xlu0 %4727
        %4731 = vset.pattern.permute.xlu0 0
        %4732 = vperm.xlu0 %4731, %v4678
        %v4733 = vpop.permute.xlu0 %4732
        %4736 = vset.pattern.permute.xlu0 0
        %4737 = vperm.xlu0 %4736, %v4679
        %v4738 = vpop.permute.xlu0 %4737
        %4741 = vset.pattern.permute.xlu0 0
        %4742 = vperm.xlu0 %4741, %v4680
        %v4743 = vpop.permute.xlu0 %4742
        %4746 = vset.pattern.permute.xlu0 0
        %4747 = vperm.xlu0 %4746, %v4681
        %v4748 = vpop.permute.xlu0 %4747
        %4751 = vset.pattern.permute.xlu0 0
        %4752 = vperm.xlu0 %4751, %v4682
        %v4753 = vpop.permute.xlu0 %4752
        %4756 = vset.pattern.permute.xlu0 0
        %4757 = vperm.xlu0 %4756, %v4683
        %v4758 = vpop.permute.xlu0 %4757
        %4761 = vset.pattern.permute.xlu0 0
        %4762 = vperm.xlu0 %4761, %v4684
        %v4763 = vpop.permute.xlu0 %4762
        %4766 = vset.pattern.permute.xlu0 0
        %4767 = vperm.xlu0 %4766, %v4685
        %v4768 = vpop.permute.xlu0 %4767
        %4771 = vset.pattern.permute.xlu0 0
        %4772 = vperm.xlu0 %4771, %v4686
        %v4773 = vpop.permute.xlu0 %4772
        %4776 = vset.pattern.permute.xlu0 0
        %4777 = vperm.xlu0 %4776, %v4687
        %v4778 = vpop.permute.xlu0 %4777
        %4781 = vset.pattern.permute.xlu0 0
        %4782 = vperm.xlu0 %4781, %v4688
        %v4783 = vpop.permute.xlu0 %4782
        %4786 = vset.pattern.permute.xlu0 0
        %4787 = vperm.xlu0 %4786, %v4689
        %v4788 = vpop.permute.xlu0 %4787
        %4791 = vset.pattern.permute.xlu0 0
        %4792 = vperm.xlu0 %4791, %v4690
        %v4793 = vpop.permute.xlu0 %4792
        %4796 = vset.pattern.permute.xlu0 0
        %4797 = vperm.xlu0 %4796, %v4691
        %v4798 = vpop.permute.xlu0 %4797
        %4801 = vset.pattern.permute.xlu0 0
        %4802 = vperm.xlu0 %4801, %v4692
        %v4803 = vpop.permute.xlu0 %4802
        %4806 = vset.pattern.permute.xlu0 0
        %4807 = vperm.xlu0 %4806, %v4693
        %v4808 = vpop.permute.xlu0 %4807
        %4811 = vset.pattern.permute.xlu0 0
        %4812 = vperm.xlu0 %4811, %v4694
        %v4813 = vpop.permute.xlu0 %4812
        %4816 = vset.pattern.permute.xlu0 0
        %4817 = vperm.xlu0 %4816, %v4695
        %v4818 = vpop.permute.xlu0 %4817
        %4821 = vset.pattern.permute.xlu0 0
        %4822 = vperm.xlu0 %4821, %v4696
        %v4823 = vpop.permute.xlu0 %4822
        %4826 = vset.pattern.permute.xlu0 0
        %4827 = vperm.xlu0 %4826, %v4697
        %v4828 = vpop.permute.xlu0 %4827
        %4831 = vset.pattern.permute.xlu0 0
        %4832 = vperm.xlu0 %4831, %v4698
        %v4833 = vpop.permute.xlu0 %4832
        %4836 = vset.pattern.permute.xlu0 0
        %4837 = vperm.xlu0 %4836, %v4699
        %v4838 = vpop.permute.xlu0 %4837
        %4841 = vset.pattern.permute.xlu0 0
        %4842 = vperm.xlu0 %4841, %v4700
        %v4843 = vpop.permute.xlu0 %4842
        %4846 = vset.pattern.permute.xlu0 0
        %4847 = vperm.xlu0 %4846, %v4701
        %v4848 = vpop.permute.xlu0 %4847
        %4851 = vset.pattern.permute.xlu0 0
        %4852 = vperm.xlu0 %4851, %v4702
        %v4853 = vpop.permute.xlu0 %4852
        %4856 = vset.pattern.permute.xlu0 0
        %4857 = vperm.xlu0 %4856, %v4703
        %v4858 = vpop.permute.xlu0 %4857
        %4861 = vset.pattern.permute.xlu0 0
        %4862 = vperm.xlu0 %4861, %v4704
        %v4863 = vpop.permute.xlu0 %4862
        %v5025 = vunpack.c.l.b16 %v4369
        %v5026 = vunpack.c.h.b16 %v4369
        %v5027 = vunpack.c.l.b16 %v4370
        %v5028 = vunpack.c.h.b16 %v4370
        %v5029 = vunpack.c.l.b16 %v4371
        %v5030 = vunpack.c.h.b16 %v4371
        %v5031 = vunpack.c.l.b16 %v4372
        %v5032 = vunpack.c.h.b16 %v4372
        %v5033 = vunpack.c.l.b16 %v4373
        %v5034 = vunpack.c.l.b16 %v4374
        %v5035 = vunpack.c.h.b16 %v4374
        %v5036 = vunpack.c.l.b16 %v4375
        %v5037 = vunpack.c.h.b16 %v4375
        %v5038 = vunpack.c.l.b16 %v4376
        %v5039 = vunpack.c.h.b16 %v4376
        %v5040 = vunpack.c.l.b16 %v4377
        %v5041 = vunpack.c.h.b16 %v4377
        %v5042 = vunpack.c.l.b16 %v4378
        %v5043 = vunpack.c.l.b16 %v4379
        %v5044 = vunpack.c.h.b16 %v4379
        %v5045 = vunpack.c.l.b16 %v4380
        %v5046 = vunpack.c.h.b16 %v4380
        %v5047 = vunpack.c.l.b16 %v4381
        %v5048 = vunpack.c.h.b16 %v4381
        %v5049 = vunpack.c.l.b16 %v4382
        %v5050 = vunpack.c.h.b16 %v4382
        %v5051 = vunpack.c.l.b16 %v4383
        %v5052 = vunpack.c.l.b16 %v4384
        %v5053 = vunpack.c.h.b16 %v4384
        %v5054 = vunpack.c.l.b16 %v4385
        %v5055 = vunpack.c.h.b16 %v4385
        %v5056 = vunpack.c.l.b16 %v4386
        %v5057 = vunpack.c.h.b16 %v4386
        %v5058 = vunpack.c.l.b16 %v4387
        %v5059 = vunpack.c.h.b16 %v4387
        %v5060 = vunpack.c.l.b16 %v4388
        %v5061 = vunpack.c.l.b16 %v4389
        %v5062 = vunpack.c.h.b16 %v4389
        %v5063 = vunpack.c.l.b16 %v4390
        %v5064 = vunpack.c.h.b16 %v4390
        %v5065 = vunpack.c.l.b16 %v4391
        %v5066 = vunpack.c.h.b16 %v4391
        %v5067 = vunpack.c.l.b16 %v4392
        %v5068 = vunpack.c.h.b16 %v4392
        %v5069 = vunpack.c.l.b16 %v4393
        %v5070 = vunpack.c.l.b16 %v4394
        %v5071 = vunpack.c.h.b16 %v4394
        %v5072 = vunpack.c.l.b16 %v4395
        %v5073 = vunpack.c.h.b16 %v4395
        %v5074 = vunpack.c.l.b16 %v4396
        %v5075 = vunpack.c.h.b16 %v4396
        %v5076 = vunpack.c.l.b16 %v4397
        %v5077 = vunpack.c.h.b16 %v4397
        %v5078 = vunpack.c.l.b16 %v4398
        %v5079 = vunpack.c.l.b16 %v4399
        %v5080 = vunpack.c.h.b16 %v4399
        %v5081 = vunpack.c.l.b16 %v4400
        %v5082 = vunpack.c.h.b16 %v4400
        %v5083 = vunpack.c.l.b16 %v4401
        %v5084 = vunpack.c.h.b16 %v4401
        %v5085 = vunpack.c.l.b16 %v4402
        %v5086 = vunpack.c.h.b16 %v4402
        %v5087 = vunpack.c.l.b16 %v4403
        %v5088 = vunpack.c.l.b16 %v4404
        %v5089 = vunpack.c.h.b16 %v4404
        %v5090 = vunpack.c.l.b16 %v4405
        %v5091 = vunpack.c.h.b16 %v4405
        %v5092 = vunpack.c.l.b16 %v4406
        %v5093 = vunpack.c.h.b16 %v4406
        %v5094 = vunpack.c.l.b16 %v4407
        %v5095 = vunpack.c.h.b16 %v4407
        %v5096 = vunpack.c.l.b16 %v4408
        %v5097 = vunpack.c.l.b16 %v4409
        %v5098 = vunpack.c.h.b16 %v4409
        %v5099 = vunpack.c.l.b16 %v4410
        %v5100 = vunpack.c.h.b16 %v4410
        %v5101 = vunpack.c.l.b16 %v4411
        %v5102 = vunpack.c.h.b16 %v4411
        %v5103 = vunpack.c.l.b16 %v4412
        %v5104 = vunpack.c.h.b16 %v4412
        %v5105 = vunpack.c.l.b16 %v4413
        %v5106 = vunpack.c.l.b16 %v4414
        %v5107 = vunpack.c.h.b16 %v4414
        %v5108 = vunpack.c.l.b16 %v4415
        %v5109 = vunpack.c.h.b16 %v4415
        %v5110 = vunpack.c.l.b16 %v4416
        %v5111 = vunpack.c.h.b16 %v4416
        %v5112 = vunpack.c.l.b16 %v4417
        %v5113 = vunpack.c.h.b16 %v4417
        %v5114 = vunpack.c.l.b16 %v4418
        %v5115 = vunpack.c.l.b16 %v4419
        %v5116 = vunpack.c.h.b16 %v4419
        %v5117 = vunpack.c.l.b16 %v4420
        %v5118 = vunpack.c.h.b16 %v4420
        %v5119 = vunpack.c.l.b16 %v4421
        %v5120 = vunpack.c.h.b16 %v4421
        %v5121 = vunpack.c.l.b16 %v4422
        %v5122 = vunpack.c.h.b16 %v4422
        %v5123 = vunpack.c.l.b16 %v4423
        %v5124 = vunpack.c.l.b16 %v4424
        %v5125 = vunpack.c.h.b16 %v4424
        %v5126 = vunpack.c.l.b16 %v4425
        %v5127 = vunpack.c.h.b16 %v4425
        %v5128 = vunpack.c.l.b16 %v4426
        %v5129 = vunpack.c.h.b16 %v4426
        %v5130 = vunpack.c.l.b16 %v4427
        %v5131 = vunpack.c.h.b16 %v4427
        %v5132 = vunpack.c.l.b16 %v4428
        %v5133 = vunpack.c.l.b16 %v4429
        %v5134 = vunpack.c.h.b16 %v4429
        %v5135 = vunpack.c.l.b16 %v4430
        %v5136 = vunpack.c.h.b16 %v4430
        %v5137 = vunpack.c.l.b16 %v4431
        %v5138 = vunpack.c.h.b16 %v4431
        %v5139 = vunpack.c.l.b16 %v4432
        %v5140 = vunpack.c.h.b16 %v4432
        %v5141 = vunpack.c.l.b16 %v4433
        %v5142 = vunpack.c.l.b16 %v4434
        %v5143 = vunpack.c.h.b16 %v4434
        %v5144 = vunpack.c.l.b16 %v4435
        %v5145 = vunpack.c.h.b16 %v4435
        %v5146 = vunpack.c.l.b16 %v4436
        %v5147 = vunpack.c.h.b16 %v4436
        %v5148 = vunpack.c.l.b16 %v4437
        %v5149 = vunpack.c.h.b16 %v4437
        %v5150 = vunpack.c.l.b16 %v4438
        %v5151 = vunpack.c.l.b16 %v4439
        %v5152 = vunpack.c.h.b16 %v4439
        %v5153 = vunpack.c.l.b16 %v4440
        %v5154 = vunpack.c.h.b16 %v4440
        %v5155 = vunpack.c.l.b16 %v4441
        %v5156 = vunpack.c.h.b16 %v4441
        %v5157 = vunpack.c.l.b16 %v4442
        %v5158 = vunpack.c.h.b16 %v4442
        %v5159 = vunpack.c.l.b16 %v4443
        %v5160 = vunpack.c.l.b16 %v4444
        %v5161 = vunpack.c.h.b16 %v4444
        %v5162 = vunpack.c.l.b16 %v4445
        %v5163 = vunpack.c.h.b16 %v4445
        %v5164 = vunpack.c.l.b16 %v4446
        %v5165 = vunpack.c.h.b16 %v4446
        %v5166 = vunpack.c.l.b16 %v4447
        %v5167 = vunpack.c.h.b16 %v4447
        %v5168 = vunpack.c.l.b16 %v4448
        %v5169 = vunpack.c.l.b16 %v4449
        %v5170 = vunpack.c.h.b16 %v4449
        %v5171 = vunpack.c.l.b16 %v4450
        %v5172 = vunpack.c.h.b16 %v4450
        %v5173 = vunpack.c.l.b16 %v4451
        %v5174 = vunpack.c.h.b16 %v4451
        %v5175 = vunpack.c.l.b16 %v4452
        %v5176 = vunpack.c.h.b16 %v4452
        %v5177 = vunpack.c.l.b16 %v4453
        %v5178 = vunpack.c.l.b16 %v4454
        %v5179 = vunpack.c.h.b16 %v4454
        %v5180 = vunpack.c.l.b16 %v4455
        %v5181 = vunpack.c.h.b16 %v4455
        %v5182 = vunpack.c.l.b16 %v4456
        %v5183 = vunpack.c.h.b16 %v4456
        %v5184 = vunpack.c.l.b16 %v4457
        %v5185 = vunpack.c.h.b16 %v4457
        %v5186 = vunpack.c.l.b16 %v4458
        %v5187 = vunpack.c.l.b16 %v4459
        %v5188 = vunpack.c.h.b16 %v4459
        %v5189 = vunpack.c.l.b16 %v4460
        %v5190 = vunpack.c.h.b16 %v4460
        %v5191 = vunpack.c.l.b16 %v4461
        %v5192 = vunpack.c.h.b16 %v4461
        %v5193 = vunpack.c.l.b16 %v4462
        %v5194 = vunpack.c.h.b16 %v4462
        %v5195 = vunpack.c.l.b16 %v4463
        %v5196 = vunpack.c.l.b16 %v4464
        %v5197 = vunpack.c.h.b16 %v4464
        %v5198 = vunpack.c.l.b16 %v4465
        %v5199 = vunpack.c.h.b16 %v4465
        %v5200 = vunpack.c.l.b16 %v4466
        %v5201 = vunpack.c.h.b16 %v4466
        %v5202 = vunpack.c.l.b16 %v4467
        %v5203 = vunpack.c.h.b16 %v4467
        %v5204 = vunpack.c.l.b16 %v4468
        %v5205 = vunpack.c.l.b16 %v4469
        %v5206 = vunpack.c.h.b16 %v4469
        %v5207 = vunpack.c.l.b16 %v4470
        %v5208 = vunpack.c.h.b16 %v4470
        %v5209 = vunpack.c.l.b16 %v4471
        %v5210 = vunpack.c.h.b16 %v4471
        %v5211 = vunpack.c.l.b16 %v4472
        %v5212 = vunpack.c.h.b16 %v4472
        %v5213 = vunpack.c.l.b16 %v4473
        %v5214 = vunpack.c.l.b16 %v4474
        %v5215 = vunpack.c.h.b16 %v4474
        %v5216 = vunpack.c.l.b16 %v4475
        %v5217 = vunpack.c.h.b16 %v4475
        %v5218 = vunpack.c.l.b16 %v4476
        %v5219 = vunpack.c.h.b16 %v4476
        %v5220 = vunpack.c.l.b16 %v4477
        %v5221 = vunpack.c.h.b16 %v4477
        %v5222 = vunpack.c.l.b16 %v4478
        %v5223 = vunpack.c.l.b16 %v4479
        %v5224 = vunpack.c.h.b16 %v4479
        %v5225 = vunpack.c.l.b16 %v4480
        %v5226 = vunpack.c.h.b16 %v4480
        %v5227 = vunpack.c.l.b16 %v4481
        %v5228 = vunpack.c.h.b16 %v4481
        %v5229 = vunpack.c.l.b16 %v4482
        %v5230 = vunpack.c.h.b16 %v4482
        %v5231 = vunpack.c.l.b16 %v4483
        %v5232 = vunpack.c.l.b16 %v4484
        %v5233 = vunpack.c.h.b16 %v4484
        %v5234 = vunpack.c.l.b16 %v4485
        %v5235 = vunpack.c.h.b16 %v4485
        %v5236 = vunpack.c.l.b16 %v4486
        %v5237 = vunpack.c.h.b16 %v4486
        %v5238 = vunpack.c.l.b16 %v4487
        %v5239 = vunpack.c.h.b16 %v4487
        %v5240 = vunpack.c.l.b16 %v4488
        %v5241 = vunpack.c.l.b16 %v4489
        %v5242 = vunpack.c.h.b16 %v4489
        %v5243 = vunpack.c.l.b16 %v4490
        %v5244 = vunpack.c.h.b16 %v4490
        %v5245 = vunpack.c.l.b16 %v4491
        %v5246 = vunpack.c.h.b16 %v4491
        %v5247 = vunpack.c.l.b16 %v4492
        %v5248 = vunpack.c.h.b16 %v4492
        %v5249 = vunpack.c.l.b16 %v4493
        %v5250 = vunpack.c.l.b16 %v4494
        %v5251 = vunpack.c.h.b16 %v4494
        %v5252 = vunpack.c.l.b16 %v4495
        %v5253 = vunpack.c.h.b16 %v4495
        %v5254 = vunpack.c.l.b16 %v4496
        %v5255 = vunpack.c.h.b16 %v4496
        %v5256 = vunpack.c.l.b16 %v4497
        %v5257 = vunpack.c.h.b16 %v4497
        %v5258 = vunpack.c.l.b16 %v4498
        %v5259 = vunpack.c.l.b16 %v4499
        %v5260 = vunpack.c.h.b16 %v4499
        %v5261 = vunpack.c.l.b16 %v4500
        %v5262 = vunpack.c.h.b16 %v4500
        %v5263 = vunpack.c.l.b16 %v4501
        %v5264 = vunpack.c.h.b16 %v4501
        %v5265 = vunpack.c.l.b16 %v4502
        %v5266 = vunpack.c.h.b16 %v4502
        %v5267 = vunpack.c.l.b16 %v4503
        %v5268 = vunpack.c.l.b16 %v4504
        %v5269 = vunpack.c.h.b16 %v4504
        %v5270 = vunpack.c.l.b16 %v4505
        %v5271 = vunpack.c.h.b16 %v4505
        %v5272 = vunpack.c.l.b16 %v4506
        %v5273 = vunpack.c.h.b16 %v4506
        %v5274 = vunpack.c.l.b16 %v4507
        %v5275 = vunpack.c.h.b16 %v4507
        %v5276 = vunpack.c.l.b16 %v4508
        %v5277 = vunpack.c.l.b16 %v4509
        %v5278 = vunpack.c.h.b16 %v4509
        %v5279 = vunpack.c.l.b16 %v4510
        %v5280 = vunpack.c.h.b16 %v4510
        %v5281 = vunpack.c.l.b16 %v4511
        %v5282 = vunpack.c.h.b16 %v4511
        %v5283 = vunpack.c.l.b16 %v4512
        %v5284 = vunpack.c.h.b16 %v4512
        %v5285 = vunpack.c.l.b16 %v4513
        %v5286 = vunpack.c.l.b16 %v4514
        %v5287 = vunpack.c.h.b16 %v4514
        %v5288 = vunpack.c.l.b16 %v4515
        %v5289 = vunpack.c.h.b16 %v4515
        %v5290 = vunpack.c.l.b16 %v4516
        %v5291 = vunpack.c.h.b16 %v4516
        %v5292 = vunpack.c.l.b16 %v4517
        %v5293 = vunpack.c.h.b16 %v4517
        %v5294 = vunpack.c.l.b16 %v4518
        %v5295 = vunpack.c.l.b16 %v4519
        %v5296 = vunpack.c.h.b16 %v4519
        %v5297 = vunpack.c.l.b16 %v4520
        %v5298 = vunpack.c.h.b16 %v4520
        %v5299 = vunpack.c.l.b16 %v4521
        %v5300 = vunpack.c.h.b16 %v4521
        %v5301 = vunpack.c.l.b16 %v4522
        %v5302 = vunpack.c.h.b16 %v4522
        %v5303 = vunpack.c.l.b16 %v4523
        %v5304 = vunpack.c.l.b16 %v4524
        %v5305 = vunpack.c.h.b16 %v4524
        %v5306 = vunpack.c.l.b16 %v4525
        %v5307 = vunpack.c.h.b16 %v4525
        %v5308 = vunpack.c.l.b16 %v4526
        %v5309 = vunpack.c.h.b16 %v4526
        %v5310 = vunpack.c.l.b16 %v4527
        %v5311 = vunpack.c.h.b16 %v4527
        %v5312 = vunpack.c.l.b16 %v4528
        %v5313 = vpack.c.b16 %v5034, %v5025
        %v5314 = vpack.c.b16 %v5035, %v5026
        %v5315 = vpack.c.b16 %v5036, %v5027
        %v5316 = vpack.c.b16 %v5037, %v5028
        %v5317 = vpack.c.b16 %v5038, %v5029
        %v5318 = vpack.c.b16 %v5039, %v5030
        %v5319 = vpack.c.b16 %v5040, %v5031
        %v5320 = vpack.c.b16 %v5041, %v5032
        %v5321 = vpack.c.b16 %v5042, %v5033
        %v5322 = vpack.c.b16 %v5052, %v5043
        %v5323 = vpack.c.b16 %v5053, %v5044
        %v5324 = vpack.c.b16 %v5054, %v5045
        %v5325 = vpack.c.b16 %v5055, %v5046
        %v5326 = vpack.c.b16 %v5056, %v5047
        %v5327 = vpack.c.b16 %v5057, %v5048
        %v5328 = vpack.c.b16 %v5058, %v5049
        %v5329 = vpack.c.b16 %v5059, %v5050
        %v5330 = vpack.c.b16 %v5060, %v5051
        %v5331 = vpack.c.b16 %v5070, %v5061
        %v5332 = vpack.c.b16 %v5071, %v5062
        %v5333 = vpack.c.b16 %v5072, %v5063
        %v5334 = vpack.c.b16 %v5073, %v5064
        %v5335 = vpack.c.b16 %v5074, %v5065
        %v5336 = vpack.c.b16 %v5075, %v5066
        %v5337 = vpack.c.b16 %v5076, %v5067
        %v5338 = vpack.c.b16 %v5077, %v5068
        %v5339 = vpack.c.b16 %v5078, %v5069
        %v5340 = vpack.c.b16 %v5088, %v5079
        %v5341 = vpack.c.b16 %v5089, %v5080
        %v5342 = vpack.c.b16 %v5090, %v5081
        %v5343 = vpack.c.b16 %v5091, %v5082
        %v5344 = vpack.c.b16 %v5092, %v5083
        %v5345 = vpack.c.b16 %v5093, %v5084
        %v5346 = vpack.c.b16 %v5094, %v5085
        %v5347 = vpack.c.b16 %v5095, %v5086
        %v5348 = vpack.c.b16 %v5096, %v5087
        %v5349 = vpack.c.b16 %v5106, %v5097
        %v5350 = vpack.c.b16 %v5107, %v5098
        %v5351 = vpack.c.b16 %v5108, %v5099
        %v5352 = vpack.c.b16 %v5109, %v5100
        %v5353 = vpack.c.b16 %v5110, %v5101
        %v5354 = vpack.c.b16 %v5111, %v5102
        %v5355 = vpack.c.b16 %v5112, %v5103
        %v5356 = vpack.c.b16 %v5113, %v5104
        %v5357 = vpack.c.b16 %v5114, %v5105
        %v5358 = vpack.c.b16 %v5124, %v5115
        %v5359 = vpack.c.b16 %v5125, %v5116
        %v5360 = vpack.c.b16 %v5126, %v5117
        %v5361 = vpack.c.b16 %v5127, %v5118
        %v5362 = vpack.c.b16 %v5128, %v5119
        %v5363 = vpack.c.b16 %v5129, %v5120
        %v5364 = vpack.c.b16 %v5130, %v5121
        %v5365 = vpack.c.b16 %v5131, %v5122
        %v5366 = vpack.c.b16 %v5132, %v5123
        %v5367 = vpack.c.b16 %v5142, %v5133
        %v5368 = vpack.c.b16 %v5143, %v5134
        %v5369 = vpack.c.b16 %v5144, %v5135
        %v5370 = vpack.c.b16 %v5145, %v5136
        %v5371 = vpack.c.b16 %v5146, %v5137
        %v5372 = vpack.c.b16 %v5147, %v5138
        %v5373 = vpack.c.b16 %v5148, %v5139
        %v5374 = vpack.c.b16 %v5149, %v5140
        %v5375 = vpack.c.b16 %v5150, %v5141
        %v5376 = vpack.c.b16 %v5160, %v5151
        %v5377 = vpack.c.b16 %v5161, %v5152
        %v5378 = vpack.c.b16 %v5162, %v5153
        %v5379 = vpack.c.b16 %v5163, %v5154
        %v5380 = vpack.c.b16 %v5164, %v5155
        %v5381 = vpack.c.b16 %v5165, %v5156
        %v5382 = vpack.c.b16 %v5166, %v5157
        %v5383 = vpack.c.b16 %v5167, %v5158
        %v5384 = vpack.c.b16 %v5168, %v5159
        %v5385 = vpack.c.b16 %v5178, %v5169
        %v5386 = vpack.c.b16 %v5179, %v5170
        %v5387 = vpack.c.b16 %v5180, %v5171
        %v5388 = vpack.c.b16 %v5181, %v5172
        %v5389 = vpack.c.b16 %v5182, %v5173
        %v5390 = vpack.c.b16 %v5183, %v5174
        %v5391 = vpack.c.b16 %v5184, %v5175
        %v5392 = vpack.c.b16 %v5185, %v5176
        %v5393 = vpack.c.b16 %v5186, %v5177
        %v5394 = vpack.c.b16 %v5196, %v5187
        %v5395 = vpack.c.b16 %v5197, %v5188
        %v5396 = vpack.c.b16 %v5198, %v5189
        %v5397 = vpack.c.b16 %v5199, %v5190
        %v5398 = vpack.c.b16 %v5200, %v5191
        %v5399 = vpack.c.b16 %v5201, %v5192
        %v5400 = vpack.c.b16 %v5202, %v5193
        %v5401 = vpack.c.b16 %v5203, %v5194
        %v5402 = vpack.c.b16 %v5204, %v5195
        %v5403 = vpack.c.b16 %v5214, %v5205
        %v5404 = vpack.c.b16 %v5215, %v5206
        %v5405 = vpack.c.b16 %v5216, %v5207
        %v5406 = vpack.c.b16 %v5217, %v5208
        %v5407 = vpack.c.b16 %v5218, %v5209
        %v5408 = vpack.c.b16 %v5219, %v5210
        %v5409 = vpack.c.b16 %v5220, %v5211
        %v5410 = vpack.c.b16 %v5221, %v5212
        %v5411 = vpack.c.b16 %v5222, %v5213
        %v5412 = vpack.c.b16 %v5232, %v5223
        %v5413 = vpack.c.b16 %v5233, %v5224
        %v5414 = vpack.c.b16 %v5234, %v5225
        %v5415 = vpack.c.b16 %v5235, %v5226
        %v5416 = vpack.c.b16 %v5236, %v5227
        %v5417 = vpack.c.b16 %v5237, %v5228
        %v5418 = vpack.c.b16 %v5238, %v5229
        %v5419 = vpack.c.b16 %v5239, %v5230
        %v5420 = vpack.c.b16 %v5240, %v5231
        %v5421 = vpack.c.b16 %v5250, %v5241
        %v5422 = vpack.c.b16 %v5251, %v5242
        %v5423 = vpack.c.b16 %v5252, %v5243
        %v5424 = vpack.c.b16 %v5253, %v5244
        %v5425 = vpack.c.b16 %v5254, %v5245
        %v5426 = vpack.c.b16 %v5255, %v5246
        %v5427 = vpack.c.b16 %v5256, %v5247
        %v5428 = vpack.c.b16 %v5257, %v5248
        %v5429 = vpack.c.b16 %v5258, %v5249
        %v5430 = vpack.c.b16 %v5268, %v5259
        %v5431 = vpack.c.b16 %v5269, %v5260
        %v5432 = vpack.c.b16 %v5270, %v5261
        %v5433 = vpack.c.b16 %v5271, %v5262
        %v5434 = vpack.c.b16 %v5272, %v5263
        %v5435 = vpack.c.b16 %v5273, %v5264
        %v5436 = vpack.c.b16 %v5274, %v5265
        %v5437 = vpack.c.b16 %v5275, %v5266
        %v5438 = vpack.c.b16 %v5276, %v5267
        %v5439 = vpack.c.b16 %v5286, %v5277
        %v5440 = vpack.c.b16 %v5287, %v5278
        %v5441 = vpack.c.b16 %v5288, %v5279
        %v5442 = vpack.c.b16 %v5289, %v5280
        %v5443 = vpack.c.b16 %v5290, %v5281
        %v5444 = vpack.c.b16 %v5291, %v5282
        %v5445 = vpack.c.b16 %v5292, %v5283
        %v5446 = vpack.c.b16 %v5293, %v5284
        %v5447 = vpack.c.b16 %v5294, %v5285
        %v5448 = vpack.c.b16 %v5304, %v5295
        %v5449 = vpack.c.b16 %v5305, %v5296
        %v5450 = vpack.c.b16 %v5306, %v5297
        %v5451 = vpack.c.b16 %v5307, %v5298
        %v5452 = vpack.c.b16 %v5308, %v5299
        %v5453 = vpack.c.b16 %v5309, %v5300
        %v5454 = vpack.c.b16 %v5310, %v5301
        %v5455 = vpack.c.b16 %v5311, %v5302
        %v5456 = vpack.c.b16 %v5312, %v5303
        %5601 = vmatprep.subr.bf16.mxu0 %v4530
        %5602 = vmatpush1.bf16.msra.mxu0 %v4529
        %5603 = vmatprep.subr.bf16.mxu0 %v4532
        %5604 = vmatpush1.bf16.msra.mxu0 %v4531
        %5605 = vmatprep.subr.bf16.mxu0 %v4534
        %5606 = vmatpush1.bf16.msra.mxu0 %v4533
        %5607 = vmatprep.subr.bf16.mxu0 %v4536
        %5608 = vmatpush1.bf16.msra.mxu0 %v4535
        %5609 = vmatprep.subr.bf16.mxu0 %v4538
        %5610 = vmatpush1.bf16.msra.mxu0 %v4537
        %5611 = vmatprep.subr.bf16.mxu0 %v4540
        %5612 = vmatpush1.bf16.msra.mxu0 %v4539
        %5613 = vmatprep.subr.bf16.mxu0 %v4542
        %5614 = vmatpush1.bf16.msra.mxu0 %v4541
        %5615 = vmatprep.subr.bf16.mxu0 %v4544
        %5616 = vmatpush1.bf16.msra.mxu0 %v4543
        %5617 = vmatprep.subr.bf16.mxu0 %v4546
        %5618 = vmatpush1.bf16.msra.mxu0 %v4545
        %5619 = vmatprep.subr.bf16.mxu0 %v4548
        %5620 = vmatpush1.bf16.msra.mxu0 %v4547
        %5621 = vmatprep.subr.bf16.mxu0 %v4550
        %5622 = vmatpush1.bf16.msra.mxu0 %v4549
        %5623 = vmatprep.subr.bf16.mxu0 %v4552
        %5624 = vmatpush1.bf16.msra.mxu0 %v4551
        %5625 = vmatprep.subr.bf16.mxu0 %v4554
        %5626 = vmatpush1.bf16.msra.mxu0 %v4553
        %5627 = vmatprep.subr.bf16.mxu0 %v4556
        %5628 = vmatpush1.bf16.msra.mxu0 %v4555
        %5629 = vmatprep.subr.bf16.mxu0 %v4558
        %5630 = vmatpush1.bf16.msra.mxu0 %v4557
        %5631 = vmatprep.subr.bf16.mxu0 %v4560
        %5632 = vmatpush1.bf16.msra.mxu0 %v4559
        %5633 = vmatprep.mubr.bf16.mxu0 %v5314
        %5634 = vmatmul.mubr.bf16.gmra.mrb[0].mxu0 %v5313
        %v5635 = vpop.f32.mrb[0].mxu0
        %v5636 = vadd.f32 %v4708, %v5635
        %v5637 = vpop.f32.mrb[0].mxu0
        %v5638 = vadd.f32 %v4708, %v5637
        %v5639 = vpop.f32.mrb[0].mxu0
        %v5640 = vadd.f32 %v4713, %v5639
        %v5641 = vpop.f32.mrb[0].mxu0
        %v5642 = vadd.f32 %v4713, %v5641
        %5643 = vmatprep.mubr.bf16.mxu0 %v5323
        %5644 = vmatmul.mubr.bf16.gmra.mrb[0].mxu0 %v5322
        %v5645 = vpop.f32.mrb[0].mxu0
        %v5646 = vadd.f32 %v4718, %v5645
        %v5647 = vpop.f32.mrb[0].mxu0
        %v5648 = vadd.f32 %v4718, %v5647
        %v5649 = vpop.f32.mrb[0].mxu0
        %v5650 = vadd.f32 %v4723, %v5649
        %v5651 = vpop.f32.mrb[0].mxu0
        %v5652 = vadd.f32 %v4723, %v5651
        %5653 = vmatprep.mubr.bf16.mxu0 %v5332
        %5654 = vmatmul.mubr.bf16.gmra.mrb[0].mxu0 %v5331
        %v5655 = vpop.f32.mrb[0].mxu0
        %v5656 = vadd.f32 %v4728, %v5655
        %v5657 = vpop.f32.mrb[0].mxu0
        %v5658 = vadd.f32 %v4728, %v5657
        %v5659 = vpop.f32.mrb[0].mxu0
        %v5660 = vadd.f32 %v4733, %v5659
        %v5661 = vpop.f32.mrb[0].mxu0
        %v5662 = vadd.f32 %v4733, %v5661
        %5663 = vmatprep.mubr.bf16.mxu0 %v5341
        %5664 = vmatmul.mubr.bf16.gmra.mrb[0].mxu0 %v5340
        %v5665 = vpop.f32.mrb[0].mxu0
        %v5666 = vadd.f32 %v4738, %v5665
        %v5667 = vpop.f32.mrb[0].mxu0
        %v5668 = vadd.f32 %v4738, %v5667
        %v5669 = vpop.f32.mrb[0].mxu0
        %v5670 = vadd.f32 %v4743, %v5669
        %v5671 = vpop.f32.mrb[0].mxu0
        %v5672 = vadd.f32 %v4743, %v5671
        %5673 = vmatprep.mubr.bf16.mxu0 %v5350
        %5674 = vmatmul.mubr.bf16.gmra.mrb[0].mxu0 %v5349
        %v5675 = vpop.f32.mrb[0].mxu0
        %v5676 = vadd.f32 %v4748, %v5675
        %v5677 = vpop.f32.mrb[0].mxu0
        %v5678 = vadd.f32 %v4748, %v5677
        %v5679 = vpop.f32.mrb[0].mxu0
        %v5680 = vadd.f32 %v4753, %v5679
        %v5681 = vpop.f32.mrb[0].mxu0
        %v5682 = vadd.f32 %v4753, %v5681
        %5683 = vmatprep.mubr.bf16.mxu0 %v5359
        %5684 = vmatmul.mubr.bf16.gmra.mrb[0].mxu0 %v5358
        %v5685 = vpop.f32.mrb[0].mxu0
        %v5686 = vadd.f32 %v4758, %v5685
        %v5687 = vpop.f32.mrb[0].mxu0
        %v5688 = vadd.f32 %v4758, %v5687
        %v5689 = vpop.f32.mrb[0].mxu0
        %v5690 = vadd.f32 %v4763, %v5689
        %v5691 = vpop.f32.mrb[0].mxu0
        %v5692 = vadd.f32 %v4763, %v5691
        %5693 = vmatprep.mubr.bf16.mxu0 %v5368
        %5694 = vmatmul.mubr.bf16.gmra.mrb[0].mxu0 %v5367
        %v5695 = vpop.f32.mrb[0].mxu0
        %v5696 = vadd.f32 %v4768, %v5695
        %v5697 = vpop.f32.mrb[0].mxu0
        %v5698 = vadd.f32 %v4768, %v5697
        %v5699 = vpop.f32.mrb[0].mxu0
        %v5700 = vadd.f32 %v4773, %v5699
        %v5701 = vpop.f32.mrb[0].mxu0
        %v5702 = vadd.f32 %v4773, %v5701
        %5703 = vmatprep.mubr.bf16.mxu0 %v5377
        %5704 = vmatmul.mubr.bf16.gmra.mrb[0].mxu0 %v5376
        %v5705 = vpop.f32.mrb[0].mxu0
        %v5706 = vadd.f32 %v4778, %v5705
        %v5707 = vpop.f32.mrb[0].mxu0
        %v5708 = vadd.f32 %v4778, %v5707
        %v5709 = vpop.f32.mrb[0].mxu0
        %v5710 = vadd.f32 %v4783, %v5709
        %v5711 = vpop.f32.mrb[0].mxu0
        %v5712 = vadd.f32 %v4783, %v5711
        %5713 = vmatprep.mubr.bf16.mxu0 %v5386
        %5714 = vmatmul.mubr.bf16.gmra.mrb[0].mxu0 %v5385
        %v5715 = vpop.f32.mrb[0].mxu0
        %v5716 = vadd.f32 %v4788, %v5715
        %v5717 = vpop.f32.mrb[0].mxu0
        %v5718 = vadd.f32 %v4788, %v5717
        %v5719 = vpop.f32.mrb[0].mxu0
        %v5720 = vadd.f32 %v4793, %v5719
        %v5721 = vpop.f32.mrb[0].mxu0
        %v5722 = vadd.f32 %v4793, %v5721
        %5723 = vmatprep.mubr.bf16.mxu0 %v5395
        %5724 = vmatmul.mubr.bf16.gmra.mrb[0].mxu0 %v5394
        %v5725 = vpop.f32.mrb[0].mxu0
        %v5726 = vadd.f32 %v4798, %v5725
        %v5727 = vpop.f32.mrb[0].mxu0
        %v5728 = vadd.f32 %v4798, %v5727
        %v5729 = vpop.f32.mrb[0].mxu0
        %v5730 = vadd.f32 %v4803, %v5729
        %v5731 = vpop.f32.mrb[0].mxu0
        %v5732 = vadd.f32 %v4803, %v5731
        %5733 = vmatprep.mubr.bf16.mxu0 %v5404
        %5734 = vmatmul.mubr.bf16.gmra.mrb[0].mxu0 %v5403
        %v5735 = vpop.f32.mrb[0].mxu0
        %v5736 = vadd.f32 %v4808, %v5735
        %v5737 = vpop.f32.mrb[0].mxu0
        %v5738 = vadd.f32 %v4808, %v5737
        %v5739 = vpop.f32.mrb[0].mxu0
        %v5740 = vadd.f32 %v4813, %v5739
        %v5741 = vpop.f32.mrb[0].mxu0
        %v5742 = vadd.f32 %v4813, %v5741
        %5743 = vmatprep.mubr.bf16.mxu0 %v5413
        %5744 = vmatmul.mubr.bf16.gmra.mrb[0].mxu0 %v5412
        %v5745 = vpop.f32.mrb[0].mxu0
        %v5746 = vadd.f32 %v4818, %v5745
        %v5747 = vpop.f32.mrb[0].mxu0
        %v5748 = vadd.f32 %v4818, %v5747
        %v5749 = vpop.f32.mrb[0].mxu0
        %v5750 = vadd.f32 %v4823, %v5749
        %v5751 = vpop.f32.mrb[0].mxu0
        %v5752 = vadd.f32 %v4823, %v5751
        %5753 = vmatprep.mubr.bf16.mxu0 %v5422
        %5754 = vmatmul.mubr.bf16.gmra.mrb[0].mxu0 %v5421
        %v5755 = vpop.f32.mrb[0].mxu0
        %v5756 = vadd.f32 %v4828, %v5755
        %v5757 = vpop.f32.mrb[0].mxu0
        %v5758 = vadd.f32 %v4828, %v5757
        %v5759 = vpop.f32.mrb[0].mxu0
        %v5760 = vadd.f32 %v4833, %v5759
        %v5761 = vpop.f32.mrb[0].mxu0
        %v5762 = vadd.f32 %v4833, %v5761
        %5763 = vmatprep.mubr.bf16.mxu0 %v5431
        %5764 = vmatmul.mubr.bf16.gmra.mrb[0].mxu0 %v5430
        %v5765 = vpop.f32.mrb[0].mxu0
        %v5766 = vadd.f32 %v4838, %v5765
        %v5767 = vpop.f32.mrb[0].mxu0
        %v5768 = vadd.f32 %v4838, %v5767
        %v5769 = vpop.f32.mrb[0].mxu0
        %v5770 = vadd.f32 %v4843, %v5769
        %v5771 = vpop.f32.mrb[0].mxu0
        %v5772 = vadd.f32 %v4843, %v5771
        %5773 = vmatprep.mubr.bf16.mxu0 %v5440
        %5774 = vmatmul.mubr.bf16.gmra.mrb[0].mxu0 %v5439
        %v5775 = vpop.f32.mrb[0].mxu0
        %v5776 = vadd.f32 %v4848, %v5775
        %v5777 = vpop.f32.mrb[0].mxu0
        %v5778 = vadd.f32 %v4848, %v5777
        %v5779 = vpop.f32.mrb[0].mxu0
        %v5780 = vadd.f32 %v4853, %v5779
        %v5781 = vpop.f32.mrb[0].mxu0
        %v5782 = vadd.f32 %v4853, %v5781
        %5783 = vmatprep.mubr.bf16.mxu0 %v5449
        %5784 = vmatmul.mubr.bf16.gmra.mrb[0].mxu0 %v5448
        %v5785 = vpop.f32.mrb[0].mxu0
        %v5786 = vadd.f32 %v4858, %v5785
        %v5787 = vpop.f32.mrb[0].mxu0
        %v5788 = vadd.f32 %v4858, %v5787
        %v5789 = vpop.f32.mrb[0].mxu0
        %v5790 = vadd.f32 %v4863, %v5789
        %v5791 = vpop.f32.mrb[0].mxu0
        %v5792 = vadd.f32 %v4863, %v5791
        %5793 = vdwg.mxu0
        %5794 = vmatprep.subr.bf16.mxu0 %v4562
        %5795 = vmatpush1.bf16.msra.mxu0 %v4561
        %5796 = vmatprep.subr.bf16.mxu0 %v4564
        %5797 = vmatpush1.bf16.msra.mxu0 %v4563
        %5798 = vmatprep.subr.bf16.mxu0 %v4566
        %5799 = vmatpush1.bf16.msra.mxu0 %v4565
        %5800 = vmatprep.subr.bf16.mxu0 %v4568
        %5801 = vmatpush1.bf16.msra.mxu0 %v4567
        %5802 = vmatprep.subr.bf16.mxu0 %v4570
        %5803 = vmatpush1.bf16.msra.mxu0 %v4569
        %5804 = vmatprep.subr.bf16.mxu0 %v4572
        %5805 = vmatpush1.bf16.msra.mxu0 %v4571
        %5806 = vmatprep.subr.bf16.mxu0 %v4574
        %5807 = vmatpush1.bf16.msra.mxu0 %v4573
        %5808 = vmatprep.subr.bf16.mxu0 %v4576
        %5809 = vmatpush1.bf16.msra.mxu0 %v4575
        %5810 = vmatprep.subr.bf16.mxu0 %v4578
        %5811 = vmatpush1.bf16.msra.mxu0 %v4577
        %5812 = vmatprep.subr.bf16.mxu0 %v4580
        %5813 = vmatpush1.bf16.msra.mxu0 %v4579
        %5814 = vmatprep.subr.bf16.mxu0 %v4582
        %5815 = vmatpush1.bf16.msra.mxu0 %v4581
        %5816 = vmatprep.subr.bf16.mxu0 %v4584
        %5817 = vmatpush1.bf16.msra.mxu0 %v4583
        %5818 = vmatprep.subr.bf16.mxu0 %v4586
        %5819 = vmatpush1.bf16.msra.mxu0 %v4585
        %5820 = vmatprep.subr.bf16.mxu0 %v4588
        %5821 = vmatpush1.bf16.msra.mxu0 %v4587
        %5822 = vmatprep.subr.bf16.mxu0 %v4590
        %5823 = vmatpush1.bf16.msra.mxu0 %v4589
        %5824 = vmatprep.subr.bf16.mxu0 %v4592
        %5825 = vmatpush1.bf16.msra.mxu0 %v4591
        %5826 = vmatprep.mubr.bf16.mxu0 %v5316
        %5827 = vmatmul.mubr.bf16.gmra.mrb[0].mxu0 %v5315
        %v5828 = vpop.f32.mrb[0].mxu0
        %v5829 = vadd.f32 %v5636, %v5828
        %v5830 = vpop.f32.mrb[0].mxu0
        %v5831 = vadd.f32 %v5638, %v5830
        %v5832 = vpop.f32.mrb[0].mxu0
        %v5833 = vadd.f32 %v5640, %v5832
        %v5834 = vpop.f32.mrb[0].mxu0
        %v5835 = vadd.f32 %v5642, %v5834
        %5836 = vmatprep.mubr.bf16.mxu0 %v5325
        %5837 = vmatmul.mubr.bf16.gmra.mrb[0].mxu0 %v5324
        %v5838 = vpop.f32.mrb[0].mxu0
        %v5839 = vadd.f32 %v5646, %v5838
        %v5840 = vpop.f32.mrb[0].mxu0
        %v5841 = vadd.f32 %v5648, %v5840
        %v5842 = vpop.f32.mrb[0].mxu0
        %v5843 = vadd.f32 %v5650, %v5842
        %v5844 = vpop.f32.mrb[0].mxu0
        %v5845 = vadd.f32 %v5652, %v5844
        %5846 = vmatprep.mubr.bf16.mxu0 %v5334
        %5847 = vmatmul.mubr.bf16.gmra.mrb[0].mxu0 %v5333
        %v5848 = vpop.f32.mrb[0].mxu0
        %v5849 = vadd.f32 %v5656, %v5848
        %v5850 = vpop.f32.mrb[0].mxu0
        %v5851 = vadd.f32 %v5658, %v5850
        %v5852 = vpop.f32.mrb[0].mxu0
        %v5853 = vadd.f32 %v5660, %v5852
        %v5854 = vpop.f32.mrb[0].mxu0
        %v5855 = vadd.f32 %v5662, %v5854
        %5856 = vmatprep.mubr.bf16.mxu0 %v5343
        %5857 = vmatmul.mubr.bf16.gmra.mrb[0].mxu0 %v5342
        %v5858 = vpop.f32.mrb[0].mxu0
        %v5859 = vadd.f32 %v5666, %v5858
        %v5860 = vpop.f32.mrb[0].mxu0
        %v5861 = vadd.f32 %v5668, %v5860
        %v5862 = vpop.f32.mrb[0].mxu0
        %v5863 = vadd.f32 %v5670, %v5862
        %v5864 = vpop.f32.mrb[0].mxu0
        %v5865 = vadd.f32 %v5672, %v5864
        %5866 = vmatprep.mubr.bf16.mxu0 %v5352
        %5867 = vmatmul.mubr.bf16.gmra.mrb[0].mxu0 %v5351
        %v5868 = vpop.f32.mrb[0].mxu0
        %v5869 = vadd.f32 %v5676, %v5868
        %v5870 = vpop.f32.mrb[0].mxu0
        %v5871 = vadd.f32 %v5678, %v5870
        %v5872 = vpop.f32.mrb[0].mxu0
        %v5873 = vadd.f32 %v5680, %v5872
        %v5874 = vpop.f32.mrb[0].mxu0
        %v5875 = vadd.f32 %v5682, %v5874
        %5876 = vmatprep.mubr.bf16.mxu0 %v5361
        %5877 = vmatmul.mubr.bf16.gmra.mrb[0].mxu0 %v5360
        %v5878 = vpop.f32.mrb[0].mxu0
        %v5879 = vadd.f32 %v5686, %v5878
        %v5880 = vpop.f32.mrb[0].mxu0
        %v5881 = vadd.f32 %v5688, %v5880
        %v5882 = vpop.f32.mrb[0].mxu0
        %v5883 = vadd.f32 %v5690, %v5882
        %v5884 = vpop.f32.mrb[0].mxu0
        %v5885 = vadd.f32 %v5692, %v5884
        %5886 = vmatprep.mubr.bf16.mxu0 %v5370
        %5887 = vmatmul.mubr.bf16.gmra.mrb[0].mxu0 %v5369
        %v5888 = vpop.f32.mrb[0].mxu0
        %v5889 = vadd.f32 %v5696, %v5888
        %v5890 = vpop.f32.mrb[0].mxu0
        %v5891 = vadd.f32 %v5698, %v5890
        %v5892 = vpop.f32.mrb[0].mxu0
        %v5893 = vadd.f32 %v5700, %v5892
        %v5894 = vpop.f32.mrb[0].mxu0
        %v5895 = vadd.f32 %v5702, %v5894
        %5896 = vmatprep.mubr.bf16.mxu0 %v5379
        %5897 = vmatmul.mubr.bf16.gmra.mrb[0].mxu0 %v5378
        %v5898 = vpop.f32.mrb[0].mxu0
        %v5899 = vadd.f32 %v5706, %v5898
        %v5900 = vpop.f32.mrb[0].mxu0
        %v5901 = vadd.f32 %v5708, %v5900
        %v5902 = vpop.f32.mrb[0].mxu0
        %v5903 = vadd.f32 %v5710, %v5902
        %v5904 = vpop.f32.mrb[0].mxu0
        %v5905 = vadd.f32 %v5712, %v5904
        %5906 = vmatprep.mubr.bf16.mxu0 %v5388
        %5907 = vmatmul.mubr.bf16.gmra.mrb[0].mxu0 %v5387
        %v5908 = vpop.f32.mrb[0].mxu0
        %v5909 = vadd.f32 %v5716, %v5908
        %v5910 = vpop.f32.mrb[0].mxu0
        %v5911 = vadd.f32 %v5718, %v5910
        %v5912 = vpop.f32.mrb[0].mxu0
        %v5913 = vadd.f32 %v5720, %v5912
        %v5914 = vpop.f32.mrb[0].mxu0
        %v5915 = vadd.f32 %v5722, %v5914
        %5916 = vmatprep.mubr.bf16.mxu0 %v5397
        %5917 = vmatmul.mubr.bf16.gmra.mrb[0].mxu0 %v5396
        %v5918 = vpop.f32.mrb[0].mxu0
        %v5919 = vadd.f32 %v5726, %v5918
        %v5920 = vpop.f32.mrb[0].mxu0
        %v5921 = vadd.f32 %v5728, %v5920
        %v5922 = vpop.f32.mrb[0].mxu0
        %v5923 = vadd.f32 %v5730, %v5922
        %v5924 = vpop.f32.mrb[0].mxu0
        %v5925 = vadd.f32 %v5732, %v5924
        %5926 = vmatprep.mubr.bf16.mxu0 %v5406
        %5927 = vmatmul.mubr.bf16.gmra.mrb[0].mxu0 %v5405
        %v5928 = vpop.f32.mrb[0].mxu0
        %v5929 = vadd.f32 %v5736, %v5928
        %v5930 = vpop.f32.mrb[0].mxu0
        %v5931 = vadd.f32 %v5738, %v5930
        %v5932 = vpop.f32.mrb[0].mxu0
        %v5933 = vadd.f32 %v5740, %v5932
        %v5934 = vpop.f32.mrb[0].mxu0
        %v5935 = vadd.f32 %v5742, %v5934
        %5936 = vmatprep.mubr.bf16.mxu0 %v5415
        %5937 = vmatmul.mubr.bf16.gmra.mrb[0].mxu0 %v5414
        %v5938 = vpop.f32.mrb[0].mxu0
        %v5939 = vadd.f32 %v5746, %v5938
        %v5940 = vpop.f32.mrb[0].mxu0
        %v5941 = vadd.f32 %v5748, %v5940
        %v5942 = vpop.f32.mrb[0].mxu0
        %v5943 = vadd.f32 %v5750, %v5942
        %v5944 = vpop.f32.mrb[0].mxu0
        %v5945 = vadd.f32 %v5752, %v5944
        %5946 = vmatprep.mubr.bf16.mxu0 %v5424
        %5947 = vmatmul.mubr.bf16.gmra.mrb[0].mxu0 %v5423
        %v5948 = vpop.f32.mrb[0].mxu0
        %v5949 = vadd.f32 %v5756, %v5948
        %v5950 = vpop.f32.mrb[0].mxu0
        %v5951 = vadd.f32 %v5758, %v5950
        %v5952 = vpop.f32.mrb[0].mxu0
        %v5953 = vadd.f32 %v5760, %v5952
        %v5954 = vpop.f32.mrb[0].mxu0
        %v5955 = vadd.f32 %v5762, %v5954
        %5956 = vmatprep.mubr.bf16.mxu0 %v5433
        %5957 = vmatmul.mubr.bf16.gmra.mrb[0].mxu0 %v5432
        %v5958 = vpop.f32.mrb[0].mxu0
        %v5959 = vadd.f32 %v5766, %v5958
        %v5960 = vpop.f32.mrb[0].mxu0
        %v5961 = vadd.f32 %v5768, %v5960
        %v5962 = vpop.f32.mrb[0].mxu0
        %v5963 = vadd.f32 %v5770, %v5962
        %v5964 = vpop.f32.mrb[0].mxu0
        %v5965 = vadd.f32 %v5772, %v5964
        %5966 = vmatprep.mubr.bf16.mxu0 %v5442
        %5967 = vmatmul.mubr.bf16.gmra.mrb[0].mxu0 %v5441
        %v5968 = vpop.f32.mrb[0].mxu0
        %v5969 = vadd.f32 %v5776, %v5968
        %v5970 = vpop.f32.mrb[0].mxu0
        %v5971 = vadd.f32 %v5778, %v5970
        %v5972 = vpop.f32.mrb[0].mxu0
        %v5973 = vadd.f32 %v5780, %v5972
        %v5974 = vpop.f32.mrb[0].mxu0
        %v5975 = vadd.f32 %v5782, %v5974
        %5976 = vmatprep.mubr.bf16.mxu0 %v5451
        %5977 = vmatmul.mubr.bf16.gmra.mrb[0].mxu0 %v5450
        %v5978 = vpop.f32.mrb[0].mxu0
        %v5979 = vadd.f32 %v5786, %v5978
        %v5980 = vpop.f32.mrb[0].mxu0
        %v5981 = vadd.f32 %v5788, %v5980
        %v5982 = vpop.f32.mrb[0].mxu0
        %v5983 = vadd.f32 %v5790, %v5982
        %v5984 = vpop.f32.mrb[0].mxu0
        %v5985 = vadd.f32 %v5792, %v5984
        %5986 = vdwg.mxu0
        %5987 = vmatprep.subr.bf16.mxu0 %v4594
        %5988 = vmatpush1.bf16.msra.mxu0 %v4593
        %5989 = vmatprep.subr.bf16.mxu0 %v4596
        %5990 = vmatpush1.bf16.msra.mxu0 %v4595
        %5991 = vmatprep.subr.bf16.mxu0 %v4598
        %5992 = vmatpush1.bf16.msra.mxu0 %v4597
        %5993 = vmatprep.subr.bf16.mxu0 %v4600
        %5994 = vmatpush1.bf16.msra.mxu0 %v4599
        %5995 = vmatprep.subr.bf16.mxu0 %v4602
        %5996 = vmatpush1.bf16.msra.mxu0 %v4601
        %5997 = vmatprep.subr.bf16.mxu0 %v4604
        %5998 = vmatpush1.bf16.msra.mxu0 %v4603
        %5999 = vmatprep.subr.bf16.mxu0 %v4606
        %6000 = vmatpush1.bf16.msra.mxu0 %v4605
        %6001 = vmatprep.subr.bf16.mxu0 %v4608
        %6002 = vmatpush1.bf16.msra.mxu0 %v4607
        %6003 = vmatprep.subr.bf16.mxu0 %v4610
        %6004 = vmatpush1.bf16.msra.mxu0 %v4609
        %6005 = vmatprep.subr.bf16.mxu0 %v4612
        %6006 = vmatpush1.bf16.msra.mxu0 %v4611
        %6007 = vmatprep.subr.bf16.mxu0 %v4614
        %6008 = vmatpush1.bf16.msra.mxu0 %v4613
        %6009 = vmatprep.subr.bf16.mxu0 %v4616
        %6010 = vmatpush1.bf16.msra.mxu0 %v4615
        %6011 = vmatprep.subr.bf16.mxu0 %v4618
        %6012 = vmatpush1.bf16.msra.mxu0 %v4617
        %6013 = vmatprep.subr.bf16.mxu0 %v4620
        %6014 = vmatpush1.bf16.msra.mxu0 %v4619
        %6015 = vmatprep.subr.bf16.mxu0 %v4622
        %6016 = vmatpush1.bf16.msra.mxu0 %v4621
        %6017 = vmatprep.subr.bf16.mxu0 %v4624
        %6018 = vmatpush1.bf16.msra.mxu0 %v4623
        %6019 = vmatprep.mubr.bf16.mxu0 %v5318
        %6020 = vmatmul.mubr.bf16.gmra.mrb[0].mxu0 %v5317
        %v6021 = vpop.f32.mrb[0].mxu0
        %v6022 = vadd.f32 %v5829, %v6021
        %v6023 = vpop.f32.mrb[0].mxu0
        %v6024 = vadd.f32 %v5831, %v6023
        %v6025 = vpop.f32.mrb[0].mxu0
        %v6026 = vadd.f32 %v5833, %v6025
        %v6027 = vpop.f32.mrb[0].mxu0
        %v6028 = vadd.f32 %v5835, %v6027
        %6029 = vmatprep.mubr.bf16.mxu0 %v5327
        %6030 = vmatmul.mubr.bf16.gmra.mrb[0].mxu0 %v5326
        %v6031 = vpop.f32.mrb[0].mxu0
        %v6032 = vadd.f32 %v5839, %v6031
        %v6033 = vpop.f32.mrb[0].mxu0
        %v6034 = vadd.f32 %v5841, %v6033
        %v6035 = vpop.f32.mrb[0].mxu0
        %v6036 = vadd.f32 %v5843, %v6035
        %v6037 = vpop.f32.mrb[0].mxu0
        %v6038 = vadd.f32 %v5845, %v6037
        %6039 = vmatprep.mubr.bf16.mxu0 %v5336
        %6040 = vmatmul.mubr.bf16.gmra.mrb[0].mxu0 %v5335
        %v6041 = vpop.f32.mrb[0].mxu0
        %v6042 = vadd.f32 %v5849, %v6041
        %v6043 = vpop.f32.mrb[0].mxu0
        %v6044 = vadd.f32 %v5851, %v6043
        %v6045 = vpop.f32.mrb[0].mxu0
        %v6046 = vadd.f32 %v5853, %v6045
        %v6047 = vpop.f32.mrb[0].mxu0
        %v6048 = vadd.f32 %v5855, %v6047
        %6049 = vmatprep.mubr.bf16.mxu0 %v5345
        %6050 = vmatmul.mubr.bf16.gmra.mrb[0].mxu0 %v5344
        %v6051 = vpop.f32.mrb[0].mxu0
        %v6052 = vadd.f32 %v5859, %v6051
        %v6053 = vpop.f32.mrb[0].mxu0
        %v6054 = vadd.f32 %v5861, %v6053
        %v6055 = vpop.f32.mrb[0].mxu0
        %v6056 = vadd.f32 %v5863, %v6055
        %v6057 = vpop.f32.mrb[0].mxu0
        %v6058 = vadd.f32 %v5865, %v6057
        %6059 = vmatprep.mubr.bf16.mxu0 %v5354
        %6060 = vmatmul.mubr.bf16.gmra.mrb[0].mxu0 %v5353
        %v6061 = vpop.f32.mrb[0].mxu0
        %v6062 = vadd.f32 %v5869, %v6061
        %v6063 = vpop.f32.mrb[0].mxu0
        %v6064 = vadd.f32 %v5871, %v6063
        %v6065 = vpop.f32.mrb[0].mxu0
        %v6066 = vadd.f32 %v5873, %v6065
        %v6067 = vpop.f32.mrb[0].mxu0
        %v6068 = vadd.f32 %v5875, %v6067
        %6069 = vmatprep.mubr.bf16.mxu0 %v5363
        %6070 = vmatmul.mubr.bf16.gmra.mrb[0].mxu0 %v5362
        %v6071 = vpop.f32.mrb[0].mxu0
        %v6072 = vadd.f32 %v5879, %v6071
        %v6073 = vpop.f32.mrb[0].mxu0
        %v6074 = vadd.f32 %v5881, %v6073
        %v6075 = vpop.f32.mrb[0].mxu0
        %v6076 = vadd.f32 %v5883, %v6075
        %v6077 = vpop.f32.mrb[0].mxu0
        %v6078 = vadd.f32 %v5885, %v6077
        %6079 = vmatprep.mubr.bf16.mxu0 %v5372
        %6080 = vmatmul.mubr.bf16.gmra.mrb[0].mxu0 %v5371
        %v6081 = vpop.f32.mrb[0].mxu0
        %v6082 = vadd.f32 %v5889, %v6081
        %v6083 = vpop.f32.mrb[0].mxu0
        %v6084 = vadd.f32 %v5891, %v6083
        %v6085 = vpop.f32.mrb[0].mxu0
        %v6086 = vadd.f32 %v5893, %v6085
        %v6087 = vpop.f32.mrb[0].mxu0
        %v6088 = vadd.f32 %v5895, %v6087
        %6089 = vmatprep.mubr.bf16.mxu0 %v5381
        %6090 = vmatmul.mubr.bf16.gmra.mrb[0].mxu0 %v5380
        %v6091 = vpop.f32.mrb[0].mxu0
        %v6092 = vadd.f32 %v5899, %v6091
        %v6093 = vpop.f32.mrb[0].mxu0
        %v6094 = vadd.f32 %v5901, %v6093
        %v6095 = vpop.f32.mrb[0].mxu0
        %v6096 = vadd.f32 %v5903, %v6095
        %v6097 = vpop.f32.mrb[0].mxu0
        %v6098 = vadd.f32 %v5905, %v6097
        %6099 = vmatprep.mubr.bf16.mxu0 %v5390
        %6100 = vmatmul.mubr.bf16.gmra.mrb[0].mxu0 %v5389
        %v6101 = vpop.f32.mrb[0].mxu0
        %v6102 = vadd.f32 %v5909, %v6101
        %v6103 = vpop.f32.mrb[0].mxu0
        %v6104 = vadd.f32 %v5911, %v6103
        %v6105 = vpop.f32.mrb[0].mxu0
        %v6106 = vadd.f32 %v5913, %v6105
        %v6107 = vpop.f32.mrb[0].mxu0
        %v6108 = vadd.f32 %v5915, %v6107
        %6109 = vmatprep.mubr.bf16.mxu0 %v5399
        %6110 = vmatmul.mubr.bf16.gmra.mrb[0].mxu0 %v5398
        %v6111 = vpop.f32.mrb[0].mxu0
        %v6112 = vadd.f32 %v5919, %v6111
        %v6113 = vpop.f32.mrb[0].mxu0
        %v6114 = vadd.f32 %v5921, %v6113
        %v6115 = vpop.f32.mrb[0].mxu0
        %v6116 = vadd.f32 %v5923, %v6115
        %v6117 = vpop.f32.mrb[0].mxu0
        %v6118 = vadd.f32 %v5925, %v6117
        %6119 = vmatprep.mubr.bf16.mxu0 %v5408
        %6120 = vmatmul.mubr.bf16.gmra.mrb[0].mxu0 %v5407
        %v6121 = vpop.f32.mrb[0].mxu0
        %v6122 = vadd.f32 %v5929, %v6121
        %v6123 = vpop.f32.mrb[0].mxu0
        %v6124 = vadd.f32 %v5931, %v6123
        %v6125 = vpop.f32.mrb[0].mxu0
        %v6126 = vadd.f32 %v5933, %v6125
        %v6127 = vpop.f32.mrb[0].mxu0
        %v6128 = vadd.f32 %v5935, %v6127
        %6129 = vmatprep.mubr.bf16.mxu0 %v5417
        %6130 = vmatmul.mubr.bf16.gmra.mrb[0].mxu0 %v5416
        %v6131 = vpop.f32.mrb[0].mxu0
        %v6132 = vadd.f32 %v5939, %v6131
        %v6133 = vpop.f32.mrb[0].mxu0
        %v6134 = vadd.f32 %v5941, %v6133
        %v6135 = vpop.f32.mrb[0].mxu0
        %v6136 = vadd.f32 %v5943, %v6135
        %v6137 = vpop.f32.mrb[0].mxu0
        %v6138 = vadd.f32 %v5945, %v6137
        %6139 = vmatprep.mubr.bf16.mxu0 %v5426
        %6140 = vmatmul.mubr.bf16.gmra.mrb[0].mxu0 %v5425
        %v6141 = vpop.f32.mrb[0].mxu0
        %v6142 = vadd.f32 %v5949, %v6141
        %v6143 = vpop.f32.mrb[0].mxu0
        %v6144 = vadd.f32 %v5951, %v6143
        %v6145 = vpop.f32.mrb[0].mxu0
        %v6146 = vadd.f32 %v5953, %v6145
        %v6147 = vpop.f32.mrb[0].mxu0
        %v6148 = vadd.f32 %v5955, %v6147
        %6149 = vmatprep.mubr.bf16.mxu0 %v5435
        %6150 = vmatmul.mubr.bf16.gmra.mrb[0].mxu0 %v5434
        %v6151 = vpop.f32.mrb[0].mxu0
        %v6152 = vadd.f32 %v5959, %v6151
        %v6153 = vpop.f32.mrb[0].mxu0
        %v6154 = vadd.f32 %v5961, %v6153
        %v6155 = vpop.f32.mrb[0].mxu0
        %v6156 = vadd.f32 %v5963, %v6155
        %v6157 = vpop.f32.mrb[0].mxu0
        %v6158 = vadd.f32 %v5965, %v6157
        %6159 = vmatprep.mubr.bf16.mxu0 %v5444
        %6160 = vmatmul.mubr.bf16.gmra.mrb[0].mxu0 %v5443
        %v6161 = vpop.f32.mrb[0].mxu0
        %v6162 = vadd.f32 %v5969, %v6161
        %v6163 = vpop.f32.mrb[0].mxu0
        %v6164 = vadd.f32 %v5971, %v6163
        %v6165 = vpop.f32.mrb[0].mxu0
        %v6166 = vadd.f32 %v5973, %v6165
        %v6167 = vpop.f32.mrb[0].mxu0
        %v6168 = vadd.f32 %v5975, %v6167
        %6169 = vmatprep.mubr.bf16.mxu0 %v5453
        %6170 = vmatmul.mubr.bf16.gmra.mrb[0].mxu0 %v5452
        %v6171 = vpop.f32.mrb[0].mxu0
        %v6172 = vadd.f32 %v5979, %v6171
        %v6173 = vpop.f32.mrb[0].mxu0
        %v6174 = vadd.f32 %v5981, %v6173
        %v6175 = vpop.f32.mrb[0].mxu0
        %v6176 = vadd.f32 %v5983, %v6175
        %v6177 = vpop.f32.mrb[0].mxu0
        %v6178 = vadd.f32 %v5985, %v6177
        %6179 = vdwg.mxu0
        %6180 = vmatprep.subr.bf16.mxu0 %v4626
        %6181 = vmatpush1.bf16.msra.mxu0 %v4625
        %6182 = vmatprep.subr.bf16.mxu0 %v4628
        %6183 = vmatpush1.bf16.msra.mxu0 %v4627
        %6184 = vmatprep.subr.bf16.mxu0 %v4630
        %6185 = vmatpush1.bf16.msra.mxu0 %v4629
        %6186 = vmatprep.subr.bf16.mxu0 %v4632
        %6187 = vmatpush1.bf16.msra.mxu0 %v4631
        %6188 = vmatprep.subr.bf16.mxu0 %v4634
        %6189 = vmatpush1.bf16.msra.mxu0 %v4633
        %6190 = vmatprep.subr.bf16.mxu0 %v4636
        %6191 = vmatpush1.bf16.msra.mxu0 %v4635
        %6192 = vmatprep.subr.bf16.mxu0 %v4638
        %6193 = vmatpush1.bf16.msra.mxu0 %v4637
        %6194 = vmatprep.subr.bf16.mxu0 %v4640
        %6195 = vmatpush1.bf16.msra.mxu0 %v4639
        %6196 = vmatprep.subr.bf16.mxu0 %v4642
        %6197 = vmatpush1.bf16.msra.mxu0 %v4641
        %6198 = vmatprep.subr.bf16.mxu0 %v4644
        %6199 = vmatpush1.bf16.msra.mxu0 %v4643
        %6200 = vmatprep.subr.bf16.mxu0 %v4646
        %6201 = vmatpush1.bf16.msra.mxu0 %v4645
        %6202 = vmatprep.subr.bf16.mxu0 %v4648
        %6203 = vmatpush1.bf16.msra.mxu0 %v4647
        %6204 = vmatprep.subr.bf16.mxu0 %v4650
        %6205 = vmatpush1.bf16.msra.mxu0 %v4649
        %6206 = vmatprep.subr.bf16.mxu0 %v4652
        %6207 = vmatpush1.bf16.msra.mxu0 %v4651
        %6208 = vmatprep.subr.bf16.mxu0 %v4654
        %6209 = vmatpush1.bf16.msra.mxu0 %v4653
        %6210 = vmatprep.subr.bf16.mxu0 %v4656
        %6211 = vmatpush1.bf16.msra.mxu0 %v4655
        %6212 = vmatprep.mubr.bf16.mxu0 %v5320
        %6213 = vmatmul.mubr.bf16.gmra.mrb[0].mxu0 %v5319
        %v6214 = vpop.f32.mrb[0].mxu0
        %v6215 = vadd.f32 %v6022, %v6214
        %v6216 = vpop.f32.mrb[0].mxu0
        %v6217 = vadd.f32 %v6024, %v6216
        %v6218 = vpop.f32.mrb[0].mxu0
        %v6219 = vadd.f32 %v6026, %v6218
        %v6220 = vpop.f32.mrb[0].mxu0
        %v6221 = vadd.f32 %v6028, %v6220
        %6222 = vmatprep.mubr.bf16.mxu0 %v5329
        %6223 = vmatmul.mubr.bf16.gmra.mrb[0].mxu0 %v5328
        %v6224 = vpop.f32.mrb[0].mxu0
        %v6225 = vadd.f32 %v6032, %v6224
        %v6226 = vpop.f32.mrb[0].mxu0
        %v6227 = vadd.f32 %v6034, %v6226
        %v6228 = vpop.f32.mrb[0].mxu0
        %v6229 = vadd.f32 %v6036, %v6228
        %v6230 = vpop.f32.mrb[0].mxu0
        %v6231 = vadd.f32 %v6038, %v6230
        %6232 = vmatprep.mubr.bf16.mxu0 %v5338
        %6233 = vmatmul.mubr.bf16.gmra.mrb[0].mxu0 %v5337
        %v6234 = vpop.f32.mrb[0].mxu0
        %v6235 = vadd.f32 %v6042, %v6234
        %v6236 = vpop.f32.mrb[0].mxu0
        %v6237 = vadd.f32 %v6044, %v6236
        %v6238 = vpop.f32.mrb[0].mxu0
        %v6239 = vadd.f32 %v6046, %v6238
        %v6240 = vpop.f32.mrb[0].mxu0
        %v6241 = vadd.f32 %v6048, %v6240
        %6242 = vmatprep.mubr.bf16.mxu0 %v5347
        %6243 = vmatmul.mubr.bf16.gmra.mrb[0].mxu0 %v5346
        %v6244 = vpop.f32.mrb[0].mxu0
        %v6245 = vadd.f32 %v6052, %v6244
        %v6246 = vpop.f32.mrb[0].mxu0
        %v6247 = vadd.f32 %v6054, %v6246
        %v6248 = vpop.f32.mrb[0].mxu0
        %v6249 = vadd.f32 %v6056, %v6248
        %v6250 = vpop.f32.mrb[0].mxu0
        %v6251 = vadd.f32 %v6058, %v6250
        %6252 = vmatprep.mubr.bf16.mxu0 %v5356
        %6253 = vmatmul.mubr.bf16.gmra.mrb[0].mxu0 %v5355
        %v6254 = vpop.f32.mrb[0].mxu0
        %v6255 = vadd.f32 %v6062, %v6254
        %v6256 = vpop.f32.mrb[0].mxu0
        %v6257 = vadd.f32 %v6064, %v6256
        %v6258 = vpop.f32.mrb[0].mxu0
        %v6259 = vadd.f32 %v6066, %v6258
        %v6260 = vpop.f32.mrb[0].mxu0
        %v6261 = vadd.f32 %v6068, %v6260
        %6262 = vmatprep.mubr.bf16.mxu0 %v5365
        %6263 = vmatmul.mubr.bf16.gmra.mrb[0].mxu0 %v5364
        %v6264 = vpop.f32.mrb[0].mxu0
        %v6265 = vadd.f32 %v6072, %v6264
        %v6266 = vpop.f32.mrb[0].mxu0
        %v6267 = vadd.f32 %v6074, %v6266
        %v6268 = vpop.f32.mrb[0].mxu0
        %v6269 = vadd.f32 %v6076, %v6268
        %v6270 = vpop.f32.mrb[0].mxu0
        %v6271 = vadd.f32 %v6078, %v6270
        %6272 = vmatprep.mubr.bf16.mxu0 %v5374
        %6273 = vmatmul.mubr.bf16.gmra.mrb[0].mxu0 %v5373
        %v6274 = vpop.f32.mrb[0].mxu0
        %v6275 = vadd.f32 %v6082, %v6274
        %v6276 = vpop.f32.mrb[0].mxu0
        %v6277 = vadd.f32 %v6084, %v6276
        %v6278 = vpop.f32.mrb[0].mxu0
        %v6279 = vadd.f32 %v6086, %v6278
        %v6280 = vpop.f32.mrb[0].mxu0
        %v6281 = vadd.f32 %v6088, %v6280
        %6282 = vmatprep.mubr.bf16.mxu0 %v5383
        %6283 = vmatmul.mubr.bf16.gmra.mrb[0].mxu0 %v5382
        %v6284 = vpop.f32.mrb[0].mxu0
        %v6285 = vadd.f32 %v6092, %v6284
        %v6286 = vpop.f32.mrb[0].mxu0
        %v6287 = vadd.f32 %v6094, %v6286
        %v6288 = vpop.f32.mrb[0].mxu0
        %v6289 = vadd.f32 %v6096, %v6288
        %v6290 = vpop.f32.mrb[0].mxu0
        %v6291 = vadd.f32 %v6098, %v6290
        %6292 = vmatprep.mubr.bf16.mxu0 %v5392
        %6293 = vmatmul.mubr.bf16.gmra.mrb[0].mxu0 %v5391
        %v6294 = vpop.f32.mrb[0].mxu0
        %v6295 = vadd.f32 %v6102, %v6294
        %v6296 = vpop.f32.mrb[0].mxu0
        %v6297 = vadd.f32 %v6104, %v6296
        %v6298 = vpop.f32.mrb[0].mxu0
        %v6299 = vadd.f32 %v6106, %v6298
        %v6300 = vpop.f32.mrb[0].mxu0
        %v6301 = vadd.f32 %v6108, %v6300
        %6302 = vmatprep.mubr.bf16.mxu0 %v5401
        %6303 = vmatmul.mubr.bf16.gmra.mrb[0].mxu0 %v5400
        %v6304 = vpop.f32.mrb[0].mxu0
        %v6305 = vadd.f32 %v6112, %v6304
        %v6306 = vpop.f32.mrb[0].mxu0
        %v6307 = vadd.f32 %v6114, %v6306
        %v6308 = vpop.f32.mrb[0].mxu0
        %v6309 = vadd.f32 %v6116, %v6308
        %v6310 = vpop.f32.mrb[0].mxu0
        %v6311 = vadd.f32 %v6118, %v6310
        %6312 = vmatprep.mubr.bf16.mxu0 %v5410
        %6313 = vmatmul.mubr.bf16.gmra.mrb[0].mxu0 %v5409
        %v6314 = vpop.f32.mrb[0].mxu0
        %v6315 = vadd.f32 %v6122, %v6314
        %v6316 = vpop.f32.mrb[0].mxu0
        %v6317 = vadd.f32 %v6124, %v6316
        %v6318 = vpop.f32.mrb[0].mxu0
        %v6319 = vadd.f32 %v6126, %v6318
        %v6320 = vpop.f32.mrb[0].mxu0
        %v6321 = vadd.f32 %v6128, %v6320
        %6322 = vmatprep.mubr.bf16.mxu0 %v5419
        %6323 = vmatmul.mubr.bf16.gmra.mrb[0].mxu0 %v5418
        %v6324 = vpop.f32.mrb[0].mxu0
        %v6325 = vadd.f32 %v6132, %v6324
        %v6326 = vpop.f32.mrb[0].mxu0
        %v6327 = vadd.f32 %v6134, %v6326
        %v6328 = vpop.f32.mrb[0].mxu0
        %v6329 = vadd.f32 %v6136, %v6328
        %v6330 = vpop.f32.mrb[0].mxu0
        %v6331 = vadd.f32 %v6138, %v6330
        %6332 = vmatprep.mubr.bf16.mxu0 %v5428
        %6333 = vmatmul.mubr.bf16.gmra.mrb[0].mxu0 %v5427
        %v6334 = vpop.f32.mrb[0].mxu0
        %v6335 = vadd.f32 %v6142, %v6334
        %v6336 = vpop.f32.mrb[0].mxu0
        %v6337 = vadd.f32 %v6144, %v6336
        %v6338 = vpop.f32.mrb[0].mxu0
        %v6339 = vadd.f32 %v6146, %v6338
        %v6340 = vpop.f32.mrb[0].mxu0
        %v6341 = vadd.f32 %v6148, %v6340
        %6342 = vmatprep.mubr.bf16.mxu0 %v5437
        %6343 = vmatmul.mubr.bf16.gmra.mrb[0].mxu0 %v5436
        %v6344 = vpop.f32.mrb[0].mxu0
        %v6345 = vadd.f32 %v6152, %v6344
        %v6346 = vpop.f32.mrb[0].mxu0
        %v6347 = vadd.f32 %v6154, %v6346
        %v6348 = vpop.f32.mrb[0].mxu0
        %v6349 = vadd.f32 %v6156, %v6348
        %v6350 = vpop.f32.mrb[0].mxu0
        %v6351 = vadd.f32 %v6158, %v6350
        %6352 = vmatprep.mubr.bf16.mxu0 %v5446
        %6353 = vmatmul.mubr.bf16.gmra.mrb[0].mxu0 %v5445
        %v6354 = vpop.f32.mrb[0].mxu0
        %v6355 = vadd.f32 %v6162, %v6354
        %v6356 = vpop.f32.mrb[0].mxu0
        %v6357 = vadd.f32 %v6164, %v6356
        %v6358 = vpop.f32.mrb[0].mxu0
        %v6359 = vadd.f32 %v6166, %v6358
        %v6360 = vpop.f32.mrb[0].mxu0
        %v6361 = vadd.f32 %v6168, %v6360
        %6362 = vmatprep.mubr.bf16.mxu0 %v5455
        %6363 = vmatmul.mubr.bf16.gmra.mrb[0].mxu0 %v5454
        %v6364 = vpop.f32.mrb[0].mxu0
        %v6365 = vadd.f32 %v6172, %v6364
        %v6366 = vpop.f32.mrb[0].mxu0
        %v6367 = vadd.f32 %v6174, %v6366
        %v6368 = vpop.f32.mrb[0].mxu0
        %v6369 = vadd.f32 %v6176, %v6368
        %v6370 = vpop.f32.mrb[0].mxu0
        %v6371 = vadd.f32 %v6178, %v6370
        %6372 = vdwg.mxu0
        %6373 = vmatprep.subr.bf16.mxu0 %v4658
        %6374 = vmatpush1.bf16.msra.mxu0 %v4657
        %6375 = vmatprep.subr.bf16.mxu0 %v4660
        %6376 = vmatpush1.bf16.msra.mxu0 %v4659
        %6377 = vmatprep.subr.bf16.mxu0 %v4662
        %6378 = vmatpush1.bf16.msra.mxu0 %v4661
        %6379 = vmatprep.subr.bf16.mxu0 %v4664
        %6380 = vmatpush1.bf16.msra.mxu0 %v4663
        %6381 = vmatprep.subr.bf16.mxu0 %v4666
        %6382 = vmatpush1.bf16.msra.mxu0 %v4665
        %6383 = vmatprep.subr.bf16.mxu0 %v4668
        %6384 = vmatpush1.bf16.msra.mxu0 %v4667
        %6385 = vmatprep.subr.bf16.mxu0 %v4670
        %6386 = vmatpush1.bf16.msra.mxu0 %v4669
        %6387 = vmatprep.subr.bf16.mxu0 %v4672
        %6388 = vmatpush1.bf16.msra.mxu0 %v4671
        %6389 = vmatprep.subr.bf16.mxu0 0
        %6390 = vmatpush1.bf16.msra.mxu0 0
        %6391 = vmatprep.subr.bf16.mxu0 0
        %6392 = vmatpush1.bf16.msra.mxu0 0
        %6393 = vmatprep.subr.bf16.mxu0 0
        %6394 = vmatpush1.bf16.msra.mxu0 0
        %6395 = vmatprep.subr.bf16.mxu0 0
        %6396 = vmatpush1.bf16.msra.mxu0 0
        %6397 = vmatprep.subr.bf16.mxu0 0
        %6398 = vmatpush1.bf16.msra.mxu0 0
        %6399 = vmatprep.subr.bf16.mxu0 0
        %6400 = vmatpush1.bf16.msra.mxu0 0
        %6401 = vmatprep.subr.bf16.mxu0 0
        %6402 = vmatpush1.bf16.msra.mxu0 0
        %6403 = vmatprep.subr.bf16.mxu0 0
        %6404 = vmatpush1.bf16.msra.mxu0 0
        %6405 = vmatprep.mubr.bf16.mxu0 0
        %6406 = vmatmul.mubr.bf16.gmra.mrb[0].mxu0 %v5321
        %v6407 = vpop.f32.mrb[0].mxu0
        %v6408 = vadd.f32 %v6215, %v6407
        %v6409 = vpop.f32.mrb[0].mxu0
        %v6410 = vadd.f32 %v6217, %v6409
        %v6411 = vpop.f32.mrb[0].mxu0
        %v6412 = vadd.f32 %v6219, %v6411
        %v6413 = vpop.f32.mrb[0].mxu0
        %v6414 = vadd.f32 %v6221, %v6413
        %6415 = vmatprep.mubr.bf16.mxu0 0
        %6416 = vmatmul.mubr.bf16.gmra.mrb[0].mxu0 %v5330
        %v6417 = vpop.f32.mrb[0].mxu0
        %v6418 = vadd.f32 %v6225, %v6417
        %v6419 = vpop.f32.mrb[0].mxu0
        %v6420 = vadd.f32 %v6227, %v6419
        %v6421 = vpop.f32.mrb[0].mxu0
        %v6422 = vadd.f32 %v6229, %v6421
        %v6423 = vpop.f32.mrb[0].mxu0
        %v6424 = vadd.f32 %v6231, %v6423
        %6425 = vmatprep.mubr.bf16.mxu0 0
        %6426 = vmatmul.mubr.bf16.gmra.mrb[0].mxu0 %v5339
        %v6427 = vpop.f32.mrb[0].mxu0
        %v6428 = vadd.f32 %v6235, %v6427
        %v6429 = vpop.f32.mrb[0].mxu0
        %v6430 = vadd.f32 %v6237, %v6429
        %v6431 = vpop.f32.mrb[0].mxu0
        %v6432 = vadd.f32 %v6239, %v6431
        %v6433 = vpop.f32.mrb[0].mxu0
        %v6434 = vadd.f32 %v6241, %v6433
        %6435 = vmatprep.mubr.bf16.mxu0 0
        %6436 = vmatmul.mubr.bf16.gmra.mrb[0].mxu0 %v5348
        %v6437 = vpop.f32.mrb[0].mxu0
        %v6438 = vadd.f32 %v6245, %v6437
        %v6439 = vpop.f32.mrb[0].mxu0
        %v6440 = vadd.f32 %v6247, %v6439
        %v6441 = vpop.f32.mrb[0].mxu0
        %v6442 = vadd.f32 %v6249, %v6441
        %v6443 = vpop.f32.mrb[0].mxu0
        %v6444 = vadd.f32 %v6251, %v6443
        %6445 = vmatprep.mubr.bf16.mxu0 0
        %6446 = vmatmul.mubr.bf16.gmra.mrb[0].mxu0 %v5357
        %v6447 = vpop.f32.mrb[0].mxu0
        %v6448 = vadd.f32 %v6255, %v6447
        %v6449 = vpop.f32.mrb[0].mxu0
        %v6450 = vadd.f32 %v6257, %v6449
        %v6451 = vpop.f32.mrb[0].mxu0
        %v6452 = vadd.f32 %v6259, %v6451
        %v6453 = vpop.f32.mrb[0].mxu0
        %v6454 = vadd.f32 %v6261, %v6453
        %6455 = vmatprep.mubr.bf16.mxu0 0
        %6456 = vmatmul.mubr.bf16.gmra.mrb[0].mxu0 %v5366
        %v6457 = vpop.f32.mrb[0].mxu0
        %v6458 = vadd.f32 %v6265, %v6457
        %v6459 = vpop.f32.mrb[0].mxu0
        %v6460 = vadd.f32 %v6267, %v6459
        %v6461 = vpop.f32.mrb[0].mxu0
        %v6462 = vadd.f32 %v6269, %v6461
        %v6463 = vpop.f32.mrb[0].mxu0
        %v6464 = vadd.f32 %v6271, %v6463
        %6465 = vmatprep.mubr.bf16.mxu0 0
        %6466 = vmatmul.mubr.bf16.gmra.mrb[0].mxu0 %v5375
        %v6467 = vpop.f32.mrb[0].mxu0
        %v6468 = vadd.f32 %v6275, %v6467
        %v6469 = vpop.f32.mrb[0].mxu0
        %v6470 = vadd.f32 %v6277, %v6469
        %v6471 = vpop.f32.mrb[0].mxu0
        %v6472 = vadd.f32 %v6279, %v6471
        %v6473 = vpop.f32.mrb[0].mxu0
        %v6474 = vadd.f32 %v6281, %v6473
        %6475 = vmatprep.mubr.bf16.mxu0 0
        %6476 = vmatmul.mubr.bf16.gmra.mrb[0].mxu0 %v5384
        %v6477 = vpop.f32.mrb[0].mxu0
        %v6478 = vadd.f32 %v6285, %v6477
        %v6479 = vpop.f32.mrb[0].mxu0
        %v6480 = vadd.f32 %v6287, %v6479
        %v6481 = vpop.f32.mrb[0].mxu0
        %v6482 = vadd.f32 %v6289, %v6481
        %v6483 = vpop.f32.mrb[0].mxu0
        %v6484 = vadd.f32 %v6291, %v6483
        %6485 = vmatprep.mubr.bf16.mxu0 0
        %6486 = vmatmul.mubr.bf16.gmra.mrb[0].mxu0 %v5393
        %v6487 = vpop.f32.mrb[0].mxu0
        %v6488 = vadd.f32 %v6295, %v6487
        %v6489 = vpop.f32.mrb[0].mxu0
        %v6490 = vadd.f32 %v6297, %v6489
        %v6491 = vpop.f32.mrb[0].mxu0
        %v6492 = vadd.f32 %v6299, %v6491
        %v6493 = vpop.f32.mrb[0].mxu0
        %v6494 = vadd.f32 %v6301, %v6493
        %6495 = vmatprep.mubr.bf16.mxu0 0
        %6496 = vmatmul.mubr.bf16.gmra.mrb[0].mxu0 %v5402
        %v6497 = vpop.f32.mrb[0].mxu0
        %v6498 = vadd.f32 %v6305, %v6497
        %v6499 = vpop.f32.mrb[0].mxu0
        %v6500 = vadd.f32 %v6307, %v6499
        %v6501 = vpop.f32.mrb[0].mxu0
        %v6502 = vadd.f32 %v6309, %v6501
        %v6503 = vpop.f32.mrb[0].mxu0
        %v6504 = vadd.f32 %v6311, %v6503
        %6505 = vmatprep.mubr.bf16.mxu0 0
        %6506 = vmatmul.mubr.bf16.gmra.mrb[0].mxu0 %v5411
        %v6507 = vpop.f32.mrb[0].mxu0
        %v6508 = vadd.f32 %v6315, %v6507
        %v6509 = vpop.f32.mrb[0].mxu0
        %v6510 = vadd.f32 %v6317, %v6509
        %v6511 = vpop.f32.mrb[0].mxu0
        %v6512 = vadd.f32 %v6319, %v6511
        %v6513 = vpop.f32.mrb[0].mxu0
        %v6514 = vadd.f32 %v6321, %v6513
        %6515 = vmatprep.mubr.bf16.mxu0 0
        %6516 = vmatmul.mubr.bf16.gmra.mrb[0].mxu0 %v5420
        %v6517 = vpop.f32.mrb[0].mxu0
        %v6518 = vadd.f32 %v6325, %v6517
        %v6519 = vpop.f32.mrb[0].mxu0
        %v6520 = vadd.f32 %v6327, %v6519
        %v6521 = vpop.f32.mrb[0].mxu0
        %v6522 = vadd.f32 %v6329, %v6521
        %v6523 = vpop.f32.mrb[0].mxu0
        %v6524 = vadd.f32 %v6331, %v6523
        %6525 = vmatprep.mubr.bf16.mxu0 0
        %6526 = vmatmul.mubr.bf16.gmra.mrb[0].mxu0 %v5429
        %v6527 = vpop.f32.mrb[0].mxu0
        %v6528 = vadd.f32 %v6335, %v6527
        %v6529 = vpop.f32.mrb[0].mxu0
        %v6530 = vadd.f32 %v6337, %v6529
        %v6531 = vpop.f32.mrb[0].mxu0
        %v6532 = vadd.f32 %v6339, %v6531
        %v6533 = vpop.f32.mrb[0].mxu0
        %v6534 = vadd.f32 %v6341, %v6533
        %6535 = vmatprep.mubr.bf16.mxu0 0
        %6536 = vmatmul.mubr.bf16.gmra.mrb[0].mxu0 %v5438
        %v6537 = vpop.f32.mrb[0].mxu0
        %v6538 = vadd.f32 %v6345, %v6537
        %v6539 = vpop.f32.mrb[0].mxu0
        %v6540 = vadd.f32 %v6347, %v6539
        %v6541 = vpop.f32.mrb[0].mxu0
        %v6542 = vadd.f32 %v6349, %v6541
        %v6543 = vpop.f32.mrb[0].mxu0
        %v6544 = vadd.f32 %v6351, %v6543
        %6545 = vmatprep.mubr.bf16.mxu0 0
        %6546 = vmatmul.mubr.bf16.gmra.mrb[0].mxu0 %v5447
        %v6547 = vpop.f32.mrb[0].mxu0
        %v6548 = vadd.f32 %v6355, %v6547
        %v6549 = vpop.f32.mrb[0].mxu0
        %v6550 = vadd.f32 %v6357, %v6549
        %v6551 = vpop.f32.mrb[0].mxu0
        %v6552 = vadd.f32 %v6359, %v6551
        %v6553 = vpop.f32.mrb[0].mxu0
        %v6554 = vadd.f32 %v6361, %v6553
        %6555 = vmatprep.mubr.bf16.mxu0 0
        %6556 = vmatmul.mubr.bf16.gmra.mrb[0].mxu0 %v5456
        %v6557 = vpop.f32.mrb[0].mxu0
        %v6558 = vadd.f32 %v6365, %v6557
        %v6559 = vpop.f32.mrb[0].mxu0
        %v6560 = vadd.f32 %v6367, %v6559
        %v6561 = vpop.f32.mrb[0].mxu0
        %v6562 = vadd.f32 %v6369, %v6561
        %v6563 = vpop.f32.mrb[0].mxu0
        %v6564 = vadd.f32 %v6371, %v6563
        %6565 = vdwg.mxu0
        %v6566 = vmax.f32 %v6408, 0.0
        %v6567 = vmax.f32 %v6410, 0.0
        %v6568 = vmax.f32 %v6412, 0.0
        %v6569 = vmax.f32 %v6414, 0.0
        %v6570 = vmax.f32 %v6418, 0.0
        %v6571 = vmax.f32 %v6420, 0.0
        %v6572 = vmax.f32 %v6422, 0.0
        %v6573 = vmax.f32 %v6424, 0.0
        %v6574 = vmax.f32 %v6428, 0.0
        %v6575 = vmax.f32 %v6430, 0.0
        %v6576 = vmax.f32 %v6432, 0.0
        %v6577 = vmax.f32 %v6434, 0.0
        %v6578 = vmax.f32 %v6438, 0.0
        %v6579 = vmax.f32 %v6440, 0.0
        %v6580 = vmax.f32 %v6442, 0.0
        %v6581 = vmax.f32 %v6444, 0.0
        %v6582 = vmax.f32 %v6448, 0.0
        %v6583 = vmax.f32 %v6450, 0.0
        %v6584 = vmax.f32 %v6452, 0.0
        %v6585 = vmax.f32 %v6454, 0.0
        %v6586 = vmax.f32 %v6458, 0.0
        %v6587 = vmax.f32 %v6460, 0.0
        %v6588 = vmax.f32 %v6462, 0.0
        %v6589 = vmax.f32 %v6464, 0.0
        %v6590 = vmax.f32 %v6468, 0.0
        %v6591 = vmax.f32 %v6470, 0.0
        %v6592 = vmax.f32 %v6472, 0.0
        %v6593 = vmax.f32 %v6474, 0.0
        %v6594 = vmax.f32 %v6478, 0.0
        %v6595 = vmax.f32 %v6480, 0.0
        %v6596 = vmax.f32 %v6482, 0.0
        %v6597 = vmax.f32 %v6484, 0.0
        %v6598 = vmax.f32 %v6488, 0.0
        %v6599 = vmax.f32 %v6490, 0.0
        %v6600 = vmax.f32 %v6492, 0.0
        %v6601 = vmax.f32 %v6494, 0.0
        %v6602 = vmax.f32 %v6498, 0.0
        %v6603 = vmax.f32 %v6500, 0.0
        %v6604 = vmax.f32 %v6502, 0.0
        %v6605 = vmax.f32 %v6504, 0.0
        %v6606 = vmax.f32 %v6508, 0.0
        %v6607 = vmax.f32 %v6510, 0.0
        %v6608 = vmax.f32 %v6512, 0.0
        %v6609 = vmax.f32 %v6514, 0.0
        %v6610 = vmax.f32 %v6518, 0.0
        %v6611 = vmax.f32 %v6520, 0.0
        %v6612 = vmax.f32 %v6522, 0.0
        %v6613 = vmax.f32 %v6524, 0.0
        %v6614 = vmax.f32 %v6528, 0.0
        %v6615 = vmax.f32 %v6530, 0.0
        %v6616 = vmax.f32 %v6532, 0.0
        %v6617 = vmax.f32 %v6534, 0.0
        %v6618 = vmax.f32 %v6538, 0.0
        %v6619 = vmax.f32 %v6540, 0.0
        %v6620 = vmax.f32 %v6542, 0.0
        %v6621 = vmax.f32 %v6544, 0.0
        %v6622 = vmax.f32 %v6548, 0.0
        %v6623 = vmax.f32 %v6550, 0.0
        %v6624 = vmax.f32 %v6552, 0.0
        %v6625 = vmax.f32 %v6554, 0.0
        %v6626 = vmax.f32 %v6558, 0.0
        %v6627 = vmax.f32 %v6560, 0.0
        %v6628 = vmax.f32 %v6562, 0.0
        %v6629 = vmax.f32 %v6564, 0.0
        %v6630 = vld [vmem:[%s6] sm:$0x3]
        %v6632 = vlaneseq
        %v6633 = vshrl.u32 %v6632, 7
        %v6634 = vsub.s32 0, %v6633
        %v6635 = vrot.slane %v6630, %v6634
        %v6636 = vlaneseq
        %v6637 = vshrl.u32 %v6636, 7
        %v6638 = vsub.s32 1, %v6637
        %v6639 = vrot.slane %v6630, %v6638
        %v6642 = vadd.f32 %v6566, %v6635
        %v6643 = vadd.f32 %v6567, %v6639
        %v6644 = vadd.f32 %v6568, %v6635
        %v6645 = vadd.f32 %v6569, %v6639
        %v6646 = vadd.f32 %v6570, %v6635
        %v6647 = vadd.f32 %v6571, %v6639
        %v6648 = vadd.f32 %v6572, %v6635
        %v6649 = vadd.f32 %v6573, %v6639
        %v6650 = vadd.f32 %v6574, %v6635
        %v6651 = vadd.f32 %v6575, %v6639
        %v6652 = vadd.f32 %v6576, %v6635
        %v6653 = vadd.f32 %v6577, %v6639
        %v6654 = vadd.f32 %v6578, %v6635
        %v6655 = vadd.f32 %v6579, %v6639
        %v6656 = vadd.f32 %v6580, %v6635
        %v6657 = vadd.f32 %v6581, %v6639
        %v6658 = vadd.f32 %v6582, %v6635
        %v6659 = vadd.f32 %v6583, %v6639
        %v6660 = vadd.f32 %v6584, %v6635
        %v6661 = vadd.f32 %v6585, %v6639
        %v6662 = vadd.f32 %v6586, %v6635
        %v6663 = vadd.f32 %v6587, %v6639
        %v6664 = vadd.f32 %v6588, %v6635
        %v6665 = vadd.f32 %v6589, %v6639
        %v6666 = vadd.f32 %v6590, %v6635
        %v6667 = vadd.f32 %v6591, %v6639
        %v6668 = vadd.f32 %v6592, %v6635
        %v6669 = vadd.f32 %v6593, %v6639
        %v6670 = vadd.f32 %v6594, %v6635
        %v6671 = vadd.f32 %v6595, %v6639
        %v6672 = vadd.f32 %v6596, %v6635
        %v6673 = vadd.f32 %v6597, %v6639
        %v6674 = vadd.f32 %v6598, %v6635
        %v6675 = vadd.f32 %v6599, %v6639
        %v6676 = vadd.f32 %v6600, %v6635
        %v6677 = vadd.f32 %v6601, %v6639
        %v6678 = vadd.f32 %v6602, %v6635
        %v6679 = vadd.f32 %v6603, %v6639
        %v6680 = vadd.f32 %v6604, %v6635
        %v6681 = vadd.f32 %v6605, %v6639
        %v6682 = vadd.f32 %v6606, %v6635
        %v6683 = vadd.f32 %v6607, %v6639
        %v6684 = vadd.f32 %v6608, %v6635
        %v6685 = vadd.f32 %v6609, %v6639
        %v6686 = vadd.f32 %v6610, %v6635
        %v6687 = vadd.f32 %v6611, %v6639
        %v6688 = vadd.f32 %v6612, %v6635
        %v6689 = vadd.f32 %v6613, %v6639
        %v6690 = vadd.f32 %v6614, %v6635
        %v6691 = vadd.f32 %v6615, %v6639
        %v6692 = vadd.f32 %v6616, %v6635
        %v6693 = vadd.f32 %v6617, %v6639
        %v6694 = vadd.f32 %v6618, %v6635
        %v6695 = vadd.f32 %v6619, %v6639
        %v6696 = vadd.f32 %v6620, %v6635
        %v6697 = vadd.f32 %v6621, %v6639
        %v6698 = vadd.f32 %v6622, %v6635
        %v6699 = vadd.f32 %v6623, %v6639
        %v6700 = vadd.f32 %v6624, %v6635
        %v6701 = vadd.f32 %v6625, %v6639
        %v6702 = vadd.f32 %v6626, %v6635
        %v6703 = vadd.f32 %v6627, %v6639
        %v6704 = vadd.f32 %v6628, %v6635
        %v6705 = vadd.f32 %v6629, %v6639
        %6770 = vrot.lane.b32.xlu0 %v6642, 127
        %v6771 = vpop.permute.xlu0 %6770
        %6772 = vrot.lane.b32.xlu0 %v6643, 127
        %v6773 = vpop.permute.xlu0 %6772
        %6774 = vrot.lane.b32.xlu0 %v6644, 127
        %v6775 = vpop.permute.xlu0 %6774
        %6776 = vrot.lane.b32.xlu0 %v6645, 127
        %v6777 = vpop.permute.xlu0 %6776
        %6778 = vrot.lane.b32.xlu0 %v6646, 127
        %v6779 = vpop.permute.xlu0 %6778
        %6780 = vrot.lane.b32.xlu0 %v6647, 127
        %v6781 = vpop.permute.xlu0 %6780
        %6782 = vrot.lane.b32.xlu0 %v6648, 127
        %v6783 = vpop.permute.xlu0 %6782
        %6784 = vrot.lane.b32.xlu0 %v6649, 127
        %v6785 = vpop.permute.xlu0 %6784
        %6786 = vrot.lane.b32.xlu0 %v6650, 127
        %v6787 = vpop.permute.xlu0 %6786
        %6788 = vrot.lane.b32.xlu0 %v6651, 127
        %v6789 = vpop.permute.xlu0 %6788
        %6790 = vrot.lane.b32.xlu0 %v6652, 127
        %v6791 = vpop.permute.xlu0 %6790
        %6792 = vrot.lane.b32.xlu0 %v6653, 127
        %v6793 = vpop.permute.xlu0 %6792
        %6794 = vrot.lane.b32.xlu0 %v6654, 127
        %v6795 = vpop.permute.xlu0 %6794
        %6796 = vrot.lane.b32.xlu0 %v6655, 127
        %v6797 = vpop.permute.xlu0 %6796
        %6798 = vrot.lane.b32.xlu0 %v6656, 127
        %v6799 = vpop.permute.xlu0 %6798
        %6800 = vrot.lane.b32.xlu0 %v6657, 127
        %v6801 = vpop.permute.xlu0 %6800
        %6802 = vrot.lane.b32.xlu0 %v6658, 127
        %v6803 = vpop.permute.xlu0 %6802
        %6804 = vrot.lane.b32.xlu0 %v6659, 127
        %v6805 = vpop.permute.xlu0 %6804
        %6806 = vrot.lane.b32.xlu0 %v6660, 127
        %v6807 = vpop.permute.xlu0 %6806
        %6808 = vrot.lane.b32.xlu0 %v6661, 127
        %v6809 = vpop.permute.xlu0 %6808
        %6810 = vrot.lane.b32.xlu0 %v6662, 127
        %v6811 = vpop.permute.xlu0 %6810
        %6812 = vrot.lane.b32.xlu0 %v6663, 127
        %v6813 = vpop.permute.xlu0 %6812
        %6814 = vrot.lane.b32.xlu0 %v6664, 127
        %v6815 = vpop.permute.xlu0 %6814
        %6816 = vrot.lane.b32.xlu0 %v6665, 127
        %v6817 = vpop.permute.xlu0 %6816
        %6818 = vrot.lane.b32.xlu0 %v6666, 127
        %v6819 = vpop.permute.xlu0 %6818
        %6820 = vrot.lane.b32.xlu0 %v6667, 127
        %v6821 = vpop.permute.xlu0 %6820
        %6822 = vrot.lane.b32.xlu0 %v6668, 127
        %v6823 = vpop.permute.xlu0 %6822
        %6824 = vrot.lane.b32.xlu0 %v6669, 127
        %v6825 = vpop.permute.xlu0 %6824
        %6826 = vrot.lane.b32.xlu0 %v6670, 127
        %v6827 = vpop.permute.xlu0 %6826
        %6828 = vrot.lane.b32.xlu0 %v6671, 127
        %v6829 = vpop.permute.xlu0 %6828
        %6830 = vrot.lane.b32.xlu0 %v6672, 127
        %v6831 = vpop.permute.xlu0 %6830
        %6832 = vrot.lane.b32.xlu0 %v6673, 127
        %v6833 = vpop.permute.xlu0 %6832
        %6834 = vrot.lane.b32.xlu0 %v6674, 127
        %v6835 = vpop.permute.xlu0 %6834
        %6836 = vrot.lane.b32.xlu0 %v6675, 127
        %v6837 = vpop.permute.xlu0 %6836
        %6838 = vrot.lane.b32.xlu0 %v6676, 127
        %v6839 = vpop.permute.xlu0 %6838
        %6840 = vrot.lane.b32.xlu0 %v6677, 127
        %v6841 = vpop.permute.xlu0 %6840
        %6842 = vrot.lane.b32.xlu0 %v6678, 127
        %v6843 = vpop.permute.xlu0 %6842
        %6844 = vrot.lane.b32.xlu0 %v6679, 127
        %v6845 = vpop.permute.xlu0 %6844
        %6846 = vrot.lane.b32.xlu0 %v6680, 127
        %v6847 = vpop.permute.xlu0 %6846
        %6848 = vrot.lane.b32.xlu0 %v6681, 127
        %v6849 = vpop.permute.xlu0 %6848
        %6850 = vrot.lane.b32.xlu0 %v6682, 127
        %v6851 = vpop.permute.xlu0 %6850
        %6852 = vrot.lane.b32.xlu0 %v6683, 127
        %v6853 = vpop.permute.xlu0 %6852
        %6854 = vrot.lane.b32.xlu0 %v6684, 127
        %v6855 = vpop.permute.xlu0 %6854
        %6856 = vrot.lane.b32.xlu0 %v6685, 127
        %v6857 = vpop.permute.xlu0 %6856
        %6858 = vrot.lane.b32.xlu0 %v6686, 127
        %v6859 = vpop.permute.xlu0 %6858
        %6860 = vrot.lane.b32.xlu0 %v6687, 127
        %v6861 = vpop.permute.xlu0 %6860
        %6862 = vrot.lane.b32.xlu0 %v6688, 127
        %v6863 = vpop.permute.xlu0 %6862
        %6864 = vrot.lane.b32.xlu0 %v6689, 127
        %v6865 = vpop.permute.xlu0 %6864
        %6866 = vrot.lane.b32.xlu0 %v6690, 127
        %v6867 = vpop.permute.xlu0 %6866
        %6868 = vrot.lane.b32.xlu0 %v6691, 127
        %v6869 = vpop.permute.xlu0 %6868
        %6870 = vrot.lane.b32.xlu0 %v6692, 127
        %v6871 = vpop.permute.xlu0 %6870
        %6872 = vrot.lane.b32.xlu0 %v6693, 127
        %v6873 = vpop.permute.xlu0 %6872
        %6874 = vrot.lane.b32.xlu0 %v6694, 127
        %v6875 = vpop.permute.xlu0 %6874
        %6876 = vrot.lane.b32.xlu0 %v6695, 127
        %v6877 = vpop.permute.xlu0 %6876
        %6878 = vrot.lane.b32.xlu0 %v6696, 127
        %v6879 = vpop.permute.xlu0 %6878
        %6880 = vrot.lane.b32.xlu0 %v6697, 127
        %v6881 = vpop.permute.xlu0 %6880
        %6882 = vrot.lane.b32.xlu0 %v6698, 127
        %v6883 = vpop.permute.xlu0 %6882
        %6884 = vrot.lane.b32.xlu0 %v6699, 127
        %v6885 = vpop.permute.xlu0 %6884
        %6886 = vrot.lane.b32.xlu0 %v6700, 127
        %v6887 = vpop.permute.xlu0 %6886
        %6888 = vrot.lane.b32.xlu0 %v6701, 127
        %v6889 = vpop.permute.xlu0 %6888
        %6890 = vrot.lane.b32.xlu0 %v6702, 127
        %v6891 = vpop.permute.xlu0 %6890
        %6892 = vrot.lane.b32.xlu0 %v6703, 127
        %v6893 = vpop.permute.xlu0 %6892
        %6894 = vrot.lane.b32.xlu0 %v6704, 127
        %v6895 = vpop.permute.xlu0 %6894
        %6896 = vrot.lane.b32.xlu0 %v6705, 127
        %v6897 = vpop.permute.xlu0 %6896
        %v6898 = vsel %vm515, %v6771, %v6773
        %v6899 = vsel %vm515, %v6775, %v6777
        %v6900 = vsel %vm515, %v6779, %v6781
        %v6901 = vsel %vm515, %v6783, %v6785
        %v6902 = vsel %vm515, %v6787, %v6789
        %v6903 = vsel %vm515, %v6791, %v6793
        %v6904 = vsel %vm515, %v6795, %v6797
        %v6905 = vsel %vm515, %v6799, %v6801
        %v6906 = vsel %vm515, %v6803, %v6805
        %v6907 = vsel %vm515, %v6807, %v6809
        %v6908 = vsel %vm515, %v6811, %v6813
        %v6909 = vsel %vm515, %v6815, %v6817
        %v6910 = vsel %vm515, %v6819, %v6821
        %v6911 = vsel %vm515, %v6823, %v6825
        %v6912 = vsel %vm515, %v6827, %v6829
        %v6913 = vsel %vm515, %v6831, %v6833
        %v6914 = vsel %vm515, %v6835, %v6837
        %v6915 = vsel %vm515, %v6839, %v6841
        %v6916 = vsel %vm515, %v6843, %v6845
        %v6917 = vsel %vm515, %v6847, %v6849
        %v6918 = vsel %vm515, %v6851, %v6853
        %v6919 = vsel %vm515, %v6855, %v6857
        %v6920 = vsel %vm515, %v6859, %v6861
        %v6921 = vsel %vm515, %v6863, %v6865
        %v6922 = vsel %vm515, %v6867, %v6869
        %v6923 = vsel %vm515, %v6871, %v6873
        %v6924 = vsel %vm515, %v6875, %v6877
        %v6925 = vsel %vm515, %v6879, %v6881
        %v6926 = vsel %vm515, %v6883, %v6885
        %v6927 = vsel %vm515, %v6887, %v6889
        %v6928 = vsel %vm515, %v6891, %v6893
        %v6929 = vsel %vm515, %v6895, %v6897
        %v6994 = vmax.f32 %v6642, %v6898
        %v6995 = vmax.f32 %v6643, %v6773
        %v6996 = vmax.f32 %v6644, %v6899
        %v6997 = vmax.f32 %v6645, %v6777
        %v6998 = vmax.f32 %v6646, %v6900
        %v6999 = vmax.f32 %v6647, %v6781
        %v7000 = vmax.f32 %v6648, %v6901
        %v7001 = vmax.f32 %v6649, %v6785
        %v7002 = vmax.f32 %v6650, %v6902
        %v7003 = vmax.f32 %v6651, %v6789
        %v7004 = vmax.f32 %v6652, %v6903
        %v7005 = vmax.f32 %v6653, %v6793
        %v7006 = vmax.f32 %v6654, %v6904
        %v7007 = vmax.f32 %v6655, %v6797
        %v7008 = vmax.f32 %v6656, %v6905
        %v7009 = vmax.f32 %v6657, %v6801
        %v7010 = vmax.f32 %v6658, %v6906
        %v7011 = vmax.f32 %v6659, %v6805
        %v7012 = vmax.f32 %v6660, %v6907
        %v7013 = vmax.f32 %v6661, %v6809
        %v7014 = vmax.f32 %v6662, %v6908
        %v7015 = vmax.f32 %v6663, %v6813
        %v7016 = vmax.f32 %v6664, %v6909
        %v7017 = vmax.f32 %v6665, %v6817
        %v7018 = vmax.f32 %v6666, %v6910
        %v7019 = vmax.f32 %v6667, %v6821
        %v7020 = vmax.f32 %v6668, %v6911
        %v7021 = vmax.f32 %v6669, %v6825
        %v7022 = vmax.f32 %v6670, %v6912
        %v7023 = vmax.f32 %v6671, %v6829
        %v7024 = vmax.f32 %v6672, %v6913
        %v7025 = vmax.f32 %v6673, %v6833
        %v7026 = vmax.f32 %v6674, %v6914
        %v7027 = vmax.f32 %v6675, %v6837
        %v7028 = vmax.f32 %v6676, %v6915
        %v7029 = vmax.f32 %v6677, %v6841
        %v7030 = vmax.f32 %v6678, %v6916
        %v7031 = vmax.f32 %v6679, %v6845
        %v7032 = vmax.f32 %v6680, %v6917
        %v7033 = vmax.f32 %v6681, %v6849
        %v7034 = vmax.f32 %v6682, %v6918
        %v7035 = vmax.f32 %v6683, %v6853
        %v7036 = vmax.f32 %v6684, %v6919
        %v7037 = vmax.f32 %v6685, %v6857
        %v7038 = vmax.f32 %v6686, %v6920
        %v7039 = vmax.f32 %v6687, %v6861
        %v7040 = vmax.f32 %v6688, %v6921
        %v7041 = vmax.f32 %v6689, %v6865
        %v7042 = vmax.f32 %v6690, %v6922
        %v7043 = vmax.f32 %v6691, %v6869
        %v7044 = vmax.f32 %v6692, %v6923
        %v7045 = vmax.f32 %v6693, %v6873
        %v7046 = vmax.f32 %v6694, %v6924
        %v7047 = vmax.f32 %v6695, %v6877
        %v7048 = vmax.f32 %v6696, %v6925
        %v7049 = vmax.f32 %v6697, %v6881
        %v7050 = vmax.f32 %v6698, %v6926
        %v7051 = vmax.f32 %v6699, %v6885
        %v7052 = vmax.f32 %v6700, %v6927
        %v7053 = vmax.f32 %v6701, %v6889
        %v7054 = vmax.f32 %v6702, %v6928
        %v7055 = vmax.f32 %v6703, %v6893
        %v7056 = vmax.f32 %v6704, %v6929
        %v7057 = vmax.f32 %v6705, %v6897
        %7122 = vrot.lane.b32.xlu0 %v6994, 115
        %v7123 = vpop.permute.xlu0 %7122
        %7124 = vrot.lane.b32.xlu0 %v6995, 115
        %v7125 = vpop.permute.xlu0 %7124
        %7126 = vrot.lane.b32.xlu0 %v6996, 115
        %v7127 = vpop.permute.xlu0 %7126
        %7128 = vrot.lane.b32.xlu0 %v6997, 115
        %v7129 = vpop.permute.xlu0 %7128
        %7130 = vrot.lane.b32.xlu0 %v6998, 115
        %v7131 = vpop.permute.xlu0 %7130
        %7132 = vrot.lane.b32.xlu0 %v6999, 115
        %v7133 = vpop.permute.xlu0 %7132
        %7134 = vrot.lane.b32.xlu0 %v7000, 115
        %v7135 = vpop.permute.xlu0 %7134
        %7136 = vrot.lane.b32.xlu0 %v7001, 115
        %v7137 = vpop.permute.xlu0 %7136
        %7138 = vrot.lane.b32.xlu0 %v7002, 115
        %v7139 = vpop.permute.xlu0 %7138
        %7140 = vrot.lane.b32.xlu0 %v7003, 115
        %v7141 = vpop.permute.xlu0 %7140
        %7142 = vrot.lane.b32.xlu0 %v7004, 115
        %v7143 = vpop.permute.xlu0 %7142
        %7144 = vrot.lane.b32.xlu0 %v7005, 115
        %v7145 = vpop.permute.xlu0 %7144
        %7146 = vrot.lane.b32.xlu0 %v7006, 115
        %v7147 = vpop.permute.xlu0 %7146
        %7148 = vrot.lane.b32.xlu0 %v7007, 115
        %v7149 = vpop.permute.xlu0 %7148
        %7150 = vrot.lane.b32.xlu0 %v7008, 115
        %v7151 = vpop.permute.xlu0 %7150
        %7152 = vrot.lane.b32.xlu0 %v7009, 115
        %v7153 = vpop.permute.xlu0 %7152
        %7154 = vrot.lane.b32.xlu0 %v7010, 115
        %v7155 = vpop.permute.xlu0 %7154
        %7156 = vrot.lane.b32.xlu0 %v7011, 115
        %v7157 = vpop.permute.xlu0 %7156
        %7158 = vrot.lane.b32.xlu0 %v7012, 115
        %v7159 = vpop.permute.xlu0 %7158
        %7160 = vrot.lane.b32.xlu0 %v7013, 115
        %v7161 = vpop.permute.xlu0 %7160
        %7162 = vrot.lane.b32.xlu0 %v7014, 115
        %v7163 = vpop.permute.xlu0 %7162
        %7164 = vrot.lane.b32.xlu0 %v7015, 115
        %v7165 = vpop.permute.xlu0 %7164
        %7166 = vrot.lane.b32.xlu0 %v7016, 115
        %v7167 = vpop.permute.xlu0 %7166
        %7168 = vrot.lane.b32.xlu0 %v7017, 115
        %v7169 = vpop.permute.xlu0 %7168
        %7170 = vrot.lane.b32.xlu0 %v7018, 115
        %v7171 = vpop.permute.xlu0 %7170
        %7172 = vrot.lane.b32.xlu0 %v7019, 115
        %v7173 = vpop.permute.xlu0 %7172
        %7174 = vrot.lane.b32.xlu0 %v7020, 115
        %v7175 = vpop.permute.xlu0 %7174
        %7176 = vrot.lane.b32.xlu0 %v7021, 115
        %v7177 = vpop.permute.xlu0 %7176
        %7178 = vrot.lane.b32.xlu0 %v7022, 115
        %v7179 = vpop.permute.xlu0 %7178
        %7180 = vrot.lane.b32.xlu0 %v7023, 115
        %v7181 = vpop.permute.xlu0 %7180
        %7182 = vrot.lane.b32.xlu0 %v7024, 115
        %v7183 = vpop.permute.xlu0 %7182
        %7184 = vrot.lane.b32.xlu0 %v7025, 115
        %v7185 = vpop.permute.xlu0 %7184
        %7186 = vrot.lane.b32.xlu0 %v7026, 115
        %v7187 = vpop.permute.xlu0 %7186
        %7188 = vrot.lane.b32.xlu0 %v7027, 115
        %v7189 = vpop.permute.xlu0 %7188
        %7190 = vrot.lane.b32.xlu0 %v7028, 115
        %v7191 = vpop.permute.xlu0 %7190
        %7192 = vrot.lane.b32.xlu0 %v7029, 115
        %v7193 = vpop.permute.xlu0 %7192
        %7194 = vrot.lane.b32.xlu0 %v7030, 115
        %v7195 = vpop.permute.xlu0 %7194
        %7196 = vrot.lane.b32.xlu0 %v7031, 115
        %v7197 = vpop.permute.xlu0 %7196
        %7198 = vrot.lane.b32.xlu0 %v7032, 115
        %v7199 = vpop.permute.xlu0 %7198
        %7200 = vrot.lane.b32.xlu0 %v7033, 115
        %v7201 = vpop.permute.xlu0 %7200
        %7202 = vrot.lane.b32.xlu0 %v7034, 115
        %v7203 = vpop.permute.xlu0 %7202
        %7204 = vrot.lane.b32.xlu0 %v7035, 115
        %v7205 = vpop.permute.xlu0 %7204
        %7206 = vrot.lane.b32.xlu0 %v7036, 115
        %v7207 = vpop.permute.xlu0 %7206
        %7208 = vrot.lane.b32.xlu0 %v7037, 115
        %v7209 = vpop.permute.xlu0 %7208
        %7210 = vrot.lane.b32.xlu0 %v7038, 115
        %v7211 = vpop.permute.xlu0 %7210
        %7212 = vrot.lane.b32.xlu0 %v7039, 115
        %v7213 = vpop.permute.xlu0 %7212
        %7214 = vrot.lane.b32.xlu0 %v7040, 115
        %v7215 = vpop.permute.xlu0 %7214
        %7216 = vrot.lane.b32.xlu0 %v7041, 115
        %v7217 = vpop.permute.xlu0 %7216
        %7218 = vrot.lane.b32.xlu0 %v7042, 115
        %v7219 = vpop.permute.xlu0 %7218
        %7220 = vrot.lane.b32.xlu0 %v7043, 115
        %v7221 = vpop.permute.xlu0 %7220
        %7222 = vrot.lane.b32.xlu0 %v7044, 115
        %v7223 = vpop.permute.xlu0 %7222
        %7224 = vrot.lane.b32.xlu0 %v7045, 115
        %v7225 = vpop.permute.xlu0 %7224
        %7226 = vrot.lane.b32.xlu0 %v7046, 115
        %v7227 = vpop.permute.xlu0 %7226
        %7228 = vrot.lane.b32.xlu0 %v7047, 115
        %v7229 = vpop.permute.xlu0 %7228
        %7230 = vrot.lane.b32.xlu0 %v7048, 115
        %v7231 = vpop.permute.xlu0 %7230
        %7232 = vrot.lane.b32.xlu0 %v7049, 115
        %v7233 = vpop.permute.xlu0 %7232
        %7234 = vrot.lane.b32.xlu0 %v7050, 115
        %v7235 = vpop.permute.xlu0 %7234
        %7236 = vrot.lane.b32.xlu0 %v7051, 115
        %v7237 = vpop.permute.xlu0 %7236
        %7238 = vrot.lane.b32.xlu0 %v7052, 115
        %v7239 = vpop.permute.xlu0 %7238
        %7240 = vrot.lane.b32.xlu0 %v7053, 115
        %v7241 = vpop.permute.xlu0 %7240
        %7242 = vrot.lane.b32.xlu0 %v7054, 115
        %v7243 = vpop.permute.xlu0 %7242
        %7244 = vrot.lane.b32.xlu0 %v7055, 115
        %v7245 = vpop.permute.xlu0 %7244
        %7246 = vrot.lane.b32.xlu0 %v7056, 115
        %v7247 = vpop.permute.xlu0 %7246
        %7248 = vrot.lane.b32.xlu0 %v7057, 115
        %v7249 = vpop.permute.xlu0 %7248
        %v7250 = vsel %vm3756, %v7123, %v7125
        %v7251 = vsel %vm3756, %v7127, %v7129
        %v7252 = vsel %vm3756, %v7131, %v7133
        %v7253 = vsel %vm3756, %v7135, %v7137
        %v7254 = vsel %vm3756, %v7139, %v7141
        %v7255 = vsel %vm3756, %v7143, %v7145
        %v7256 = vsel %vm3756, %v7147, %v7149
        %v7257 = vsel %vm3756, %v7151, %v7153
        %v7258 = vsel %vm3756, %v7155, %v7157
        %v7259 = vsel %vm3756, %v7159, %v7161
        %v7260 = vsel %vm3756, %v7163, %v7165
        %v7261 = vsel %vm3756, %v7167, %v7169
        %v7262 = vsel %vm3756, %v7171, %v7173
        %v7263 = vsel %vm3756, %v7175, %v7177
        %v7264 = vsel %vm3756, %v7179, %v7181
        %v7265 = vsel %vm3756, %v7183, %v7185
        %v7266 = vsel %vm3756, %v7187, %v7189
        %v7267 = vsel %vm3756, %v7191, %v7193
        %v7268 = vsel %vm3756, %v7195, %v7197
        %v7269 = vsel %vm3756, %v7199, %v7201
        %v7270 = vsel %vm3756, %v7203, %v7205
        %v7271 = vsel %vm3756, %v7207, %v7209
        %v7272 = vsel %vm3756, %v7211, %v7213
        %v7273 = vsel %vm3756, %v7215, %v7217
        %v7274 = vsel %vm3756, %v7219, %v7221
        %v7275 = vsel %vm3756, %v7223, %v7225
        %v7276 = vsel %vm3756, %v7227, %v7229
        %v7277 = vsel %vm3756, %v7231, %v7233
        %v7278 = vsel %vm3756, %v7235, %v7237
        %v7279 = vsel %vm3756, %v7239, %v7241
        %v7280 = vsel %vm3756, %v7243, %v7245
        %v7281 = vsel %vm3756, %v7247, %v7249
        %v7346 = vmax.f32 %v6994, %v7250
        %v7347 = vmax.f32 %v6995, %v7125
        %v7348 = vmax.f32 %v6996, %v7251
        %v7349 = vmax.f32 %v6997, %v7129
        %v7350 = vmax.f32 %v6998, %v7252
        %v7351 = vmax.f32 %v6999, %v7133
        %v7352 = vmax.f32 %v7000, %v7253
        %v7353 = vmax.f32 %v7001, %v7137
        %v7354 = vmax.f32 %v7002, %v7254
        %v7355 = vmax.f32 %v7003, %v7141
        %v7356 = vmax.f32 %v7004, %v7255
        %v7357 = vmax.f32 %v7005, %v7145
        %v7358 = vmax.f32 %v7006, %v7256
        %v7359 = vmax.f32 %v7007, %v7149
        %v7360 = vmax.f32 %v7008, %v7257
        %v7361 = vmax.f32 %v7009, %v7153
        %v7362 = vmax.f32 %v7010, %v7258
        %v7363 = vmax.f32 %v7011, %v7157
        %v7364 = vmax.f32 %v7012, %v7259
        %v7365 = vmax.f32 %v7013, %v7161
        %v7366 = vmax.f32 %v7014, %v7260
        %v7367 = vmax.f32 %v7015, %v7165
        %v7368 = vmax.f32 %v7016, %v7261
        %v7369 = vmax.f32 %v7017, %v7169
        %v7370 = vmax.f32 %v7018, %v7262
        %v7371 = vmax.f32 %v7019, %v7173
        %v7372 = vmax.f32 %v7020, %v7263
        %v7373 = vmax.f32 %v7021, %v7177
        %v7374 = vmax.f32 %v7022, %v7264
        %v7375 = vmax.f32 %v7023, %v7181
        %v7376 = vmax.f32 %v7024, %v7265
        %v7377 = vmax.f32 %v7025, %v7185
        %v7378 = vmax.f32 %v7026, %v7266
        %v7379 = vmax.f32 %v7027, %v7189
        %v7380 = vmax.f32 %v7028, %v7267
        %v7381 = vmax.f32 %v7029, %v7193
        %v7382 = vmax.f32 %v7030, %v7268
        %v7383 = vmax.f32 %v7031, %v7197
        %v7384 = vmax.f32 %v7032, %v7269
        %v7385 = vmax.f32 %v7033, %v7201
        %v7386 = vmax.f32 %v7034, %v7270
        %v7387 = vmax.f32 %v7035, %v7205
        %v7388 = vmax.f32 %v7036, %v7271
        %v7389 = vmax.f32 %v7037, %v7209
        %v7390 = vmax.f32 %v7038, %v7272
        %v7391 = vmax.f32 %v7039, %v7213
        %v7392 = vmax.f32 %v7040, %v7273
        %v7393 = vmax.f32 %v7041, %v7217
        %v7394 = vmax.f32 %v7042, %v7274
        %v7395 = vmax.f32 %v7043, %v7221
        %v7396 = vmax.f32 %v7044, %v7275
        %v7397 = vmax.f32 %v7045, %v7225
        %v7398 = vmax.f32 %v7046, %v7276
        %v7399 = vmax.f32 %v7047, %v7229
        %v7400 = vmax.f32 %v7048, %v7277
        %v7401 = vmax.f32 %v7049, %v7233
        %v7402 = vmax.f32 %v7050, %v7278
        %v7403 = vmax.f32 %v7051, %v7237
        %v7404 = vmax.f32 %v7052, %v7279
        %v7405 = vmax.f32 %v7053, %v7241
        %v7406 = vmax.f32 %v7054, %v7280
        %v7407 = vmax.f32 %v7055, %v7245
        %v7408 = vmax.f32 %v7056, %v7281
        %v7409 = vmax.f32 %v7057, %v7249
        %v7410 = vpack.c.bf16 %v7348, %v7346
        %v7411 = vpack.c.bf16 %v7349, %v7347
        %v7412 = vpack.c.bf16 %v7352, %v7350
        %v7413 = vpack.c.bf16 %v7353, %v7351
        %v7414 = vpack.c.bf16 %v7356, %v7354
        %v7415 = vpack.c.bf16 %v7357, %v7355
        %v7416 = vpack.c.bf16 %v7360, %v7358
        %v7417 = vpack.c.bf16 %v7361, %v7359
        %v7418 = vpack.c.bf16 %v7364, %v7362
        %v7419 = vpack.c.bf16 %v7365, %v7363
        %v7420 = vpack.c.bf16 %v7368, %v7366
        %v7421 = vpack.c.bf16 %v7369, %v7367
        %v7422 = vpack.c.bf16 %v7372, %v7370
        %v7423 = vpack.c.bf16 %v7373, %v7371
        %v7424 = vpack.c.bf16 %v7376, %v7374
        %v7425 = vpack.c.bf16 %v7377, %v7375
        %v7426 = vpack.c.bf16 %v7380, %v7378
        %v7427 = vpack.c.bf16 %v7381, %v7379
        %v7428 = vpack.c.bf16 %v7384, %v7382
        %v7429 = vpack.c.bf16 %v7385, %v7383
        %v7430 = vpack.c.bf16 %v7388, %v7386
        %v7431 = vpack.c.bf16 %v7389, %v7387
        %v7432 = vpack.c.bf16 %v7392, %v7390
        %v7433 = vpack.c.bf16 %v7393, %v7391
        %v7434 = vpack.c.bf16 %v7396, %v7394
        %v7435 = vpack.c.bf16 %v7397, %v7395
        %v7436 = vpack.c.bf16 %v7400, %v7398
        %v7437 = vpack.c.bf16 %v7401, %v7399
        %v7438 = vpack.c.bf16 %v7404, %v7402
        %v7439 = vpack.c.bf16 %v7405, %v7403
        %v7440 = vpack.c.bf16 %v7408, %v7406
        %v7441 = vpack.c.bf16 %v7409, %v7407
        %v7442 = vld [vmem:[%s7] sm:$0xf]
        %v7443 = vld [vmem:[%s7 + $0x4] sm:$0xf]
        %v7444 = vld [vmem:[%s7 + $0x8] sm:$0xf]
        %v7445 = vld [vmem:[%s7 + $0xc] sm:$0xf]
        %v7446 = vld [vmem:[%s7 + $0x10] sm:$0xf]
        %v7447 = vld [vmem:[%s7 + $0x14] sm:$0xf]
        %v7448 = vld [vmem:[%s7 + $0x18] sm:$0xf]
        %v7449 = vld [vmem:[%s7 + $0x1c] sm:$0xf]
        %v7450 = vld [vmem:[%s7 + $0x20] sm:$0xf]
        %v7451 = vld [vmem:[%s7 + $0x24] sm:$0xf]
        %v7452 = vld [vmem:[%s7 + $0x28] sm:$0xf]
        %v7453 = vld [vmem:[%s7 + $0x2c] sm:$0xf]
        %v7454 = vld [vmem:[%s7 + $0x30] sm:$0xf]
        %v7455 = vld [vmem:[%s7 + $0x34] sm:$0xf]
        %v7456 = vld [vmem:[%s7 + $0x38] sm:$0xf]
        %v7457 = vld [vmem:[%s7 + $0x3c] sm:$0xf]
        %v7458 = vld [vmem:[%s7 + $0x40] sm:$0xf]
        %v7459 = vld [vmem:[%s7 + $0x44] sm:$0x7]
        %v7478 = vunpack.c.l.b16 %v7442
        %v7479 = vunpack.c.l.b16 %v7443
        %v7480 = vunpack.c.l.b16 %v7444
        %v7481 = vunpack.c.l.b16 %v7445
        %v7482 = vunpack.c.l.b16 %v7446
        %v7483 = vunpack.c.l.b16 %v7447
        %v7484 = vunpack.c.l.b16 %v7448
        %v7485 = vunpack.c.l.b16 %v7449
        %v7486 = vunpack.c.l.b16 %v7450
        %v7487 = vunpack.c.l.b16 %v7451
        %v7488 = vunpack.c.l.b16 %v7452
        %v7489 = vunpack.c.l.b16 %v7453
        %v7490 = vunpack.c.l.b16 %v7454
        %v7491 = vunpack.c.l.b16 %v7455
        %v7492 = vunpack.c.l.b16 %v7456
        %v7493 = vunpack.c.l.b16 %v7457
        %v7494 = vunpack.c.l.b16 %v7458
        %v7495 = vunpack.c.l.b16 %v7459
        %v7496 = vpack.c.b16 %v7479, %v7478
        %v7497 = vpack.c.b16 %v7481, %v7480
        %v7498 = vpack.c.b16 %v7483, %v7482
        %v7499 = vpack.c.b16 %v7485, %v7484
        %v7500 = vpack.c.b16 %v7487, %v7486
        %v7501 = vpack.c.b16 %v7489, %v7488
        %v7502 = vpack.c.b16 %v7491, %v7490
        %v7503 = vpack.c.b16 %v7493, %v7492
        %v7504 = vpack.c.b16 %v7495, %v7494
        %vm7513 = vcmask 105472
        %v7515 = vsel %vm7513, %v7411, 0
        %v7518 = vsel %vm7513, %v7413, 0
        %v7521 = vsel %vm7513, %v7415, 0
        %v7524 = vsel %vm7513, %v7417, 0
        %v7527 = vsel %vm7513, %v7419, 0
        %v7530 = vsel %vm7513, %v7421, 0
        %v7533 = vsel %vm7513, %v7423, 0
        %v7536 = vsel %vm7513, %v7425, 0
        %v7539 = vsel %vm7513, %v7427, 0
        %v7542 = vsel %vm7513, %v7429, 0
        %v7545 = vsel %vm7513, %v7431, 0
        %v7548 = vsel %vm7513, %v7433, 0
        %v7551 = vsel %vm7513, %v7435, 0
        %v7554 = vsel %vm7513, %v7437, 0
        %v7557 = vsel %vm7513, %v7439, 0
        %v7560 = vsel %vm7513, %v7441, 0
        %vm7562 = vcmask 1045504
        %vm7563 = vcmask 1046528
        %v7564 = vsel %vm7562, 4294967295, 65535
        %v7565 = vsel %vm7563, %v7564, 0
        %v7567 = vand.u32 %v7504, %v7565
        %7569 = vmatprep.subr.bf16.mxu0 0
        %7570 = vmatpush1.bf16.msra.mxu0 %v7496
        %7571 = vmatprep.subr.bf16.mxu0 0
        %7572 = vmatpush1.bf16.msra.mxu0 %v7497
        %7573 = vmatprep.subr.bf16.mxu0 0
        %7574 = vmatpush1.bf16.msra.mxu0 %v7498
        %7575 = vmatprep.subr.bf16.mxu0 0
        %7576 = vmatpush1.bf16.msra.mxu0 %v7499
        %7577 = vmatprep.subr.bf16.mxu0 0
        %7578 = vmatpush1.bf16.msra.mxu0 %v7500
        %7579 = vmatprep.subr.bf16.mxu0 0
        %7580 = vmatpush1.bf16.msra.mxu0 %v7501
        %7581 = vmatprep.subr.bf16.mxu0 0
        %7582 = vmatpush1.bf16.msra.mxu0 %v7502
        %7583 = vmatprep.subr.bf16.mxu0 0
        %7584 = vmatpush1.bf16.msra.mxu0 %v7503
        %7585 = vmatprep.subr.bf16.mxu0 0
        %7586 = vmatpush1.bf16.msra.mxu0 %v7567
        %7587 = vmatprep.subr.bf16.mxu0 0
        %7588 = vmatpush1.bf16.msra.mxu0 0
        %7589 = vmatprep.subr.bf16.mxu0 0
        %7590 = vmatpush1.bf16.msra.mxu0 0
        %7591 = vmatprep.subr.bf16.mxu0 0
        %7592 = vmatpush1.bf16.msra.mxu0 0
        %7593 = vmatprep.subr.bf16.mxu0 0
        %7594 = vmatpush1.bf16.msra.mxu0 0
        %7595 = vmatprep.subr.bf16.mxu0 0
        %7596 = vmatpush1.bf16.msra.mxu0 0
        %7597 = vmatprep.subr.bf16.mxu0 0
        %7598 = vmatpush1.bf16.msra.mxu0 0
        %7599 = vmatprep.subr.bf16.mxu0 0
        %7600 = vmatpush1.bf16.msra.mxu0 0
        %7601 = vmatprep.mubr.bf16.mxu0 %v7515
        %7602 = vmatmul.mubr.bf16.gmra.mrb[0].mxu0 %v7410
        %v7603 = vpop.f32.mrb[0].mxu0
        %v7604 = vadd.f32 0.0, %v7603
        %v7605 = vpop.f32.mrb[0].mxu0
        %v7606 = vpop.f32.mrb[0].mxu0
        %v7607 = vadd.f32 0.0, %v7606
        %v7608 = vpop.f32.mrb[0].mxu0
        %7609 = vmatprep.mubr.bf16.mxu0 %v7518
        %7610 = vmatmul.mubr.bf16.gmra.mrb[0].mxu0 %v7412
        %v7611 = vpop.f32.mrb[0].mxu0
        %v7612 = vadd.f32 0.0, %v7611
        %v7613 = vpop.f32.mrb[0].mxu0
        %v7614 = vpop.f32.mrb[0].mxu0
        %v7615 = vadd.f32 0.0, %v7614
        %v7616 = vpop.f32.mrb[0].mxu0
        %7617 = vmatprep.mubr.bf16.mxu0 %v7521
        %7618 = vmatmul.mubr.bf16.gmra.mrb[0].mxu0 %v7414
        %v7619 = vpop.f32.mrb[0].mxu0
        %v7620 = vadd.f32 0.0, %v7619
        %v7621 = vpop.f32.mrb[0].mxu0
        %v7622 = vpop.f32.mrb[0].mxu0
        %v7623 = vadd.f32 0.0, %v7622
        %v7624 = vpop.f32.mrb[0].mxu0
        %7625 = vmatprep.mubr.bf16.mxu0 %v7524
        %7626 = vmatmul.mubr.bf16.gmra.mrb[0].mxu0 %v7416
        %v7627 = vpop.f32.mrb[0].mxu0
        %v7628 = vadd.f32 0.0, %v7627
        %v7629 = vpop.f32.mrb[0].mxu0
        %v7630 = vpop.f32.mrb[0].mxu0
        %v7631 = vadd.f32 0.0, %v7630
        %v7632 = vpop.f32.mrb[0].mxu0
        %7633 = vmatprep.mubr.bf16.mxu0 %v7527
        %7634 = vmatmul.mubr.bf16.gmra.mrb[0].mxu0 %v7418
        %v7635 = vpop.f32.mrb[0].mxu0
        %v7636 = vadd.f32 0.0, %v7635
        %v7637 = vpop.f32.mrb[0].mxu0
        %v7638 = vpop.f32.mrb[0].mxu0
        %v7639 = vadd.f32 0.0, %v7638
        %v7640 = vpop.f32.mrb[0].mxu0
        %7641 = vmatprep.mubr.bf16.mxu0 %v7530
        %7642 = vmatmul.mubr.bf16.gmra.mrb[0].mxu0 %v7420
        %v7643 = vpop.f32.mrb[0].mxu0
        %v7644 = vadd.f32 0.0, %v7643
        %v7645 = vpop.f32.mrb[0].mxu0
        %v7646 = vpop.f32.mrb[0].mxu0
        %v7647 = vadd.f32 0.0, %v7646
        %v7648 = vpop.f32.mrb[0].mxu0
        %7649 = vmatprep.mubr.bf16.mxu0 %v7533
        %7650 = vmatmul.mubr.bf16.gmra.mrb[0].mxu0 %v7422
        %v7651 = vpop.f32.mrb[0].mxu0
        %v7652 = vadd.f32 0.0, %v7651
        %v7653 = vpop.f32.mrb[0].mxu0
        %v7654 = vpop.f32.mrb[0].mxu0
        %v7655 = vadd.f32 0.0, %v7654
        %v7656 = vpop.f32.mrb[0].mxu0
        %7657 = vmatprep.mubr.bf16.mxu0 %v7536
        %7658 = vmatmul.mubr.bf16.gmra.mrb[0].mxu0 %v7424
        %v7659 = vpop.f32.mrb[0].mxu0
        %v7660 = vadd.f32 0.0, %v7659
        %v7661 = vpop.f32.mrb[0].mxu0
        %v7662 = vpop.f32.mrb[0].mxu0
        %v7663 = vadd.f32 0.0, %v7662
        %v7664 = vpop.f32.mrb[0].mxu0
        %7665 = vmatprep.mubr.bf16.mxu0 %v7539
        %7666 = vmatmul.mubr.bf16.gmra.mrb[0].mxu0 %v7426
        %v7667 = vpop.f32.mrb[0].mxu0
        %v7668 = vadd.f32 0.0, %v7667
        %v7669 = vpop.f32.mrb[0].mxu0
        %v7670 = vpop.f32.mrb[0].mxu0
        %v7671 = vadd.f32 0.0, %v7670
        %v7672 = vpop.f32.mrb[0].mxu0
        %7673 = vmatprep.mubr.bf16.mxu0 %v7542
        %7674 = vmatmul.mubr.bf16.gmra.mrb[0].mxu0 %v7428
        %v7675 = vpop.f32.mrb[0].mxu0
        %v7676 = vadd.f32 0.0, %v7675
        %v7677 = vpop.f32.mrb[0].mxu0
        %v7678 = vpop.f32.mrb[0].mxu0
        %v7679 = vadd.f32 0.0, %v7678
        %v7680 = vpop.f32.mrb[0].mxu0
        %7681 = vmatprep.mubr.bf16.mxu0 %v7545
        %7682 = vmatmul.mubr.bf16.gmra.mrb[0].mxu0 %v7430
        %v7683 = vpop.f32.mrb[0].mxu0
        %v7684 = vadd.f32 0.0, %v7683
        %v7685 = vpop.f32.mrb[0].mxu0
        %v7686 = vpop.f32.mrb[0].mxu0
        %v7687 = vadd.f32 0.0, %v7686
        %v7688 = vpop.f32.mrb[0].mxu0
        %7689 = vmatprep.mubr.bf16.mxu0 %v7548
        %7690 = vmatmul.mubr.bf16.gmra.mrb[0].mxu0 %v7432
        %v7691 = vpop.f32.mrb[0].mxu0
        %v7692 = vadd.f32 0.0, %v7691
        %v7693 = vpop.f32.mrb[0].mxu0
        %v7694 = vpop.f32.mrb[0].mxu0
        %v7695 = vadd.f32 0.0, %v7694
        %v7696 = vpop.f32.mrb[0].mxu0
        %7697 = vmatprep.mubr.bf16.mxu0 %v7551
        %7698 = vmatmul.mubr.bf16.gmra.mrb[0].mxu0 %v7434
        %v7699 = vpop.f32.mrb[0].mxu0
        %v7700 = vadd.f32 0.0, %v7699
        %v7701 = vpop.f32.mrb[0].mxu0
        %v7702 = vpop.f32.mrb[0].mxu0
        %v7703 = vadd.f32 0.0, %v7702
        %v7704 = vpop.f32.mrb[0].mxu0
        %7705 = vmatprep.mubr.bf16.mxu0 %v7554
        %7706 = vmatmul.mubr.bf16.gmra.mrb[0].mxu0 %v7436
        %v7707 = vpop.f32.mrb[0].mxu0
        %v7708 = vadd.f32 0.0, %v7707
        %v7709 = vpop.f32.mrb[0].mxu0
        %v7710 = vpop.f32.mrb[0].mxu0
        %v7711 = vadd.f32 0.0, %v7710
        %v7712 = vpop.f32.mrb[0].mxu0
        %7713 = vmatprep.mubr.bf16.mxu0 %v7557
        %7714 = vmatmul.mubr.bf16.gmra.mrb[0].mxu0 %v7438
        %v7715 = vpop.f32.mrb[0].mxu0
        %v7716 = vadd.f32 0.0, %v7715
        %v7717 = vpop.f32.mrb[0].mxu0
        %v7718 = vpop.f32.mrb[0].mxu0
        %v7719 = vadd.f32 0.0, %v7718
        %v7720 = vpop.f32.mrb[0].mxu0
        %7721 = vmatprep.mubr.bf16.mxu0 %v7560
        %7722 = vmatmul.mubr.bf16.gmra.mrb[0].mxu0 %v7440
        %v7723 = vpop.f32.mrb[0].mxu0
        %v7724 = vadd.f32 0.0, %v7723
        %v7725 = vpop.f32.mrb[0].mxu0
        %v7726 = vpop.f32.mrb[0].mxu0
        %v7727 = vadd.f32 0.0, %v7726
        %v7728 = vpop.f32.mrb[0].mxu0
        %7729 = vdwg.mxu0
        %vm7730 = vcmask 293888
        %7731 = vst.msk [vmem:[#allocation3] sm:$0xff] %vm7730, %v7604
        %7733 = vrot.lane.b32.xlu0 %v7607, 36
        %v7734 = vpop.permute.xlu0 %7733
        %vm7736 = vcmask 589088
        %7737 = vst.msk [vmem:[#allocation3] sm:$0xff] %vm7736, %v7734
        %7739 = vrot.lane.b32.xlu0 %v7612, 72
        %v7740 = vpop.permute.xlu0 %7739
        %vm7742 = vcmask 884288
        %7743 = vst.msk [vmem:[#allocation3] sm:$0xff] %vm7742, %v7740
        %7745 = vrot.lane.b32.xlu0 %v7615, 108
        %v7746 = vpop.permute.xlu0 %7745
        %vm7748 = vcmask 1048416
        %7749 = vst.msk [vmem:[#allocation3] sm:$0xff] %vm7748, %v7746
        %7750 = vst.msk [vmem:[#allocation3 + $0x8] sm:$0xff] %vm482, %v7746
        %7752 = vrot.lane.b32.xlu0 %v7620, 16
        %v7753 = vpop.permute.xlu0 %7752
        %vm7755 = vcmask 425088
        %7756 = vst.msk [vmem:[#allocation3 + $0x8] sm:$0xff] %vm7755, %v7753
        %7758 = vrot.lane.b32.xlu0 %v7623, 52
        %v7759 = vpop.permute.xlu0 %7758
        %vm7761 = vcmask 720288
        %7762 = vst.msk [vmem:[#allocation3 + $0x8] sm:$0xff] %vm7761, %v7759
        %7764 = vrot.lane.b32.xlu0 %v7628, 88
        %v7765 = vpop.permute.xlu0 %7764
        %vm7767 = vcmask 1015488
        %7768 = vst.msk [vmem:[#allocation3 + $0x8] sm:$0xff] %vm7767, %v7765
        %7770 = vrot.lane.b32.xlu0 %v7631, 124
        %v7771 = vpop.permute.xlu0 %7770
        %vm7773 = vcmask 1048544
        %7774 = vst.msk [vmem:[#allocation3 + $0x8] sm:$0xff] %vm7773, %v7771
        %vm7775 = vcmask 261120
        %7776 = vst.msk [vmem:[#allocation3 + $0x10] sm:$0xff] %vm7775, %v7771
        %7778 = vrot.lane.b32.xlu0 %v7636, 32
        %v7779 = vpop.permute.xlu0 %7778
        %vm7781 = vcmask 556288
        %7782 = vst.msk [vmem:[#allocation3 + $0x10] sm:$0xff] %vm7781, %v7779
        %7784 = vrot.lane.b32.xlu0 %v7639, 68
        %v7785 = vpop.permute.xlu0 %7784
        %vm7787 = vcmask 851488
        %7788 = vst.msk [vmem:[#allocation3 + $0x10] sm:$0xff] %vm7787, %v7785
        %7790 = vrot.lane.b32.xlu0 %v7644, 104
        %v7791 = vpop.permute.xlu0 %7790
        %vm7793 = vcmask 1048384
        %7794 = vst.msk [vmem:[#allocation3 + $0x10] sm:$0xff] %vm7793, %v7791
        %vm7795 = vcmask 97280
        %7796 = vst.msk [vmem:[#allocation3 + $0x18] sm:$0xff] %vm7795, %v7791
        %7798 = vrot.lane.b32.xlu0 %v7647, 12
        %v7799 = vpop.permute.xlu0 %7798
        %vm7801 = vcmask 392288
        %7802 = vst.msk [vmem:[#allocation3 + $0x18] sm:$0xff] %vm7801, %v7799
        %7804 = vrot.lane.b32.xlu0 %v7652, 48
        %v7805 = vpop.permute.xlu0 %7804
        %vm7807 = vcmask 687488
        %7808 = vst.msk [vmem:[#allocation3 + $0x18] sm:$0xff] %vm7807, %v7805
        %7810 = vrot.lane.b32.xlu0 %v7655, 84
        %v7811 = vpop.permute.xlu0 %7810
        %vm7813 = vcmask 982688
        %7814 = vst.msk [vmem:[#allocation3 + $0x18] sm:$0xff] %vm7813, %v7811
        %7816 = vrot.lane.b32.xlu0 %v7660, 120
        %v7817 = vpop.permute.xlu0 %7816
        %vm7819 = vcmask 1048512
        %7820 = vst.msk [vmem:[#allocation3 + $0x18] sm:$0xff] %vm7819, %v7817
        %vm7821 = vcmask 228352
        %7822 = vst.msk [vmem:[#allocation3 + $0x20] sm:$0xff] %vm7821, %v7817
        %7824 = vrot.lane.b32.xlu0 %v7663, 28
        %v7825 = vpop.permute.xlu0 %7824
        %vm7827 = vcmask 523488
        %7828 = vst.msk [vmem:[#allocation3 + $0x20] sm:$0xff] %vm7827, %v7825
        %7830 = vrot.lane.b32.xlu0 %v7668, 64
        %v7831 = vpop.permute.xlu0 %7830
        %vm7833 = vcmask 818688
        %7834 = vst.msk [vmem:[#allocation3 + $0x20] sm:$0xff] %vm7833, %v7831
        %7836 = vrot.lane.b32.xlu0 %v7671, 100
        %v7837 = vpop.permute.xlu0 %7836
        %vm7839 = vcmask 1048352
        %7840 = vst.msk [vmem:[#allocation3 + $0x20] sm:$0xff] %vm7839, %v7837
        %vm7841 = vcmask 64512
        %7842 = vst.msk [vmem:[#allocation3 + $0x28] sm:$0xff] %vm7841, %v7837
        %7844 = vrot.lane.b32.xlu0 %v7676, 8
        %v7845 = vpop.permute.xlu0 %7844
        %vm7847 = vcmask 359488
        %7848 = vst.msk [vmem:[#allocation3 + $0x28] sm:$0xff] %vm7847, %v7845
        %7850 = vrot.lane.b32.xlu0 %v7679, 44
        %v7851 = vpop.permute.xlu0 %7850
        %vm7853 = vcmask 654688
        %7854 = vst.msk [vmem:[#allocation3 + $0x28] sm:$0xff] %vm7853, %v7851
        %7856 = vrot.lane.b32.xlu0 %v7684, 80
        %v7857 = vpop.permute.xlu0 %7856
        %vm7859 = vcmask 949888
        %7860 = vst.msk [vmem:[#allocation3 + $0x28] sm:$0xff] %vm7859, %v7857
        %7862 = vrot.lane.b32.xlu0 %v7687, 116
        %v7863 = vpop.permute.xlu0 %7862
        %vm7865 = vcmask 1048480
        %7866 = vst.msk [vmem:[#allocation3 + $0x28] sm:$0xff] %vm7865, %v7863
        %vm7867 = vcmask 195584
        %7868 = vst.msk [vmem:[#allocation3 + $0x30] sm:$0xff] %vm7867, %v7863
        %7870 = vrot.lane.b32.xlu0 %v7692, 24
        %v7871 = vpop.permute.xlu0 %7870
        %vm7873 = vcmask 490688
        %7874 = vst.msk [vmem:[#allocation3 + $0x30] sm:$0xff] %vm7873, %v7871
        %7876 = vrot.lane.b32.xlu0 %v7695, 60
        %v7877 = vpop.permute.xlu0 %7876
        %vm7879 = vcmask 785888
        %7880 = vst.msk [vmem:[#allocation3 + $0x30] sm:$0xff] %vm7879, %v7877
        %7882 = vrot.lane.b32.xlu0 %v7700, 96
        %v7883 = vpop.permute.xlu0 %7882
        %vm7885 = vcmask 1048320
        %7886 = vst.msk [vmem:[#allocation3 + $0x30] sm:$0xff] %vm7885, %v7883
        %vm7887 = vcmask 31744
        %7888 = vst.msk [vmem:[#allocation3 + $0x38] sm:$0xff] %vm7887, %v7883
        %7890 = vrot.lane.b32.xlu0 %v7703, 4
        %v7891 = vpop.permute.xlu0 %7890
        %vm7893 = vcmask 326688
        %7894 = vst.msk [vmem:[#allocation3 + $0x38] sm:$0xff] %vm7893, %v7891
        %7896 = vrot.lane.b32.xlu0 %v7708, 40
        %v7897 = vpop.permute.xlu0 %7896
        %vm7899 = vcmask 621888
        %7900 = vst.msk [vmem:[#allocation3 + $0x38] sm:$0xff] %vm7899, %v7897
        %7902 = vrot.lane.b32.xlu0 %v7711, 76
        %v7903 = vpop.permute.xlu0 %7902
        %vm7905 = vcmask 917088
        %7906 = vst.msk [vmem:[#allocation3 + $0x38] sm:$0xff] %vm7905, %v7903
        %7908 = vrot.lane.b32.xlu0 %v7716, 112
        %v7909 = vpop.permute.xlu0 %7908
        %vm7911 = vcmask 1048448
        %7912 = vst.msk [vmem:[#allocation3 + $0x38] sm:$0xff] %vm7911, %v7909
        %vm7913 = vcmask 162816
        %7914 = vst.msk [vmem:[#allocation3 + $0x40] sm:$0xff] %vm7913, %v7909
        %7916 = vrot.lane.b32.xlu0 %v7719, 20
        %v7917 = vpop.permute.xlu0 %7916
        %vm7919 = vcmask 457888
        %7920 = vst.msk [vmem:[#allocation3 + $0x40] sm:$0xff] %vm7919, %v7917
        %7922 = vrot.lane.b32.xlu0 %v7724, 56
        %v7923 = vpop.permute.xlu0 %7922
        %vm7925 = vcmask 753088
        %7926 = vst.msk [vmem:[#allocation3 + $0x40] sm:$0xff] %vm7925, %v7923
        %7928 = vrot.lane.b32.xlu0 %v7727, 92
        %v7929 = vpop.permute.xlu0 %7928
        %vm7931 = vcmask 1048288
        %7932 = vst.msk [vmem:[#allocation3 + $0x40] sm:$0xff] %vm7931, %v7929
        %v7933 = vld [vmem:[#allocation3] sm:$0xff]
        %v7934 = vld [vmem:[#allocation3 + $0x8] sm:$0xff]
        %v7935 = vld [vmem:[#allocation3 + $0x10] sm:$0xff]
        %v7936 = vld [vmem:[#allocation3 + $0x18] sm:$0xff]
        %v7937 = vld [vmem:[#allocation3 + $0x20] sm:$0xff]
        %v7938 = vld [vmem:[#allocation3 + $0x28] sm:$0xff]
        %v7939 = vld [vmem:[#allocation3 + $0x30] sm:$0xff]
        %v7940 = vld [vmem:[#allocation3 + $0x38] sm:$0xff]
        %v7941 = vld [vmem:[#allocation3 + $0x40] sm:$0xff]
        %v7942 = vpack.c.bf16 %v7933, %v7933
        %v7943 = vpack.c.bf16 %v7934, %v7934
        %v7944 = vpack.c.bf16 %v7935, %v7935
        %v7945 = vpack.c.bf16 %v7936, %v7936
        %v7946 = vpack.c.bf16 %v7937, %v7937
        %v7947 = vpack.c.bf16 %v7938, %v7938
        %v7948 = vpack.c.bf16 %v7939, %v7939
        %v7949 = vpack.c.bf16 %v7940, %v7940
        %v7950 = vpack.c.bf16 %v7941, %v7941
        %v7951 = vld [vmem:[%s8] sm:$0xf]
        %v7952 = vld [vmem:[%s8 + $0x4] sm:$0xf]
        %v7953 = vld [vmem:[%s8 + $0x8] sm:$0xf]
        %v7954 = vld [vmem:[%s8 + $0xc] sm:$0xf]
        %v7955 = vld [vmem:[%s8 + $0x10] sm:$0xf]
        %v7956 = vld [vmem:[%s8 + $0x14] sm:$0xf]
        %v7957 = vld [vmem:[%s8 + $0x18] sm:$0xf]
        %v7958 = vld [vmem:[%s8 + $0x1c] sm:$0xf]
        %v7959 = vld [vmem:[%s8 + $0x20] sm:$0xf]
        %v7960 = vld [vmem:[%s8 + $0x24] sm:$0xf]
        %v7961 = vld [vmem:[%s8 + $0x28] sm:$0xf]
        %v7962 = vld [vmem:[%s8 + $0x2c] sm:$0xf]
        %v7963 = vld [vmem:[%s8 + $0x30] sm:$0xf]
        %v7964 = vld [vmem:[%s8 + $0x34] sm:$0xf]
        %v7965 = vld [vmem:[%s8 + $0x38] sm:$0xf]
        %v7966 = vld [vmem:[%s8 + $0x3c] sm:$0xf]
        %v7967 = vld [vmem:[%s8 + $0x40] sm:$0xf]
        %v7968 = vld [vmem:[%s8 + $0x44] sm:$0xf]
        %v7969 = vld [vmem:[%s8 + $0x48] sm:$0xf]
        %v7970 = vld [vmem:[%s8 + $0x4c] sm:$0xf]
        %v7971 = vld [vmem:[%s8 + $0x50] sm:$0xf]
        %v7972 = vld [vmem:[%s8 + $0x54] sm:$0xf]
        %v7973 = vld [vmem:[%s8 + $0x58] sm:$0xf]
        %v7974 = vld [vmem:[%s8 + $0x5c] sm:$0xf]
        %v7975 = vld [vmem:[%s8 + $0x60] sm:$0xf]
        %v7976 = vld [vmem:[%s8 + $0x64] sm:$0xf]
        %v7977 = vld [vmem:[%s8 + $0x68] sm:$0xf]
        %v7978 = vld [vmem:[%s8 + $0x6c] sm:$0xf]
        %v7979 = vld [vmem:[%s8 + $0x70] sm:$0xf]
        %v7980 = vld [vmem:[%s8 + $0x74] sm:$0xf]
        %v7981 = vld [vmem:[%s8 + $0x78] sm:$0xf]
        %v7982 = vld [vmem:[%s8 + $0x7c] sm:$0xf]
        %v7983 = vld [vmem:[%s8 + $0x80] sm:$0xf]
        %v7984 = vld [vmem:[%s8 + $0x84] sm:$0xf]
        %v7985 = vld [vmem:[%s8 + $0x88] sm:$0xf]
        %v7986 = vld [vmem:[%s8 + $0x8c] sm:$0xf]
        %v7987 = vld [vmem:[%s8 + $0x90] sm:$0xf]
        %v7988 = vld [vmem:[%s8 + $0x94] sm:$0xf]
        %v7989 = vld [vmem:[%s8 + $0x98] sm:$0xf]
        %v7990 = vld [vmem:[%s8 + $0x9c] sm:$0xf]
        %v7991 = vld [vmem:[%s8 + $0xa0] sm:$0xf]
        %v7992 = vld [vmem:[%s8 + $0xa4] sm:$0xf]
        %v7993 = vld [vmem:[%s8 + $0xa8] sm:$0xf]
        %v7994 = vld [vmem:[%s8 + $0xac] sm:$0xf]
        %v7995 = vld [vmem:[%s8 + $0xb0] sm:$0xf]
        %v7996 = vld [vmem:[%s8 + $0xb4] sm:$0xf]
        %v7997 = vld [vmem:[%s8 + $0xb8] sm:$0xf]
        %v7998 = vld [vmem:[%s8 + $0xbc] sm:$0xf]
        %v7999 = vld [vmem:[%s8 + $0xc0] sm:$0xf]
        %v8000 = vld [vmem:[%s8 + $0xc4] sm:$0xf]
        %v8001 = vld [vmem:[%s8 + $0xc8] sm:$0xf]
        %v8002 = vld [vmem:[%s8 + $0xcc] sm:$0xf]
        %v8003 = vld [vmem:[%s8 + $0xd0] sm:$0xf]
        %v8004 = vld [vmem:[%s8 + $0xd4] sm:$0xf]
        %v8005 = vld [vmem:[%s8 + $0xd8] sm:$0xf]
        %v8006 = vld [vmem:[%s8 + $0xdc] sm:$0xf]
        %v8007 = vld [vmem:[%s8 + $0xe0] sm:$0xf]
        %v8008 = vld [vmem:[%s8 + $0xe4] sm:$0xf]
        %v8009 = vld [vmem:[%s8 + $0xe8] sm:$0xf]
        %v8010 = vld [vmem:[%s8 + $0xec] sm:$0xf]
        %v8011 = vld [vmem:[%s8 + $0xf0] sm:$0xf]
        %v8012 = vld [vmem:[%s8 + $0xf4] sm:$0xf]
        %v8013 = vld [vmem:[%s8 + $0xf8] sm:$0xf]
        %v8014 = vld [vmem:[%s8 + $0xfc] sm:$0xf]
        %v8015 = vld [vmem:[%s8 + $0x100] sm:$0xf]
        %v8016 = vld [vmem:[%s8 + $0x104] sm:$0xf]
        %v8017 = vld [vmem:[%s8 + $0x108] sm:$0xf]
        %v8018 = vld [vmem:[%s8 + $0x10c] sm:$0xf]
        %v8019 = vld [vmem:[%s8 + $0x110] sm:$0xf]
        %v8020 = vld [vmem:[%s8 + $0x114] sm:$0xf]
        %v8021 = vld [vmem:[%s8 + $0x118] sm:$0xf]
        %v8022 = vld [vmem:[%s8 + $0x11c] sm:$0xf]
        %v8023 = vld [vmem:[%s8 + $0x120] sm:$0xf]
        %v8024 = vld [vmem:[%s8 + $0x124] sm:$0xf]
        %v8025 = vld [vmem:[%s8 + $0x128] sm:$0xf]
        %v8026 = vld [vmem:[%s8 + $0x12c] sm:$0xf]
        %v8027 = vld [vmem:[%s8 + $0x130] sm:$0xf]
        %v8028 = vld [vmem:[%s8 + $0x134] sm:$0xf]
        %v8029 = vld [vmem:[%s8 + $0x138] sm:$0xf]
        %v8030 = vld [vmem:[%s8 + $0x13c] sm:$0xf]
        %v8031 = vld [vmem:[%s8 + $0x140] sm:$0xf]
        %v8032 = vld [vmem:[%s8 + $0x144] sm:$0xf]
        %v8033 = vld [vmem:[%s8 + $0x148] sm:$0xf]
        %v8034 = vld [vmem:[%s8 + $0x14c] sm:$0xf]
        %v8035 = vld [vmem:[%s8 + $0x150] sm:$0xf]
        %v8036 = vld [vmem:[%s8 + $0x154] sm:$0xf]
        %v8037 = vld [vmem:[%s8 + $0x158] sm:$0xf]
        %v8038 = vld [vmem:[%s8 + $0x15c] sm:$0xf]
        %v8039 = vld [vmem:[%s8 + $0x160] sm:$0xf]
        %v8040 = vld [vmem:[%s8 + $0x164] sm:$0xf]
        %v8041 = vld [vmem:[%s8 + $0x168] sm:$0xf]
        %v8042 = vld [vmem:[%s8 + $0x16c] sm:$0xf]
        %v8043 = vld [vmem:[%s8 + $0x170] sm:$0xf]
        %v8044 = vld [vmem:[%s8 + $0x174] sm:$0xf]
        %v8045 = vld [vmem:[%s8 + $0x178] sm:$0xf]
        %v8046 = vld [vmem:[%s8 + $0x17c] sm:$0xf]
        %v8047 = vld [vmem:[%s8 + $0x180] sm:$0xf]
        %v8048 = vld [vmem:[%s8 + $0x184] sm:$0xf]
        %v8049 = vld [vmem:[%s8 + $0x188] sm:$0xf]
        %v8050 = vld [vmem:[%s8 + $0x18c] sm:$0xf]
        %v8051 = vld [vmem:[%s8 + $0x190] sm:$0xf]
        %v8052 = vld [vmem:[%s8 + $0x194] sm:$0xf]
        %v8053 = vld [vmem:[%s8 + $0x198] sm:$0xf]
        %v8054 = vld [vmem:[%s8 + $0x19c] sm:$0xf]
        %v8055 = vld [vmem:[%s8 + $0x1a0] sm:$0xf]
        %v8056 = vld [vmem:[%s8 + $0x1a4] sm:$0xf]
        %v8057 = vld [vmem:[%s8 + $0x1a8] sm:$0xf]
        %v8058 = vld [vmem:[%s8 + $0x1ac] sm:$0xf]
        %v8059 = vld [vmem:[%s8 + $0x1b0] sm:$0xf]
        %v8060 = vld [vmem:[%s8 + $0x1b4] sm:$0xf]
        %v8061 = vld [vmem:[%s8 + $0x1b8] sm:$0xf]
        %v8062 = vld [vmem:[%s8 + $0x1bc] sm:$0xf]
        %v8063 = vld [vmem:[%s8 + $0x1c0] sm:$0xf]
        %v8064 = vld [vmem:[%s8 + $0x1c4] sm:$0xf]
        %v8065 = vld [vmem:[%s8 + $0x1c8] sm:$0xf]
        %v8066 = vld [vmem:[%s8 + $0x1cc] sm:$0xf]
        %v8067 = vld [vmem:[%s8 + $0x1d0] sm:$0xf]
        %v8068 = vld [vmem:[%s8 + $0x1d4] sm:$0xf]
        %v8069 = vld [vmem:[%s8 + $0x1d8] sm:$0xf]
        %v8070 = vld [vmem:[%s8 + $0x1dc] sm:$0xf]
        %v8071 = vld [vmem:[%s8 + $0x1e0] sm:$0xf]
        %v8072 = vld [vmem:[%s8 + $0x1e4] sm:$0xf]
        %v8073 = vld [vmem:[%s8 + $0x1e8] sm:$0xf]
        %v8074 = vld [vmem:[%s8 + $0x1ec] sm:$0xf]
        %v8075 = vld [vmem:[%s8 + $0x1f0] sm:$0xf]
        %v8076 = vld [vmem:[%s8 + $0x1f4] sm:$0xf]
        %v8077 = vld [vmem:[%s8 + $0x1f8] sm:$0xf]
        %v8078 = vld [vmem:[%s8 + $0x1fc] sm:$0xf]
        %v8079 = vld [vmem:[%s8 + $0x200] sm:$0xf]
        %v8080 = vld [vmem:[%s8 + $0x204] sm:$0xf]
        %v8081 = vld [vmem:[%s8 + $0x208] sm:$0xf]
        %v8082 = vld [vmem:[%s8 + $0x20c] sm:$0xf]
        %v8083 = vld [vmem:[%s8 + $0x210] sm:$0xf]
        %v8084 = vld [vmem:[%s8 + $0x214] sm:$0xf]
        %v8085 = vld [vmem:[%s8 + $0x218] sm:$0xf]
        %v8086 = vld [vmem:[%s8 + $0x21c] sm:$0xf]
        %v8087 = vld [vmem:[%s8 + $0x220] sm:$0xf]
        %v8088 = vld [vmem:[%s8 + $0x224] sm:$0xf]
        %v8089 = vld [vmem:[%s8 + $0x228] sm:$0xf]
        %v8090 = vld [vmem:[%s8 + $0x22c] sm:$0xf]
        %v8091 = vld [vmem:[%s8 + $0x230] sm:$0xf]
        %v8092 = vld [vmem:[%s8 + $0x234] sm:$0xf]
        %v8093 = vld [vmem:[%s8 + $0x238] sm:$0xf]
        %v8094 = vld [vmem:[%s8 + $0x23c] sm:$0xf]
        %v8095 = vld [vmem:[%s9] sm:$0x1]
        %v8097 = vlaneseq
        %v8098 = vshrl.u32 %v8097, 7
        %v8099 = vsub.s32 0, %v8098
        %v8100 = vrot.slane %v8095, %v8099
        %v8246 = vunpack.c.l.b16 %v7951
        %v8247 = vunpack.c.l.b16 %v7952
        %v8248 = vunpack.c.l.b16 %v7953
        %v8249 = vunpack.c.l.b16 %v7954
        %v8250 = vunpack.c.l.b16 %v7955
        %v8251 = vunpack.c.l.b16 %v7956
        %v8252 = vunpack.c.l.b16 %v7957
        %v8253 = vunpack.c.l.b16 %v7958
        %v8254 = vunpack.c.l.b16 %v7959
        %v8255 = vunpack.c.l.b16 %v7960
        %v8256 = vunpack.c.l.b16 %v7961
        %v8257 = vunpack.c.l.b16 %v7962
        %v8258 = vunpack.c.l.b16 %v7963
        %v8259 = vunpack.c.l.b16 %v7964
        %v8260 = vunpack.c.l.b16 %v7965
        %v8261 = vunpack.c.l.b16 %v7966
        %v8262 = vunpack.c.l.b16 %v7967
        %v8263 = vunpack.c.l.b16 %v7968
        %v8264 = vunpack.c.l.b16 %v7969
        %v8265 = vunpack.c.l.b16 %v7970
        %v8266 = vunpack.c.l.b16 %v7971
        %v8267 = vunpack.c.l.b16 %v7972
        %v8268 = vunpack.c.l.b16 %v7973
        %v8269 = vunpack.c.l.b16 %v7974
        %v8270 = vunpack.c.l.b16 %v7975
        %v8271 = vunpack.c.l.b16 %v7976
        %v8272 = vunpack.c.l.b16 %v7977
        %v8273 = vunpack.c.l.b16 %v7978
        %v8274 = vunpack.c.l.b16 %v7979
        %v8275 = vunpack.c.l.b16 %v7980
        %v8276 = vunpack.c.l.b16 %v7981
        %v8277 = vunpack.c.l.b16 %v7982
        %v8278 = vunpack.c.l.b16 %v7983
        %v8279 = vunpack.c.l.b16 %v7984
        %v8280 = vunpack.c.l.b16 %v7985
        %v8281 = vunpack.c.l.b16 %v7986
        %v8282 = vunpack.c.l.b16 %v7987
        %v8283 = vunpack.c.l.b16 %v7988
        %v8284 = vunpack.c.l.b16 %v7989
        %v8285 = vunpack.c.l.b16 %v7990
        %v8286 = vunpack.c.l.b16 %v7991
        %v8287 = vunpack.c.l.b16 %v7992
        %v8288 = vunpack.c.l.b16 %v7993
        %v8289 = vunpack.c.l.b16 %v7994
        %v8290 = vunpack.c.l.b16 %v7995
        %v8291 = vunpack.c.l.b16 %v7996
        %v8292 = vunpack.c.l.b16 %v7997
        %v8293 = vunpack.c.l.b16 %v7998
        %v8294 = vunpack.c.l.b16 %v7999
        %v8295 = vunpack.c.l.b16 %v8000
        %v8296 = vunpack.c.l.b16 %v8001
        %v8297 = vunpack.c.l.b16 %v8002
        %v8298 = vunpack.c.l.b16 %v8003
        %v8299 = vunpack.c.l.b16 %v8004
        %v8300 = vunpack.c.l.b16 %v8005
        %v8301 = vunpack.c.l.b16 %v8006
        %v8302 = vunpack.c.l.b16 %v8007
        %v8303 = vunpack.c.l.b16 %v8008
        %v8304 = vunpack.c.l.b16 %v8009
        %v8305 = vunpack.c.l.b16 %v8010
        %v8306 = vunpack.c.l.b16 %v8011
        %v8307 = vunpack.c.l.b16 %v8012
        %v8308 = vunpack.c.l.b16 %v8013
        %v8309 = vunpack.c.l.b16 %v8014
        %v8310 = vunpack.c.l.b16 %v8015
        %v8311 = vunpack.c.l.b16 %v8016
        %v8312 = vunpack.c.l.b16 %v8017
        %v8313 = vunpack.c.l.b16 %v8018
        %v8314 = vunpack.c.l.b16 %v8019
        %v8315 = vunpack.c.l.b16 %v8020
        %v8316 = vunpack.c.l.b16 %v8021
        %v8317 = vunpack.c.l.b16 %v8022
        %v8318 = vunpack.c.l.b16 %v8023
        %v8319 = vunpack.c.l.b16 %v8024
        %v8320 = vunpack.c.l.b16 %v8025
        %v8321 = vunpack.c.l.b16 %v8026
        %v8322 = vunpack.c.l.b16 %v8027
        %v8323 = vunpack.c.l.b16 %v8028
        %v8324 = vunpack.c.l.b16 %v8029
        %v8325 = vunpack.c.l.b16 %v8030
        %v8326 = vunpack.c.l.b16 %v8031
        %v8327 = vunpack.c.l.b16 %v8032
        %v8328 = vunpack.c.l.b16 %v8033
        %v8329 = vunpack.c.l.b16 %v8034
        %v8330 = vunpack.c.l.b16 %v8035
        %v8331 = vunpack.c.l.b16 %v8036
        %v8332 = vunpack.c.l.b16 %v8037
        %v8333 = vunpack.c.l.b16 %v8038
        %v8334 = vunpack.c.l.b16 %v8039
        %v8335 = vunpack.c.l.b16 %v8040
        %v8336 = vunpack.c.l.b16 %v8041
        %v8337 = vunpack.c.l.b16 %v8042
        %v8338 = vunpack.c.l.b16 %v8043
        %v8339 = vunpack.c.l.b16 %v8044
        %v8340 = vunpack.c.l.b16 %v8045
        %v8341 = vunpack.c.l.b16 %v8046
        %v8342 = vunpack.c.l.b16 %v8047
        %v8343 = vunpack.c.l.b16 %v8048
        %v8344 = vunpack.c.l.b16 %v8049
        %v8345 = vunpack.c.l.b16 %v8050
        %v8346 = vunpack.c.l.b16 %v8051
        %v8347 = vunpack.c.l.b16 %v8052
        %v8348 = vunpack.c.l.b16 %v8053
        %v8349 = vunpack.c.l.b16 %v8054
        %v8350 = vunpack.c.l.b16 %v8055
        %v8351 = vunpack.c.l.b16 %v8056
        %v8352 = vunpack.c.l.b16 %v8057
        %v8353 = vunpack.c.l.b16 %v8058
        %v8354 = vunpack.c.l.b16 %v8059
        %v8355 = vunpack.c.l.b16 %v8060
        %v8356 = vunpack.c.l.b16 %v8061
        %v8357 = vunpack.c.l.b16 %v8062
        %v8358 = vunpack.c.l.b16 %v8063
        %v8359 = vunpack.c.l.b16 %v8064
        %v8360 = vunpack.c.l.b16 %v8065
        %v8361 = vunpack.c.l.b16 %v8066
        %v8362 = vunpack.c.l.b16 %v8067
        %v8363 = vunpack.c.l.b16 %v8068
        %v8364 = vunpack.c.l.b16 %v8069
        %v8365 = vunpack.c.l.b16 %v8070
        %v8366 = vunpack.c.l.b16 %v8071
        %v8367 = vunpack.c.l.b16 %v8072
        %v8368 = vunpack.c.l.b16 %v8073
        %v8369 = vunpack.c.l.b16 %v8074
        %v8370 = vunpack.c.l.b16 %v8075
        %v8371 = vunpack.c.l.b16 %v8076
        %v8372 = vunpack.c.l.b16 %v8077
        %v8373 = vunpack.c.l.b16 %v8078
        %v8374 = vunpack.c.l.b16 %v8079
        %v8375 = vunpack.c.l.b16 %v8080
        %v8376 = vunpack.c.l.b16 %v8081
        %v8377 = vunpack.c.l.b16 %v8082
        %v8378 = vunpack.c.l.b16 %v8083
        %v8379 = vunpack.c.l.b16 %v8084
        %v8380 = vunpack.c.l.b16 %v8085
        %v8381 = vunpack.c.l.b16 %v8086
        %v8382 = vunpack.c.l.b16 %v8087
        %v8383 = vunpack.c.l.b16 %v8088
        %v8384 = vunpack.c.l.b16 %v8089
        %v8385 = vunpack.c.l.b16 %v8090
        %v8386 = vunpack.c.l.b16 %v8091
        %v8387 = vunpack.c.l.b16 %v8092
        %v8388 = vunpack.c.l.b16 %v8093
        %v8389 = vunpack.c.l.b16 %v8094
        %v8390 = vpack.c.b16 %v8247, %v8246
        %v8391 = vpack.c.b16 %v8249, %v8248
        %v8392 = vpack.c.b16 %v8251, %v8250
        %v8393 = vpack.c.b16 %v8253, %v8252
        %v8394 = vpack.c.b16 %v8255, %v8254
        %v8395 = vpack.c.b16 %v8257, %v8256
        %v8396 = vpack.c.b16 %v8259, %v8258
        %v8397 = vpack.c.b16 %v8261, %v8260
        %v8398 = vpack.c.b16 %v8263, %v8262
        %v8399 = vpack.c.b16 %v8265, %v8264
        %v8400 = vpack.c.b16 %v8267, %v8266
        %v8401 = vpack.c.b16 %v8269, %v8268
        %v8402 = vpack.c.b16 %v8271, %v8270
        %v8403 = vpack.c.b16 %v8273, %v8272
        %v8404 = vpack.c.b16 %v8275, %v8274
        %v8405 = vpack.c.b16 %v8277, %v8276
        %v8406 = vpack.c.b16 %v8279, %v8278
        %v8407 = vpack.c.b16 %v8281, %v8280
        %v8408 = vpack.c.b16 %v8283, %v8282
        %v8409 = vpack.c.b16 %v8285, %v8284
        %v8410 = vpack.c.b16 %v8287, %v8286
        %v8411 = vpack.c.b16 %v8289, %v8288
        %v8412 = vpack.c.b16 %v8291, %v8290
        %v8413 = vpack.c.b16 %v8293, %v8292
        %v8414 = vpack.c.b16 %v8295, %v8294
        %v8415 = vpack.c.b16 %v8297, %v8296
        %v8416 = vpack.c.b16 %v8299, %v8298
        %v8417 = vpack.c.b16 %v8301, %v8300
        %v8418 = vpack.c.b16 %v8303, %v8302
        %v8419 = vpack.c.b16 %v8305, %v8304
        %v8420 = vpack.c.b16 %v8307, %v8306
        %v8421 = vpack.c.b16 %v8309, %v8308
        %v8422 = vpack.c.b16 %v8311, %v8310
        %v8423 = vpack.c.b16 %v8313, %v8312
        %v8424 = vpack.c.b16 %v8315, %v8314
        %v8425 = vpack.c.b16 %v8317, %v8316
        %v8426 = vpack.c.b16 %v8319, %v8318
        %v8427 = vpack.c.b16 %v8321, %v8320
        %v8428 = vpack.c.b16 %v8323, %v8322
        %v8429 = vpack.c.b16 %v8325, %v8324
        %v8430 = vpack.c.b16 %v8327, %v8326
        %v8431 = vpack.c.b16 %v8329, %v8328
        %v8432 = vpack.c.b16 %v8331, %v8330
        %v8433 = vpack.c.b16 %v8333, %v8332
        %v8434 = vpack.c.b16 %v8335, %v8334
        %v8435 = vpack.c.b16 %v8337, %v8336
        %v8436 = vpack.c.b16 %v8339, %v8338
        %v8437 = vpack.c.b16 %v8341, %v8340
        %v8438 = vpack.c.b16 %v8343, %v8342
        %v8439 = vpack.c.b16 %v8345, %v8344
        %v8440 = vpack.c.b16 %v8347, %v8346
        %v8441 = vpack.c.b16 %v8349, %v8348
        %v8442 = vpack.c.b16 %v8351, %v8350
        %v8443 = vpack.c.b16 %v8353, %v8352
        %v8444 = vpack.c.b16 %v8355, %v8354
        %v8445 = vpack.c.b16 %v8357, %v8356
        %v8446 = vpack.c.b16 %v8359, %v8358
        %v8447 = vpack.c.b16 %v8361, %v8360
        %v8448 = vpack.c.b16 %v8363, %v8362
        %v8449 = vpack.c.b16 %v8365, %v8364
        %v8450 = vpack.c.b16 %v8367, %v8366
        %v8451 = vpack.c.b16 %v8369, %v8368
        %v8452 = vpack.c.b16 %v8371, %v8370
        %v8453 = vpack.c.b16 %v8373, %v8372
        %v8454 = vpack.c.b16 %v8375, %v8374
        %v8455 = vpack.c.b16 %v8377, %v8376
        %v8456 = vpack.c.b16 %v8379, %v8378
        %v8457 = vpack.c.b16 %v8381, %v8380
        %v8458 = vpack.c.b16 %v8383, %v8382
        %v8459 = vpack.c.b16 %v8385, %v8384
        %v8460 = vpack.c.b16 %v8387, %v8386
        %v8461 = vpack.c.b16 %v8389, %v8388
        %8534 = vmatprep.subr.bf16.mxu0 0
        %8535 = vmatpush1.bf16.msra.mxu0 %v8390
        %8536 = vmatprep.subr.bf16.mxu0 0
        %8537 = vmatpush1.bf16.msra.mxu0 %v8391
        %8538 = vmatprep.subr.bf16.mxu0 0
        %8539 = vmatpush1.bf16.msra.mxu0 %v8392
        %8540 = vmatprep.subr.bf16.mxu0 0
        %8541 = vmatpush1.bf16.msra.mxu0 %v8393
        %8542 = vmatprep.subr.bf16.mxu0 0
        %8543 = vmatpush1.bf16.msra.mxu0 %v8394
        %8544 = vmatprep.subr.bf16.mxu0 0
        %8545 = vmatpush1.bf16.msra.mxu0 %v8395
        %8546 = vmatprep.subr.bf16.mxu0 0
        %8547 = vmatpush1.bf16.msra.mxu0 %v8396
        %8548 = vmatprep.subr.bf16.mxu0 0
        %8549 = vmatpush1.bf16.msra.mxu0 %v8397
        %8550 = vmatprep.subr.bf16.mxu0 0
        %8551 = vmatpush1.bf16.msra.mxu0 %v8398
        %8552 = vmatprep.subr.bf16.mxu0 0
        %8553 = vmatpush1.bf16.msra.mxu0 %v8399
        %8554 = vmatprep.subr.bf16.mxu0 0
        %8555 = vmatpush1.bf16.msra.mxu0 %v8400
        %8556 = vmatprep.subr.bf16.mxu0 0
        %8557 = vmatpush1.bf16.msra.mxu0 %v8401
        %8558 = vmatprep.subr.bf16.mxu0 0
        %8559 = vmatpush1.bf16.msra.mxu0 %v8402
        %8560 = vmatprep.subr.bf16.mxu0 0
        %8561 = vmatpush1.bf16.msra.mxu0 %v8403
        %8562 = vmatprep.subr.bf16.mxu0 0
        %8563 = vmatpush1.bf16.msra.mxu0 %v8404
        %8564 = vmatprep.subr.bf16.mxu0 0
        %8565 = vmatpush1.bf16.msra.mxu0 %v8405
        %8566 = vmatprep.mubr.bf16.mxu0 %v7943
        %8567 = vmatmul.mubr.bf16.gmra.mrb[0].mxu0 %v7942
        %v8568 = vpop.f32.mrb[0].mxu0
        %v8569 = vadd.f32 %v8100, %v8568
        %v8570 = vpop.f32.mrb[0].mxu0
        %v8571 = vpop.f32.mrb[0].mxu0
        %v8572 = vpop.f32.mrb[0].mxu0
        %8573 = vdwg.mxu0
        %8574 = vmatprep.subr.bf16.mxu0 0
        %8575 = vmatpush1.bf16.msra.mxu0 %v8406
        %8576 = vmatprep.subr.bf16.mxu0 0
        %8577 = vmatpush1.bf16.msra.mxu0 %v8407
        %8578 = vmatprep.subr.bf16.mxu0 0
        %8579 = vmatpush1.bf16.msra.mxu0 %v8408
        %8580 = vmatprep.subr.bf16.mxu0 0
        %8581 = vmatpush1.bf16.msra.mxu0 %v8409
        %8582 = vmatprep.subr.bf16.mxu0 0
        %8583 = vmatpush1.bf16.msra.mxu0 %v8410
        %8584 = vmatprep.subr.bf16.mxu0 0
        %8585 = vmatpush1.bf16.msra.mxu0 %v8411
        %8586 = vmatprep.subr.bf16.mxu0 0
        %8587 = vmatpush1.bf16.msra.mxu0 %v8412
        %8588 = vmatprep.subr.bf16.mxu0 0
        %8589 = vmatpush1.bf16.msra.mxu0 %v8413
        %8590 = vmatprep.subr.bf16.mxu0 0
        %8591 = vmatpush1.bf16.msra.mxu0 %v8414
        %8592 = vmatprep.subr.bf16.mxu0 0
        %8593 = vmatpush1.bf16.msra.mxu0 %v8415
        %8594 = vmatprep.subr.bf16.mxu0 0
        %8595 = vmatpush1.bf16.msra.mxu0 %v8416
        %8596 = vmatprep.subr.bf16.mxu0 0
        %8597 = vmatpush1.bf16.msra.mxu0 %v8417
        %8598 = vmatprep.subr.bf16.mxu0 0
        %8599 = vmatpush1.bf16.msra.mxu0 %v8418
        %8600 = vmatprep.subr.bf16.mxu0 0
        %8601 = vmatpush1.bf16.msra.mxu0 %v8419
        %8602 = vmatprep.subr.bf16.mxu0 0
        %8603 = vmatpush1.bf16.msra.mxu0 %v8420
        %8604 = vmatprep.subr.bf16.mxu0 0
        %8605 = vmatpush1.bf16.msra.mxu0 %v8421
        %8606 = vmatprep.mubr.bf16.mxu0 %v7945
        %8607 = vmatmul.mubr.bf16.gmra.mrb[0].mxu0 %v7944
        %v8608 = vpop.f32.mrb[0].mxu0
        %v8609 = vadd.f32 %v8569, %v8608
        %v8610 = vpop.f32.mrb[0].mxu0
        %v8611 = vpop.f32.mrb[0].mxu0
        %v8612 = vpop.f32.mrb[0].mxu0
        %8613 = vdwg.mxu0
        %8614 = vmatprep.subr.bf16.mxu0 0
        %8615 = vmatpush1.bf16.msra.mxu0 %v8422
        %8616 = vmatprep.subr.bf16.mxu0 0
        %8617 = vmatpush1.bf16.msra.mxu0 %v8423
        %8618 = vmatprep.subr.bf16.mxu0 0
        %8619 = vmatpush1.bf16.msra.mxu0 %v8424
        %8620 = vmatprep.subr.bf16.mxu0 0
        %8621 = vmatpush1.bf16.msra.mxu0 %v8425
        %8622 = vmatprep.subr.bf16.mxu0 0
        %8623 = vmatpush1.bf16.msra.mxu0 %v8426
        %8624 = vmatprep.subr.bf16.mxu0 0
        %8625 = vmatpush1.bf16.msra.mxu0 %v8427
        %8626 = vmatprep.subr.bf16.mxu0 0
        %8627 = vmatpush1.bf16.msra.mxu0 %v8428
        %8628 = vmatprep.subr.bf16.mxu0 0
        %8629 = vmatpush1.bf16.msra.mxu0 %v8429
        %8630 = vmatprep.subr.bf16.mxu0 0
        %8631 = vmatpush1.bf16.msra.mxu0 %v8430
        %8632 = vmatprep.subr.bf16.mxu0 0
        %8633 = vmatpush1.bf16.msra.mxu0 %v8431
        %8634 = vmatprep.subr.bf16.mxu0 0
        %8635 = vmatpush1.bf16.msra.mxu0 %v8432
        %8636 = vmatprep.subr.bf16.mxu0 0
        %8637 = vmatpush1.bf16.msra.mxu0 %v8433
        %8638 = vmatprep.subr.bf16.mxu0 0
        %8639 = vmatpush1.bf16.msra.mxu0 %v8434
        %8640 = vmatprep.subr.bf16.mxu0 0
        %8641 = vmatpush1.bf16.msra.mxu0 %v8435
        %8642 = vmatprep.subr.bf16.mxu0 0
        %8643 = vmatpush1.bf16.msra.mxu0 %v8436
        %8644 = vmatprep.subr.bf16.mxu0 0
        %8645 = vmatpush1.bf16.msra.mxu0 %v8437
        %8646 = vmatprep.mubr.bf16.mxu0 %v7947
        %8647 = vmatmul.mubr.bf16.gmra.mrb[0].mxu0 %v7946
        %v8648 = vpop.f32.mrb[0].mxu0
        %v8649 = vadd.f32 %v8609, %v8648
        %v8650 = vpop.f32.mrb[0].mxu0
        %v8651 = vpop.f32.mrb[0].mxu0
        %v8652 = vpop.f32.mrb[0].mxu0
        %8653 = vdwg.mxu0
        %8654 = vmatprep.subr.bf16.mxu0 0
        %8655 = vmatpush1.bf16.msra.mxu0 %v8438
        %8656 = vmatprep.subr.bf16.mxu0 0
        %8657 = vmatpush1.bf16.msra.mxu0 %v8439
        %8658 = vmatprep.subr.bf16.mxu0 0
        %8659 = vmatpush1.bf16.msra.mxu0 %v8440
        %8660 = vmatprep.subr.bf16.mxu0 0
        %8661 = vmatpush1.bf16.msra.mxu0 %v8441
        %8662 = vmatprep.subr.bf16.mxu0 0
        %8663 = vmatpush1.bf16.msra.mxu0 %v8442
        %8664 = vmatprep.subr.bf16.mxu0 0
        %8665 = vmatpush1.bf16.msra.mxu0 %v8443
        %8666 = vmatprep.subr.bf16.mxu0 0
        %8667 = vmatpush1.bf16.msra.mxu0 %v8444
        %8668 = vmatprep.subr.bf16.mxu0 0
        %8669 = vmatpush1.bf16.msra.mxu0 %v8445
        %8670 = vmatprep.subr.bf16.mxu0 0
        %8671 = vmatpush1.bf16.msra.mxu0 %v8446
        %8672 = vmatprep.subr.bf16.mxu0 0
        %8673 = vmatpush1.bf16.msra.mxu0 %v8447
        %8674 = vmatprep.subr.bf16.mxu0 0
        %8675 = vmatpush1.bf16.msra.mxu0 %v8448
        %8676 = vmatprep.subr.bf16.mxu0 0
        %8677 = vmatpush1.bf16.msra.mxu0 %v8449
        %8678 = vmatprep.subr.bf16.mxu0 0
        %8679 = vmatpush1.bf16.msra.mxu0 %v8450
        %8680 = vmatprep.subr.bf16.mxu0 0
        %8681 = vmatpush1.bf16.msra.mxu0 %v8451
        %8682 = vmatprep.subr.bf16.mxu0 0
        %8683 = vmatpush1.bf16.msra.mxu0 %v8452
        %8684 = vmatprep.subr.bf16.mxu0 0
        %8685 = vmatpush1.bf16.msra.mxu0 %v8453
        %8686 = vmatprep.mubr.bf16.mxu0 %v7949
        %8687 = vmatmul.mubr.bf16.gmra.mrb[0].mxu0 %v7948
        %v8688 = vpop.f32.mrb[0].mxu0
        %v8689 = vadd.f32 %v8649, %v8688
        %v8690 = vpop.f32.mrb[0].mxu0
        %v8691 = vpop.f32.mrb[0].mxu0
        %v8692 = vpop.f32.mrb[0].mxu0
        %8693 = vdwg.mxu0
        %8694 = vmatprep.subr.bf16.mxu0 0
        %8695 = vmatpush1.bf16.msra.mxu0 %v8454
        %8696 = vmatprep.subr.bf16.mxu0 0
        %8697 = vmatpush1.bf16.msra.mxu0 %v8455
        %8698 = vmatprep.subr.bf16.mxu0 0
        %8699 = vmatpush1.bf16.msra.mxu0 %v8456
        %8700 = vmatprep.subr.bf16.mxu0 0
        %8701 = vmatpush1.bf16.msra.mxu0 %v8457
        %8702 = vmatprep.subr.bf16.mxu0 0
        %8703 = vmatpush1.bf16.msra.mxu0 %v8458
        %8704 = vmatprep.subr.bf16.mxu0 0
        %8705 = vmatpush1.bf16.msra.mxu0 %v8459
        %8706 = vmatprep.subr.bf16.mxu0 0
        %8707 = vmatpush1.bf16.msra.mxu0 %v8460
        %8708 = vmatprep.subr.bf16.mxu0 0
        %8709 = vmatpush1.bf16.msra.mxu0 %v8461
        %8710 = vmatprep.subr.bf16.mxu0 0
        %8711 = vmatpush1.bf16.msra.mxu0 0
        %8712 = vmatprep.subr.bf16.mxu0 0
        %8713 = vmatpush1.bf16.msra.mxu0 0
        %8714 = vmatprep.subr.bf16.mxu0 0
        %8715 = vmatpush1.bf16.msra.mxu0 0
        %8716 = vmatprep.subr.bf16.mxu0 0
        %8717 = vmatpush1.bf16.msra.mxu0 0
        %8718 = vmatprep.subr.bf16.mxu0 0
        %8719 = vmatpush1.bf16.msra.mxu0 0
        %8720 = vmatprep.subr.bf16.mxu0 0
        %8721 = vmatpush1.bf16.msra.mxu0 0
        %8722 = vmatprep.subr.bf16.mxu0 0
        %8723 = vmatpush1.bf16.msra.mxu0 0
        %8724 = vmatprep.subr.bf16.mxu0 0
        %8725 = vmatpush1.bf16.msra.mxu0 0
        %8726 = vmatprep.mubr.bf16.mxu0 0
        %8727 = vmatmul.mubr.bf16.gmra.mrb[0].mxu0 %v7950
        %v8728 = vpop.f32.mrb[0].mxu0
        %v8729 = vadd.f32 %v8689, %v8728
        %v8730 = vpop.f32.mrb[0].mxu0
        %v8731 = vpop.f32.mrb[0].mxu0
        %v8732 = vpop.f32.mrb[0].mxu0
        %8733 = vdwg.mxu0
        %v8734 = vmax.f32 %v8729, 0.0
        %v8735 = vpack.c.bf16 %v8734, %v8734
        %v8736 = vld [vmem:[%s10] sm:$0xf]
        %v8737 = vld [vmem:[%s10 + $0x4] sm:$0xf]
        %v8738 = vld [vmem:[%s10 + $0x8] sm:$0xf]
        %v8739 = vld [vmem:[%s10 + $0xc] sm:$0xf]
        %v8740 = vld [vmem:[%s10 + $0x10] sm:$0xf]
        %v8741 = vld [vmem:[%s10 + $0x14] sm:$0xf]
        %v8742 = vld [vmem:[%s10 + $0x18] sm:$0xf]
        %v8743 = vld [vmem:[%s10 + $0x1c] sm:$0xf]
        %v8744 = vld [vmem:[%s10 + $0x20] sm:$0xf]
        %v8745 = vld [vmem:[%s10 + $0x24] sm:$0xf]
        %v8746 = vld [vmem:[%s10 + $0x28] sm:$0xf]
        %v8747 = vld [vmem:[%s10 + $0x2c] sm:$0xf]
        %v8748 = vld [vmem:[%s10 + $0x30] sm:$0xf]
        %v8749 = vld [vmem:[%s10 + $0x34] sm:$0xf]
        %v8750 = vld [vmem:[%s10 + $0x38] sm:$0xf]
        %v8751 = vld [vmem:[%s11] sm:$0x1]
        %v8753 = vlaneseq
        %v8754 = vshrl.u32 %v8753, 7
        %v8755 = vsub.s32 0, %v8754
        %v8756 = vrot.slane %v8751, %v8755
        %v8773 = vunpack.c.l.b16 %v8736
        %v8774 = vunpack.c.l.b16 %v8737
        %v8775 = vunpack.c.l.b16 %v8738
        %v8776 = vunpack.c.l.b16 %v8739
        %v8777 = vunpack.c.l.b16 %v8740
        %v8778 = vunpack.c.l.b16 %v8741
        %v8779 = vunpack.c.l.b16 %v8742
        %v8780 = vunpack.c.l.b16 %v8743
        %v8781 = vunpack.c.l.b16 %v8744
        %v8782 = vunpack.c.l.b16 %v8745
        %v8783 = vunpack.c.l.b16 %v8746
        %v8784 = vunpack.c.l.b16 %v8747
        %v8785 = vunpack.c.l.b16 %v8748
        %v8786 = vunpack.c.l.b16 %v8749
        %v8787 = vunpack.c.l.b16 %v8750
        %v8788 = vpack.c.b16 %v8774, %v8773
        %v8789 = vpack.c.b16 %v8776, %v8775
        %v8790 = vpack.c.b16 %v8778, %v8777
        %v8791 = vpack.c.b16 %v8780, %v8779
        %v8792 = vpack.c.b16 %v8782, %v8781
        %v8793 = vpack.c.b16 %v8784, %v8783
        %v8794 = vpack.c.b16 %v8786, %v8785
        %v8795 = vpack.c.b16 %v8787, %v8787
        %vm8803 = vcmask 982016
        %v8805 = vsel %vm8803, %v8735, 0
        %v8808 = vsel %vm917, %v8795, 0
        %8810 = vmatprep.subr.bf16.mxu0 0
        %8811 = vmatpush1.bf16.msra.mxu0 %v8788
        %8812 = vmatprep.subr.bf16.mxu0 0
        %8813 = vmatpush1.bf16.msra.mxu0 %v8789
        %8814 = vmatprep.subr.bf16.mxu0 0
        %8815 = vmatpush1.bf16.msra.mxu0 %v8790
        %8816 = vmatprep.subr.bf16.mxu0 0
        %8817 = vmatpush1.bf16.msra.mxu0 %v8791
        %8818 = vmatprep.subr.bf16.mxu0 0
        %8819 = vmatpush1.bf16.msra.mxu0 %v8792
        %8820 = vmatprep.subr.bf16.mxu0 0
        %8821 = vmatpush1.bf16.msra.mxu0 %v8793
        %8822 = vmatprep.subr.bf16.mxu0 0
        %8823 = vmatpush1.bf16.msra.mxu0 %v8794
        %8824 = vmatprep.subr.bf16.mxu0 0
        %8825 = vmatpush1.bf16.msra.mxu0 %v8808
        %8826 = vmatprep.subr.bf16.mxu0 0
        %8827 = vmatpush1.bf16.msra.mxu0 0
        %8828 = vmatprep.subr.bf16.mxu0 0
        %8829 = vmatpush1.bf16.msra.mxu0 0
        %8830 = vmatprep.subr.bf16.mxu0 0
        %8831 = vmatpush1.bf16.msra.mxu0 0
        %8832 = vmatprep.subr.bf16.mxu0 0
        %8833 = vmatpush1.bf16.msra.mxu0 0
        %8834 = vmatprep.subr.bf16.mxu0 0
        %8835 = vmatpush1.bf16.msra.mxu0 0
        %8836 = vmatprep.subr.bf16.mxu0 0
        %8837 = vmatpush1.bf16.msra.mxu0 0
        %8838 = vmatprep.subr.bf16.mxu0 0
        %8839 = vmatpush1.bf16.msra.mxu0 0
        %8840 = vmatprep.subr.bf16.mxu0 0
        %8841 = vmatpush1.bf16.msra.mxu0 0
        %8842 = vmatprep.mubr.bf16.mxu0 0
        %8843 = vmatmul.mubr.bf16.gmra.mrb[0].mxu0 %v8805
        %v8844 = vpop.f32.mrb[0].mxu0
        %v8845 = vadd.f32 %v8756, %v8844
        %v8846 = vpop.f32.mrb[0].mxu0
        %v8847 = vpop.f32.mrb[0].mxu0
        %v8848 = vpop.f32.mrb[0].mxu0
        %8849 = vdwg.mxu0
        %v8850 = vmax.f32 %v8845, 0.0
        %v8851 = vpack.c.bf16 %v8850, %v8850
        %v8852 = vld [vmem:[%s12] sm:$0xf]
        %v8853 = vld [vmem:[%s12 + $0x4] sm:$0xf]
        %v8854 = vld [vmem:[%s12 + $0x8] sm:$0xf]
        %v8855 = vld [vmem:[%s12 + $0xc] sm:$0xf]
        %v8856 = vld [vmem:[%s12 + $0x10] sm:$0xf]
        %v8857 = vld [vmem:[%s12 + $0x14] sm:$0xf]
        %v8858 = vld [vmem:[%s12 + $0x18] sm:$0xf]
        %v8859 = vld [vmem:[%s12 + $0x1c] sm:$0xf]
        %v8860 = vld [vmem:[%s12 + $0x20] sm:$0xf]
        %v8861 = vld [vmem:[%s12 + $0x24] sm:$0xf]
        %v8862 = vld [vmem:[%s12 + $0x28] sm:$0xf]
        %v8863 = vld [vmem:[%s12 + $0x2c] sm:$0xf]
        %v8864 = vld [vmem:[%s12 + $0x30] sm:$0xf]
        %v8865 = vld [vmem:[%s12 + $0x34] sm:$0xf]
        %v8866 = vld [vmem:[%s12 + $0x38] sm:$0xf]
        %v8867 = vld [vmem:[%s13] sm:$0x1]
        %v8869 = vlaneseq
        %v8870 = vshrl.u32 %v8869, 7
        %v8871 = vsub.s32 0, %v8870
        %v8872 = vrot.slane %v8867, %v8871
        %v8889 = vunpack.c.l.b16 %v8852
        %v8890 = vunpack.c.l.b16 %v8853
        %v8891 = vunpack.c.l.b16 %v8854
        %v8892 = vunpack.c.l.b16 %v8855
        %v8893 = vunpack.c.l.b16 %v8856
        %v8894 = vunpack.c.l.b16 %v8857
        %v8895 = vunpack.c.l.b16 %v8858
        %v8896 = vunpack.c.l.b16 %v8859
        %v8897 = vunpack.c.l.b16 %v8860
        %v8898 = vunpack.c.l.b16 %v8861
        %v8899 = vunpack.c.l.b16 %v8862
        %v8900 = vunpack.c.l.b16 %v8863
        %v8901 = vunpack.c.l.b16 %v8864
        %v8902 = vunpack.c.l.b16 %v8865
        %v8903 = vunpack.c.l.b16 %v8866
        %v8904 = vpack.c.b16 %v8890, %v8889
        %v8905 = vpack.c.b16 %v8892, %v8891
        %v8906 = vpack.c.b16 %v8894, %v8893
        %v8907 = vpack.c.b16 %v8896, %v8895
        %v8908 = vpack.c.b16 %v8898, %v8897
        %v8909 = vpack.c.b16 %v8900, %v8899
        %v8910 = vpack.c.b16 %v8902, %v8901
        %v8911 = vpack.c.b16 %v8903, %v8903
        %v8920 = vsel %vm8803, %v8851, 0
        %v8923 = vsel %vm917, %v8911, 0
        %8925 = vmatprep.subr.bf16.mxu0 0
        %8926 = vmatpush1.bf16.msra.mxu0 %v8904
        %8927 = vmatprep.subr.bf16.mxu0 0
        %8928 = vmatpush1.bf16.msra.mxu0 %v8905
        %8929 = vmatprep.subr.bf16.mxu0 0
        %8930 = vmatpush1.bf16.msra.mxu0 %v8906
        %8931 = vmatprep.subr.bf16.mxu0 0
        %8932 = vmatpush1.bf16.msra.mxu0 %v8907
        %8933 = vmatprep.subr.bf16.mxu0 0
        %8934 = vmatpush1.bf16.msra.mxu0 %v8908
        %8935 = vmatprep.subr.bf16.mxu0 0
        %8936 = vmatpush1.bf16.msra.mxu0 %v8909
        %8937 = vmatprep.subr.bf16.mxu0 0
        %8938 = vmatpush1.bf16.msra.mxu0 %v8910
        %8939 = vmatprep.subr.bf16.mxu0 0
        %8940 = vmatpush1.bf16.msra.mxu0 %v8923
        %8941 = vmatprep.subr.bf16.mxu0 0
        %8942 = vmatpush1.bf16.msra.mxu0 0
        %8943 = vmatprep.subr.bf16.mxu0 0
        %8944 = vmatpush1.bf16.msra.mxu0 0
        %8945 = vmatprep.subr.bf16.mxu0 0
        %8946 = vmatpush1.bf16.msra.mxu0 0
        %8947 = vmatprep.subr.bf16.mxu0 0
        %8948 = vmatpush1.bf16.msra.mxu0 0
        %8949 = vmatprep.subr.bf16.mxu0 0
        %8950 = vmatpush1.bf16.msra.mxu0 0
        %8951 = vmatprep.subr.bf16.mxu0 0
        %8952 = vmatpush1.bf16.msra.mxu0 0
        %8953 = vmatprep.subr.bf16.mxu0 0
        %8954 = vmatpush1.bf16.msra.mxu0 0
        %8955 = vmatprep.subr.bf16.mxu0 0
        %8956 = vmatpush1.bf16.msra.mxu0 0
        %8957 = vmatprep.mubr.bf16.mxu0 0
        %8958 = vmatmul.mubr.bf16.gmra.mrb[0].mxu0 %v8920
        %v8959 = vpop.f32.mrb[0].mxu0
        %v8960 = vadd.f32 %v8872, %v8959
        %v8961 = vpop.f32.mrb[0].mxu0
        %v8962 = vpop.f32.mrb[0].mxu0
        %v8963 = vpop.f32.mrb[0].mxu0
        %8964 = vdwg.mxu0
        %8965 = vst [vmem:[%s460] sm:$0xff] %v8960
        %s8966 = sand.u32 %s335, 1
        %s8967 = scalar_lea.sflag [#allocation5], %s8966
        %s8968 = sand.u32 %s335, 1
        %s8969 = smul.addr %s8968, 8
        %s8970 = scalar_lea.vmem [#allocation4], %s8969
        // Predicated region
        $region77: #{simple_mnist_net.1} parent=75 // pred_check
          %p8971 = pneg %p345
        $region78: #{simple_mnist_net.1} parent=75 // pred_check_branch
          %8973 = sbr.rel (%p8971) target = $region80
        $region79: #{simple_mnist_net.1} parent=75 // pred_region
          %s8975 = ssub.s32 128, 128
          %8976 = vsyncadd %s8967, %s8975
          %s8977 = smul.addr %s28, 128
          %s8978 = scalar_lea.hbm %s14, %s8977
          %s8980 = sshll.u32 %s8970, 4
          %s8981 = int_to_ptr.vmem [resolvable:$true] %s8980
          %8983 = dma.vmem_to_hbm [thread:$0]  %s8981, 128, %s8978, %s8967
        $region80: #{simple_mnist_net.1} parent=75 // pred_fallthru
          _
      $region76: #{simple_mnist_net.1} parent=5 // pred_fallthru
        _
      %p8984 = scmp.le.s32.totalorder 2, %s23
      // Predicated region
      $region81: #{simple_mnist_net.1} parent=5 // pred_check
        %p8985 = pneg %p8984
      $region82: #{simple_mnist_net.1} parent=5 // pred_check_branch
        %8987 = sbr.rel (%p8985) target = $region84
      $region83: #{simple_mnist_net.1} parent=5 // pred_region
        %s8988 = ssub.s32 %s23, 2
        // Predicated region
        $region85: #{simple_mnist_net.1} parent=83 // pred_check
          %p8989 = pneg %p351
        $region86: #{simple_mnist_net.1} parent=83 // pred_check_branch
          %8991 = sbr.rel (%p8989) target = $region88
        $region87: #{simple_mnist_net.1} parent=83 // pred_region
          %s8992 = sand.u32 %s336, 1
          %s8993 = scalar_lea.sflag [#allocation5], %s8992
          %s8994 = sand.u32 %s336, 1
          %s8995 = smul.addr %s8994, 8
          %s8996 = scalar_lea.vmem [#allocation4], %s8995
          %8997 = dma.done %s8993, 128
        $region88: #{simple_mnist_net.1} parent=83 // pred_fallthru
          _
      $region84: #{simple_mnist_net.1} parent=5 // pred_fallthru
        _
    $region6: #{simple_mnist_net.1} parent=1 // loop_footer
      %s27 = sadd.s32 1, %s23
    $region7: #{simple_mnist_net.1} parent=1 // loop_footer_branch
      %22 = sbr.rel target = $region3
    $region8: #{simple_mnist_net.1} parent=1 // loop_exit
      _
    %8998 = vsyncpa [#allocation5], 1
    %s8999 = scalar_lea.sflag [#allocation5], 1
    %9000 = vsyncpa %s8999, 1

</llo_original>
